<compile_context>
chip_gen: v7x
topology: tpu7x:2x2x1
jax: 0.10.0
libtpu: 0.0.40
codegen_flags: <defaults>
</compile_context>

<pallas_src>
import numpy as np
import jax
import jax.numpy as jnp
from jax.experimental import pallas as pl
from jax.experimental.pallas import tpu as pltpu

NPOSE = 144                      # 24 joints * 6 (continuous rotation rep)
X0_DIM = NPOSE + 10 + 3          # pose + shape + cam = 157
CPAD = 128                       # every conv channel dim lane-padded to 128


# -----------------------------------------------------------------------------
# Fused forward: conv stack + BN(eval) + ReLU + stride2/avg-pool + 3 IEF iters
# -----------------------------------------------------------------------------
def smpl_head_forward(x_nchw, params, batch_block=None):
    B, Cin, H, W = x_nchw.shape
    assert Cin <= CPAD
    BB = B if batch_block is None else batch_block      # samples per grid step
    assert B % BB == 0
    nblk = B // BB

    Hp, Wp = H + 2, W + 2
    NROW = BB * Hp * Wp                  # flattened zero-padded rows per grid step
    L = NROW - 2 * Wp                    # rows of the shared im2col / conv-output matrix
    RBUF = NROW + 8                      # tail slack: max tap offset (2*Wp+2) + L <= NROW+2 <= RBUF

    # stride-2 conv output extent; the fused pooling assumes it collapses to 1x1
    Ho2, Wo2 = (H - 1) // 2 + 1, (W - 1) // 2 + 1
    assert (Ho2 - H // 2 + 1 == 1) and (Wo2 - W // 2 + 1 == 1), \
        "stride-2-conv + avg-pool fusion requires a 1x1 pooled map (pool k == in_size//2)"

    cw = params['conv_w']                                # 4 x (9*CPAD, CPAD) bf16
    assert len(cw) == 4
    hidden = params['w2_t'].shape[0]

    # ---- wrapper-side prep (tiny, one-time): NCHW -> flattened padded NHWC bf16 ----
    x = jnp.transpose(x_nchw, (0, 2, 3, 1))                       # (B, H, W, Cin)
    x = jnp.pad(x, ((0, 0), (1, 1), (1, 1), (0, CPAD - Cin)))     # spatial halo + lane pad
    x = x.reshape(nblk, NROW, CPAD)
    x = jnp.pad(x, ((0, 0), (0, RBUF - NROW), (0, 0))).astype(jnp.bfloat16)

    # valid-row mask for the shifted-slice im2col: zeroes output rows that fall on a
    # padding column / inter-sample gap so block-stores keep the halo ring at zero.
    rr = np.arange(L)
    rem = rr % (Hp * Wp)
    mask_np = (((rem // Wp) < H) & ((rem % Wp) < W)).astype(np.float32)[:, None]   # (L, 1)

    # stride-2 conv + global average pool as a single (BB, L) selection/average matrix
    pool_np = np.zeros((BB, L), np.float32)
    inv = 1.0 / float(Ho2 * Wo2)
    for b in range(BB):
        for i in range(Ho2):
            for j in range(Wo2):
                pool_np[b, b * Hp * Wp + (2 * i) * Wp + (2 * j)] = inv

    x0_full = jnp.broadcast_to(params['init_x0'][None, :], (BB, X0_DIM))

    def kernel(x_ref,                                   # (1, RBUF, CPAD) bf16 flattened padded input
               w0_ref, w1_ref, w2_ref, w3_ref,          # (9*CPAD, CPAD) bf16 im2col conv weights
               scales_ref, shifts_ref,                  # (4, 1, CPAD) f32 folded BN
               mask_ref,                                # (L, 1) f32 valid-row mask
               pool_ref,                                # (BB, L) f32 stride-2 + avg-pool matrix
               x0_ref,                                  # (BB, X0_DIM) f32 shared init params
               w1f_ref, w1p_ref, b1_ref,                # fc1 split: xf part / param part
               w2fc_ref, b2_ref, wd_ref, bd_ref,        # fc2 / dec
               out_ref,                                 # (1, BB, X0_DIM)
               act_b, act_c, col_ref):                  # VMEM scratch
        head = Wp + 1
        tail = RBUF - head - L
        # Zero only the rows the per-layer interior store never touches; the interior
        # [head, head+L) is fully rewritten (masked) by every layer, every step.
        for buf in (act_b, act_c):
            buf[pl.ds(0, head), :] = jnp.zeros((head, CPAD), buf.dtype)
            buf[pl.ds(head + L, tail), :] = jnp.zeros((tail, CPAD), buf.dtype)

        mask = mask_ref[...]                            # (L, 1), broadcast over lanes

        def conv_layer(read_rows, wmat_ref, layer):
            # Layer-wide shifted-slice im2col: 9 lane-aligned (L, CPAD) copies into the
            # shared col scratch, then ONE (L, 9*CPAD) x (9*CPAD, CPAD) bf16 MXU matmul.
            for kh in range(3):
                for kw in range(3):
                    tap = kh * 3 + kw
                    col_ref[:, tap * CPAD:(tap + 1) * CPAD] = read_rows(kh * Wp + kw)
            y = jnp.dot(col_ref[...], wmat_ref[...],
                        preferred_element_type=jnp.float32)        # (L, CPAD) f32
            # folded BN + ReLU in f32 (padded channels stay exactly 0)
            return jnp.maximum(y * scales_ref[layer] + shifts_ref[layer], 0.0)

        # ---- layers 0..2: stride 1; one lane-dense block store per layer at a uniform
        #      +Wp+1 row shift; masked garbage rows land exactly on the padding ring. ----
        y = conv_layer(lambda off: x_ref[0, pl.ds(off, L), :], w0_ref, 0)
        act_b[pl.ds(head, L), :] = (y * mask).astype(act_b.dtype)
        y = conv_layer(lambda off: act_b[pl.ds(off, L), :], w1_ref, 1)
        act_c[pl.ds(head, L), :] = (y * mask).astype(act_c.dtype)
        y = conv_layer(lambda off: act_c[pl.ds(off, L), :], w2_ref, 2)
        act_b[pl.ds(head, L), :] = (y * mask).astype(act_b.dtype)

        # ---- layer 3 (stride 2) fused with global AvgPool: compute the stride-1 map
        #      once, then one small dot with the pooling matrix selects/averages the
        #      even (oh, ow) positions per sample.  Its feature map is never stored. ----
        y = conv_layer(lambda off: act_b[pl.ds(off, L), :], w3_ref, 3)
        xf = jnp.dot(pool_ref[...], y, preferred_element_type=jnp.float32)   # (BB, CPAD)

        # ---- IEF: 3 regression iterations, all f32, dropout == identity (eval) ----
        w1p = w1p_ref[...]
        w2fc = w2fc_ref[...]
        wd = wd_ref[...]
        b1 = b1_ref[...]
        b2 = b2_ref[...]
        bd = bd_ref[...]
        # xf is constant across iterations -> its fc1 contribution is computed once
        xfw = jnp.dot(xf, w1f_ref[...], preferred_element_type=jnp.float32)
        xcur = x0_ref[...]                              # (BB, 157)
        for _ in range(3):
            h1 = jnp.maximum(
                xfw + jnp.dot(xcur, w1p, preferred_element_type=jnp.float32) + b1, 0.0)
            h2 = jnp.maximum(
                jnp.dot(h1, w2fc, preferred_element_type=jnp.float32) + b2, 0.0)
            xcur = xcur + jnp.dot(h2, wd, preferred_element_type=jnp.float32) + bd
        out_ref[0] = xcur.astype(out_ref.dtype)

    def const(shape):
        return pl.BlockSpec(shape, lambda b, _s=shape: tuple(0 for _ in _s))

    in_specs = [pl.BlockSpec((1, RBUF, CPAD), lambda b: (b, 0, 0))]
    in_specs += [const(w.shape) for w in cw]
    in_specs += [
        const((4, 1, CPAD)), const((4, 1, CPAD)),       # scales, shifts
        const((L, 1)), const((BB, L)), const((BB, X0_DIM)),
        const((CPAD, hidden)), const((X0_DIM, hidden)), const((1, hidden)),
        const((hidden, hidden)), const((1, hidden)),
        const((hidden, X0_DIM)), const((1, X0_DIM)),
    ]

    out = pl.pallas_call(
        kernel,
        out_shape=jax.ShapeDtypeStruct((nblk, BB, X0_DIM), jnp.float32),
        grid=(nblk,),
        in_specs=in_specs,
        out_specs=pl.BlockSpec((1, BB, X0_DIM), lambda b: (b, 0, 0)),
        scratch_shapes=[
            pltpu.VMEM((RBUF, CPAD), jnp.bfloat16),     # ping activation buffer
            pltpu.VMEM((RBUF, CPAD), jnp.bfloat16),     # pong activation buffer
            pltpu.VMEM((L, 9 * CPAD), jnp.bfloat16),    # shared layer-wide im2col
        ],
        compiler_params=pltpu.CompilerParams(dimension_semantics=("parallel",)),
    )(x, *cw, params['scales'], params['shifts'],
      jnp.asarray(mask_np), jnp.asarray(pool_np), x0_full,
      params['w1f_t'], params['w1p_t'], params['b1'],
      params['w2_t'], params['b2'], params['wd_t'], params['bd'])

    x3 = out.reshape(B, X0_DIM)
    pred_pose6d = x3[:, :NPOSE]
    pred_betas = x3[:, NPOSE:NPOSE + 10]
    pred_camera = x3[:, NPOSE + 10:]
    pred_rotmat = rot6d_to_rotmat(pred_pose6d).reshape(B, 24, 3, 3)

    # TODO(synk): SMPL body-model forward (pred_vertices / pred_joints) needs the
    # external 'data/smpl' model files; not reproducible in-script.
    return {'pred_rotmat': pred_rotmat,
            'pred_betas': pred_betas,
            'pred_camera': pred_camera}


# -----------------------------------------------------------------------------
# Glue math (wrapper-side, tiny)
# -----------------------------------------------------------------------------
def rot6d_to_rotmat(x):
    """x: (B, 144) -> (B*24, 3, 3), SPIN convention."""
    x = x.reshape(-1, 3, 2)
    a1 = x[:, :, 0]
    a2 = x[:, :, 1]
    b1 = a1 / jnp.maximum(jnp.linalg.norm(a1, axis=1, keepdims=True), 1e-12)
    proj = jnp.sum(b1 * a2, axis=1, keepdims=True)
    u2 = a2 - proj * b1
    b2 = u2 / jnp.maximum(jnp.linalg.norm(u2, axis=1, keepdims=True), 1e-12)
    b3 = jnp.cross(b1, b2)
    return jnp.stack([b1, b2, b3], axis=-1)


def rodrigues_np(rvec):
    """(N, 3) axis-angle -> (N, 3, 3) rotation matrices (numpy, init-time only)."""
    theta = np.maximum(np.linalg.norm(rvec, axis=1, keepdims=True), 1e-8)
    k = rvec / theta
    kx, ky, kz = k[:, 0], k[:, 1], k[:, 2]
    z = np.zeros_like(kx)
    K = np.stack([z, -kz, ky, kz, z, -kx, -ky, kx, z], axis=1).reshape(-1, 3, 3)
    st = np.sin(theta)[:, :, None]
    ct = np.cos(theta)[:, :, None]
    return (np.eye(3)[None] + st * K + (1.0 - ct) * (K @ K)).astype(np.float32)


# -----------------------------------------------------------------------------
# Parameter construction (deterministic synthetic weights; init_weights semantics)
# -----------------------------------------------------------------------------
def init_params(key, in_channels, conv_out, hidden, num_convs=4):
    eps = 1e-5
    keys = jax.random.split(key, num_convs + 3)

    conv_w, scales, shifts = [], [], []
    for i in range(num_convs):
        cin = in_channels if i == 0 else conv_out
        fan_out = 3 * 3 * conv_out
        std = float(np.sqrt(2.0 / fan_out))                      # kaiming (fan_out, relu)
        w = np.asarray(std * jax.random.normal(keys[i], (3, 3, cin, conv_out), jnp.float32))
        wpad = np.zeros((3, 3, CPAD, CPAD), np.float32)          # lane-pad cin/cout -> 128
        wpad[:, :, :cin, :conv_out] = w
        # (3,3,128,128) -> (9*128, 128); row index (kh*3+kw)*128 + c matches the
        # in-kernel im2col layout (tap-major, 128-wide lane-aligned slots). bf16 for MXU.
        conv_w.append(jnp.asarray(wpad.reshape(9 * CPAD, CPAD), dtype=jnp.bfloat16))

        gamma = np.ones(conv_out, np.float32)                    # BN weight = 1
        beta = np.zeros(conv_out, np.float32)                    # BN bias   = 0
        mean = np.zeros(conv_out, np.float32)
        var = np.ones(conv_out, np.float32)
        bias = np.zeros(conv_out, np.float32)                    # kaiming_init conv bias = 0
        scale = gamma / np.sqrt(var + eps)
        shift = scale * (bias - mean) + beta
        sc = np.ones(CPAD, np.float32)
        sh = np.zeros(CPAD, np.float32)                          # padded channels stay 0 after ReLU
        sc[:conv_out] = scale
        sh[:conv_out] = shift
        scales.append(sc)
        shifts.append(sh)

    def xavier(k, out_f, in_f, gain=1.0):
        a = gain * float(np.sqrt(6.0 / (in_f + out_f)))
        return np.asarray(jax.random.uniform(k, (out_f, in_f), jnp.float32, minval=-a, maxval=a))

    fc1_in = conv_out + X0_DIM
    w1 = xavier(keys[-3], hidden, fc1_in)
    w2 = xavier(keys[-2], hidden, hidden)
    wd = xavier(keys[-1], X0_DIM, hidden, gain=0.1)

    w1f_t = np.zeros((CPAD, hidden), np.float32)                 # xf part, rows lane-padded
    w1f_t[:conv_out] = w1[:, :conv_out].T

    # TODO(synk): the neutral_smpl_mean_params.h5 file is unavailable; mean pose/shape = 0,
    # global orient = [pi, 0, 0], cam = [0.9, 0, 0] (same construction, synthetic values).
    init_pose = np.zeros((24, 3), np.float32)
    init_pose[0] = np.array([np.pi, 0.0, 0.0], np.float32)
    rotmats = rodrigues_np(init_pose)                            # (24, 3, 3)
    init_contrep = rotmats[:, :, ::2].reshape(-1)                # matches [:, :, ::2] in source
    init_x0 = np.concatenate([init_contrep, np.zeros(10, np.float32),
                              np.array([0.9, 0.0, 0.0], np.float32)])   # (157,)

    return {
        'conv_w': conv_w,                                        # 4 x (9*128, 128) bf16
        'scales': jnp.asarray(np.stack(scales)[:, None, :]),     # (4, 1, 128) f32
        'shifts': jnp.asarray(np.stack(shifts)[:, None, :]),     # (4, 1, 128) f32
        'w1f_t': jnp.asarray(w1f_t),                             # (128, hidden)
        'w1p_t': jnp.asarray(w1[:, conv_out:].T),                # (157, hidden)
        'b1': jnp.zeros((1, hidden), jnp.float32),
        'w2_t': jnp.asarray(w2.T),                               # (hidden, hidden)
        'b2': jnp.zeros((1, hidden), jnp.float32),
        'wd_t': jnp.asarray(wd.T),                               # (hidden, 157)
        'bd': jnp.zeros((1, X0_DIM), jnp.float32),
        'init_x0': jnp.asarray(init_x0, dtype=jnp.float32),      # (157,)
    }


if __name__ == "__main__":
    # spatial 6 -> stride-2 conv gives 3x3 -> AvgPool2d(in_size // 2 = 3) gives 1x1,
    # so the pooled feature width equals conv_out (required by fc1's input width).
    B, IN_C, S = 2, 16, 6
    CONV_OUT = 32
    HIDDEN = 64

    key = jax.random.PRNGKey(0)
    kx, kp = jax.random.split(key)
    x = jax.random.normal(kx, (B, IN_C, S, S), jnp.float32)      # NCHW like PyTorch
    params = init_params(kp, IN_C, CONV_OUT, HIDDEN)

    out = jax.jit(smpl_head_forward)(x, params)
    jax.block_until_ready(out)

    assert out['pred_rotmat'].shape == (B, 24, 3, 3)
    assert out['pred_betas'].shape == (B, 10)
    assert out['pred_camera'].shape == (B, 3)
    print("KERNEL_OK")
</pallas_src>

<mosaic_0001>
module attributes {stable_mosaic.version = 11 : i64} {
  func.func @kernel(%arg0: i32, %arg1: memref<1x136x128xbf16, #tpu.memory_space<vmem>>, %arg2: memref<1152x128xbf16, #tpu.memory_space<vmem>>, %arg3: memref<1152x128xbf16, #tpu.memory_space<vmem>>, %arg4: memref<1152x128xbf16, #tpu.memory_space<vmem>>, %arg5: memref<1152x128xbf16, #tpu.memory_space<vmem>>, %arg6: memref<4x1x128xf32, #tpu.memory_space<vmem>>, %arg7: memref<4x1x128xf32, #tpu.memory_space<vmem>>, %arg8: memref<112x1xf32, #tpu.memory_space<vmem>>, %arg9: memref<2x112xf32, #tpu.memory_space<vmem>>, %arg10: memref<2x157xf32, #tpu.memory_space<vmem>>, %arg11: memref<128x64xf32, #tpu.memory_space<vmem>>, %arg12: memref<157x64xf32, #tpu.memory_space<vmem>>, %arg13: memref<1x64xf32, #tpu.memory_space<vmem>>, %arg14: memref<64x64xf32, #tpu.memory_space<vmem>>, %arg15: memref<1x64xf32, #tpu.memory_space<vmem>>, %arg16: memref<64x157xf32, #tpu.memory_space<vmem>>, %arg17: memref<1x157xf32, #tpu.memory_space<vmem>>, %arg18: memref<1x2x157xf32, #tpu.memory_space<vmem>>, %arg19: memref<136x128xbf16, #tpu.memory_space<vmem>>, %arg20: memref<136x128xbf16, #tpu.memory_space<vmem>>, %arg21: memref<112x1152xbf16, #tpu.memory_space<vmem>>) attributes {dimension_semantics = [#tpu.dimension_semantics<parallel>], iteration_bounds = array<i64: 1>, scalar_prefetch = 0 : i64, scratch_operands = 3 : i64, tpu.core_type = #tpu.core_type<tc>, window_params = [{transform_indices = @transform_0, window_bounds = array<i64: 1, 136, 128>}, {pipeline_mode = #tpu.pipeline_mode<synchronous>, transform_indices = @transform_1, window_bounds = array<i64: 1152, 128>}, {pipeline_mode = #tpu.pipeline_mode<synchronous>, transform_indices = @transform_2, window_bounds = array<i64: 1152, 128>}, {pipeline_mode = #tpu.pipeline_mode<synchronous>, transform_indices = @transform_3, window_bounds = array<i64: 1152, 128>}, {pipeline_mode = #tpu.pipeline_mode<synchronous>, transform_indices = @transform_4, window_bounds = array<i64: 1152, 128>}, {pipeline_mode = #tpu.pipeline_mode<synchronous>, transform_indices = @transform_5, window_bounds = array<i64: 4, 1, 128>}, {pipeline_mode = #tpu.pipeline_mode<synchronous>, transform_indices = @transform_6, window_bounds = array<i64: 4, 1, 128>}, {pipeline_mode = #tpu.pipeline_mode<synchronous>, transform_indices = @transform_7, window_bounds = array<i64: 112, 1>}, {pipeline_mode = #tpu.pipeline_mode<synchronous>, transform_indices = @transform_8, window_bounds = array<i64: 2, 112>}, {pipeline_mode = #tpu.pipeline_mode<synchronous>, transform_indices = @transform_9, window_bounds = array<i64: 2, 157>}, {pipeline_mode = #tpu.pipeline_mode<synchronous>, transform_indices = @transform_10, window_bounds = array<i64: 128, 64>}, {pipeline_mode = #tpu.pipeline_mode<synchronous>, transform_indices = @transform_11, window_bounds = array<i64: 157, 64>}, {pipeline_mode = #tpu.pipeline_mode<synchronous>, transform_indices = @transform_12, window_bounds = array<i64: 1, 64>}, {pipeline_mode = #tpu.pipeline_mode<synchronous>, transform_indices = @transform_13, window_bounds = array<i64: 64, 64>}, {pipeline_mode = #tpu.pipeline_mode<synchronous>, transform_indices = @transform_14, window_bounds = array<i64: 1, 64>}, {pipeline_mode = #tpu.pipeline_mode<synchronous>, transform_indices = @transform_15, window_bounds = array<i64: 64, 157>}, {pipeline_mode = #tpu.pipeline_mode<synchronous>, transform_indices = @transform_16, window_bounds = array<i64: 1, 157>}, {transform_indices = @transform_17, window_bounds = array<i64: 1, 2, 157>}]} {
    %cst = arith.constant 0.000000e+00 : bf16
    %0 = vector.broadcast %cst : bf16 to vector<9x128xbf16>
    %c0 = arith.constant 0 : index
    %c0_0 = arith.constant 0 : index
    %1 = vector.load %arg19[%c0, %c0_0] : memref<136x128xbf16, #tpu.memory_space<vmem>>, vector<9x128xbf16>
    tpu.vector_store %arg19[%c0, %c0_0], %0 {strides = array<i32>} : memref<136x128xbf16, #tpu.memory_space<vmem>>, vector<9x128xbf16>,
    %cst_1 = arith.constant 0.000000e+00 : bf16
    %2 = vector.broadcast %cst_1 : bf16 to vector<15x128xbf16>
    %c121 = arith.constant 121 : index
    %c0_2 = arith.constant 0 : index
    %3 = vector.load %arg19[%c121, %c0_2] : memref<136x128xbf16, #tpu.memory_space<vmem>>, vector<15x128xbf16>
    tpu.vector_store %arg19[%c121, %c0_2], %2 {strides = array<i32>} : memref<136x128xbf16, #tpu.memory_space<vmem>>, vector<15x128xbf16>,
    %cst_3 = arith.constant 0.000000e+00 : bf16
    %4 = vector.broadcast %cst_3 : bf16 to vector<9x128xbf16>
    %c0_4 = arith.constant 0 : index
    %c0_5 = arith.constant 0 : index
    %5 = vector.load %arg20[%c0_4, %c0_5] : memref<136x128xbf16, #tpu.memory_space<vmem>>, vector<9x128xbf16>
    tpu.vector_store %arg20[%c0_4, %c0_5], %4 {strides = array<i32>} : memref<136x128xbf16, #tpu.memory_space<vmem>>, vector<9x128xbf16>,
    %cst_6 = arith.constant 0.000000e+00 : bf16
    %6 = vector.broadcast %cst_6 : bf16 to vector<15x128xbf16>
    %c121_7 = arith.constant 121 : index
    %c0_8 = arith.constant 0 : index
    %7 = vector.load %arg20[%c121_7, %c0_8] : memref<136x128xbf16, #tpu.memory_space<vmem>>, vector<15x128xbf16>
    tpu.vector_store %arg20[%c121_7, %c0_8], %6 {strides = array<i32>} : memref<136x128xbf16, #tpu.memory_space<vmem>>, vector<15x128xbf16>,
    %c0_9 = arith.constant 0 : index
    %c0_10 = arith.constant 0 : index
    %8 = vector.load %arg8[%c0_9, %c0_10] : memref<112x1xf32, #tpu.memory_space<vmem>>, vector<112x1xf32>
    %c0_11 = arith.constant 0 : index
    %c0_12 = arith.constant 0 : index
    %c0_13 = arith.constant 0 : index
    %9 = vector.load %arg1[%c0_11, %c0_12, %c0_13] : memref<1x136x128xbf16, #tpu.memory_space<vmem>>, vector<1x112x128xbf16>
    %10 = vector.shape_cast %9 : vector<1x112x128xbf16> to vector<112x128xbf16>
    %c0_14 = arith.constant 0 : index
    %c0_15 = arith.constant 0 : index
    %11 = vector.load %arg21[%c0_14, %c0_15] : memref<112x1152xbf16, #tpu.memory_space<vmem>>, vector<112x128xbf16>
    tpu.vector_store %arg21[%c0_14, %c0_15], %10 {strides = array<i32>} : memref<112x1152xbf16, #tpu.memory_space<vmem>>, vector<112x128xbf16>,
    %c0_16 = arith.constant 0 : index
    %c1 = arith.constant 1 : index
    %c0_17 = arith.constant 0 : index
    %12 = vector.load %arg1[%c0_16, %c1, %c0_17] : memref<1x136x128xbf16, #tpu.memory_space<vmem>>, vector<1x112x128xbf16>
    %13 = vector.shape_cast %12 : vector<1x112x128xbf16> to vector<112x128xbf16>
    %c0_18 = arith.constant 0 : index
    %c128 = arith.constant 128 : index
    %14 = vector.load %arg21[%c0_18, %c128] : memref<112x1152xbf16, #tpu.memory_space<vmem>>, vector<112x128xbf16>
    tpu.vector_store %arg21[%c0_18, %c128], %13 {strides = array<i32>} : memref<112x1152xbf16, #tpu.memory_space<vmem>>, vector<112x128xbf16>,
    %c0_19 = arith.constant 0 : index
    %c2 = arith.constant 2 : index
    %c0_20 = arith.constant 0 : index
    %15 = vector.load %arg1[%c0_19, %c2, %c0_20] : memref<1x136x128xbf16, #tpu.memory_space<vmem>>, vector<1x112x128xbf16>
    %16 = vector.shape_cast %15 : vector<1x112x128xbf16> to vector<112x128xbf16>
    %c0_21 = arith.constant 0 : index
    %c256 = arith.constant 256 : index
    %17 = vector.load %arg21[%c0_21, %c256] : memref<112x1152xbf16, #tpu.memory_space<vmem>>, vector<112x128xbf16>
    tpu.vector_store %arg21[%c0_21, %c256], %16 {strides = array<i32>} : memref<112x1152xbf16, #tpu.memory_space<vmem>>, vector<112x128xbf16>,
    %c0_22 = arith.constant 0 : index
    %c8 = arith.constant 8 : index
    %c0_23 = arith.constant 0 : index
    %18 = vector.load %arg1[%c0_22, %c8, %c0_23] : memref<1x136x128xbf16, #tpu.memory_space<vmem>>, vector<1x112x128xbf16>
    %19 = vector.shape_cast %18 : vector<1x112x128xbf16> to vector<112x128xbf16>
    %c0_24 = arith.constant 0 : index
    %c384 = arith.constant 384 : index
    %20 = vector.load %arg21[%c0_24, %c384] : memref<112x1152xbf16, #tpu.memory_space<vmem>>, vector<112x128xbf16>
    tpu.vector_store %arg21[%c0_24, %c384], %19 {strides = array<i32>} : memref<112x1152xbf16, #tpu.memory_space<vmem>>, vector<112x128xbf16>,
    %c0_25 = arith.constant 0 : index
    %c9 = arith.constant 9 : index
    %c0_26 = arith.constant 0 : index
    %21 = vector.load %arg1[%c0_25, %c9, %c0_26] : memref<1x136x128xbf16, #tpu.memory_space<vmem>>, vector<1x112x128xbf16>
    %22 = vector.shape_cast %21 : vector<1x112x128xbf16> to vector<112x128xbf16>
    %c0_27 = arith.constant 0 : index
    %c512 = arith.constant 512 : index
    %23 = vector.load %arg21[%c0_27, %c512] : memref<112x1152xbf16, #tpu.memory_space<vmem>>, vector<112x128xbf16>
    tpu.vector_store %arg21[%c0_27, %c512], %22 {strides = array<i32>} : memref<112x1152xbf16, #tpu.memory_space<vmem>>, vector<112x128xbf16>,
    %c0_28 = arith.constant 0 : index
    %c10 = arith.constant 10 : index
    %c0_29 = arith.constant 0 : index
    %24 = vector.load %arg1[%c0_28, %c10, %c0_29] : memref<1x136x128xbf16, #tpu.memory_space<vmem>>, vector<1x112x128xbf16>
    %25 = vector.shape_cast %24 : vector<1x112x128xbf16> to vector<112x128xbf16>
    %c0_30 = arith.constant 0 : index
    %c640 = arith.constant 640 : index
    %26 = vector.load %arg21[%c0_30, %c640] : memref<112x1152xbf16, #tpu.memory_space<vmem>>, vector<112x128xbf16>
    tpu.vector_store %arg21[%c0_30, %c640], %25 {strides = array<i32>} : memref<112x1152xbf16, #tpu.memory_space<vmem>>, vector<112x128xbf16>,
    %c0_31 = arith.constant 0 : index
    %c16 = arith.constant 16 : index
    %c0_32 = arith.constant 0 : index
    %27 = vector.load %arg1[%c0_31, %c16, %c0_32] : memref<1x136x128xbf16, #tpu.memory_space<vmem>>, vector<1x112x128xbf16>
    %28 = vector.shape_cast %27 : vector<1x112x128xbf16> to vector<112x128xbf16>
    %c0_33 = arith.constant 0 : index
    %c768 = arith.constant 768 : index
    %29 = vector.load %arg21[%c0_33, %c768] : memref<112x1152xbf16, #tpu.memory_space<vmem>>, vector<112x128xbf16>
    tpu.vector_store %arg21[%c0_33, %c768], %28 {strides = array<i32>} : memref<112x1152xbf16, #tpu.memory_space<vmem>>, vector<112x128xbf16>,
    %c0_34 = arith.constant 0 : index
    %c17 = arith.constant 17 : index
    %c0_35 = arith.constant 0 : index
    %30 = vector.load %arg1[%c0_34, %c17, %c0_35] : memref<1x136x128xbf16, #tpu.memory_space<vmem>>, vector<1x112x128xbf16>
    %31 = vector.shape_cast %30 : vector<1x112x128xbf16> to vector<112x128xbf16>
    %c0_36 = arith.constant 0 : index
    %c896 = arith.constant 896 : index
    %32 = vector.load %arg21[%c0_36, %c896] : memref<112x1152xbf16, #tpu.memory_space<vmem>>, vector<112x128xbf16>
    tpu.vector_store %arg21[%c0_36, %c896], %31 {strides = array<i32>} : memref<112x1152xbf16, #tpu.memory_space<vmem>>, vector<112x128xbf16>,
    %c0_37 = arith.constant 0 : index
    %c18 = arith.constant 18 : index
    %c0_38 = arith.constant 0 : index
    %33 = vector.load %arg1[%c0_37, %c18, %c0_38] : memref<1x136x128xbf16, #tpu.memory_space<vmem>>, vector<1x112x128xbf16>
    %34 = vector.shape_cast %33 : vector<1x112x128xbf16> to vector<112x128xbf16>
    %c0_39 = arith.constant 0 : index
    %c1024 = arith.constant 1024 : index
    %35 = vector.load %arg21[%c0_39, %c1024] : memref<112x1152xbf16, #tpu.memory_space<vmem>>, vector<112x128xbf16>
    tpu.vector_store %arg21[%c0_39, %c1024], %34 {strides = array<i32>} : memref<112x1152xbf16, #tpu.memory_space<vmem>>, vector<112x128xbf16>,
    %c0_40 = arith.constant 0 : index
    %c0_41 = arith.constant 0 : index
    %36 = vector.load %arg21[%c0_40, %c0_41] : memref<112x1152xbf16, #tpu.memory_space<vmem>>, vector<112x1152xbf16>
    %c0_42 = arith.constant 0 : index
    %c0_43 = arith.constant 0 : index
    %37 = vector.load %arg2[%c0_42, %c0_43] : memref<1152x128xbf16, #tpu.memory_space<vmem>>, vector<1152x128xbf16>
    %cst_44 = arith.constant dense<0.000000e+00> : vector<112x128xf32>
    %38 = tpu.matmul %36, %37, %cst_44 {dimension_numbers = #tpu.dot_dimension_numbers<[1], [0], [0], [1], [0, 0, 1, 1], [], []>} : vector<112x1152xbf16>, vector<1152x128xbf16>, vector<112x128xf32> -> vector<112x128xf32>
    %c0_45 = arith.constant 0 : index
    %c0_46 = arith.constant 0 : index
    %c0_47 = arith.constant 0 : index
    %39 = vector.load %arg6[%c0_45, %c0_46, %c0_47] : memref<4x1x128xf32, #tpu.memory_space<vmem>>, vector<1x1x128xf32>
    %40 = vector.shape_cast %39 : vector<1x1x128xf32> to vector<1x128xf32>
    %41 = vector.broadcast %40 : vector<1x128xf32> to vector<112x128xf32>
    %42 = arith.mulf %38, %41 : vector<112x128xf32>
    %c0_48 = arith.constant 0 : index
    %c0_49 = arith.constant 0 : index
    %c0_50 = arith.constant 0 : index
    %43 = vector.load %arg7[%c0_48, %c0_49, %c0_50] : memref<4x1x128xf32, #tpu.memory_space<vmem>>, vector<1x1x128xf32>
    %44 = vector.shape_cast %43 : vector<1x1x128xf32> to vector<1x128xf32>
    %45 = vector.broadcast %44 : vector<1x128xf32> to vector<112x128xf32>
    %46 = arith.addf %42, %45 : vector<112x128xf32>
    %cst_51 = arith.constant 0.000000e+00 : f32
    %47 = vector.broadcast %cst_51 : f32 to vector<112x128xf32>
    %48 = arith.maximumf %46, %47 : vector<112x128xf32>
    %49 = vector.broadcast %8 : vector<112x1xf32> to vector<112x128xf32>
    %50 = arith.mulf %48, %49 : vector<112x128xf32>
    %51 = arith.truncf %50 : vector<112x128xf32> to vector<112x128xbf16>
    %c9_52 = arith.constant 9 : index
    %c0_53 = arith.constant 0 : index
    %52 = vector.load %arg19[%c9_52, %c0_53] : memref<136x128xbf16, #tpu.memory_space<vmem>>, vector<112x128xbf16>
    tpu.vector_store %arg19[%c9_52, %c0_53], %51 {strides = array<i32>} : memref<136x128xbf16, #tpu.memory_space<vmem>>, vector<112x128xbf16>,
    %c0_54 = arith.constant 0 : index
    %c0_55 = arith.constant 0 : index
    %53 = vector.load %arg19[%c0_54, %c0_55] : memref<136x128xbf16, #tpu.memory_space<vmem>>, vector<112x128xbf16>
    %c0_56 = arith.constant 0 : index
    %c0_57 = arith.constant 0 : index
    %54 = vector.load %arg21[%c0_56, %c0_57] : memref<112x1152xbf16, #tpu.memory_space<vmem>>, vector<112x128xbf16>
    tpu.vector_store %arg21[%c0_56, %c0_57], %53 {strides = array<i32>} : memref<112x1152xbf16, #tpu.memory_space<vmem>>, vector<112x128xbf16>,
    %c1_58 = arith.constant 1 : index
    %c0_59 = arith.constant 0 : index
    %55 = vector.load %arg19[%c1_58, %c0_59] : memref<136x128xbf16, #tpu.memory_space<vmem>>, vector<112x128xbf16>
    %c0_60 = arith.constant 0 : index
    %c128_61 = arith.constant 128 : index
    %56 = vector.load %arg21[%c0_60, %c128_61] : memref<112x1152xbf16, #tpu.memory_space<vmem>>, vector<112x128xbf16>
    tpu.vector_store %arg21[%c0_60, %c128_61], %55 {strides = array<i32>} : memref<112x1152xbf16, #tpu.memory_space<vmem>>, vector<112x128xbf16>,
    %c2_62 = arith.constant 2 : index
    %c0_63 = arith.constant 0 : index
    %57 = vector.load %arg19[%c2_62, %c0_63] : memref<136x128xbf16, #tpu.memory_space<vmem>>, vector<112x128xbf16>
    %c0_64 = arith.constant 0 : index
    %c256_65 = arith.constant 256 : index
    %58 = vector.load %arg21[%c0_64, %c256_65] : memref<112x1152xbf16, #tpu.memory_space<vmem>>, vector<112x128xbf16>
    tpu.vector_store %arg21[%c0_64, %c256_65], %57 {strides = array<i32>} : memref<112x1152xbf16, #tpu.memory_space<vmem>>, vector<112x128xbf16>,
    %c8_66 = arith.constant 8 : index
    %c0_67 = arith.constant 0 : index
    %59 = vector.load %arg19[%c8_66, %c0_67] : memref<136x128xbf16, #tpu.memory_space<vmem>>, vector<112x128xbf16>
    %c0_68 = arith.constant 0 : index
    %c384_69 = arith.constant 384 : index
    %60 = vector.load %arg21[%c0_68, %c384_69] : memref<112x1152xbf16, #tpu.memory_space<vmem>>, vector<112x128xbf16>
    tpu.vector_store %arg21[%c0_68, %c384_69], %59 {strides = array<i32>} : memref<112x1152xbf16, #tpu.memory_space<vmem>>, vector<112x128xbf16>,
    %c9_70 = arith.constant 9 : index
    %c0_71 = arith.constant 0 : index
    %61 = vector.load %arg19[%c9_70, %c0_71] : memref<136x128xbf16, #tpu.memory_space<vmem>>, vector<112x128xbf16>
    %c0_72 = arith.constant 0 : index
    %c512_73 = arith.constant 512 : index
    %62 = vector.load %arg21[%c0_72, %c512_73] : memref<112x1152xbf16, #tpu.memory_space<vmem>>, vector<112x128xbf16>
    tpu.vector_store %arg21[%c0_72, %c512_73], %61 {strides = array<i32>} : memref<112x1152xbf16, #tpu.memory_space<vmem>>, vector<112x128xbf16>,
    %c10_74 = arith.constant 10 : index
    %c0_75 = arith.constant 0 : index
    %63 = vector.load %arg19[%c10_74, %c0_75] : memref<136x128xbf16, #tpu.memory_space<vmem>>, vector<112x128xbf16>
    %c0_76 = arith.constant 0 : index
    %c640_77 = arith.constant 640 : index
    %64 = vector.load %arg21[%c0_76, %c640_77] : memref<112x1152xbf16, #tpu.memory_space<vmem>>, vector<112x128xbf16>
    tpu.vector_store %arg21[%c0_76, %c640_77], %63 {strides = array<i32>} : memref<112x1152xbf16, #tpu.memory_space<vmem>>, vector<112x128xbf16>,
    %c16_78 = arith.constant 16 : index
    %c0_79 = arith.constant 0 : index
    %65 = vector.load %arg19[%c16_78, %c0_79] : memref<136x128xbf16, #tpu.memory_space<vmem>>, vector<112x128xbf16>
    %c0_80 = arith.constant 0 : index
    %c768_81 = arith.constant 768 : index
    %66 = vector.load %arg21[%c0_80, %c768_81] : memref<112x1152xbf16, #tpu.memory_space<vmem>>, vector<112x128xbf16>
    tpu.vector_store %arg21[%c0_80, %c768_81], %65 {strides = array<i32>} : memref<112x1152xbf16, #tpu.memory_space<vmem>>, vector<112x128xbf16>,
    %c17_82 = arith.constant 17 : index
    %c0_83 = arith.constant 0 : index
    %67 = vector.load %arg19[%c17_82, %c0_83] : memref<136x128xbf16, #tpu.memory_space<vmem>>, vector<112x128xbf16>
    %c0_84 = arith.constant 0 : index
    %c896_85 = arith.constant 896 : index
    %68 = vector.load %arg21[%c0_84, %c896_85] : memref<112x1152xbf16, #tpu.memory_space<vmem>>, vector<112x128xbf16>
    tpu.vector_store %arg21[%c0_84, %c896_85], %67 {strides = array<i32>} : memref<112x1152xbf16, #tpu.memory_space<vmem>>, vector<112x128xbf16>,
    %c18_86 = arith.constant 18 : index
    %c0_87 = arith.constant 0 : index
    %69 = vector.load %arg19[%c18_86, %c0_87] : memref<136x128xbf16, #tpu.memory_space<vmem>>, vector<112x128xbf16>
    %c0_88 = arith.constant 0 : index
    %c1024_89 = arith.constant 1024 : index
    %70 = vector.load %arg21[%c0_88, %c1024_89] : memref<112x1152xbf16, #tpu.memory_space<vmem>>, vector<112x128xbf16>
    tpu.vector_store %arg21[%c0_88, %c1024_89], %69 {strides = array<i32>} : memref<112x1152xbf16, #tpu.memory_space<vmem>>, vector<112x128xbf16>,
    %c0_90 = arith.constant 0 : index
    %c0_91 = arith.constant 0 : index
    %71 = vector.load %arg21[%c0_90, %c0_91] : memref<112x1152xbf16, #tpu.memory_space<vmem>>, vector<112x1152xbf16>
    %c0_92 = arith.constant 0 : index
    %c0_93 = arith.constant 0 : index
    %72 = vector.load %arg3[%c0_92, %c0_93] : memref<1152x128xbf16, #tpu.memory_space<vmem>>, vector<1152x128xbf16>
    %cst_94 = arith.constant dense<0.000000e+00> : vector<112x128xf32>
    %73 = tpu.matmul %71, %72, %cst_94 {dimension_numbers = #tpu.dot_dimension_numbers<[1], [0], [0], [1], [0, 0, 1, 1], [], []>} : vector<112x1152xbf16>, vector<1152x128xbf16>, vector<112x128xf32> -> vector<112x128xf32>
    %c1_95 = arith.constant 1 : index
    %c0_96 = arith.constant 0 : index
    %c0_97 = arith.constant 0 : index
    %74 = vector.load %arg6[%c1_95, %c0_96, %c0_97] : memref<4x1x128xf32, #tpu.memory_space<vmem>>, vector<1x1x128xf32>
    %75 = vector.shape_cast %74 : vector<1x1x128xf32> to vector<1x128xf32>
    %76 = vector.broadcast %75 : vector<1x128xf32> to vector<112x128xf32>
    %77 = arith.mulf %73, %76 : vector<112x128xf32>
    %c1_98 = arith.constant 1 : index
    %c0_99 = arith.constant 0 : index
    %c0_100 = arith.constant 0 : index
    %78 = vector.load %arg7[%c1_98, %c0_99, %c0_100] : memref<4x1x128xf32, #tpu.memory_space<vmem>>, vector<1x1x128xf32>
    %79 = vector.shape_cast %78 : vector<1x1x128xf32> to vector<1x128xf32>
    %80 = vector.broadcast %79 : vector<1x128xf32> to vector<112x128xf32>
    %81 = arith.addf %77, %80 : vector<112x128xf32>
    %cst_101 = arith.constant 0.000000e+00 : f32
    %82 = vector.broadcast %cst_101 : f32 to vector<112x128xf32>
    %83 = arith.maximumf %81, %82 : vector<112x128xf32>
    %84 = vector.broadcast %8 : vector<112x1xf32> to vector<112x128xf32>
    %85 = arith.mulf %83, %84 : vector<112x128xf32>
    %86 = arith.truncf %85 : vector<112x128xf32> to vector<112x128xbf16>
    %c9_102 = arith.constant 9 : index
    %c0_103 = arith.constant 0 : index
    %87 = vector.load %arg20[%c9_102, %c0_103] : memref<136x128xbf16, #tpu.memory_space<vmem>>, vector<112x128xbf16>
    tpu.vector_store %arg20[%c9_102, %c0_103], %86 {strides = array<i32>} : memref<136x128xbf16, #tpu.memory_space<vmem>>, vector<112x128xbf16>,
    %c0_104 = arith.constant 0 : index
    %c0_105 = arith.constant 0 : index
    %88 = vector.load %arg20[%c0_104, %c0_105] : memref<136x128xbf16, #tpu.memory_space<vmem>>, vector<112x128xbf16>
    %c0_106 = arith.constant 0 : index
    %c0_107 = arith.constant 0 : index
    %89 = vector.load %arg21[%c0_106, %c0_107] : memref<112x1152xbf16, #tpu.memory_space<vmem>>, vector<112x128xbf16>
    tpu.vector_store %arg21[%c0_106, %c0_107], %88 {strides = array<i32>} : memref<112x1152xbf16, #tpu.memory_space<vmem>>, vector<112x128xbf16>,
    %c1_108 = arith.constant 1 : index
    %c0_109 = arith.constant 0 : index
    %90 = vector.load %arg20[%c1_108, %c0_109] : memref<136x128xbf16, #tpu.memory_space<vmem>>, vector<112x128xbf16>
    %c0_110 = arith.constant 0 : index
    %c128_111 = arith.constant 128 : index
    %91 = vector.load %arg21[%c0_110, %c128_111] : memref<112x1152xbf16, #tpu.memory_space<vmem>>, vector<112x128xbf16>
    tpu.vector_store %arg21[%c0_110, %c128_111], %90 {strides = array<i32>} : memref<112x1152xbf16, #tpu.memory_space<vmem>>, vector<112x128xbf16>,
    %c2_112 = arith.constant 2 : index
    %c0_113 = arith.constant 0 : index
    %92 = vector.load %arg20[%c2_112, %c0_113] : memref<136x128xbf16, #tpu.memory_space<vmem>>, vector<112x128xbf16>
    %c0_114 = arith.constant 0 : index
    %c256_115 = arith.constant 256 : index
    %93 = vector.load %arg21[%c0_114, %c256_115] : memref<112x1152xbf16, #tpu.memory_space<vmem>>, vector<112x128xbf16>
    tpu.vector_store %arg21[%c0_114, %c256_115], %92 {strides = array<i32>} : memref<112x1152xbf16, #tpu.memory_space<vmem>>, vector<112x128xbf16>,
    %c8_116 = arith.constant 8 : index
    %c0_117 = arith.constant 0 : index
    %94 = vector.load %arg20[%c8_116, %c0_117] : memref<136x128xbf16, #tpu.memory_space<vmem>>, vector<112x128xbf16>
    %c0_118 = arith.constant 0 : index
    %c384_119 = arith.constant 384 : index
    %95 = vector.load %arg21[%c0_118, %c384_119] : memref<112x1152xbf16, #tpu.memory_space<vmem>>, vector<112x128xbf16>
    tpu.vector_store %arg21[%c0_118, %c384_119], %94 {strides = array<i32>} : memref<112x1152xbf16, #tpu.memory_space<vmem>>, vector<112x128xbf16>,
    %c9_120 = arith.constant 9 : index
    %c0_121 = arith.constant 0 : index
    %96 = vector.load %arg20[%c9_120, %c0_121] : memref<136x128xbf16, #tpu.memory_space<vmem>>, vector<112x128xbf16>
    %c0_122 = arith.constant 0 : index
    %c512_123 = arith.constant 512 : index
    %97 = vector.load %arg21[%c0_122, %c512_123] : memref<112x1152xbf16, #tpu.memory_space<vmem>>, vector<112x128xbf16>
    tpu.vector_store %arg21[%c0_122, %c512_123], %96 {strides = array<i32>} : memref<112x1152xbf16, #tpu.memory_space<vmem>>, vector<112x128xbf16>,
    %c10_124 = arith.constant 10 : index
    %c0_125 = arith.constant 0 : index
    %98 = vector.load %arg20[%c10_124, %c0_125] : memref<136x128xbf16, #tpu.memory_space<vmem>>, vector<112x128xbf16>
    %c0_126 = arith.constant 0 : index
    %c640_127 = arith.constant 640 : index
    %99 = vector.load %arg21[%c0_126, %c640_127] : memref<112x1152xbf16, #tpu.memory_space<vmem>>, vector<112x128xbf16>
    tpu.vector_store %arg21[%c0_126, %c640_127], %98 {strides = array<i32>} : memref<112x1152xbf16, #tpu.memory_space<vmem>>, vector<112x128xbf16>,
    %c16_128 = arith.constant 16 : index
    %c0_129 = arith.constant 0 : index
    %100 = vector.load %arg20[%c16_128, %c0_129] : memref<136x128xbf16, #tpu.memory_space<vmem>>, vector<112x128xbf16>
    %c0_130 = arith.constant 0 : index
    %c768_131 = arith.constant 768 : index
    %101 = vector.load %arg21[%c0_130, %c768_131] : memref<112x1152xbf16, #tpu.memory_space<vmem>>, vector<112x128xbf16>
    tpu.vector_store %arg21[%c0_130, %c768_131], %100 {strides = array<i32>} : memref<112x1152xbf16, #tpu.memory_space<vmem>>, vector<112x128xbf16>,
    %c17_132 = arith.constant 17 : index
    %c0_133 = arith.constant 0 : index
    %102 = vector.load %arg20[%c17_132, %c0_133] : memref<136x128xbf16, #tpu.memory_space<vmem>>, vector<112x128xbf16>
    %c0_134 = arith.constant 0 : index
    %c896_135 = arith.constant 896 : index
    %103 = vector.load %arg21[%c0_134, %c896_135] : memref<112x1152xbf16, #tpu.memory_space<vmem>>, vector<112x128xbf16>
    tpu.vector_store %arg21[%c0_134, %c896_135], %102 {strides = array<i32>} : memref<112x1152xbf16, #tpu.memory_space<vmem>>, vector<112x128xbf16>,
    %c18_136 = arith.constant 18 : index
    %c0_137 = arith.constant 0 : index
    %104 = vector.load %arg20[%c18_136, %c0_137] : memref<136x128xbf16, #tpu.memory_space<vmem>>, vector<112x128xbf16>
    %c0_138 = arith.constant 0 : index
    %c1024_139 = arith.constant 1024 : index
    %105 = vector.load %arg21[%c0_138, %c1024_139] : memref<112x1152xbf16, #tpu.memory_space<vmem>>, vector<112x128xbf16>
    tpu.vector_store %arg21[%c0_138, %c1024_139], %104 {strides = array<i32>} : memref<112x1152xbf16, #tpu.memory_space<vmem>>, vector<112x128xbf16>,
    %c0_140 = arith.constant 0 : index
    %c0_141 = arith.constant 0 : index
    %106 = vector.load %arg21[%c0_140, %c0_141] : memref<112x1152xbf16, #tpu.memory_space<vmem>>, vector<112x1152xbf16>
    %c0_142 = arith.constant 0 : index
    %c0_143 = arith.constant 0 : index
    %107 = vector.load %arg4[%c0_142, %c0_143] : memref<1152x128xbf16, #tpu.memory_space<vmem>>, vector<1152x128xbf16>
    %cst_144 = arith.constant dense<0.000000e+00> : vector<112x128xf32>
    %108 = tpu.matmul %106, %107, %cst_144 {dimension_numbers = #tpu.dot_dimension_numbers<[1], [0], [0], [1], [0, 0, 1, 1], [], []>} : vector<112x1152xbf16>, vector<1152x128xbf16>, vector<112x128xf32> -> vector<112x128xf32>
    %c2_145 = arith.constant 2 : index
    %c0_146 = arith.constant 0 : index
    %c0_147 = arith.constant 0 : index
    %109 = vector.load %arg6[%c2_145, %c0_146, %c0_147] : memref<4x1x128xf32, #tpu.memory_space<vmem>>, vector<1x1x128xf32>
    %110 = vector.shape_cast %109 : vector<1x1x128xf32> to vector<1x128xf32>
    %111 = vector.broadcast %110 : vector<1x128xf32> to vector<112x128xf32>
    %112 = arith.mulf %108, %111 : vector<112x128xf32>
    %c2_148 = arith.constant 2 : index
    %c0_149 = arith.constant 0 : index
    %c0_150 = arith.constant 0 : index
    %113 = vector.load %arg7[%c2_148, %c0_149, %c0_150] : memref<4x1x128xf32, #tpu.memory_space<vmem>>, vector<1x1x128xf32>
    %114 = vector.shape_cast %113 : vector<1x1x128xf32> to vector<1x128xf32>
    %115 = vector.broadcast %114 : vector<1x128xf32> to vector<112x128xf32>
    %116 = arith.addf %112, %115 : vector<112x128xf32>
    %cst_151 = arith.constant 0.000000e+00 : f32
    %117 = vector.broadcast %cst_151 : f32 to vector<112x128xf32>
    %118 = arith.maximumf %116, %117 : vector<112x128xf32>
    %119 = vector.broadcast %8 : vector<112x1xf32> to vector<112x128xf32>
    %120 = arith.mulf %118, %119 : vector<112x128xf32>
    %121 = arith.truncf %120 : vector<112x128xf32> to vector<112x128xbf16>
    %c9_152 = arith.constant 9 : index
    %c0_153 = arith.constant 0 : index
    %122 = vector.load %arg19[%c9_152, %c0_153] : memref<136x128xbf16, #tpu.memory_space<vmem>>, vector<112x128xbf16>
    tpu.vector_store %arg19[%c9_152, %c0_153], %121 {strides = array<i32>} : memref<136x128xbf16, #tpu.memory_space<vmem>>, vector<112x128xbf16>,
    %c0_154 = arith.constant 0 : index
    %c0_155 = arith.constant 0 : index
    %123 = vector.load %arg19[%c0_154, %c0_155] : memref<136x128xbf16, #tpu.memory_space<vmem>>, vector<112x128xbf16>
    %c0_156 = arith.constant 0 : index
    %c0_157 = arith.constant 0 : index
    %124 = vector.load %arg21[%c0_156, %c0_157] : memref<112x1152xbf16, #tpu.memory_space<vmem>>, vector<112x128xbf16>
    tpu.vector_store %arg21[%c0_156, %c0_157], %123 {strides = array<i32>} : memref<112x1152xbf16, #tpu.memory_space<vmem>>, vector<112x128xbf16>,
    %c1_158 = arith.constant 1 : index
    %c0_159 = arith.constant 0 : index
    %125 = vector.load %arg19[%c1_158, %c0_159] : memref<136x128xbf16, #tpu.memory_space<vmem>>, vector<112x128xbf16>
    %c0_160 = arith.constant 0 : index
    %c128_161 = arith.constant 128 : index
    %126 = vector.load %arg21[%c0_160, %c128_161] : memref<112x1152xbf16, #tpu.memory_space<vmem>>, vector<112x128xbf16>
    tpu.vector_store %arg21[%c0_160, %c128_161], %125 {strides = array<i32>} : memref<112x1152xbf16, #tpu.memory_space<vmem>>, vector<112x128xbf16>,
    %c2_162 = arith.constant 2 : index
    %c0_163 = arith.constant 0 : index
    %127 = vector.load %arg19[%c2_162, %c0_163] : memref<136x128xbf16, #tpu.memory_space<vmem>>, vector<112x128xbf16>
    %c0_164 = arith.constant 0 : index
    %c256_165 = arith.constant 256 : index
    %128 = vector.load %arg21[%c0_164, %c256_165] : memref<112x1152xbf16, #tpu.memory_space<vmem>>, vector<112x128xbf16>
    tpu.vector_store %arg21[%c0_164, %c256_165], %127 {strides = array<i32>} : memref<112x1152xbf16, #tpu.memory_space<vmem>>, vector<112x128xbf16>,
    %c8_166 = arith.constant 8 : index
    %c0_167 = arith.constant 0 : index
    %129 = vector.load %arg19[%c8_166, %c0_167] : memref<136x128xbf16, #tpu.memory_space<vmem>>, vector<112x128xbf16>
    %c0_168 = arith.constant 0 : index
    %c384_169 = arith.constant 384 : index
    %130 = vector.load %arg21[%c0_168, %c384_169] : memref<112x1152xbf16, #tpu.memory_space<vmem>>, vector<112x128xbf16>
    tpu.vector_store %arg21[%c0_168, %c384_169], %129 {strides = array<i32>} : memref<112x1152xbf16, #tpu.memory_space<vmem>>, vector<112x128xbf16>,
    %c9_170 = arith.constant 9 : index
    %c0_171 = arith.constant 0 : index
    %131 = vector.load %arg19[%c9_170, %c0_171] : memref<136x128xbf16, #tpu.memory_space<vmem>>, vector<112x128xbf16>
    %c0_172 = arith.constant 0 : index
    %c512_173 = arith.constant 512 : index
    %132 = vector.load %arg21[%c0_172, %c512_173] : memref<112x1152xbf16, #tpu.memory_space<vmem>>, vector<112x128xbf16>
    tpu.vector_store %arg21[%c0_172, %c512_173], %131 {strides = array<i32>} : memref<112x1152xbf16, #tpu.memory_space<vmem>>, vector<112x128xbf16>,
    %c10_174 = arith.constant 10 : index
    %c0_175 = arith.constant 0 : index
    %133 = vector.load %arg19[%c10_174, %c0_175] : memref<136x128xbf16, #tpu.memory_space<vmem>>, vector<112x128xbf16>
    %c0_176 = arith.constant 0 : index
    %c640_177 = arith.constant 640 : index
    %134 = vector.load %arg21[%c0_176, %c640_177] : memref<112x1152xbf16, #tpu.memory_space<vmem>>, vector<112x128xbf16>
    tpu.vector_store %arg21[%c0_176, %c640_177], %133 {strides = array<i32>} : memref<112x1152xbf16, #tpu.memory_space<vmem>>, vector<112x128xbf16>,
    %c16_178 = arith.constant 16 : index
    %c0_179 = arith.constant 0 : index
    %135 = vector.load %arg19[%c16_178, %c0_179] : memref<136x128xbf16, #tpu.memory_space<vmem>>, vector<112x128xbf16>
    %c0_180 = arith.constant 0 : index
    %c768_181 = arith.constant 768 : index
    %136 = vector.load %arg21[%c0_180, %c768_181] : memref<112x1152xbf16, #tpu.memory_space<vmem>>, vector<112x128xbf16>
    tpu.vector_store %arg21[%c0_180, %c768_181], %135 {strides = array<i32>} : memref<112x1152xbf16, #tpu.memory_space<vmem>>, vector<112x128xbf16>,
    %c17_182 = arith.constant 17 : index
    %c0_183 = arith.constant 0 : index
    %137 = vector.load %arg19[%c17_182, %c0_183] : memref<136x128xbf16, #tpu.memory_space<vmem>>, vector<112x128xbf16>
    %c0_184 = arith.constant 0 : index
    %c896_185 = arith.constant 896 : index
    %138 = vector.load %arg21[%c0_184, %c896_185] : memref<112x1152xbf16, #tpu.memory_space<vmem>>, vector<112x128xbf16>
    tpu.vector_store %arg21[%c0_184, %c896_185], %137 {strides = array<i32>} : memref<112x1152xbf16, #tpu.memory_space<vmem>>, vector<112x128xbf16>,
    %c18_186 = arith.constant 18 : index
    %c0_187 = arith.constant 0 : index
    %139 = vector.load %arg19[%c18_186, %c0_187] : memref<136x128xbf16, #tpu.memory_space<vmem>>, vector<112x128xbf16>
    %c0_188 = arith.constant 0 : index
    %c1024_189 = arith.constant 1024 : index
    %140 = vector.load %arg21[%c0_188, %c1024_189] : memref<112x1152xbf16, #tpu.memory_space<vmem>>, vector<112x128xbf16>
    tpu.vector_store %arg21[%c0_188, %c1024_189], %139 {strides = array<i32>} : memref<112x1152xbf16, #tpu.memory_space<vmem>>, vector<112x128xbf16>,
    %c0_190 = arith.constant 0 : index
    %c0_191 = arith.constant 0 : index
    %141 = vector.load %arg21[%c0_190, %c0_191] : memref<112x1152xbf16, #tpu.memory_space<vmem>>, vector<112x1152xbf16>
    %c0_192 = arith.constant 0 : index
    %c0_193 = arith.constant 0 : index
    %142 = vector.load %arg5[%c0_192, %c0_193] : memref<1152x128xbf16, #tpu.memory_space<vmem>>, vector<1152x128xbf16>
    %cst_194 = arith.constant dense<0.000000e+00> : vector<112x128xf32>
    %143 = tpu.matmul %141, %142, %cst_194 {dimension_numbers = #tpu.dot_dimension_numbers<[1], [0], [0], [1], [0, 0, 1, 1], [], []>} : vector<112x1152xbf16>, vector<1152x128xbf16>, vector<112x128xf32> -> vector<112x128xf32>
    %c3 = arith.constant 3 : index
    %c0_195 = arith.constant 0 : index
    %c0_196 = arith.constant 0 : index
    %144 = vector.load %arg6[%c3, %c0_195, %c0_196] : memref<4x1x128xf32, #tpu.memory_space<vmem>>, vector<1x1x128xf32>
    %145 = vector.shape_cast %144 : vector<1x1x128xf32> to vector<1x128xf32>
    %146 = vector.broadcast %145 : vector<1x128xf32> to vector<112x128xf32>
    %147 = arith.mulf %143, %146 : vector<112x128xf32>
    %c3_197 = arith.constant 3 : index
    %c0_198 = arith.constant 0 : index
    %c0_199 = arith.constant 0 : index
    %148 = vector.load %arg7[%c3_197, %c0_198, %c0_199] : memref<4x1x128xf32, #tpu.memory_space<vmem>>, vector<1x1x128xf32>
    %149 = vector.shape_cast %148 : vector<1x1x128xf32> to vector<1x128xf32>
    %150 = vector.broadcast %149 : vector<1x128xf32> to vector<112x128xf32>
    %151 = arith.addf %147, %150 : vector<112x128xf32>
    %cst_200 = arith.constant 0.000000e+00 : f32
    %152 = vector.broadcast %cst_200 : f32 to vector<112x128xf32>
    %153 = arith.maximumf %151, %152 : vector<112x128xf32>
    %c0_201 = arith.constant 0 : index
    %c0_202 = arith.constant 0 : index
    %154 = vector.load %arg9[%c0_201, %c0_202] : memref<2x112xf32, #tpu.memory_space<vmem>>, vector<2x112xf32>
    %cst_203 = arith.constant dense<0.000000e+00> : vector<2x128xf32>
    %155 = tpu.matmul %154, %153, %cst_203 {dimension_numbers = #tpu.dot_dimension_numbers<[1], [0], [0], [1], [0, 0, 1, 1], [], []>} : vector<2x112xf32>, vector<112x128xf32>, vector<2x128xf32> -> vector<2x128xf32>
    %c0_204 = arith.constant 0 : index
    %c0_205 = arith.constant 0 : index
    %156 = vector.load %arg12[%c0_204, %c0_205] : memref<157x64xf32, #tpu.memory_space<vmem>>, vector<157x64xf32>
    %c0_206 = arith.constant 0 : index
    %c0_207 = arith.constant 0 : index
    %157 = vector.load %arg14[%c0_206, %c0_207] : memref<64x64xf32, #tpu.memory_space<vmem>>, vector<64x64xf32>
    %c0_208 = arith.constant 0 : index
    %c0_209 = arith.constant 0 : index
    %158 = vector.load %arg16[%c0_208, %c0_209] : memref<64x157xf32, #tpu.memory_space<vmem>>, vector<64x157xf32>
    %c0_210 = arith.constant 0 : index
    %c0_211 = arith.constant 0 : index
    %159 = vector.load %arg13[%c0_210, %c0_211] : memref<1x64xf32, #tpu.memory_space<vmem>>, vector<1x64xf32>
    %c0_212 = arith.constant 0 : index
    %c0_213 = arith.constant 0 : index
    %160 = vector.load %arg15[%c0_212, %c0_213] : memref<1x64xf32, #tpu.memory_space<vmem>>, vector<1x64xf32>
    %c0_214 = arith.constant 0 : index
    %c0_215 = arith.constant 0 : index
    %161 = vector.load %arg17[%c0_214, %c0_215] : memref<1x157xf32, #tpu.memory_space<vmem>>, vector<1x157xf32>
    %c0_216 = arith.constant 0 : index
    %c0_217 = arith.constant 0 : index
    %162 = vector.load %arg11[%c0_216, %c0_217] : memref<128x64xf32, #tpu.memory_space<vmem>>, vector<128x64xf32>
    %cst_218 = arith.constant dense<0.000000e+00> : vector<2x64xf32>
    %163 = tpu.matmul %155, %162, %cst_218 {dimension_numbers = #tpu.dot_dimension_numbers<[1], [0], [0], [1], [0, 0, 1, 1], [], []>} : vector<2x128xf32>, vector<128x64xf32>, vector<2x64xf32> -> vector<2x64xf32>
    %c0_219 = arith.constant 0 : index
    %c0_220 = arith.constant 0 : index
    %164 = vector.load %arg10[%c0_219, %c0_220] : memref<2x157xf32, #tpu.memory_space<vmem>>, vector<2x157xf32>
    %cst_221 = arith.constant dense<0.000000e+00> : vector<2x64xf32>
    %165 = tpu.matmul %164, %156, %cst_221 {dimension_numbers = #tpu.dot_dimension_numbers<[1], [0], [0], [1], [0, 0, 1, 1], [], []>} : vector<2x157xf32>, vector<157x64xf32>, vector<2x64xf32> -> vector<2x64xf32>
    %166 = arith.addf %163, %165 : vector<2x64xf32>
    %167 = vector.broadcast %159 : vector<1x64xf32> to vector<2x64xf32>
    %168 = arith.addf %166, %167 : vector<2x64xf32>
    %cst_222 = arith.constant 0.000000e+00 : f32
    %169 = vector.broadcast %cst_222 : f32 to vector<2x64xf32>
    %170 = arith.maximumf %168, %169 : vector<2x64xf32>
    %cst_223 = arith.constant dense<0.000000e+00> : vector<2x64xf32>
    %171 = tpu.matmul %170, %157, %cst_223 {dimension_numbers = #tpu.dot_dimension_numbers<[1], [0], [0], [1], [0, 0, 1, 1], [], []>} : vector<2x64xf32>, vector<64x64xf32>, vector<2x64xf32> -> vector<2x64xf32>
    %172 = vector.broadcast %160 : vector<1x64xf32> to vector<2x64xf32>
    %173 = arith.addf %171, %172 : vector<2x64xf32>
    %cst_224 = arith.constant 0.000000e+00 : f32
    %174 = vector.broadcast %cst_224 : f32 to vector<2x64xf32>
    %175 = arith.maximumf %173, %174 : vector<2x64xf32>
    %cst_225 = arith.constant dense<0.000000e+00> : vector<2x157xf32>
    %176 = tpu.matmul %175, %158, %cst_225 {dimension_numbers = #tpu.dot_dimension_numbers<[1], [0], [0], [1], [0, 0, 1, 1], [], []>} : vector<2x64xf32>, vector<64x157xf32>, vector<2x157xf32> -> vector<2x157xf32>
    %177 = arith.addf %164, %176 : vector<2x157xf32>
    %178 = vector.broadcast %161 : vector<1x157xf32> to vector<2x157xf32>
    %179 = arith.addf %177, %178 : vector<2x157xf32>
    %cst_226 = arith.constant dense<0.000000e+00> : vector<2x64xf32>
    %180 = tpu.matmul %179, %156, %cst_226 {dimension_numbers = #tpu.dot_dimension_numbers<[1], [0], [0], [1], [0, 0, 1, 1], [], []>} : vector<2x157xf32>, vector<157x64xf32>, vector<2x64xf32> -> vector<2x64xf32>
    %181 = arith.addf %163, %180 : vector<2x64xf32>
    %182 = vector.broadcast %159 : vector<1x64xf32> to vector<2x64xf32>
    %183 = arith.addf %181, %182 : vector<2x64xf32>
    %cst_227 = arith.constant 0.000000e+00 : f32
    %184 = vector.broadcast %cst_227 : f32 to vector<2x64xf32>
    %185 = arith.maximumf %183, %184 : vector<2x64xf32>
    %cst_228 = arith.constant dense<0.000000e+00> : vector<2x64xf32>
    %186 = tpu.matmul %185, %157, %cst_228 {dimension_numbers = #tpu.dot_dimension_numbers<[1], [0], [0], [1], [0, 0, 1, 1], [], []>} : vector<2x64xf32>, vector<64x64xf32>, vector<2x64xf32> -> vector<2x64xf32>
    %187 = vector.broadcast %160 : vector<1x64xf32> to vector<2x64xf32>
    %188 = arith.addf %186, %187 : vector<2x64xf32>
    %cst_229 = arith.constant 0.000000e+00 : f32
    %189 = vector.broadcast %cst_229 : f32 to vector<2x64xf32>
    %190 = arith.maximumf %188, %189 : vector<2x64xf32>
    %cst_230 = arith.constant dense<0.000000e+00> : vector<2x157xf32>
    %191 = tpu.matmul %190, %158, %cst_230 {dimension_numbers = #tpu.dot_dimension_numbers<[1], [0], [0], [1], [0, 0, 1, 1], [], []>} : vector<2x64xf32>, vector<64x157xf32>, vector<2x157xf32> -> vector<2x157xf32>
    %192 = arith.addf %179, %191 : vector<2x157xf32>
    %193 = vector.broadcast %161 : vector<1x157xf32> to vector<2x157xf32>
    %194 = arith.addf %192, %193 : vector<2x157xf32>
    %cst_231 = arith.constant dense<0.000000e+00> : vector<2x64xf32>
    %195 = tpu.matmul %194, %156, %cst_231 {dimension_numbers = #tpu.dot_dimension_numbers<[1], [0], [0], [1], [0, 0, 1, 1], [], []>} : vector<2x157xf32>, vector<157x64xf32>, vector<2x64xf32> -> vector<2x64xf32>
    %196 = arith.addf %163, %195 : vector<2x64xf32>
    %197 = vector.broadcast %159 : vector<1x64xf32> to vector<2x64xf32>
    %198 = arith.addf %196, %197 : vector<2x64xf32>
    %cst_232 = arith.constant 0.000000e+00 : f32
    %199 = vector.broadcast %cst_232 : f32 to vector<2x64xf32>
    %200 = arith.maximumf %198, %199 : vector<2x64xf32>
    %cst_233 = arith.constant dense<0.000000e+00> : vector<2x64xf32>
    %201 = tpu.matmul %200, %157, %cst_233 {dimension_numbers = #tpu.dot_dimension_numbers<[1], [0], [0], [1], [0, 0, 1, 1], [], []>} : vector<2x64xf32>, vector<64x64xf32>, vector<2x64xf32> -> vector<2x64xf32>
    %202 = vector.broadcast %160 : vector<1x64xf32> to vector<2x64xf32>
    %203 = arith.addf %201, %202 : vector<2x64xf32>
    %cst_234 = arith.constant 0.000000e+00 : f32
    %204 = vector.broadcast %cst_234 : f32 to vector<2x64xf32>
    %205 = arith.maximumf %203, %204 : vector<2x64xf32>
    %cst_235 = arith.constant dense<0.000000e+00> : vector<2x157xf32>
    %206 = tpu.matmul %205, %158, %cst_235 {dimension_numbers = #tpu.dot_dimension_numbers<[1], [0], [0], [1], [0, 0, 1, 1], [], []>} : vector<2x64xf32>, vector<64x157xf32>, vector<2x157xf32> -> vector<2x157xf32>
    %207 = arith.addf %194, %206 : vector<2x157xf32>
    %208 = vector.broadcast %161 : vector<1x157xf32> to vector<2x157xf32>
    %209 = arith.addf %207, %208 : vector<2x157xf32>
    %c0_236 = arith.constant 0 : index
    %c0_237 = arith.constant 0 : index
    %c0_238 = arith.constant 0 : index
    %210 = vector.load %arg18[%c0_236, %c0_237, %c0_238] : memref<1x2x157xf32, #tpu.memory_space<vmem>>, vector<1x2x157xf32>
    %211 = vector.shape_cast %210 : vector<1x2x157xf32> to vector<2x157xf32>
    %212 = vector.shape_cast %209 : vector<2x157xf32> to vector<1x2x157xf32>
    tpu.vector_store %arg18[%c0_236, %c0_237, %c0_238], %212 {strides = array<i32>} : memref<1x2x157xf32, #tpu.memory_space<vmem>>, vector<1x2x157xf32>,
    return
  }
  func.func @transform_0(%arg0: i32) -> (i32, i32, i32) {
    %c0_i32 = arith.constant 0 : i32
    %c0_i32_0 = arith.constant 0 : i32
    %c0_i32_1 = arith.constant 0 : i32
    return %arg0, %c0_i32, %c0_i32_0 : i32, i32, i32
  }
  func.func @transform_1(%arg0: i32) -> (i32, i32) {
    %c0_i32 = arith.constant 0 : i32
    %c0_i32_0 = arith.constant 0 : i32
    %c0_i32_1 = arith.constant 0 : i32
    return %c0_i32, %c0_i32_0 : i32, i32
  }
  func.func @transform_2(%arg0: i32) -> (i32, i32) {
    %c0_i32 = arith.constant 0 : i32
    %c0_i32_0 = arith.constant 0 : i32
    %c0_i32_1 = arith.constant 0 : i32
    return %c0_i32, %c0_i32_0 : i32, i32
  }
  func.func @transform_3(%arg0: i32) -> (i32, i32) {
    %c0_i32 = arith.constant 0 : i32
    %c0_i32_0 = arith.constant 0 : i32
    %c0_i32_1 = arith.constant 0 : i32
    return %c0_i32, %c0_i32_0 : i32, i32
  }
  func.func @transform_4(%arg0: i32) -> (i32, i32) {
    %c0_i32 = arith.constant 0 : i32
    %c0_i32_0 = arith.constant 0 : i32
    %c0_i32_1 = arith.constant 0 : i32
    return %c0_i32, %c0_i32_0 : i32, i32
  }
  func.func @transform_5(%arg0: i32) -> (i32, i32, i32) {
    %c0_i32 = arith.constant 0 : i32
    %c0_i32_0 = arith.constant 0 : i32
    %c0_i32_1 = arith.constant 0 : i32
    %c0_i32_2 = arith.constant 0 : i32
    return %c0_i32, %c0_i32_0, %c0_i32_1 : i32, i32, i32
  }
  func.func @transform_6(%arg0: i32) -> (i32, i32, i32) {
    %c0_i32 = arith.constant 0 : i32
    %c0_i32_0 = arith.constant 0 : i32
    %c0_i32_1 = arith.constant 0 : i32
    %c0_i32_2 = arith.constant 0 : i32
    return %c0_i32, %c0_i32_0, %c0_i32_1 : i32, i32, i32
  }
  func.func @transform_7(%arg0: i32) -> (i32, i32) {
    %c0_i32 = arith.constant 0 : i32
    %c0_i32_0 = arith.constant 0 : i32
    %c0_i32_1 = arith.constant 0 : i32
    return %c0_i32, %c0_i32_0 : i32, i32
  }
  func.func @transform_8(%arg0: i32) -> (i32, i32) {
    %c0_i32 = arith.constant 0 : i32
    %c0_i32_0 = arith.constant 0 : i32
    %c0_i32_1 = arith.constant 0 : i32
    return %c0_i32, %c0_i32_0 : i32, i32
  }
  func.func @transform_9(%arg0: i32) -> (i32, i32) {
    %c0_i32 = arith.constant 0 : i32
    %c0_i32_0 = arith.constant 0 : i32
    %c0_i32_1 = arith.constant 0 : i32
    return %c0_i32, %c0_i32_0 : i32, i32
  }
  func.func @transform_10(%arg0: i32) -> (i32, i32) {
    %c0_i32 = arith.constant 0 : i32
    %c0_i32_0 = arith.constant 0 : i32
    %c0_i32_1 = arith.constant 0 : i32
    return %c0_i32, %c0_i32_0 : i32, i32
  }
  func.func @transform_11(%arg0: i32) -> (i32, i32) {
    %c0_i32 = arith.constant 0 : i32
    %c0_i32_0 = arith.constant 0 : i32
    %c0_i32_1 = arith.constant 0 : i32
    return %c0_i32, %c0_i32_0 : i32, i32
  }
  func.func @transform_12(%arg0: i32) -> (i32, i32) {
    %c0_i32 = arith.constant 0 : i32
    %c0_i32_0 = arith.constant 0 : i32
    %c0_i32_1 = arith.constant 0 : i32
    return %c0_i32, %c0_i32_0 : i32, i32
  }
  func.func @transform_13(%arg0: i32) -> (i32, i32) {
    %c0_i32 = arith.constant 0 : i32
    %c0_i32_0 = arith.constant 0 : i32
    %c0_i32_1 = arith.constant 0 : i32
    return %c0_i32, %c0_i32_0 : i32, i32
  }
  func.func @transform_14(%arg0: i32) -> (i32, i32) {
    %c0_i32 = arith.constant 0 : i32
    %c0_i32_0 = arith.constant 0 : i32
    %c0_i32_1 = arith.constant 0 : i32
    return %c0_i32, %c0_i32_0 : i32, i32
  }
  func.func @transform_15(%arg0: i32) -> (i32, i32) {
    %c0_i32 = arith.constant 0 : i32
    %c0_i32_0 = arith.constant 0 : i32
    %c0_i32_1 = arith.constant 0 : i32
    return %c0_i32, %c0_i32_0 : i32, i32
  }
  func.func @transform_16(%arg0: i32) -> (i32, i32) {
    %c0_i32 = arith.constant 0 : i32
    %c0_i32_0 = arith.constant 0 : i32
    %c0_i32_1 = arith.constant 0 : i32
    return %c0_i32, %c0_i32_0 : i32, i32
  }
  func.func @transform_17(%arg0: i32) -> (i32, i32, i32) {
    %c0_i32 = arith.constant 0 : i32
    %c0_i32_0 = arith.constant 0 : i32
    %c0_i32_1 = arith.constant 0 : i32
    return %arg0, %c0_i32, %c0_i32_0 : i32, i32, i32
  }
}

</mosaic_0001>

<llo_original>
// kernel: smpl_head_forward.1
$region0: #{smpl_head_forward.1}
  #allocation0 [shape = 'u32[]', space=smem, size = 0x4, offset = 0x4, fixed_abs, tag = 'smem constant byte address 0x4 - core index']
  #allocation1 [shape = 'u32[144,128]{1,0:T(1,128)}', space=vmem, size = 0x12000, scoped, tag = 'internal scratch']
  #allocation2 [shape = 'bf16[136,128]{1,0:T(8,128)(2,1)}', space=vmem, size = 0x8800, scoped, tag = 'scratch operand']
  #allocation3 [shape = 'bf16[136,128]{1,0:T(8,128)(2,1)}', space=vmem, size = 0x8800, scoped, tag = 'scratch operand']
  #allocation4 [shape = 'bf16[112,1152]{1,0:T(16,128)(2,1)}', space=vmem, size = 0x3f000, scoped, tag = 'scratch operand']
  %s0 = inlined_call_operand.vmem [shape: bf16[1,136,128], index: 0, kind: input, shape index: {}]
  %s1 = inlined_call_operand.vmem [shape: bf16[1152,128], index: 1, kind: input, shape index: {}]
  %s2 = inlined_call_operand.hbm [shape: bf16[1152,128], index: 2, kind: input, shape index: {}]
  %s3 = inlined_call_operand.hbm [shape: bf16[1152,128], index: 3, kind: input, shape index: {}]
  %s4 = inlined_call_operand.hbm [shape: bf16[1152,128], index: 4, kind: input, shape index: {}]
  %s5 = inlined_call_operand.vmem [shape: f32[4,1,128], index: 5, kind: input, shape index: {}]
  %s6 = inlined_call_operand.vmem [shape: f32[4,1,128], index: 6, kind: input, shape index: {}]
  %s7 = inlined_call_operand.vmem [shape: f32[112,1], index: 7, kind: input, shape index: {}]
  %s8 = inlined_call_operand.vmem [shape: f32[2,112], index: 8, kind: input, shape index: {}]
  %s9 = inlined_call_operand.vmem [shape: f32[2,157], index: 9, kind: input, shape index: {}]
  %s10 = inlined_call_operand.vmem [shape: f32[128,64], index: 10, kind: input, shape index: {}]
  %s11 = inlined_call_operand.vmem [shape: f32[157,64], index: 11, kind: input, shape index: {}]
  %s12 = inlined_call_operand.hbm [shape: f32[1,64], index: 12, kind: input, shape index: {}]
  %s13 = inlined_call_operand.hbm [shape: f32[64,64], index: 13, kind: input, shape index: {}]
  %s14 = inlined_call_operand.hbm [shape: f32[1,64], index: 14, kind: input, shape index: {}]
  %s15 = inlined_call_operand.vmem [shape: f32[64,157], index: 15, kind: input, shape index: {}]
  %s16 = inlined_call_operand.hbm [shape: f32[1,157], index: 16, kind: input, shape index: {}]
  %s17 = inlined_call_operand.vmem [shape: f32[1,2,157], index: 17, kind: output, shape index: {}]
  %s18 = sld [smem:[#allocation0]]
  $region106: #{smpl_head_forward.1} parent=0
    _
  %s20 = ssub.s32 1, %s18
  %s21 = scalar_select 0, %s20, %s18
  $region1: #{smpl_head_forward.1} parent=0
    #allocation5 [shape = 'u8[294912]{0}', space=vmem, size = 0x48000, scoped, tag = 'input window, operand 2, single buffered']
    #allocation6 [shape = 's32[1]{0}', space=sflag, size = 0x4, scoped, tag = 'scoped memory for smpl_head_forward.1']
    #allocation7 [shape = 'u8[294912]{0}', space=vmem, size = 0x48000, scoped, tag = 'input window, operand 3, single buffered']
    #allocation8 [shape = 's32[1]{0}', space=sflag, size = 0x4, scoped, tag = 'scoped memory for smpl_head_forward.1']
    #allocation9 [shape = 'u8[294912]{0}', space=vmem, size = 0x48000, scoped, tag = 'input window, operand 4, single buffered']
    #allocation10 [shape = 'u8[512]{0}', space=vmem, size = 0x400, scoped, tag = 'input window, operand 12, single buffered']
    #allocation11 [shape = 's32[1]{0}', space=sflag, size = 0x4, scoped, tag = 'scoped memory for smpl_head_forward.1']
    #allocation12 [shape = 'u8[32768]{0}', space=vmem, size = 0x8000, scoped, tag = 'input window, operand 13, single buffered']
    #allocation13 [shape = 'u8[512]{0}', space=vmem, size = 0x400, scoped, tag = 'input window, operand 14, single buffered']
    #allocation14 [shape = 's32[1]{0}', space=sflag, size = 0x4, scoped, tag = 'scoped memory for smpl_head_forward.1']
    #allocation15 [shape = 'u8[1024]{0}', space=vmem, size = 0x400, scoped, tag = 'input window, operand 16, single buffered']
    %22 = vsyncpa [#allocation6], 0
    %23 = vsyncpa [#allocation8], 0
    %24 = vsyncpa [#allocation11], 0
    %25 = vsyncpa [#allocation14], 0
    // Predicated region
    $region2: #{smpl_head_forward.1} parent=1 // pred_check
      _
    $region3: #{smpl_head_forward.1} parent=1 // pred_check_branch
      %27 = sbr.rel (0) target = $region5
    $region4: #{smpl_head_forward.1} parent=1 // pred_region
      _
    $region5: #{smpl_head_forward.1} parent=1 // pred_fallthru
      _
    // Predicated region
    $region6: #{smpl_head_forward.1} parent=1 // pred_check
      _
    $region7: #{smpl_head_forward.1} parent=1 // pred_check_branch
      %29 = sbr.rel (0) target = $region9
    $region8: #{smpl_head_forward.1} parent=1 // pred_region
      _
    $region9: #{smpl_head_forward.1} parent=1 // pred_fallthru
      _
    // Predicated region
    $region10: #{smpl_head_forward.1} parent=1 // pred_check
      _
    $region11: #{smpl_head_forward.1} parent=1 // pred_check_branch
      %31 = sbr.rel (0) target = $region13
    $region12: #{smpl_head_forward.1} parent=1 // pred_region
      %s33 = ssub.s32 9216, 9216
      %34 = vsyncadd [#allocation6], %s33
      %s35 = sshll.u32 [#allocation5], 4
      %s36 = int_to_ptr.vmem [resolvable:$true] %s35
      %41 = dma.hbm_to_vmem [thread:$0]  %s2, 9216, %s36, [#allocation6], 64, 64, 4
    $region13: #{smpl_head_forward.1} parent=1 // pred_fallthru
      _
    // Predicated region
    $region14: #{smpl_head_forward.1} parent=1 // pred_check
      _
    $region15: #{smpl_head_forward.1} parent=1 // pred_check_branch
      %43 = sbr.rel (0) target = $region17
    $region16: #{smpl_head_forward.1} parent=1 // pred_region
      %s45 = ssub.s32 9216, 9216
      %46 = vsyncadd [#allocation8], %s45
      %s47 = sshll.u32 [#allocation7], 4
      %s48 = int_to_ptr.vmem [resolvable:$true] %s47
      %53 = dma.hbm_to_vmem [thread:$0]  %s3, 9216, %s48, [#allocation8], 64, 64, 4
    $region17: #{smpl_head_forward.1} parent=1 // pred_fallthru
      _
    // Predicated region
    $region18: #{smpl_head_forward.1} parent=1 // pred_check
      _
    $region19: #{smpl_head_forward.1} parent=1 // pred_check_branch
      %55 = sbr.rel (0) target = $region21
    $region20: #{smpl_head_forward.1} parent=1 // pred_region
      %s57 = ssub.s32 9216, 9216
      %58 = vsyncadd [#allocation8], %s57
      %s59 = sshll.u32 [#allocation9], 4
      %s60 = int_to_ptr.vmem [resolvable:$true] %s59
      %65 = dma.hbm_to_vmem [thread:$0]  %s4, 9216, %s60, [#allocation8], 64, 64, 4
    $region21: #{smpl_head_forward.1} parent=1 // pred_fallthru
      _
    // Predicated region
    $region22: #{smpl_head_forward.1} parent=1 // pred_check
      _
    $region23: #{smpl_head_forward.1} parent=1 // pred_check_branch
      %67 = sbr.rel (0) target = $region25
    $region24: #{smpl_head_forward.1} parent=1 // pred_region
      _
    $region25: #{smpl_head_forward.1} parent=1 // pred_fallthru
      _
    // Predicated region
    $region26: #{smpl_head_forward.1} parent=1 // pred_check
      _
    $region27: #{smpl_head_forward.1} parent=1 // pred_check_branch
      %69 = sbr.rel (0) target = $region29
    $region28: #{smpl_head_forward.1} parent=1 // pred_region
      _
    $region29: #{smpl_head_forward.1} parent=1 // pred_fallthru
      _
    // Predicated region
    $region30: #{smpl_head_forward.1} parent=1 // pred_check
      _
    $region31: #{smpl_head_forward.1} parent=1 // pred_check_branch
      %71 = sbr.rel (0) target = $region33
    $region32: #{smpl_head_forward.1} parent=1 // pred_region
      _
    $region33: #{smpl_head_forward.1} parent=1 // pred_fallthru
      _
    // Predicated region
    $region34: #{smpl_head_forward.1} parent=1 // pred_check
      _
    $region35: #{smpl_head_forward.1} parent=1 // pred_check_branch
      %73 = sbr.rel (0) target = $region37
    $region36: #{smpl_head_forward.1} parent=1 // pred_region
      _
    $region37: #{smpl_head_forward.1} parent=1 // pred_fallthru
      _
    // Predicated region
    $region38: #{smpl_head_forward.1} parent=1 // pred_check
      _
    $region39: #{smpl_head_forward.1} parent=1 // pred_check_branch
      %75 = sbr.rel (0) target = $region41
    $region40: #{smpl_head_forward.1} parent=1 // pred_region
      _
    $region41: #{smpl_head_forward.1} parent=1 // pred_fallthru
      _
    // Predicated region
    $region42: #{smpl_head_forward.1} parent=1 // pred_check
      _
    $region43: #{smpl_head_forward.1} parent=1 // pred_check_branch
      %77 = sbr.rel (0) target = $region45
    $region44: #{smpl_head_forward.1} parent=1 // pred_region
      _
    $region45: #{smpl_head_forward.1} parent=1 // pred_fallthru
      _
    // Predicated region
    $region46: #{smpl_head_forward.1} parent=1 // pred_check
      _
    $region47: #{smpl_head_forward.1} parent=1 // pred_check_branch
      %79 = sbr.rel (0) target = $region49
    $region48: #{smpl_head_forward.1} parent=1 // pred_region
      _
    $region49: #{smpl_head_forward.1} parent=1 // pred_fallthru
      _
    // Predicated region
    $region50: #{smpl_head_forward.1} parent=1 // pred_check
      _
    $region51: #{smpl_head_forward.1} parent=1 // pred_check_branch
      %81 = sbr.rel (0) target = $region53
    $region52: #{smpl_head_forward.1} parent=1 // pred_region
      %s83 = ssub.s32 16, 16
      %84 = vsyncadd [#allocation11], %s83
      %s86 = sshll.u32 [#allocation10], 4
      %s87 = int_to_ptr.vmem [resolvable:$true] %s86
      %89 = dma.hbm_to_vmem [thread:$0]  %s12, 16, %s87, [#allocation11]
    $region53: #{smpl_head_forward.1} parent=1 // pred_fallthru
      _
    // Predicated region
    $region54: #{smpl_head_forward.1} parent=1 // pred_check
      _
    $region55: #{smpl_head_forward.1} parent=1 // pred_check_branch
      %91 = sbr.rel (0) target = $region57
    $region56: #{smpl_head_forward.1} parent=1 // pred_region
      %s93 = ssub.s32 1024, 1024
      %94 = vsyncadd [#allocation11], %s93
      %s95 = sshll.u32 [#allocation12], 4
      %s96 = int_to_ptr.vmem [resolvable:$true] %s95
      %101 = dma.hbm_to_vmem [thread:$0]  %s13, 1024, %s96, [#allocation11], 128, 128, 8
    $region57: #{smpl_head_forward.1} parent=1 // pred_fallthru
      _
    // Predicated region
    $region58: #{smpl_head_forward.1} parent=1 // pred_check
      _
    $region59: #{smpl_head_forward.1} parent=1 // pred_check_branch
      %103 = sbr.rel (0) target = $region61
    $region60: #{smpl_head_forward.1} parent=1 // pred_region
      %s105 = ssub.s32 16, 16
      %106 = vsyncadd [#allocation14], %s105
      %s108 = sshll.u32 [#allocation13], 4
      %s109 = int_to_ptr.vmem [resolvable:$true] %s108
      %111 = dma.hbm_to_vmem [thread:$0]  %s14, 16, %s109, [#allocation14]
    $region61: #{smpl_head_forward.1} parent=1 // pred_fallthru
      _
    // Predicated region
    $region62: #{smpl_head_forward.1} parent=1 // pred_check
      _
    $region63: #{smpl_head_forward.1} parent=1 // pred_check_branch
      %113 = sbr.rel (0) target = $region65
    $region64: #{smpl_head_forward.1} parent=1 // pred_region
      _
    $region65: #{smpl_head_forward.1} parent=1 // pred_fallthru
      _
    // Predicated region
    $region66: #{smpl_head_forward.1} parent=1 // pred_check
      _
    $region67: #{smpl_head_forward.1} parent=1 // pred_check_branch
      %115 = sbr.rel (0) target = $region69
    $region68: #{smpl_head_forward.1} parent=1 // pred_region
      %s117 = ssub.s32 32, 32
      %118 = vsyncadd [#allocation14], %s117
      %s120 = sshll.u32 [#allocation15], 4
      %s121 = int_to_ptr.vmem [resolvable:$true] %s120
      %123 = dma.hbm_to_vmem [thread:$0]  %s16, 32, %s121, [#allocation14]
    $region69: #{smpl_head_forward.1} parent=1 // pred_fallthru
      _
    // Predicated region
    $region70: #{smpl_head_forward.1} parent=1 // pred_check
      _
    $region71: #{smpl_head_forward.1} parent=1 // pred_check_branch
      %125 = sbr.rel (0) target = $region73
    $region72: #{smpl_head_forward.1} parent=1 // pred_region
      %126 = dma.done [#allocation6], 9216
    $region73: #{smpl_head_forward.1} parent=1 // pred_fallthru
      _
    // Predicated region
    $region74: #{smpl_head_forward.1} parent=1 // pred_check
      _
    $region75: #{smpl_head_forward.1} parent=1 // pred_check_branch
      %128 = sbr.rel (0) target = $region77
    $region76: #{smpl_head_forward.1} parent=1 // pred_region
      %129 = dma.done [#allocation8], 9216
    $region77: #{smpl_head_forward.1} parent=1 // pred_fallthru
      _
    // Predicated region
    $region78: #{smpl_head_forward.1} parent=1 // pred_check
      _
    $region79: #{smpl_head_forward.1} parent=1 // pred_check_branch
      %131 = sbr.rel (0) target = $region81
    $region80: #{smpl_head_forward.1} parent=1 // pred_region
      %132 = dma.done [#allocation8], 9216
    $region81: #{smpl_head_forward.1} parent=1 // pred_fallthru
      _
    // Predicated region
    $region82: #{smpl_head_forward.1} parent=1 // pred_check
      _
    $region83: #{smpl_head_forward.1} parent=1 // pred_check_branch
      %134 = sbr.rel (0) target = $region85
    $region84: #{smpl_head_forward.1} parent=1 // pred_region
      %135 = dma.done [#allocation11], 16
    $region85: #{smpl_head_forward.1} parent=1 // pred_fallthru
      _
    // Predicated region
    $region86: #{smpl_head_forward.1} parent=1 // pred_check
      _
    $region87: #{smpl_head_forward.1} parent=1 // pred_check_branch
      %137 = sbr.rel (0) target = $region89
    $region88: #{smpl_head_forward.1} parent=1 // pred_region
      %138 = dma.done [#allocation11], 1024
    $region89: #{smpl_head_forward.1} parent=1 // pred_fallthru
      _
    // Predicated region
    $region90: #{smpl_head_forward.1} parent=1 // pred_check
      _
    $region91: #{smpl_head_forward.1} parent=1 // pred_check_branch
      %140 = sbr.rel (0) target = $region93
    $region92: #{smpl_head_forward.1} parent=1 // pred_region
      %141 = dma.done [#allocation14], 16
    $region93: #{smpl_head_forward.1} parent=1 // pred_fallthru
      _
    // Predicated region
    $region94: #{smpl_head_forward.1} parent=1 // pred_check
      _
    $region95: #{smpl_head_forward.1} parent=1 // pred_check_branch
      %143 = sbr.rel (0) target = $region97
    $region96: #{smpl_head_forward.1} parent=1 // pred_region
      %144 = dma.done [#allocation14], 32
    $region97: #{smpl_head_forward.1} parent=1 // pred_fallthru
      _
    %146 = vst [vmem:[#allocation2] sm:$0xf] 0
    %vm147 = vcmask 1040384
    %vm148 = vsmask.f32 256
    %vm149 = vmand %vm147, %vm148
    %v150 = vld [vmem:[#allocation2 + $0x4] sm:$0x1]
    %v151 = vsel %vm149, 0, %v150
    %152 = vst [vmem:[#allocation2 + $0x4] sm:$0x1] %v151
    %vm153 = vcmask 1043456
    %vm154 = vsmask.f32 7938
    %vm155 = vmand %vm153, %vm154
    %v156 = vld [vmem:[#allocation2 + $0x3c] sm:$0xf]
    %v157 = vsel %vm155, 0, %v156
    %158 = vst [vmem:[#allocation2 + $0x3c] sm:$0xf] %v157
    %159 = vst [vmem:[#allocation2 + $0x40] sm:$0xf] 0
    %160 = vst [vmem:[#allocation3] sm:$0xf] 0
    %v161 = vld [vmem:[#allocation3 + $0x4] sm:$0x1]
    %v162 = vsel %vm149, 0, %v161
    %163 = vst [vmem:[#allocation3 + $0x4] sm:$0x1] %v162
    %v164 = vld [vmem:[#allocation3 + $0x3c] sm:$0xf]
    %v165 = vsel %vm155, 0, %v164
    %166 = vst [vmem:[#allocation3 + $0x3c] sm:$0xf] %v165
    %167 = vst [vmem:[#allocation3 + $0x40] sm:$0xf] 0
    %v168 = vld [vmem:[%s7] sm:$0xff]
    %v169 = vld [vmem:[%s7 + $0x8] sm:$0xff]
    %v170 = vld [vmem:[%s7 + $0x10] sm:$0xff]
    %v171 = vld [vmem:[%s7 + $0x18] sm:$0xff]
    %v172 = vld [vmem:[%s7 + $0x20] sm:$0xff]
    %v173 = vld [vmem:[%s7 + $0x28] sm:$0xff]
    %v174 = vld [vmem:[%s7 + $0x30] sm:$0xff]
    %v175 = vld [vmem:[%s7 + $0x38] sm:$0xff]
    %v176 = vld [vmem:[%s7 + $0x40] sm:$0xff]
    %v177 = vld [vmem:[%s7 + $0x48] sm:$0xff]
    %v178 = vld [vmem:[%s7 + $0x50] sm:$0xff]
    %v179 = vld [vmem:[%s7 + $0x58] sm:$0xff]
    %v180 = vld [vmem:[%s7 + $0x60] sm:$0xff]
    %v181 = vld [vmem:[%s7 + $0x68] sm:$0xff]
    %v182 = vld [vmem:[%s0] sm:$0xf]
    %v183 = vld [vmem:[%s0 + $0x4] sm:$0xf]
    %v184 = vld [vmem:[%s0 + $0x8] sm:$0xf]
    %v185 = vld [vmem:[%s0 + $0xc] sm:$0xf]
    %v186 = vld [vmem:[%s0 + $0x10] sm:$0xf]
    %v187 = vld [vmem:[%s0 + $0x14] sm:$0xf]
    %v188 = vld [vmem:[%s0 + $0x18] sm:$0xf]
    %v189 = vld [vmem:[%s0 + $0x1c] sm:$0xf]
    %v190 = vld [vmem:[%s0 + $0x20] sm:$0xf]
    %v191 = vld [vmem:[%s0 + $0x24] sm:$0xf]
    %v192 = vld [vmem:[%s0 + $0x28] sm:$0xf]
    %v193 = vld [vmem:[%s0 + $0x2c] sm:$0xf]
    %v194 = vld [vmem:[%s0 + $0x30] sm:$0xf]
    %v195 = vld [vmem:[%s0 + $0x34] sm:$0xf]
    %v210 = vunpack.c.l.b16 %v182
    %v211 = vunpack.c.l.b16 %v183
    %v212 = vunpack.c.l.b16 %v184
    %v213 = vunpack.c.l.b16 %v185
    %v214 = vunpack.c.l.b16 %v186
    %v215 = vunpack.c.l.b16 %v187
    %v216 = vunpack.c.l.b16 %v188
    %v217 = vunpack.c.l.b16 %v189
    %v218 = vunpack.c.l.b16 %v190
    %v219 = vunpack.c.l.b16 %v191
    %v220 = vunpack.c.l.b16 %v192
    %v221 = vunpack.c.l.b16 %v193
    %v222 = vunpack.c.l.b16 %v194
    %v223 = vunpack.c.l.b16 %v195
    %v224 = vpack.c.b16 %v211, %v210
    %v225 = vpack.c.b16 %v213, %v212
    %v226 = vpack.c.b16 %v215, %v214
    %v227 = vpack.c.b16 %v217, %v216
    %v228 = vpack.c.b16 %v219, %v218
    %v229 = vpack.c.b16 %v221, %v220
    %v230 = vpack.c.b16 %v223, %v222
    %238 = vst [vmem:[#allocation4] sm:$0xff] %v224
    %239 = vst [vmem:[#allocation4 + $0x48] sm:$0xff] %v225
    %240 = vst [vmem:[#allocation4 + $0x90] sm:$0xff] %v226
    %241 = vst [vmem:[#allocation4 + $0xd8] sm:$0xff] %v227
    %242 = vst [vmem:[#allocation4 + $0x120] sm:$0xff] %v228
    %243 = vst [vmem:[#allocation4 + $0x168] sm:$0xff] %v229
    %244 = vst [vmem:[#allocation4 + $0x1b0] sm:$0xff] %v230
    %v245 = vld [vmem:[%s0] sm:$0xf]
    %v246 = vld [vmem:[%s0 + $0x4] sm:$0xf]
    %v247 = vld [vmem:[%s0 + $0x8] sm:$0xf]
    %v248 = vld [vmem:[%s0 + $0xc] sm:$0xf]
    %v249 = vld [vmem:[%s0 + $0x10] sm:$0xf]
    %v250 = vld [vmem:[%s0 + $0x14] sm:$0xf]
    %v251 = vld [vmem:[%s0 + $0x18] sm:$0xf]
    %v252 = vld [vmem:[%s0 + $0x1c] sm:$0xf]
    %v253 = vld [vmem:[%s0 + $0x20] sm:$0xf]
    %v254 = vld [vmem:[%s0 + $0x24] sm:$0xf]
    %v255 = vld [vmem:[%s0 + $0x28] sm:$0xf]
    %v256 = vld [vmem:[%s0 + $0x2c] sm:$0xf]
    %v257 = vld [vmem:[%s0 + $0x30] sm:$0xf]
    %v258 = vld [vmem:[%s0 + $0x34] sm:$0xf]
    %v259 = vld [vmem:[%s0 + $0x38] sm:$0x1]
    %v275 = vunpack.c.l.b16 %v245
    %v276 = vunpack.c.l.b16 %v246
    %v277 = vunpack.c.l.b16 %v247
    %v278 = vunpack.c.l.b16 %v248
    %v279 = vunpack.c.l.b16 %v249
    %v280 = vunpack.c.l.b16 %v250
    %v281 = vunpack.c.l.b16 %v251
    %v282 = vunpack.c.l.b16 %v252
    %v283 = vunpack.c.l.b16 %v253
    %v284 = vunpack.c.l.b16 %v254
    %v285 = vunpack.c.l.b16 %v255
    %v286 = vunpack.c.l.b16 %v256
    %v287 = vunpack.c.l.b16 %v257
    %v288 = vunpack.c.l.b16 %v258
    %v289 = vunpack.c.l.b16 %v259
    %v290 = vpack.c.b16 %v276, %v275
    %v291 = vpack.c.b16 %v278, %v277
    %v292 = vpack.c.b16 %v280, %v279
    %v293 = vpack.c.b16 %v282, %v281
    %v294 = vpack.c.b16 %v284, %v283
    %v295 = vpack.c.b16 %v286, %v285
    %v296 = vpack.c.b16 %v288, %v287
    %v297 = vpack.c.b16 %v289, %v289
    %vm298 = vsmask.f32 7424
    %v300 = vshrl.u32 %v290, 16
    %v302 = vshll.u32 %v290, 16
    %v304 = vrot.slane %v302, 1
    %v305 = vor.u32 %v300, %v304
    %v307 = vshll.u32 %v291, 16
    %v309 = vrot.slane %v307, 1
    %v310 = vsel %vm298, %v305, %v309
    %v311 = vshrl.u32 %v291, 16
    %v313 = vor.u32 %v311, %v309
    %v315 = vshll.u32 %v292, 16
    %v317 = vrot.slane %v315, 1
    %v318 = vsel %vm298, %v313, %v317
    %v319 = vshrl.u32 %v292, 16
    %v321 = vor.u32 %v319, %v317
    %v323 = vshll.u32 %v293, 16
    %v325 = vrot.slane %v323, 1
    %v326 = vsel %vm298, %v321, %v325
    %v327 = vshrl.u32 %v293, 16
    %v329 = vor.u32 %v327, %v325
    %v331 = vshll.u32 %v294, 16
    %v333 = vrot.slane %v331, 1
    %v334 = vsel %vm298, %v329, %v333
    %v335 = vshrl.u32 %v294, 16
    %v337 = vor.u32 %v335, %v333
    %v339 = vshll.u32 %v295, 16
    %v341 = vrot.slane %v339, 1
    %v342 = vsel %vm298, %v337, %v341
    %v343 = vshrl.u32 %v295, 16
    %v345 = vor.u32 %v343, %v341
    %v347 = vshll.u32 %v296, 16
    %v349 = vrot.slane %v347, 1
    %v350 = vsel %vm298, %v345, %v349
    %v351 = vshrl.u32 %v296, 16
    %v353 = vor.u32 %v351, %v349
    %v355 = vshll.u32 %v297, 16
    %v357 = vrot.slane %v355, 1
    %v358 = vsel %vm298, %v353, %v357
    %366 = vst [vmem:[#allocation4 + $0x8] sm:$0xff] %v310
    %367 = vst [vmem:[#allocation4 + $0x50] sm:$0xff] %v318
    %368 = vst [vmem:[#allocation4 + $0x98] sm:$0xff] %v326
    %369 = vst [vmem:[#allocation4 + $0xe0] sm:$0xff] %v334
    %370 = vst [vmem:[#allocation4 + $0x128] sm:$0xff] %v342
    %371 = vst [vmem:[#allocation4 + $0x170] sm:$0xff] %v350
    %372 = vst [vmem:[#allocation4 + $0x1b8] sm:$0xff] %v358
    %v373 = vld [vmem:[%s0] sm:$0xe]
    %v374 = vld [vmem:[%s0 + $0x4] sm:$0xf]
    %v375 = vld [vmem:[%s0 + $0x8] sm:$0xf]
    %v376 = vld [vmem:[%s0 + $0xc] sm:$0xf]
    %v377 = vld [vmem:[%s0 + $0x10] sm:$0xf]
    %v378 = vld [vmem:[%s0 + $0x14] sm:$0xf]
    %v379 = vld [vmem:[%s0 + $0x18] sm:$0xf]
    %v380 = vld [vmem:[%s0 + $0x1c] sm:$0xf]
    %v381 = vld [vmem:[%s0 + $0x20] sm:$0xf]
    %v382 = vld [vmem:[%s0 + $0x24] sm:$0xf]
    %v383 = vld [vmem:[%s0 + $0x28] sm:$0xf]
    %v384 = vld [vmem:[%s0 + $0x2c] sm:$0xf]
    %v385 = vld [vmem:[%s0 + $0x30] sm:$0xf]
    %v386 = vld [vmem:[%s0 + $0x34] sm:$0xf]
    %v387 = vld [vmem:[%s0 + $0x38] sm:$0x1]
    %v403 = vunpack.c.l.b16 %v373
    %v404 = vunpack.c.l.b16 %v374
    %v405 = vunpack.c.l.b16 %v375
    %v406 = vunpack.c.l.b16 %v376
    %v407 = vunpack.c.l.b16 %v377
    %v408 = vunpack.c.l.b16 %v378
    %v409 = vunpack.c.l.b16 %v379
    %v410 = vunpack.c.l.b16 %v380
    %v411 = vunpack.c.l.b16 %v381
    %v412 = vunpack.c.l.b16 %v382
    %v413 = vunpack.c.l.b16 %v383
    %v414 = vunpack.c.l.b16 %v384
    %v415 = vunpack.c.l.b16 %v385
    %v416 = vunpack.c.l.b16 %v386
    %v417 = vunpack.c.l.b16 %v387
    %v418 = vpack.c.b16 %v404, %v403
    %v419 = vpack.c.b16 %v406, %v405
    %v420 = vpack.c.b16 %v408, %v407
    %v421 = vpack.c.b16 %v410, %v409
    %v422 = vpack.c.b16 %v412, %v411
    %v423 = vpack.c.b16 %v414, %v413
    %v424 = vpack.c.b16 %v416, %v415
    %v425 = vpack.c.b16 %v417, %v417
    %vm426 = vcmask 1046528
    %v427 = vrot.slane %v418, 1
    %v428 = vrot.slane %v419, 1
    %v429 = vsel %vm426, %v427, %v428
    %v430 = vrot.slane %v420, 1
    %v431 = vsel %vm426, %v428, %v430
    %v432 = vrot.slane %v421, 1
    %v433 = vsel %vm426, %v430, %v432
    %v434 = vrot.slane %v422, 1
    %v435 = vsel %vm426, %v432, %v434
    %v436 = vrot.slane %v423, 1
    %v437 = vsel %vm426, %v434, %v436
    %v438 = vrot.slane %v424, 1
    %v439 = vsel %vm426, %v436, %v438
    %v440 = vrot.slane %v425, 1
    %v441 = vsel %vm426, %v438, %v440
    %449 = vst [vmem:[#allocation4 + $0x10] sm:$0xff] %v429
    %450 = vst [vmem:[#allocation4 + $0x58] sm:$0xff] %v431
    %451 = vst [vmem:[#allocation4 + $0xa0] sm:$0xff] %v433
    %452 = vst [vmem:[#allocation4 + $0xe8] sm:$0xff] %v435
    %453 = vst [vmem:[#allocation4 + $0x130] sm:$0xff] %v437
    %454 = vst [vmem:[#allocation4 + $0x178] sm:$0xff] %v439
    %455 = vst [vmem:[#allocation4 + $0x1c0] sm:$0xff] %v441
    %v456 = vld [vmem:[%s0 + $0x4] sm:$0xf]
    %v457 = vld [vmem:[%s0 + $0x8] sm:$0xf]
    %v458 = vld [vmem:[%s0 + $0xc] sm:$0xf]
    %v459 = vld [vmem:[%s0 + $0x10] sm:$0xf]
    %v460 = vld [vmem:[%s0 + $0x14] sm:$0xf]
    %v461 = vld [vmem:[%s0 + $0x18] sm:$0xf]
    %v462 = vld [vmem:[%s0 + $0x1c] sm:$0xf]
    %v463 = vld [vmem:[%s0 + $0x20] sm:$0xf]
    %v464 = vld [vmem:[%s0 + $0x24] sm:$0xf]
    %v465 = vld [vmem:[%s0 + $0x28] sm:$0xf]
    %v466 = vld [vmem:[%s0 + $0x2c] sm:$0xf]
    %v467 = vld [vmem:[%s0 + $0x30] sm:$0xf]
    %v468 = vld [vmem:[%s0 + $0x34] sm:$0xf]
    %v469 = vld [vmem:[%s0 + $0x38] sm:$0xf]
    %v484 = vunpack.c.l.b16 %v456
    %v485 = vunpack.c.l.b16 %v457
    %v486 = vunpack.c.l.b16 %v458
    %v487 = vunpack.c.l.b16 %v459
    %v488 = vunpack.c.l.b16 %v460
    %v489 = vunpack.c.l.b16 %v461
    %v490 = vunpack.c.l.b16 %v462
    %v491 = vunpack.c.l.b16 %v463
    %v492 = vunpack.c.l.b16 %v464
    %v493 = vunpack.c.l.b16 %v465
    %v494 = vunpack.c.l.b16 %v466
    %v495 = vunpack.c.l.b16 %v467
    %v496 = vunpack.c.l.b16 %v468
    %v497 = vunpack.c.l.b16 %v469
    %v498 = vpack.c.b16 %v485, %v484
    %v499 = vpack.c.b16 %v487, %v486
    %v500 = vpack.c.b16 %v489, %v488
    %v501 = vpack.c.b16 %v491, %v490
    %v502 = vpack.c.b16 %v493, %v492
    %v503 = vpack.c.b16 %v495, %v494
    %v504 = vpack.c.b16 %v497, %v496
    %512 = vst [vmem:[#allocation4 + $0x18] sm:$0xff] %v498
    %513 = vst [vmem:[#allocation4 + $0x60] sm:$0xff] %v499
    %514 = vst [vmem:[#allocation4 + $0xa8] sm:$0xff] %v500
    %515 = vst [vmem:[#allocation4 + $0xf0] sm:$0xff] %v501
    %516 = vst [vmem:[#allocation4 + $0x138] sm:$0xff] %v502
    %517 = vst [vmem:[#allocation4 + $0x180] sm:$0xff] %v503
    %518 = vst [vmem:[#allocation4 + $0x1c8] sm:$0xff] %v504
    %v519 = vld [vmem:[%s0 + $0x4] sm:$0xf]
    %v520 = vld [vmem:[%s0 + $0x8] sm:$0xf]
    %v521 = vld [vmem:[%s0 + $0xc] sm:$0xf]
    %v522 = vld [vmem:[%s0 + $0x10] sm:$0xf]
    %v523 = vld [vmem:[%s0 + $0x14] sm:$0xf]
    %v524 = vld [vmem:[%s0 + $0x18] sm:$0xf]
    %v525 = vld [vmem:[%s0 + $0x1c] sm:$0xf]
    %v526 = vld [vmem:[%s0 + $0x20] sm:$0xf]
    %v527 = vld [vmem:[%s0 + $0x24] sm:$0xf]
    %v528 = vld [vmem:[%s0 + $0x28] sm:$0xf]
    %v529 = vld [vmem:[%s0 + $0x2c] sm:$0xf]
    %v530 = vld [vmem:[%s0 + $0x30] sm:$0xf]
    %v531 = vld [vmem:[%s0 + $0x34] sm:$0xf]
    %v532 = vld [vmem:[%s0 + $0x38] sm:$0xf]
    %v533 = vld [vmem:[%s0 + $0x3c] sm:$0x1]
    %v549 = vunpack.c.l.b16 %v519
    %v550 = vunpack.c.l.b16 %v520
    %v551 = vunpack.c.l.b16 %v521
    %v552 = vunpack.c.l.b16 %v522
    %v553 = vunpack.c.l.b16 %v523
    %v554 = vunpack.c.l.b16 %v524
    %v555 = vunpack.c.l.b16 %v525
    %v556 = vunpack.c.l.b16 %v526
    %v557 = vunpack.c.l.b16 %v527
    %v558 = vunpack.c.l.b16 %v528
    %v559 = vunpack.c.l.b16 %v529
    %v560 = vunpack.c.l.b16 %v530
    %v561 = vunpack.c.l.b16 %v531
    %v562 = vunpack.c.l.b16 %v532
    %v563 = vunpack.c.l.b16 %v533
    %v564 = vpack.c.b16 %v550, %v549
    %v565 = vpack.c.b16 %v552, %v551
    %v566 = vpack.c.b16 %v554, %v553
    %v567 = vpack.c.b16 %v556, %v555
    %v568 = vpack.c.b16 %v558, %v557
    %v569 = vpack.c.b16 %v560, %v559
    %v570 = vpack.c.b16 %v562, %v561
    %v571 = vpack.c.b16 %v563, %v563
    %v573 = vshrl.u32 %v564, 16
    %v575 = vshll.u32 %v564, 16
    %v577 = vrot.slane %v575, 1
    %v578 = vor.u32 %v573, %v577
    %v580 = vshll.u32 %v565, 16
    %v582 = vrot.slane %v580, 1
    %v583 = vsel %vm298, %v578, %v582
    %v584 = vshrl.u32 %v565, 16
    %v586 = vor.u32 %v584, %v582
    %v588 = vshll.u32 %v566, 16
    %v590 = vrot.slane %v588, 1
    %v591 = vsel %vm298, %v586, %v590
    %v592 = vshrl.u32 %v566, 16
    %v594 = vor.u32 %v592, %v590
    %v596 = vshll.u32 %v567, 16
    %v598 = vrot.slane %v596, 1
    %v599 = vsel %vm298, %v594, %v598
    %v600 = vshrl.u32 %v567, 16
    %v602 = vor.u32 %v600, %v598
    %v604 = vshll.u32 %v568, 16
    %v606 = vrot.slane %v604, 1
    %v607 = vsel %vm298, %v602, %v606
    %v608 = vshrl.u32 %v568, 16
    %v610 = vor.u32 %v608, %v606
    %v612 = vshll.u32 %v569, 16
    %v614 = vrot.slane %v612, 1
    %v615 = vsel %vm298, %v610, %v614
    %v616 = vshrl.u32 %v569, 16
    %v618 = vor.u32 %v616, %v614
    %v620 = vshll.u32 %v570, 16
    %v622 = vrot.slane %v620, 1
    %v623 = vsel %vm298, %v618, %v622
    %v624 = vshrl.u32 %v570, 16
    %v626 = vor.u32 %v624, %v622
    %v628 = vshll.u32 %v571, 16
    %v630 = vrot.slane %v628, 1
    %v631 = vsel %vm298, %v626, %v630
    %639 = vst [vmem:[#allocation4 + $0x20] sm:$0xff] %v583
    %640 = vst [vmem:[#allocation4 + $0x68] sm:$0xff] %v591
    %641 = vst [vmem:[#allocation4 + $0xb0] sm:$0xff] %v599
    %642 = vst [vmem:[#allocation4 + $0xf8] sm:$0xff] %v607
    %643 = vst [vmem:[#allocation4 + $0x140] sm:$0xff] %v615
    %644 = vst [vmem:[#allocation4 + $0x188] sm:$0xff] %v623
    %645 = vst [vmem:[#allocation4 + $0x1d0] sm:$0xff] %v631
    %v646 = vld [vmem:[%s0 + $0x4] sm:$0xe]
    %v647 = vld [vmem:[%s0 + $0x8] sm:$0xf]
    %v648 = vld [vmem:[%s0 + $0xc] sm:$0xf]
    %v649 = vld [vmem:[%s0 + $0x10] sm:$0xf]
    %v650 = vld [vmem:[%s0 + $0x14] sm:$0xf]
    %v651 = vld [vmem:[%s0 + $0x18] sm:$0xf]
    %v652 = vld [vmem:[%s0 + $0x1c] sm:$0xf]
    %v653 = vld [vmem:[%s0 + $0x20] sm:$0xf]
    %v654 = vld [vmem:[%s0 + $0x24] sm:$0xf]
    %v655 = vld [vmem:[%s0 + $0x28] sm:$0xf]
    %v656 = vld [vmem:[%s0 + $0x2c] sm:$0xf]
    %v657 = vld [vmem:[%s0 + $0x30] sm:$0xf]
    %v658 = vld [vmem:[%s0 + $0x34] sm:$0xf]
    %v659 = vld [vmem:[%s0 + $0x38] sm:$0xf]
    %v660 = vld [vmem:[%s0 + $0x3c] sm:$0x1]
    %v676 = vunpack.c.l.b16 %v646
    %v677 = vunpack.c.l.b16 %v647
    %v678 = vunpack.c.l.b16 %v648
    %v679 = vunpack.c.l.b16 %v649
    %v680 = vunpack.c.l.b16 %v650
    %v681 = vunpack.c.l.b16 %v651
    %v682 = vunpack.c.l.b16 %v652
    %v683 = vunpack.c.l.b16 %v653
    %v684 = vunpack.c.l.b16 %v654
    %v685 = vunpack.c.l.b16 %v655
    %v686 = vunpack.c.l.b16 %v656
    %v687 = vunpack.c.l.b16 %v657
    %v688 = vunpack.c.l.b16 %v658
    %v689 = vunpack.c.l.b16 %v659
    %v690 = vunpack.c.l.b16 %v660
    %v691 = vpack.c.b16 %v677, %v676
    %v692 = vpack.c.b16 %v679, %v678
    %v693 = vpack.c.b16 %v681, %v680
    %v694 = vpack.c.b16 %v683, %v682
    %v695 = vpack.c.b16 %v685, %v684
    %v696 = vpack.c.b16 %v687, %v686
    %v697 = vpack.c.b16 %v689, %v688
    %v698 = vpack.c.b16 %v690, %v690
    %v699 = vrot.slane %v691, 1
    %v700 = vrot.slane %v692, 1
    %v701 = vsel %vm426, %v699, %v700
    %v702 = vrot.slane %v693, 1
    %v703 = vsel %vm426, %v700, %v702
    %v704 = vrot.slane %v694, 1
    %v705 = vsel %vm426, %v702, %v704
    %v706 = vrot.slane %v695, 1
    %v707 = vsel %vm426, %v704, %v706
    %v708 = vrot.slane %v696, 1
    %v709 = vsel %vm426, %v706, %v708
    %v710 = vrot.slane %v697, 1
    %v711 = vsel %vm426, %v708, %v710
    %v712 = vrot.slane %v698, 1
    %v713 = vsel %vm426, %v710, %v712
    %721 = vst [vmem:[#allocation4 + $0x28] sm:$0xff] %v701
    %722 = vst [vmem:[#allocation4 + $0x70] sm:$0xff] %v703
    %723 = vst [vmem:[#allocation4 + $0xb8] sm:$0xff] %v705
    %724 = vst [vmem:[#allocation4 + $0x100] sm:$0xff] %v707
    %725 = vst [vmem:[#allocation4 + $0x148] sm:$0xff] %v709
    %726 = vst [vmem:[#allocation4 + $0x190] sm:$0xff] %v711
    %727 = vst [vmem:[#allocation4 + $0x1d8] sm:$0xff] %v713
    %v728 = vld [vmem:[%s0 + $0x8] sm:$0xf]
    %v729 = vld [vmem:[%s0 + $0xc] sm:$0xf]
    %v730 = vld [vmem:[%s0 + $0x10] sm:$0xf]
    %v731 = vld [vmem:[%s0 + $0x14] sm:$0xf]
    %v732 = vld [vmem:[%s0 + $0x18] sm:$0xf]
    %v733 = vld [vmem:[%s0 + $0x1c] sm:$0xf]
    %v734 = vld [vmem:[%s0 + $0x20] sm:$0xf]
    %v735 = vld [vmem:[%s0 + $0x24] sm:$0xf]
    %v736 = vld [vmem:[%s0 + $0x28] sm:$0xf]
    %v737 = vld [vmem:[%s0 + $0x2c] sm:$0xf]
    %v738 = vld [vmem:[%s0 + $0x30] sm:$0xf]
    %v739 = vld [vmem:[%s0 + $0x34] sm:$0xf]
    %v740 = vld [vmem:[%s0 + $0x38] sm:$0xf]
    %v741 = vld [vmem:[%s0 + $0x3c] sm:$0xf]
    %v756 = vunpack.c.l.b16 %v728
    %v757 = vunpack.c.l.b16 %v729
    %v758 = vunpack.c.l.b16 %v730
    %v759 = vunpack.c.l.b16 %v731
    %v760 = vunpack.c.l.b16 %v732
    %v761 = vunpack.c.l.b16 %v733
    %v762 = vunpack.c.l.b16 %v734
    %v763 = vunpack.c.l.b16 %v735
    %v764 = vunpack.c.l.b16 %v736
    %v765 = vunpack.c.l.b16 %v737
    %v766 = vunpack.c.l.b16 %v738
    %v767 = vunpack.c.l.b16 %v739
    %v768 = vunpack.c.l.b16 %v740
    %v769 = vunpack.c.l.b16 %v741
    %v770 = vpack.c.b16 %v757, %v756
    %v771 = vpack.c.b16 %v759, %v758
    %v772 = vpack.c.b16 %v761, %v760
    %v773 = vpack.c.b16 %v763, %v762
    %v774 = vpack.c.b16 %v765, %v764
    %v775 = vpack.c.b16 %v767, %v766
    %v776 = vpack.c.b16 %v769, %v768
    %784 = vst [vmem:[#allocation4 + $0x30] sm:$0xff] %v770
    %785 = vst [vmem:[#allocation4 + $0x78] sm:$0xff] %v771
    %786 = vst [vmem:[#allocation4 + $0xc0] sm:$0xff] %v772
    %787 = vst [vmem:[#allocation4 + $0x108] sm:$0xff] %v773
    %788 = vst [vmem:[#allocation4 + $0x150] sm:$0xff] %v774
    %789 = vst [vmem:[#allocation4 + $0x198] sm:$0xff] %v775
    %790 = vst [vmem:[#allocation4 + $0x1e0] sm:$0xff] %v776
    %v791 = vld [vmem:[%s0 + $0x8] sm:$0xf]
    %v792 = vld [vmem:[%s0 + $0xc] sm:$0xf]
    %v793 = vld [vmem:[%s0 + $0x10] sm:$0xf]
    %v794 = vld [vmem:[%s0 + $0x14] sm:$0xf]
    %v795 = vld [vmem:[%s0 + $0x18] sm:$0xf]
    %v796 = vld [vmem:[%s0 + $0x1c] sm:$0xf]
    %v797 = vld [vmem:[%s0 + $0x20] sm:$0xf]
    %v798 = vld [vmem:[%s0 + $0x24] sm:$0xf]
    %v799 = vld [vmem:[%s0 + $0x28] sm:$0xf]
    %v800 = vld [vmem:[%s0 + $0x2c] sm:$0xf]
    %v801 = vld [vmem:[%s0 + $0x30] sm:$0xf]
    %v802 = vld [vmem:[%s0 + $0x34] sm:$0xf]
    %v803 = vld [vmem:[%s0 + $0x38] sm:$0xf]
    %v804 = vld [vmem:[%s0 + $0x3c] sm:$0xf]
    %v805 = vld [vmem:[%s0 + $0x40] sm:$0x1]
    %v821 = vunpack.c.l.b16 %v791
    %v822 = vunpack.c.l.b16 %v792
    %v823 = vunpack.c.l.b16 %v793
    %v824 = vunpack.c.l.b16 %v794
    %v825 = vunpack.c.l.b16 %v795
    %v826 = vunpack.c.l.b16 %v796
    %v827 = vunpack.c.l.b16 %v797
    %v828 = vunpack.c.l.b16 %v798
    %v829 = vunpack.c.l.b16 %v799
    %v830 = vunpack.c.l.b16 %v800
    %v831 = vunpack.c.l.b16 %v801
    %v832 = vunpack.c.l.b16 %v802
    %v833 = vunpack.c.l.b16 %v803
    %v834 = vunpack.c.l.b16 %v804
    %v835 = vunpack.c.l.b16 %v805
    %v836 = vpack.c.b16 %v822, %v821
    %v837 = vpack.c.b16 %v824, %v823
    %v838 = vpack.c.b16 %v826, %v825
    %v839 = vpack.c.b16 %v828, %v827
    %v840 = vpack.c.b16 %v830, %v829
    %v841 = vpack.c.b16 %v832, %v831
    %v842 = vpack.c.b16 %v834, %v833
    %v843 = vpack.c.b16 %v835, %v835
    %v845 = vshrl.u32 %v836, 16
    %v847 = vshll.u32 %v836, 16
    %v849 = vrot.slane %v847, 1
    %v850 = vor.u32 %v845, %v849
    %v852 = vshll.u32 %v837, 16
    %v854 = vrot.slane %v852, 1
    %v855 = vsel %vm298, %v850, %v854
    %v856 = vshrl.u32 %v837, 16
    %v858 = vor.u32 %v856, %v854
    %v860 = vshll.u32 %v838, 16
    %v862 = vrot.slane %v860, 1
    %v863 = vsel %vm298, %v858, %v862
    %v864 = vshrl.u32 %v838, 16
    %v866 = vor.u32 %v864, %v862
    %v868 = vshll.u32 %v839, 16
    %v870 = vrot.slane %v868, 1
    %v871 = vsel %vm298, %v866, %v870
    %v872 = vshrl.u32 %v839, 16
    %v874 = vor.u32 %v872, %v870
    %v876 = vshll.u32 %v840, 16
    %v878 = vrot.slane %v876, 1
    %v879 = vsel %vm298, %v874, %v878
    %v880 = vshrl.u32 %v840, 16
    %v882 = vor.u32 %v880, %v878
    %v884 = vshll.u32 %v841, 16
    %v886 = vrot.slane %v884, 1
    %v887 = vsel %vm298, %v882, %v886
    %v888 = vshrl.u32 %v841, 16
    %v890 = vor.u32 %v888, %v886
    %v892 = vshll.u32 %v842, 16
    %v894 = vrot.slane %v892, 1
    %v895 = vsel %vm298, %v890, %v894
    %v896 = vshrl.u32 %v842, 16
    %v898 = vor.u32 %v896, %v894
    %v900 = vshll.u32 %v843, 16
    %v902 = vrot.slane %v900, 1
    %v903 = vsel %vm298, %v898, %v902
    %911 = vst [vmem:[#allocation4 + $0x38] sm:$0xff] %v855
    %912 = vst [vmem:[#allocation4 + $0x80] sm:$0xff] %v863
    %913 = vst [vmem:[#allocation4 + $0xc8] sm:$0xff] %v871
    %914 = vst [vmem:[#allocation4 + $0x110] sm:$0xff] %v879
    %915 = vst [vmem:[#allocation4 + $0x158] sm:$0xff] %v887
    %916 = vst [vmem:[#allocation4 + $0x1a0] sm:$0xff] %v895
    %917 = vst [vmem:[#allocation4 + $0x1e8] sm:$0xff] %v903
    %v918 = vld [vmem:[%s0 + $0x8] sm:$0xe]
    %v919 = vld [vmem:[%s0 + $0xc] sm:$0xf]
    %v920 = vld [vmem:[%s0 + $0x10] sm:$0xf]
    %v921 = vld [vmem:[%s0 + $0x14] sm:$0xf]
    %v922 = vld [vmem:[%s0 + $0x18] sm:$0xf]
    %v923 = vld [vmem:[%s0 + $0x1c] sm:$0xf]
    %v924 = vld [vmem:[%s0 + $0x20] sm:$0xf]
    %v925 = vld [vmem:[%s0 + $0x24] sm:$0xf]
    %v926 = vld [vmem:[%s0 + $0x28] sm:$0xf]
    %v927 = vld [vmem:[%s0 + $0x2c] sm:$0xf]
    %v928 = vld [vmem:[%s0 + $0x30] sm:$0xf]
    %v929 = vld [vmem:[%s0 + $0x34] sm:$0xf]
    %v930 = vld [vmem:[%s0 + $0x38] sm:$0xf]
    %v931 = vld [vmem:[%s0 + $0x3c] sm:$0xf]
    %v932 = vld [vmem:[%s0 + $0x40] sm:$0x1]
    %v948 = vunpack.c.l.b16 %v918
    %v949 = vunpack.c.l.b16 %v919
    %v950 = vunpack.c.l.b16 %v920
    %v951 = vunpack.c.l.b16 %v921
    %v952 = vunpack.c.l.b16 %v922
    %v953 = vunpack.c.l.b16 %v923
    %v954 = vunpack.c.l.b16 %v924
    %v955 = vunpack.c.l.b16 %v925
    %v956 = vunpack.c.l.b16 %v926
    %v957 = vunpack.c.l.b16 %v927
    %v958 = vunpack.c.l.b16 %v928
    %v959 = vunpack.c.l.b16 %v929
    %v960 = vunpack.c.l.b16 %v930
    %v961 = vunpack.c.l.b16 %v931
    %v962 = vunpack.c.l.b16 %v932
    %v963 = vpack.c.b16 %v949, %v948
    %v964 = vpack.c.b16 %v951, %v950
    %v965 = vpack.c.b16 %v953, %v952
    %v966 = vpack.c.b16 %v955, %v954
    %v967 = vpack.c.b16 %v957, %v956
    %v968 = vpack.c.b16 %v959, %v958
    %v969 = vpack.c.b16 %v961, %v960
    %v970 = vpack.c.b16 %v962, %v962
    %v971 = vrot.slane %v963, 1
    %v972 = vrot.slane %v964, 1
    %v973 = vsel %vm426, %v971, %v972
    %v974 = vrot.slane %v965, 1
    %v975 = vsel %vm426, %v972, %v974
    %v976 = vrot.slane %v966, 1
    %v977 = vsel %vm426, %v974, %v976
    %v978 = vrot.slane %v967, 1
    %v979 = vsel %vm426, %v976, %v978
    %v980 = vrot.slane %v968, 1
    %v981 = vsel %vm426, %v978, %v980
    %v982 = vrot.slane %v969, 1
    %v983 = vsel %vm426, %v980, %v982
    %v984 = vrot.slane %v970, 1
    %v985 = vsel %vm426, %v982, %v984
    %993 = vst [vmem:[#allocation4 + $0x40] sm:$0xff] %v973
    %994 = vst [vmem:[#allocation4 + $0x88] sm:$0xff] %v975
    %995 = vst [vmem:[#allocation4 + $0xd0] sm:$0xff] %v977
    %996 = vst [vmem:[#allocation4 + $0x118] sm:$0xff] %v979
    %997 = vst [vmem:[#allocation4 + $0x160] sm:$0xff] %v981
    %998 = vst [vmem:[#allocation4 + $0x1a8] sm:$0xff] %v983
    %999 = vst [vmem:[#allocation4 + $0x1f0] sm:$0xff] %v985
    %v1000 = vld [vmem:[#allocation4] sm:$0xff]
    %v1001 = vld [vmem:[#allocation4 + $0x8] sm:$0xff]
    %v1002 = vld [vmem:[#allocation4 + $0x10] sm:$0xff]
    %v1003 = vld [vmem:[#allocation4 + $0x18] sm:$0xff]
    %v1004 = vld [vmem:[#allocation4 + $0x20] sm:$0xff]
    %v1005 = vld [vmem:[#allocation4 + $0x28] sm:$0xff]
    %v1006 = vld [vmem:[#allocation4 + $0x30] sm:$0xff]
    %v1007 = vld [vmem:[#allocation4 + $0x38] sm:$0xff]
    %v1008 = vld [vmem:[#allocation4 + $0x40] sm:$0xff]
    %v1009 = vld [vmem:[#allocation4 + $0x48] sm:$0xff]
    %v1010 = vld [vmem:[#allocation4 + $0x50] sm:$0xff]
    %v1011 = vld [vmem:[#allocation4 + $0x58] sm:$0xff]
    %v1012 = vld [vmem:[#allocation4 + $0x60] sm:$0xff]
    %v1013 = vld [vmem:[#allocation4 + $0x68] sm:$0xff]
    %v1014 = vld [vmem:[#allocation4 + $0x70] sm:$0xff]
    %v1015 = vld [vmem:[#allocation4 + $0x78] sm:$0xff]
    %v1016 = vld [vmem:[#allocation4 + $0x80] sm:$0xff]
    %v1017 = vld [vmem:[#allocation4 + $0x88] sm:$0xff]
    %v1018 = vld [vmem:[#allocation4 + $0x90] sm:$0xff]
    %v1019 = vld [vmem:[#allocation4 + $0x98] sm:$0xff]
    %v1020 = vld [vmem:[#allocation4 + $0xa0] sm:$0xff]
    %v1021 = vld [vmem:[#allocation4 + $0xa8] sm:$0xff]
    %v1022 = vld [vmem:[#allocation4 + $0xb0] sm:$0xff]
    %v1023 = vld [vmem:[#allocation4 + $0xb8] sm:$0xff]
    %v1024 = vld [vmem:[#allocation4 + $0xc0] sm:$0xff]
    %v1025 = vld [vmem:[#allocation4 + $0xc8] sm:$0xff]
    %v1026 = vld [vmem:[#allocation4 + $0xd0] sm:$0xff]
    %v1027 = vld [vmem:[#allocation4 + $0xd8] sm:$0xff]
    %v1028 = vld [vmem:[#allocation4 + $0xe0] sm:$0xff]
    %v1029 = vld [vmem:[#allocation4 + $0xe8] sm:$0xff]
    %v1030 = vld [vmem:[#allocation4 + $0xf0] sm:$0xff]
    %v1031 = vld [vmem:[#allocation4 + $0xf8] sm:$0xff]
    %v1032 = vld [vmem:[#allocation4 + $0x100] sm:$0xff]
    %v1033 = vld [vmem:[#allocation4 + $0x108] sm:$0xff]
    %v1034 = vld [vmem:[#allocation4 + $0x110] sm:$0xff]
    %v1035 = vld [vmem:[#allocation4 + $0x118] sm:$0xff]
    %v1036 = vld [vmem:[#allocation4 + $0x120] sm:$0xff]
    %v1037 = vld [vmem:[#allocation4 + $0x128] sm:$0xff]
    %v1038 = vld [vmem:[#allocation4 + $0x130] sm:$0xff]
    %v1039 = vld [vmem:[#allocation4 + $0x138] sm:$0xff]
    %v1040 = vld [vmem:[#allocation4 + $0x140] sm:$0xff]
    %v1041 = vld [vmem:[#allocation4 + $0x148] sm:$0xff]
    %v1042 = vld [vmem:[#allocation4 + $0x150] sm:$0xff]
    %v1043 = vld [vmem:[#allocation4 + $0x158] sm:$0xff]
    %v1044 = vld [vmem:[#allocation4 + $0x160] sm:$0xff]
    %v1045 = vld [vmem:[#allocation4 + $0x168] sm:$0xff]
    %v1046 = vld [vmem:[#allocation4 + $0x170] sm:$0xff]
    %v1047 = vld [vmem:[#allocation4 + $0x178] sm:$0xff]
    %v1048 = vld [vmem:[#allocation4 + $0x180] sm:$0xff]
    %v1049 = vld [vmem:[#allocation4 + $0x188] sm:$0xff]
    %v1050 = vld [vmem:[#allocation4 + $0x190] sm:$0xff]
    %v1051 = vld [vmem:[#allocation4 + $0x198] sm:$0xff]
    %v1052 = vld [vmem:[#allocation4 + $0x1a0] sm:$0xff]
    %v1053 = vld [vmem:[#allocation4 + $0x1a8] sm:$0xff]
    %v1054 = vld [vmem:[#allocation4 + $0x1b0] sm:$0xff]
    %v1055 = vld [vmem:[#allocation4 + $0x1b8] sm:$0xff]
    %v1056 = vld [vmem:[#allocation4 + $0x1c0] sm:$0xff]
    %v1057 = vld [vmem:[#allocation4 + $0x1c8] sm:$0xff]
    %v1058 = vld [vmem:[#allocation4 + $0x1d0] sm:$0xff]
    %v1059 = vld [vmem:[#allocation4 + $0x1d8] sm:$0xff]
    %v1060 = vld [vmem:[#allocation4 + $0x1e0] sm:$0xff]
    %v1061 = vld [vmem:[#allocation4 + $0x1e8] sm:$0xff]
    %v1062 = vld [vmem:[#allocation4 + $0x1f0] sm:$0xff]
    %v1063 = vld [vmem:[%s1] sm:$0xf]
    %v1064 = vld [vmem:[%s1 + $0x4] sm:$0xf]
    %v1065 = vld [vmem:[%s1 + $0x8] sm:$0xf]
    %v1066 = vld [vmem:[%s1 + $0xc] sm:$0xf]
    %v1067 = vld [vmem:[%s1 + $0x10] sm:$0xf]
    %v1068 = vld [vmem:[%s1 + $0x14] sm:$0xf]
    %v1069 = vld [vmem:[%s1 + $0x18] sm:$0xf]
    %v1070 = vld [vmem:[%s1 + $0x1c] sm:$0xf]
    %v1071 = vld [vmem:[%s1 + $0x20] sm:$0xf]
    %v1072 = vld [vmem:[%s1 + $0x24] sm:$0xf]
    %v1073 = vld [vmem:[%s1 + $0x28] sm:$0xf]
    %v1074 = vld [vmem:[%s1 + $0x2c] sm:$0xf]
    %v1075 = vld [vmem:[%s1 + $0x30] sm:$0xf]
    %v1076 = vld [vmem:[%s1 + $0x34] sm:$0xf]
    %v1077 = vld [vmem:[%s1 + $0x38] sm:$0xf]
    %v1078 = vld [vmem:[%s1 + $0x3c] sm:$0xf]
    %v1079 = vld [vmem:[%s1 + $0x40] sm:$0xf]
    %v1080 = vld [vmem:[%s1 + $0x44] sm:$0xf]
    %v1081 = vld [vmem:[%s1 + $0x48] sm:$0xf]
    %v1082 = vld [vmem:[%s1 + $0x4c] sm:$0xf]
    %v1083 = vld [vmem:[%s1 + $0x50] sm:$0xf]
    %v1084 = vld [vmem:[%s1 + $0x54] sm:$0xf]
    %v1085 = vld [vmem:[%s1 + $0x58] sm:$0xf]
    %v1086 = vld [vmem:[%s1 + $0x5c] sm:$0xf]
    %v1087 = vld [vmem:[%s1 + $0x60] sm:$0xf]
    %v1088 = vld [vmem:[%s1 + $0x64] sm:$0xf]
    %v1089 = vld [vmem:[%s1 + $0x68] sm:$0xf]
    %v1090 = vld [vmem:[%s1 + $0x6c] sm:$0xf]
    %v1091 = vld [vmem:[%s1 + $0x70] sm:$0xf]
    %v1092 = vld [vmem:[%s1 + $0x74] sm:$0xf]
    %v1093 = vld [vmem:[%s1 + $0x78] sm:$0xf]
    %v1094 = vld [vmem:[%s1 + $0x7c] sm:$0xf]
    %v1095 = vld [vmem:[%s1 + $0x80] sm:$0xf]
    %v1096 = vld [vmem:[%s1 + $0x84] sm:$0xf]
    %v1097 = vld [vmem:[%s1 + $0x88] sm:$0xf]
    %v1098 = vld [vmem:[%s1 + $0x8c] sm:$0xf]
    %v1099 = vld [vmem:[%s1 + $0x90] sm:$0xf]
    %v1100 = vld [vmem:[%s1 + $0x94] sm:$0xf]
    %v1101 = vld [vmem:[%s1 + $0x98] sm:$0xf]
    %v1102 = vld [vmem:[%s1 + $0x9c] sm:$0xf]
    %v1103 = vld [vmem:[%s1 + $0xa0] sm:$0xf]
    %v1104 = vld [vmem:[%s1 + $0xa4] sm:$0xf]
    %v1105 = vld [vmem:[%s1 + $0xa8] sm:$0xf]
    %v1106 = vld [vmem:[%s1 + $0xac] sm:$0xf]
    %v1107 = vld [vmem:[%s1 + $0xb0] sm:$0xf]
    %v1108 = vld [vmem:[%s1 + $0xb4] sm:$0xf]
    %v1109 = vld [vmem:[%s1 + $0xb8] sm:$0xf]
    %v1110 = vld [vmem:[%s1 + $0xbc] sm:$0xf]
    %v1111 = vld [vmem:[%s1 + $0xc0] sm:$0xf]
    %v1112 = vld [vmem:[%s1 + $0xc4] sm:$0xf]
    %v1113 = vld [vmem:[%s1 + $0xc8] sm:$0xf]
    %v1114 = vld [vmem:[%s1 + $0xcc] sm:$0xf]
    %v1115 = vld [vmem:[%s1 + $0xd0] sm:$0xf]
    %v1116 = vld [vmem:[%s1 + $0xd4] sm:$0xf]
    %v1117 = vld [vmem:[%s1 + $0xd8] sm:$0xf]
    %v1118 = vld [vmem:[%s1 + $0xdc] sm:$0xf]
    %v1119 = vld [vmem:[%s1 + $0xe0] sm:$0xf]
    %v1120 = vld [vmem:[%s1 + $0xe4] sm:$0xf]
    %v1121 = vld [vmem:[%s1 + $0xe8] sm:$0xf]
    %v1122 = vld [vmem:[%s1 + $0xec] sm:$0xf]
    %v1123 = vld [vmem:[%s1 + $0xf0] sm:$0xf]
    %v1124 = vld [vmem:[%s1 + $0xf4] sm:$0xf]
    %v1125 = vld [vmem:[%s1 + $0xf8] sm:$0xf]
    %v1126 = vld [vmem:[%s1 + $0xfc] sm:$0xf]
    %v1127 = vld [vmem:[%s1 + $0x100] sm:$0xf]
    %v1128 = vld [vmem:[%s1 + $0x104] sm:$0xf]
    %v1129 = vld [vmem:[%s1 + $0x108] sm:$0xf]
    %v1130 = vld [vmem:[%s1 + $0x10c] sm:$0xf]
    %v1131 = vld [vmem:[%s1 + $0x110] sm:$0xf]
    %v1132 = vld [vmem:[%s1 + $0x114] sm:$0xf]
    %v1133 = vld [vmem:[%s1 + $0x118] sm:$0xf]
    %v1134 = vld [vmem:[%s1 + $0x11c] sm:$0xf]
    %v1135 = vld [vmem:[%s1 + $0x120] sm:$0xf]
    %v1136 = vld [vmem:[%s1 + $0x124] sm:$0xf]
    %v1137 = vld [vmem:[%s1 + $0x128] sm:$0xf]
    %v1138 = vld [vmem:[%s1 + $0x12c] sm:$0xf]
    %v1139 = vld [vmem:[%s1 + $0x130] sm:$0xf]
    %v1140 = vld [vmem:[%s1 + $0x134] sm:$0xf]
    %v1141 = vld [vmem:[%s1 + $0x138] sm:$0xf]
    %v1142 = vld [vmem:[%s1 + $0x13c] sm:$0xf]
    %v1143 = vld [vmem:[%s1 + $0x140] sm:$0xf]
    %v1144 = vld [vmem:[%s1 + $0x144] sm:$0xf]
    %v1145 = vld [vmem:[%s1 + $0x148] sm:$0xf]
    %v1146 = vld [vmem:[%s1 + $0x14c] sm:$0xf]
    %v1147 = vld [vmem:[%s1 + $0x150] sm:$0xf]
    %v1148 = vld [vmem:[%s1 + $0x154] sm:$0xf]
    %v1149 = vld [vmem:[%s1 + $0x158] sm:$0xf]
    %v1150 = vld [vmem:[%s1 + $0x15c] sm:$0xf]
    %v1151 = vld [vmem:[%s1 + $0x160] sm:$0xf]
    %v1152 = vld [vmem:[%s1 + $0x164] sm:$0xf]
    %v1153 = vld [vmem:[%s1 + $0x168] sm:$0xf]
    %v1154 = vld [vmem:[%s1 + $0x16c] sm:$0xf]
    %v1155 = vld [vmem:[%s1 + $0x170] sm:$0xf]
    %v1156 = vld [vmem:[%s1 + $0x174] sm:$0xf]
    %v1157 = vld [vmem:[%s1 + $0x178] sm:$0xf]
    %v1158 = vld [vmem:[%s1 + $0x17c] sm:$0xf]
    %v1159 = vld [vmem:[%s1 + $0x180] sm:$0xf]
    %v1160 = vld [vmem:[%s1 + $0x184] sm:$0xf]
    %v1161 = vld [vmem:[%s1 + $0x188] sm:$0xf]
    %v1162 = vld [vmem:[%s1 + $0x18c] sm:$0xf]
    %v1163 = vld [vmem:[%s1 + $0x190] sm:$0xf]
    %v1164 = vld [vmem:[%s1 + $0x194] sm:$0xf]
    %v1165 = vld [vmem:[%s1 + $0x198] sm:$0xf]
    %v1166 = vld [vmem:[%s1 + $0x19c] sm:$0xf]
    %v1167 = vld [vmem:[%s1 + $0x1a0] sm:$0xf]
    %v1168 = vld [vmem:[%s1 + $0x1a4] sm:$0xf]
    %v1169 = vld [vmem:[%s1 + $0x1a8] sm:$0xf]
    %v1170 = vld [vmem:[%s1 + $0x1ac] sm:$0xf]
    %v1171 = vld [vmem:[%s1 + $0x1b0] sm:$0xf]
    %v1172 = vld [vmem:[%s1 + $0x1b4] sm:$0xf]
    %v1173 = vld [vmem:[%s1 + $0x1b8] sm:$0xf]
    %v1174 = vld [vmem:[%s1 + $0x1bc] sm:$0xf]
    %v1175 = vld [vmem:[%s1 + $0x1c0] sm:$0xf]
    %v1176 = vld [vmem:[%s1 + $0x1c4] sm:$0xf]
    %v1177 = vld [vmem:[%s1 + $0x1c8] sm:$0xf]
    %v1178 = vld [vmem:[%s1 + $0x1cc] sm:$0xf]
    %v1179 = vld [vmem:[%s1 + $0x1d0] sm:$0xf]
    %v1180 = vld [vmem:[%s1 + $0x1d4] sm:$0xf]
    %v1181 = vld [vmem:[%s1 + $0x1d8] sm:$0xf]
    %v1182 = vld [vmem:[%s1 + $0x1dc] sm:$0xf]
    %v1183 = vld [vmem:[%s1 + $0x1e0] sm:$0xf]
    %v1184 = vld [vmem:[%s1 + $0x1e4] sm:$0xf]
    %v1185 = vld [vmem:[%s1 + $0x1e8] sm:$0xf]
    %v1186 = vld [vmem:[%s1 + $0x1ec] sm:$0xf]
    %v1187 = vld [vmem:[%s1 + $0x1f0] sm:$0xf]
    %v1188 = vld [vmem:[%s1 + $0x1f4] sm:$0xf]
    %v1189 = vld [vmem:[%s1 + $0x1f8] sm:$0xf]
    %v1190 = vld [vmem:[%s1 + $0x1fc] sm:$0xf]
    %v1191 = vld [vmem:[%s1 + $0x200] sm:$0xf]
    %v1192 = vld [vmem:[%s1 + $0x204] sm:$0xf]
    %v1193 = vld [vmem:[%s1 + $0x208] sm:$0xf]
    %v1194 = vld [vmem:[%s1 + $0x20c] sm:$0xf]
    %v1195 = vld [vmem:[%s1 + $0x210] sm:$0xf]
    %v1196 = vld [vmem:[%s1 + $0x214] sm:$0xf]
    %v1197 = vld [vmem:[%s1 + $0x218] sm:$0xf]
    %v1198 = vld [vmem:[%s1 + $0x21c] sm:$0xf]
    %v1199 = vld [vmem:[%s1 + $0x220] sm:$0xf]
    %v1200 = vld [vmem:[%s1 + $0x224] sm:$0xf]
    %v1201 = vld [vmem:[%s1 + $0x228] sm:$0xf]
    %v1202 = vld [vmem:[%s1 + $0x22c] sm:$0xf]
    %v1203 = vld [vmem:[%s1 + $0x230] sm:$0xf]
    %v1204 = vld [vmem:[%s1 + $0x234] sm:$0xf]
    %v1205 = vld [vmem:[%s1 + $0x238] sm:$0xf]
    %v1206 = vld [vmem:[%s1 + $0x23c] sm:$0xf]
    %v1351 = vunpack.c.l.b16 %v1063
    %v1352 = vunpack.c.l.b16 %v1064
    %v1353 = vunpack.c.l.b16 %v1065
    %v1354 = vunpack.c.l.b16 %v1066
    %v1355 = vunpack.c.l.b16 %v1067
    %v1356 = vunpack.c.l.b16 %v1068
    %v1357 = vunpack.c.l.b16 %v1069
    %v1358 = vunpack.c.l.b16 %v1070
    %v1359 = vunpack.c.l.b16 %v1071
    %v1360 = vunpack.c.l.b16 %v1072
    %v1361 = vunpack.c.l.b16 %v1073
    %v1362 = vunpack.c.l.b16 %v1074
    %v1363 = vunpack.c.l.b16 %v1075
    %v1364 = vunpack.c.l.b16 %v1076
    %v1365 = vunpack.c.l.b16 %v1077
    %v1366 = vunpack.c.l.b16 %v1078
    %v1367 = vunpack.c.l.b16 %v1079
    %v1368 = vunpack.c.l.b16 %v1080
    %v1369 = vunpack.c.l.b16 %v1081
    %v1370 = vunpack.c.l.b16 %v1082
    %v1371 = vunpack.c.l.b16 %v1083
    %v1372 = vunpack.c.l.b16 %v1084
    %v1373 = vunpack.c.l.b16 %v1085
    %v1374 = vunpack.c.l.b16 %v1086
    %v1375 = vunpack.c.l.b16 %v1087
    %v1376 = vunpack.c.l.b16 %v1088
    %v1377 = vunpack.c.l.b16 %v1089
    %v1378 = vunpack.c.l.b16 %v1090
    %v1379 = vunpack.c.l.b16 %v1091
    %v1380 = vunpack.c.l.b16 %v1092
    %v1381 = vunpack.c.l.b16 %v1093
    %v1382 = vunpack.c.l.b16 %v1094
    %v1383 = vunpack.c.l.b16 %v1095
    %v1384 = vunpack.c.l.b16 %v1096
    %v1385 = vunpack.c.l.b16 %v1097
    %v1386 = vunpack.c.l.b16 %v1098
    %v1387 = vunpack.c.l.b16 %v1099
    %v1388 = vunpack.c.l.b16 %v1100
    %v1389 = vunpack.c.l.b16 %v1101
    %v1390 = vunpack.c.l.b16 %v1102
    %v1391 = vunpack.c.l.b16 %v1103
    %v1392 = vunpack.c.l.b16 %v1104
    %v1393 = vunpack.c.l.b16 %v1105
    %v1394 = vunpack.c.l.b16 %v1106
    %v1395 = vunpack.c.l.b16 %v1107
    %v1396 = vunpack.c.l.b16 %v1108
    %v1397 = vunpack.c.l.b16 %v1109
    %v1398 = vunpack.c.l.b16 %v1110
    %v1399 = vunpack.c.l.b16 %v1111
    %v1400 = vunpack.c.l.b16 %v1112
    %v1401 = vunpack.c.l.b16 %v1113
    %v1402 = vunpack.c.l.b16 %v1114
    %v1403 = vunpack.c.l.b16 %v1115
    %v1404 = vunpack.c.l.b16 %v1116
    %v1405 = vunpack.c.l.b16 %v1117
    %v1406 = vunpack.c.l.b16 %v1118
    %v1407 = vunpack.c.l.b16 %v1119
    %v1408 = vunpack.c.l.b16 %v1120
    %v1409 = vunpack.c.l.b16 %v1121
    %v1410 = vunpack.c.l.b16 %v1122
    %v1411 = vunpack.c.l.b16 %v1123
    %v1412 = vunpack.c.l.b16 %v1124
    %v1413 = vunpack.c.l.b16 %v1125
    %v1414 = vunpack.c.l.b16 %v1126
    %v1415 = vunpack.c.l.b16 %v1127
    %v1416 = vunpack.c.l.b16 %v1128
    %v1417 = vunpack.c.l.b16 %v1129
    %v1418 = vunpack.c.l.b16 %v1130
    %v1419 = vunpack.c.l.b16 %v1131
    %v1420 = vunpack.c.l.b16 %v1132
    %v1421 = vunpack.c.l.b16 %v1133
    %v1422 = vunpack.c.l.b16 %v1134
    %v1423 = vunpack.c.l.b16 %v1135
    %v1424 = vunpack.c.l.b16 %v1136
    %v1425 = vunpack.c.l.b16 %v1137
    %v1426 = vunpack.c.l.b16 %v1138
    %v1427 = vunpack.c.l.b16 %v1139
    %v1428 = vunpack.c.l.b16 %v1140
    %v1429 = vunpack.c.l.b16 %v1141
    %v1430 = vunpack.c.l.b16 %v1142
    %v1431 = vunpack.c.l.b16 %v1143
    %v1432 = vunpack.c.l.b16 %v1144
    %v1433 = vunpack.c.l.b16 %v1145
    %v1434 = vunpack.c.l.b16 %v1146
    %v1435 = vunpack.c.l.b16 %v1147
    %v1436 = vunpack.c.l.b16 %v1148
    %v1437 = vunpack.c.l.b16 %v1149
    %v1438 = vunpack.c.l.b16 %v1150
    %v1439 = vunpack.c.l.b16 %v1151
    %v1440 = vunpack.c.l.b16 %v1152
    %v1441 = vunpack.c.l.b16 %v1153
    %v1442 = vunpack.c.l.b16 %v1154
    %v1443 = vunpack.c.l.b16 %v1155
    %v1444 = vunpack.c.l.b16 %v1156
    %v1445 = vunpack.c.l.b16 %v1157
    %v1446 = vunpack.c.l.b16 %v1158
    %v1447 = vunpack.c.l.b16 %v1159
    %v1448 = vunpack.c.l.b16 %v1160
    %v1449 = vunpack.c.l.b16 %v1161
    %v1450 = vunpack.c.l.b16 %v1162
    %v1451 = vunpack.c.l.b16 %v1163
    %v1452 = vunpack.c.l.b16 %v1164
    %v1453 = vunpack.c.l.b16 %v1165
    %v1454 = vunpack.c.l.b16 %v1166
    %v1455 = vunpack.c.l.b16 %v1167
    %v1456 = vunpack.c.l.b16 %v1168
    %v1457 = vunpack.c.l.b16 %v1169
    %v1458 = vunpack.c.l.b16 %v1170
    %v1459 = vunpack.c.l.b16 %v1171
    %v1460 = vunpack.c.l.b16 %v1172
    %v1461 = vunpack.c.l.b16 %v1173
    %v1462 = vunpack.c.l.b16 %v1174
    %v1463 = vunpack.c.l.b16 %v1175
    %v1464 = vunpack.c.l.b16 %v1176
    %v1465 = vunpack.c.l.b16 %v1177
    %v1466 = vunpack.c.l.b16 %v1178
    %v1467 = vunpack.c.l.b16 %v1179
    %v1468 = vunpack.c.l.b16 %v1180
    %v1469 = vunpack.c.l.b16 %v1181
    %v1470 = vunpack.c.l.b16 %v1182
    %v1471 = vunpack.c.l.b16 %v1183
    %v1472 = vunpack.c.l.b16 %v1184
    %v1473 = vunpack.c.l.b16 %v1185
    %v1474 = vunpack.c.l.b16 %v1186
    %v1475 = vunpack.c.l.b16 %v1187
    %v1476 = vunpack.c.l.b16 %v1188
    %v1477 = vunpack.c.l.b16 %v1189
    %v1478 = vunpack.c.l.b16 %v1190
    %v1479 = vunpack.c.l.b16 %v1191
    %v1480 = vunpack.c.l.b16 %v1192
    %v1481 = vunpack.c.l.b16 %v1193
    %v1482 = vunpack.c.l.b16 %v1194
    %v1483 = vunpack.c.l.b16 %v1195
    %v1484 = vunpack.c.l.b16 %v1196
    %v1485 = vunpack.c.l.b16 %v1197
    %v1486 = vunpack.c.l.b16 %v1198
    %v1487 = vunpack.c.l.b16 %v1199
    %v1488 = vunpack.c.l.b16 %v1200
    %v1489 = vunpack.c.l.b16 %v1201
    %v1490 = vunpack.c.l.b16 %v1202
    %v1491 = vunpack.c.l.b16 %v1203
    %v1492 = vunpack.c.l.b16 %v1204
    %v1493 = vunpack.c.l.b16 %v1205
    %v1494 = vunpack.c.l.b16 %v1206
    %v1495 = vpack.c.b16 %v1352, %v1351
    %v1496 = vpack.c.b16 %v1354, %v1353
    %v1497 = vpack.c.b16 %v1356, %v1355
    %v1498 = vpack.c.b16 %v1358, %v1357
    %v1499 = vpack.c.b16 %v1360, %v1359
    %v1500 = vpack.c.b16 %v1362, %v1361
    %v1501 = vpack.c.b16 %v1364, %v1363
    %v1502 = vpack.c.b16 %v1366, %v1365
    %v1503 = vpack.c.b16 %v1368, %v1367
    %v1504 = vpack.c.b16 %v1370, %v1369
    %v1505 = vpack.c.b16 %v1372, %v1371
    %v1506 = vpack.c.b16 %v1374, %v1373
    %v1507 = vpack.c.b16 %v1376, %v1375
    %v1508 = vpack.c.b16 %v1378, %v1377
    %v1509 = vpack.c.b16 %v1380, %v1379
    %v1510 = vpack.c.b16 %v1382, %v1381
    %v1511 = vpack.c.b16 %v1384, %v1383
    %v1512 = vpack.c.b16 %v1386, %v1385
    %v1513 = vpack.c.b16 %v1388, %v1387
    %v1514 = vpack.c.b16 %v1390, %v1389
    %v1515 = vpack.c.b16 %v1392, %v1391
    %v1516 = vpack.c.b16 %v1394, %v1393
    %v1517 = vpack.c.b16 %v1396, %v1395
    %v1518 = vpack.c.b16 %v1398, %v1397
    %v1519 = vpack.c.b16 %v1400, %v1399
    %v1520 = vpack.c.b16 %v1402, %v1401
    %v1521 = vpack.c.b16 %v1404, %v1403
    %v1522 = vpack.c.b16 %v1406, %v1405
    %v1523 = vpack.c.b16 %v1408, %v1407
    %v1524 = vpack.c.b16 %v1410, %v1409
    %v1525 = vpack.c.b16 %v1412, %v1411
    %v1526 = vpack.c.b16 %v1414, %v1413
    %v1527 = vpack.c.b16 %v1416, %v1415
    %v1528 = vpack.c.b16 %v1418, %v1417
    %v1529 = vpack.c.b16 %v1420, %v1419
    %v1530 = vpack.c.b16 %v1422, %v1421
    %v1531 = vpack.c.b16 %v1424, %v1423
    %v1532 = vpack.c.b16 %v1426, %v1425
    %v1533 = vpack.c.b16 %v1428, %v1427
    %v1534 = vpack.c.b16 %v1430, %v1429
    %v1535 = vpack.c.b16 %v1432, %v1431
    %v1536 = vpack.c.b16 %v1434, %v1433
    %v1537 = vpack.c.b16 %v1436, %v1435
    %v1538 = vpack.c.b16 %v1438, %v1437
    %v1539 = vpack.c.b16 %v1440, %v1439
    %v1540 = vpack.c.b16 %v1442, %v1441
    %v1541 = vpack.c.b16 %v1444, %v1443
    %v1542 = vpack.c.b16 %v1446, %v1445
    %v1543 = vpack.c.b16 %v1448, %v1447
    %v1544 = vpack.c.b16 %v1450, %v1449
    %v1545 = vpack.c.b16 %v1452, %v1451
    %v1546 = vpack.c.b16 %v1454, %v1453
    %v1547 = vpack.c.b16 %v1456, %v1455
    %v1548 = vpack.c.b16 %v1458, %v1457
    %v1549 = vpack.c.b16 %v1460, %v1459
    %v1550 = vpack.c.b16 %v1462, %v1461
    %v1551 = vpack.c.b16 %v1464, %v1463
    %v1552 = vpack.c.b16 %v1466, %v1465
    %v1553 = vpack.c.b16 %v1468, %v1467
    %v1554 = vpack.c.b16 %v1470, %v1469
    %v1555 = vpack.c.b16 %v1472, %v1471
    %v1556 = vpack.c.b16 %v1474, %v1473
    %v1557 = vpack.c.b16 %v1476, %v1475
    %v1558 = vpack.c.b16 %v1478, %v1477
    %v1559 = vpack.c.b16 %v1480, %v1479
    %v1560 = vpack.c.b16 %v1482, %v1481
    %v1561 = vpack.c.b16 %v1484, %v1483
    %v1562 = vpack.c.b16 %v1486, %v1485
    %v1563 = vpack.c.b16 %v1488, %v1487
    %v1564 = vpack.c.b16 %v1490, %v1489
    %v1565 = vpack.c.b16 %v1492, %v1491
    %v1566 = vpack.c.b16 %v1494, %v1493
    %1639 = vmatprep.subr.bf16.mxu0 0
    %1640 = vmatpush1.bf16.msra.mxu0 %v1495
    %1641 = vmatprep.subr.bf16.mxu0 0
    %1642 = vmatpush1.bf16.msra.mxu0 %v1496
    %1643 = vmatprep.subr.bf16.mxu0 0
    %1644 = vmatpush1.bf16.msra.mxu0 %v1497
    %1645 = vmatprep.subr.bf16.mxu0 0
    %1646 = vmatpush1.bf16.msra.mxu0 %v1498
    %1647 = vmatprep.subr.bf16.mxu0 0
    %1648 = vmatpush1.bf16.msra.mxu0 %v1499
    %1649 = vmatprep.subr.bf16.mxu0 0
    %1650 = vmatpush1.bf16.msra.mxu0 %v1500
    %1651 = vmatprep.subr.bf16.mxu0 0
    %1652 = vmatpush1.bf16.msra.mxu0 %v1501
    %1653 = vmatprep.subr.bf16.mxu0 0
    %1654 = vmatpush1.bf16.msra.mxu0 %v1502
    %1655 = vmatprep.subr.bf16.mxu0 0
    %1656 = vmatpush1.bf16.msra.mxu0 %v1503
    %1657 = vmatprep.subr.bf16.mxu0 0
    %1658 = vmatpush1.bf16.msra.mxu0 %v1504
    %1659 = vmatprep.subr.bf16.mxu0 0
    %1660 = vmatpush1.bf16.msra.mxu0 %v1505
    %1661 = vmatprep.subr.bf16.mxu0 0
    %1662 = vmatpush1.bf16.msra.mxu0 %v1506
    %1663 = vmatprep.subr.bf16.mxu0 0
    %1664 = vmatpush1.bf16.msra.mxu0 %v1507
    %1665 = vmatprep.subr.bf16.mxu0 0
    %1666 = vmatpush1.bf16.msra.mxu0 %v1508
    %1667 = vmatprep.subr.bf16.mxu0 0
    %1668 = vmatpush1.bf16.msra.mxu0 %v1509
    %1669 = vmatprep.subr.bf16.mxu0 0
    %1670 = vmatpush1.bf16.msra.mxu0 %v1510
    %1671 = vmatprep.mubr.bf16.mxu0 %v1001
    %1672 = vmatmul.mubr.bf16.gmra.mrb[0].mxu0 %v1000
    %v1673 = vpop.f32.mrb[0].mxu0
    %v1674 = vadd.f32 0.0, %v1673
    %v1675 = vpop.f32.mrb[0].mxu0
    %v1676 = vpop.f32.mrb[0].mxu0
    %v1677 = vadd.f32 0.0, %v1676
    %v1678 = vpop.f32.mrb[0].mxu0
    %1679 = vmatprep.mubr.bf16.mxu0 %v1010
    %1680 = vmatmul.mubr.bf16.gmra.mrb[0].mxu0 %v1009
    %v1681 = vpop.f32.mrb[0].mxu0
    %v1682 = vadd.f32 0.0, %v1681
    %v1683 = vpop.f32.mrb[0].mxu0
    %v1684 = vpop.f32.mrb[0].mxu0
    %v1685 = vadd.f32 0.0, %v1684
    %v1686 = vpop.f32.mrb[0].mxu0
    %1687 = vmatprep.mubr.bf16.mxu0 %v1019
    %1688 = vmatmul.mubr.bf16.gmra.mrb[0].mxu0 %v1018
    %v1689 = vpop.f32.mrb[0].mxu0
    %v1690 = vadd.f32 0.0, %v1689
    %v1691 = vpop.f32.mrb[0].mxu0
    %v1692 = vpop.f32.mrb[0].mxu0
    %v1693 = vadd.f32 0.0, %v1692
    %v1694 = vpop.f32.mrb[0].mxu0
    %1695 = vmatprep.mubr.bf16.mxu0 %v1028
    %1696 = vmatmul.mubr.bf16.gmra.mrb[0].mxu0 %v1027
    %v1697 = vpop.f32.mrb[0].mxu0
    %v1698 = vadd.f32 0.0, %v1697
    %v1699 = vpop.f32.mrb[0].mxu0
    %v1700 = vpop.f32.mrb[0].mxu0
    %v1701 = vadd.f32 0.0, %v1700
    %v1702 = vpop.f32.mrb[0].mxu0
    %1703 = vmatprep.mubr.bf16.mxu0 %v1037
    %1704 = vmatmul.mubr.bf16.gmra.mrb[0].mxu0 %v1036
    %v1705 = vpop.f32.mrb[0].mxu0
    %v1706 = vadd.f32 0.0, %v1705
    %v1707 = vpop.f32.mrb[0].mxu0
    %v1708 = vpop.f32.mrb[0].mxu0
    %v1709 = vadd.f32 0.0, %v1708
    %v1710 = vpop.f32.mrb[0].mxu0
    %1711 = vmatprep.mubr.bf16.mxu0 %v1046
    %1712 = vmatmul.mubr.bf16.gmra.mrb[0].mxu0 %v1045
    %v1713 = vpop.f32.mrb[0].mxu0
    %v1714 = vadd.f32 0.0, %v1713
    %v1715 = vpop.f32.mrb[0].mxu0
    %v1716 = vpop.f32.mrb[0].mxu0
    %v1717 = vadd.f32 0.0, %v1716
    %v1718 = vpop.f32.mrb[0].mxu0
    %1719 = vmatprep.mubr.bf16.mxu0 %v1055
    %1720 = vmatmul.mubr.bf16.gmra.mrb[0].mxu0 %v1054
    %v1721 = vpop.f32.mrb[0].mxu0
    %v1722 = vadd.f32 0.0, %v1721
    %v1723 = vpop.f32.mrb[0].mxu0
    %v1724 = vpop.f32.mrb[0].mxu0
    %v1725 = vadd.f32 0.0, %v1724
    %v1726 = vpop.f32.mrb[0].mxu0
    %1727 = vdwg.mxu0
    %1728 = vmatprep.subr.bf16.mxu0 0
    %1729 = vmatpush1.bf16.msra.mxu0 %v1511
    %1730 = vmatprep.subr.bf16.mxu0 0
    %1731 = vmatpush1.bf16.msra.mxu0 %v1512
    %1732 = vmatprep.subr.bf16.mxu0 0
    %1733 = vmatpush1.bf16.msra.mxu0 %v1513
    %1734 = vmatprep.subr.bf16.mxu0 0
    %1735 = vmatpush1.bf16.msra.mxu0 %v1514
    %1736 = vmatprep.subr.bf16.mxu0 0
    %1737 = vmatpush1.bf16.msra.mxu0 %v1515
    %1738 = vmatprep.subr.bf16.mxu0 0
    %1739 = vmatpush1.bf16.msra.mxu0 %v1516
    %1740 = vmatprep.subr.bf16.mxu0 0
    %1741 = vmatpush1.bf16.msra.mxu0 %v1517
    %1742 = vmatprep.subr.bf16.mxu0 0
    %1743 = vmatpush1.bf16.msra.mxu0 %v1518
    %1744 = vmatprep.subr.bf16.mxu0 0
    %1745 = vmatpush1.bf16.msra.mxu0 %v1519
    %1746 = vmatprep.subr.bf16.mxu0 0
    %1747 = vmatpush1.bf16.msra.mxu0 %v1520
    %1748 = vmatprep.subr.bf16.mxu0 0
    %1749 = vmatpush1.bf16.msra.mxu0 %v1521
    %1750 = vmatprep.subr.bf16.mxu0 0
    %1751 = vmatpush1.bf16.msra.mxu0 %v1522
    %1752 = vmatprep.subr.bf16.mxu0 0
    %1753 = vmatpush1.bf16.msra.mxu0 %v1523
    %1754 = vmatprep.subr.bf16.mxu0 0
    %1755 = vmatpush1.bf16.msra.mxu0 %v1524
    %1756 = vmatprep.subr.bf16.mxu0 0
    %1757 = vmatpush1.bf16.msra.mxu0 %v1525
    %1758 = vmatprep.subr.bf16.mxu0 0
    %1759 = vmatpush1.bf16.msra.mxu0 %v1526
    %1760 = vmatprep.mubr.bf16.mxu0 %v1003
    %1761 = vmatmul.mubr.bf16.gmra.mrb[0].mxu0 %v1002
    %v1762 = vpop.f32.mrb[0].mxu0
    %v1763 = vadd.f32 %v1674, %v1762
    %v1764 = vpop.f32.mrb[0].mxu0
    %v1765 = vpop.f32.mrb[0].mxu0
    %v1766 = vadd.f32 %v1677, %v1765
    %v1767 = vpop.f32.mrb[0].mxu0
    %1768 = vmatprep.mubr.bf16.mxu0 %v1012
    %1769 = vmatmul.mubr.bf16.gmra.mrb[0].mxu0 %v1011
    %v1770 = vpop.f32.mrb[0].mxu0
    %v1771 = vadd.f32 %v1682, %v1770
    %v1772 = vpop.f32.mrb[0].mxu0
    %v1773 = vpop.f32.mrb[0].mxu0
    %v1774 = vadd.f32 %v1685, %v1773
    %v1775 = vpop.f32.mrb[0].mxu0
    %1776 = vmatprep.mubr.bf16.mxu0 %v1021
    %1777 = vmatmul.mubr.bf16.gmra.mrb[0].mxu0 %v1020
    %v1778 = vpop.f32.mrb[0].mxu0
    %v1779 = vadd.f32 %v1690, %v1778
    %v1780 = vpop.f32.mrb[0].mxu0
    %v1781 = vpop.f32.mrb[0].mxu0
    %v1782 = vadd.f32 %v1693, %v1781
    %v1783 = vpop.f32.mrb[0].mxu0
    %1784 = vmatprep.mubr.bf16.mxu0 %v1030
    %1785 = vmatmul.mubr.bf16.gmra.mrb[0].mxu0 %v1029
    %v1786 = vpop.f32.mrb[0].mxu0
    %v1787 = vadd.f32 %v1698, %v1786
    %v1788 = vpop.f32.mrb[0].mxu0
    %v1789 = vpop.f32.mrb[0].mxu0
    %v1790 = vadd.f32 %v1701, %v1789
    %v1791 = vpop.f32.mrb[0].mxu0
    %1792 = vmatprep.mubr.bf16.mxu0 %v1039
    %1793 = vmatmul.mubr.bf16.gmra.mrb[0].mxu0 %v1038
    %v1794 = vpop.f32.mrb[0].mxu0
    %v1795 = vadd.f32 %v1706, %v1794
    %v1796 = vpop.f32.mrb[0].mxu0
    %v1797 = vpop.f32.mrb[0].mxu0
    %v1798 = vadd.f32 %v1709, %v1797
    %v1799 = vpop.f32.mrb[0].mxu0
    %1800 = vmatprep.mubr.bf16.mxu0 %v1048
    %1801 = vmatmul.mubr.bf16.gmra.mrb[0].mxu0 %v1047
    %v1802 = vpop.f32.mrb[0].mxu0
    %v1803 = vadd.f32 %v1714, %v1802
    %v1804 = vpop.f32.mrb[0].mxu0
    %v1805 = vpop.f32.mrb[0].mxu0
    %v1806 = vadd.f32 %v1717, %v1805
    %v1807 = vpop.f32.mrb[0].mxu0
    %1808 = vmatprep.mubr.bf16.mxu0 %v1057
    %1809 = vmatmul.mubr.bf16.gmra.mrb[0].mxu0 %v1056
    %v1810 = vpop.f32.mrb[0].mxu0
    %v1811 = vadd.f32 %v1722, %v1810
    %v1812 = vpop.f32.mrb[0].mxu0
    %v1813 = vpop.f32.mrb[0].mxu0
    %v1814 = vadd.f32 %v1725, %v1813
    %v1815 = vpop.f32.mrb[0].mxu0
    %1816 = vdwg.mxu0
    %1817 = vmatprep.subr.bf16.mxu0 0
    %1818 = vmatpush1.bf16.msra.mxu0 %v1527
    %1819 = vmatprep.subr.bf16.mxu0 0
    %1820 = vmatpush1.bf16.msra.mxu0 %v1528
    %1821 = vmatprep.subr.bf16.mxu0 0
    %1822 = vmatpush1.bf16.msra.mxu0 %v1529
    %1823 = vmatprep.subr.bf16.mxu0 0
    %1824 = vmatpush1.bf16.msra.mxu0 %v1530
    %1825 = vmatprep.subr.bf16.mxu0 0
    %1826 = vmatpush1.bf16.msra.mxu0 %v1531
    %1827 = vmatprep.subr.bf16.mxu0 0
    %1828 = vmatpush1.bf16.msra.mxu0 %v1532
    %1829 = vmatprep.subr.bf16.mxu0 0
    %1830 = vmatpush1.bf16.msra.mxu0 %v1533
    %1831 = vmatprep.subr.bf16.mxu0 0
    %1832 = vmatpush1.bf16.msra.mxu0 %v1534
    %1833 = vmatprep.subr.bf16.mxu0 0
    %1834 = vmatpush1.bf16.msra.mxu0 %v1535
    %1835 = vmatprep.subr.bf16.mxu0 0
    %1836 = vmatpush1.bf16.msra.mxu0 %v1536
    %1837 = vmatprep.subr.bf16.mxu0 0
    %1838 = vmatpush1.bf16.msra.mxu0 %v1537
    %1839 = vmatprep.subr.bf16.mxu0 0
    %1840 = vmatpush1.bf16.msra.mxu0 %v1538
    %1841 = vmatprep.subr.bf16.mxu0 0
    %1842 = vmatpush1.bf16.msra.mxu0 %v1539
    %1843 = vmatprep.subr.bf16.mxu0 0
    %1844 = vmatpush1.bf16.msra.mxu0 %v1540
    %1845 = vmatprep.subr.bf16.mxu0 0
    %1846 = vmatpush1.bf16.msra.mxu0 %v1541
    %1847 = vmatprep.subr.bf16.mxu0 0
    %1848 = vmatpush1.bf16.msra.mxu0 %v1542
    %1849 = vmatprep.mubr.bf16.mxu0 %v1005
    %1850 = vmatmul.mubr.bf16.gmra.mrb[0].mxu0 %v1004
    %v1851 = vpop.f32.mrb[0].mxu0
    %v1852 = vadd.f32 %v1763, %v1851
    %v1853 = vpop.f32.mrb[0].mxu0
    %v1854 = vpop.f32.mrb[0].mxu0
    %v1855 = vadd.f32 %v1766, %v1854
    %v1856 = vpop.f32.mrb[0].mxu0
    %1857 = vmatprep.mubr.bf16.mxu0 %v1014
    %1858 = vmatmul.mubr.bf16.gmra.mrb[0].mxu0 %v1013
    %v1859 = vpop.f32.mrb[0].mxu0
    %v1860 = vadd.f32 %v1771, %v1859
    %v1861 = vpop.f32.mrb[0].mxu0
    %v1862 = vpop.f32.mrb[0].mxu0
    %v1863 = vadd.f32 %v1774, %v1862
    %v1864 = vpop.f32.mrb[0].mxu0
    %1865 = vmatprep.mubr.bf16.mxu0 %v1023
    %1866 = vmatmul.mubr.bf16.gmra.mrb[0].mxu0 %v1022
    %v1867 = vpop.f32.mrb[0].mxu0
    %v1868 = vadd.f32 %v1779, %v1867
    %v1869 = vpop.f32.mrb[0].mxu0
    %v1870 = vpop.f32.mrb[0].mxu0
    %v1871 = vadd.f32 %v1782, %v1870
    %v1872 = vpop.f32.mrb[0].mxu0
    %1873 = vmatprep.mubr.bf16.mxu0 %v1032
    %1874 = vmatmul.mubr.bf16.gmra.mrb[0].mxu0 %v1031
    %v1875 = vpop.f32.mrb[0].mxu0
    %v1876 = vadd.f32 %v1787, %v1875
    %v1877 = vpop.f32.mrb[0].mxu0
    %v1878 = vpop.f32.mrb[0].mxu0
    %v1879 = vadd.f32 %v1790, %v1878
    %v1880 = vpop.f32.mrb[0].mxu0
    %1881 = vmatprep.mubr.bf16.mxu0 %v1041
    %1882 = vmatmul.mubr.bf16.gmra.mrb[0].mxu0 %v1040
    %v1883 = vpop.f32.mrb[0].mxu0
    %v1884 = vadd.f32 %v1795, %v1883
    %v1885 = vpop.f32.mrb[0].mxu0
    %v1886 = vpop.f32.mrb[0].mxu0
    %v1887 = vadd.f32 %v1798, %v1886
    %v1888 = vpop.f32.mrb[0].mxu0
    %1889 = vmatprep.mubr.bf16.mxu0 %v1050
    %1890 = vmatmul.mubr.bf16.gmra.mrb[0].mxu0 %v1049
    %v1891 = vpop.f32.mrb[0].mxu0
    %v1892 = vadd.f32 %v1803, %v1891
    %v1893 = vpop.f32.mrb[0].mxu0
    %v1894 = vpop.f32.mrb[0].mxu0
    %v1895 = vadd.f32 %v1806, %v1894
    %v1896 = vpop.f32.mrb[0].mxu0
    %1897 = vmatprep.mubr.bf16.mxu0 %v1059
    %1898 = vmatmul.mubr.bf16.gmra.mrb[0].mxu0 %v1058
    %v1899 = vpop.f32.mrb[0].mxu0
    %v1900 = vadd.f32 %v1811, %v1899
    %v1901 = vpop.f32.mrb[0].mxu0
    %v1902 = vpop.f32.mrb[0].mxu0
    %v1903 = vadd.f32 %v1814, %v1902
    %v1904 = vpop.f32.mrb[0].mxu0
    %1905 = vdwg.mxu0
    %1906 = vmatprep.subr.bf16.mxu0 0
    %1907 = vmatpush1.bf16.msra.mxu0 %v1543
    %1908 = vmatprep.subr.bf16.mxu0 0
    %1909 = vmatpush1.bf16.msra.mxu0 %v1544
    %1910 = vmatprep.subr.bf16.mxu0 0
    %1911 = vmatpush1.bf16.msra.mxu0 %v1545
    %1912 = vmatprep.subr.bf16.mxu0 0
    %1913 = vmatpush1.bf16.msra.mxu0 %v1546
    %1914 = vmatprep.subr.bf16.mxu0 0
    %1915 = vmatpush1.bf16.msra.mxu0 %v1547
    %1916 = vmatprep.subr.bf16.mxu0 0
    %1917 = vmatpush1.bf16.msra.mxu0 %v1548
    %1918 = vmatprep.subr.bf16.mxu0 0
    %1919 = vmatpush1.bf16.msra.mxu0 %v1549
    %1920 = vmatprep.subr.bf16.mxu0 0
    %1921 = vmatpush1.bf16.msra.mxu0 %v1550
    %1922 = vmatprep.subr.bf16.mxu0 0
    %1923 = vmatpush1.bf16.msra.mxu0 %v1551
    %1924 = vmatprep.subr.bf16.mxu0 0
    %1925 = vmatpush1.bf16.msra.mxu0 %v1552
    %1926 = vmatprep.subr.bf16.mxu0 0
    %1927 = vmatpush1.bf16.msra.mxu0 %v1553
    %1928 = vmatprep.subr.bf16.mxu0 0
    %1929 = vmatpush1.bf16.msra.mxu0 %v1554
    %1930 = vmatprep.subr.bf16.mxu0 0
    %1931 = vmatpush1.bf16.msra.mxu0 %v1555
    %1932 = vmatprep.subr.bf16.mxu0 0
    %1933 = vmatpush1.bf16.msra.mxu0 %v1556
    %1934 = vmatprep.subr.bf16.mxu0 0
    %1935 = vmatpush1.bf16.msra.mxu0 %v1557
    %1936 = vmatprep.subr.bf16.mxu0 0
    %1937 = vmatpush1.bf16.msra.mxu0 %v1558
    %1938 = vmatprep.mubr.bf16.mxu0 %v1007
    %1939 = vmatmul.mubr.bf16.gmra.mrb[0].mxu0 %v1006
    %v1940 = vpop.f32.mrb[0].mxu0
    %v1941 = vadd.f32 %v1852, %v1940
    %v1942 = vpop.f32.mrb[0].mxu0
    %v1943 = vpop.f32.mrb[0].mxu0
    %v1944 = vadd.f32 %v1855, %v1943
    %v1945 = vpop.f32.mrb[0].mxu0
    %1946 = vmatprep.mubr.bf16.mxu0 %v1016
    %1947 = vmatmul.mubr.bf16.gmra.mrb[0].mxu0 %v1015
    %v1948 = vpop.f32.mrb[0].mxu0
    %v1949 = vadd.f32 %v1860, %v1948
    %v1950 = vpop.f32.mrb[0].mxu0
    %v1951 = vpop.f32.mrb[0].mxu0
    %v1952 = vadd.f32 %v1863, %v1951
    %v1953 = vpop.f32.mrb[0].mxu0
    %1954 = vmatprep.mubr.bf16.mxu0 %v1025
    %1955 = vmatmul.mubr.bf16.gmra.mrb[0].mxu0 %v1024
    %v1956 = vpop.f32.mrb[0].mxu0
    %v1957 = vadd.f32 %v1868, %v1956
    %v1958 = vpop.f32.mrb[0].mxu0
    %v1959 = vpop.f32.mrb[0].mxu0
    %v1960 = vadd.f32 %v1871, %v1959
    %v1961 = vpop.f32.mrb[0].mxu0
    %1962 = vmatprep.mubr.bf16.mxu0 %v1034
    %1963 = vmatmul.mubr.bf16.gmra.mrb[0].mxu0 %v1033
    %v1964 = vpop.f32.mrb[0].mxu0
    %v1965 = vadd.f32 %v1876, %v1964
    %v1966 = vpop.f32.mrb[0].mxu0
    %v1967 = vpop.f32.mrb[0].mxu0
    %v1968 = vadd.f32 %v1879, %v1967
    %v1969 = vpop.f32.mrb[0].mxu0
    %1970 = vmatprep.mubr.bf16.mxu0 %v1043
    %1971 = vmatmul.mubr.bf16.gmra.mrb[0].mxu0 %v1042
    %v1972 = vpop.f32.mrb[0].mxu0
    %v1973 = vadd.f32 %v1884, %v1972
    %v1974 = vpop.f32.mrb[0].mxu0
    %v1975 = vpop.f32.mrb[0].mxu0
    %v1976 = vadd.f32 %v1887, %v1975
    %v1977 = vpop.f32.mrb[0].mxu0
    %1978 = vmatprep.mubr.bf16.mxu0 %v1052
    %1979 = vmatmul.mubr.bf16.gmra.mrb[0].mxu0 %v1051
    %v1980 = vpop.f32.mrb[0].mxu0
    %v1981 = vadd.f32 %v1892, %v1980
    %v1982 = vpop.f32.mrb[0].mxu0
    %v1983 = vpop.f32.mrb[0].mxu0
    %v1984 = vadd.f32 %v1895, %v1983
    %v1985 = vpop.f32.mrb[0].mxu0
    %1986 = vmatprep.mubr.bf16.mxu0 %v1061
    %1987 = vmatmul.mubr.bf16.gmra.mrb[0].mxu0 %v1060
    %v1988 = vpop.f32.mrb[0].mxu0
    %v1989 = vadd.f32 %v1900, %v1988
    %v1990 = vpop.f32.mrb[0].mxu0
    %v1991 = vpop.f32.mrb[0].mxu0
    %v1992 = vadd.f32 %v1903, %v1991
    %v1993 = vpop.f32.mrb[0].mxu0
    %1994 = vdwg.mxu0
    %1995 = vmatprep.subr.bf16.mxu0 0
    %1996 = vmatpush1.bf16.msra.mxu0 %v1559
    %1997 = vmatprep.subr.bf16.mxu0 0
    %1998 = vmatpush1.bf16.msra.mxu0 %v1560
    %1999 = vmatprep.subr.bf16.mxu0 0
    %2000 = vmatpush1.bf16.msra.mxu0 %v1561
    %2001 = vmatprep.subr.bf16.mxu0 0
    %2002 = vmatpush1.bf16.msra.mxu0 %v1562
    %2003 = vmatprep.subr.bf16.mxu0 0
    %2004 = vmatpush1.bf16.msra.mxu0 %v1563
    %2005 = vmatprep.subr.bf16.mxu0 0
    %2006 = vmatpush1.bf16.msra.mxu0 %v1564
    %2007 = vmatprep.subr.bf16.mxu0 0
    %2008 = vmatpush1.bf16.msra.mxu0 %v1565
    %2009 = vmatprep.subr.bf16.mxu0 0
    %2010 = vmatpush1.bf16.msra.mxu0 %v1566
    %2011 = vmatprep.subr.bf16.mxu0 0
    %2012 = vmatpush1.bf16.msra.mxu0 0
    %2013 = vmatprep.subr.bf16.mxu0 0
    %2014 = vmatpush1.bf16.msra.mxu0 0
    %2015 = vmatprep.subr.bf16.mxu0 0
    %2016 = vmatpush1.bf16.msra.mxu0 0
    %2017 = vmatprep.subr.bf16.mxu0 0
    %2018 = vmatpush1.bf16.msra.mxu0 0
    %2019 = vmatprep.subr.bf16.mxu0 0
    %2020 = vmatpush1.bf16.msra.mxu0 0
    %2021 = vmatprep.subr.bf16.mxu0 0
    %2022 = vmatpush1.bf16.msra.mxu0 0
    %2023 = vmatprep.subr.bf16.mxu0 0
    %2024 = vmatpush1.bf16.msra.mxu0 0
    %2025 = vmatprep.subr.bf16.mxu0 0
    %2026 = vmatpush1.bf16.msra.mxu0 0
    %2027 = vmatprep.mubr.bf16.mxu0 0
    %2028 = vmatmul.mubr.bf16.gmra.mrb[0].mxu0 %v1008
    %v2029 = vpop.f32.mrb[0].mxu0
    %v2030 = vadd.f32 %v1941, %v2029
    %v2031 = vpop.f32.mrb[0].mxu0
    %v2032 = vpop.f32.mrb[0].mxu0
    %v2033 = vadd.f32 %v1944, %v2032
    %v2034 = vpop.f32.mrb[0].mxu0
    %2035 = vmatprep.mubr.bf16.mxu0 0
    %2036 = vmatmul.mubr.bf16.gmra.mrb[0].mxu0 %v1017
    %v2037 = vpop.f32.mrb[0].mxu0
    %v2038 = vadd.f32 %v1949, %v2037
    %v2039 = vpop.f32.mrb[0].mxu0
    %v2040 = vpop.f32.mrb[0].mxu0
    %v2041 = vadd.f32 %v1952, %v2040
    %v2042 = vpop.f32.mrb[0].mxu0
    %2043 = vmatprep.mubr.bf16.mxu0 0
    %2044 = vmatmul.mubr.bf16.gmra.mrb[0].mxu0 %v1026
    %v2045 = vpop.f32.mrb[0].mxu0
    %v2046 = vadd.f32 %v1957, %v2045
    %v2047 = vpop.f32.mrb[0].mxu0
    %v2048 = vpop.f32.mrb[0].mxu0
    %v2049 = vadd.f32 %v1960, %v2048
    %v2050 = vpop.f32.mrb[0].mxu0
    %2051 = vmatprep.mubr.bf16.mxu0 0
    %2052 = vmatmul.mubr.bf16.gmra.mrb[0].mxu0 %v1035
    %v2053 = vpop.f32.mrb[0].mxu0
    %v2054 = vadd.f32 %v1965, %v2053
    %v2055 = vpop.f32.mrb[0].mxu0
    %v2056 = vpop.f32.mrb[0].mxu0
    %v2057 = vadd.f32 %v1968, %v2056
    %v2058 = vpop.f32.mrb[0].mxu0
    %2059 = vmatprep.mubr.bf16.mxu0 0
    %2060 = vmatmul.mubr.bf16.gmra.mrb[0].mxu0 %v1044
    %v2061 = vpop.f32.mrb[0].mxu0
    %v2062 = vadd.f32 %v1973, %v2061
    %v2063 = vpop.f32.mrb[0].mxu0
    %v2064 = vpop.f32.mrb[0].mxu0
    %v2065 = vadd.f32 %v1976, %v2064
    %v2066 = vpop.f32.mrb[0].mxu0
    %2067 = vmatprep.mubr.bf16.mxu0 0
    %2068 = vmatmul.mubr.bf16.gmra.mrb[0].mxu0 %v1053
    %v2069 = vpop.f32.mrb[0].mxu0
    %v2070 = vadd.f32 %v1981, %v2069
    %v2071 = vpop.f32.mrb[0].mxu0
    %v2072 = vpop.f32.mrb[0].mxu0
    %v2073 = vadd.f32 %v1984, %v2072
    %v2074 = vpop.f32.mrb[0].mxu0
    %2075 = vmatprep.mubr.bf16.mxu0 0
    %2076 = vmatmul.mubr.bf16.gmra.mrb[0].mxu0 %v1062
    %v2077 = vpop.f32.mrb[0].mxu0
    %v2078 = vadd.f32 %v1989, %v2077
    %v2079 = vpop.f32.mrb[0].mxu0
    %v2080 = vpop.f32.mrb[0].mxu0
    %v2081 = vadd.f32 %v1992, %v2080
    %v2082 = vpop.f32.mrb[0].mxu0
    %2083 = vdwg.mxu0
    %v2084 = vld [vmem:[%s5] sm:$0x1]
    %v2086 = vlaneseq
    %v2087 = vshrl.u32 %v2086, 7
    %v2088 = vsub.s32 0, %v2087
    %v2089 = vrot.slane %v2084, %v2088
    %v2091 = vmul.f32 %v2030, %v2089
    %v2092 = vmul.f32 %v2033, %v2089
    %v2093 = vmul.f32 %v2038, %v2089
    %v2094 = vmul.f32 %v2041, %v2089
    %v2095 = vmul.f32 %v2046, %v2089
    %v2096 = vmul.f32 %v2049, %v2089
    %v2097 = vmul.f32 %v2054, %v2089
    %v2098 = vmul.f32 %v2057, %v2089
    %v2099 = vmul.f32 %v2062, %v2089
    %v2100 = vmul.f32 %v2065, %v2089
    %v2101 = vmul.f32 %v2070, %v2089
    %v2102 = vmul.f32 %v2073, %v2089
    %v2103 = vmul.f32 %v2078, %v2089
    %v2104 = vmul.f32 %v2081, %v2089
    %v2105 = vld [vmem:[%s6] sm:$0x1]
    %v2107 = vlaneseq
    %v2108 = vshrl.u32 %v2107, 7
    %v2109 = vsub.s32 0, %v2108
    %v2110 = vrot.slane %v2105, %v2109
    %v2112 = vadd.f32 %v2091, %v2110
    %v2113 = vadd.f32 %v2092, %v2110
    %v2114 = vadd.f32 %v2093, %v2110
    %v2115 = vadd.f32 %v2094, %v2110
    %v2116 = vadd.f32 %v2095, %v2110
    %v2117 = vadd.f32 %v2096, %v2110
    %v2118 = vadd.f32 %v2097, %v2110
    %v2119 = vadd.f32 %v2098, %v2110
    %v2120 = vadd.f32 %v2099, %v2110
    %v2121 = vadd.f32 %v2100, %v2110
    %v2122 = vadd.f32 %v2101, %v2110
    %v2123 = vadd.f32 %v2102, %v2110
    %v2124 = vadd.f32 %v2103, %v2110
    %v2125 = vadd.f32 %v2104, %v2110
    %v2126 = vmax.f32 %v2112, 0.0
    %v2127 = vmax.f32 %v2113, 0.0
    %v2128 = vmax.f32 %v2114, 0.0
    %v2129 = vmax.f32 %v2115, 0.0
    %v2130 = vmax.f32 %v2116, 0.0
    %v2131 = vmax.f32 %v2117, 0.0
    %v2132 = vmax.f32 %v2118, 0.0
    %v2133 = vmax.f32 %v2119, 0.0
    %v2134 = vmax.f32 %v2120, 0.0
    %v2135 = vmax.f32 %v2121, 0.0
    %v2136 = vmax.f32 %v2122, 0.0
    %v2137 = vmax.f32 %v2123, 0.0
    %v2138 = vmax.f32 %v2124, 0.0
    %v2139 = vmax.f32 %v2125, 0.0
    %2141 = vset.pattern.permute.xlu0 0
    %2142 = vperm.xlu0 %2141, %v168
    %v2143 = vpop.permute.xlu0 %2142
    %2146 = vset.pattern.permute.xlu0 0
    %2147 = vperm.xlu0 %2146, %v169
    %v2148 = vpop.permute.xlu0 %2147
    %2151 = vset.pattern.permute.xlu0 0
    %2152 = vperm.xlu0 %2151, %v170
    %v2153 = vpop.permute.xlu0 %2152
    %2156 = vset.pattern.permute.xlu0 0
    %2157 = vperm.xlu0 %2156, %v171
    %v2158 = vpop.permute.xlu0 %2157
    %2161 = vset.pattern.permute.xlu0 0
    %2162 = vperm.xlu0 %2161, %v172
    %v2163 = vpop.permute.xlu0 %2162
    %2166 = vset.pattern.permute.xlu0 0
    %2167 = vperm.xlu0 %2166, %v173
    %v2168 = vpop.permute.xlu0 %2167
    %2171 = vset.pattern.permute.xlu0 0
    %2172 = vperm.xlu0 %2171, %v174
    %v2173 = vpop.permute.xlu0 %2172
    %2176 = vset.pattern.permute.xlu0 0
    %2177 = vperm.xlu0 %2176, %v175
    %v2178 = vpop.permute.xlu0 %2177
    %2181 = vset.pattern.permute.xlu0 0
    %2182 = vperm.xlu0 %2181, %v176
    %v2183 = vpop.permute.xlu0 %2182
    %2186 = vset.pattern.permute.xlu0 0
    %2187 = vperm.xlu0 %2186, %v177
    %v2188 = vpop.permute.xlu0 %2187
    %2191 = vset.pattern.permute.xlu0 0
    %2192 = vperm.xlu0 %2191, %v178
    %v2193 = vpop.permute.xlu0 %2192
    %2196 = vset.pattern.permute.xlu0 0
    %2197 = vperm.xlu0 %2196, %v179
    %v2198 = vpop.permute.xlu0 %2197
    %2201 = vset.pattern.permute.xlu0 0
    %2202 = vperm.xlu0 %2201, %v180
    %v2203 = vpop.permute.xlu0 %2202
    %2206 = vset.pattern.permute.xlu0 0
    %2207 = vperm.xlu0 %2206, %v181
    %v2208 = vpop.permute.xlu0 %2207
    %v2210 = vmul.f32 %v2126, %v2143
    %v2211 = vmul.f32 %v2127, %v2148
    %v2212 = vmul.f32 %v2128, %v2153
    %v2213 = vmul.f32 %v2129, %v2158
    %v2214 = vmul.f32 %v2130, %v2163
    %v2215 = vmul.f32 %v2131, %v2168
    %v2216 = vmul.f32 %v2132, %v2173
    %v2217 = vmul.f32 %v2133, %v2178
    %v2218 = vmul.f32 %v2134, %v2183
    %v2219 = vmul.f32 %v2135, %v2188
    %v2220 = vmul.f32 %v2136, %v2193
    %v2221 = vmul.f32 %v2137, %v2198
    %v2222 = vmul.f32 %v2138, %v2203
    %v2223 = vmul.f32 %v2139, %v2208
    %v2224 = vpack.c.bf16 %v2211, %v2210
    %v2225 = vpack.c.bf16 %v2213, %v2212
    %v2226 = vpack.c.bf16 %v2215, %v2214
    %v2227 = vpack.c.bf16 %v2217, %v2216
    %v2228 = vpack.c.bf16 %v2219, %v2218
    %v2229 = vpack.c.bf16 %v2221, %v2220
    %v2230 = vpack.c.bf16 %v2223, %v2222
    %v2238 = vunpack.c.l.b16 %v2224
    %v2239 = vunpack.c.h.b16 %v2224
    %v2240 = vunpack.c.l.b16 %v2225
    %v2241 = vunpack.c.h.b16 %v2225
    %v2242 = vunpack.c.l.b16 %v2226
    %v2243 = vunpack.c.h.b16 %v2226
    %v2244 = vunpack.c.l.b16 %v2227
    %v2245 = vunpack.c.h.b16 %v2227
    %v2246 = vunpack.c.l.b16 %v2228
    %v2247 = vunpack.c.h.b16 %v2228
    %v2248 = vunpack.c.l.b16 %v2229
    %v2249 = vunpack.c.h.b16 %v2229
    %v2250 = vunpack.c.l.b16 %v2230
    %v2251 = vunpack.c.h.b16 %v2230
    %v2252 = vpack.c.b16 %v2238, %v2238
    %v2253 = vpack.c.b16 %v2239, %v2239
    %v2254 = vpack.c.b16 %v2240, %v2240
    %v2255 = vpack.c.b16 %v2241, %v2241
    %v2256 = vpack.c.b16 %v2242, %v2242
    %v2257 = vpack.c.b16 %v2243, %v2243
    %v2258 = vpack.c.b16 %v2244, %v2244
    %v2259 = vpack.c.b16 %v2245, %v2245
    %v2260 = vpack.c.b16 %v2246, %v2246
    %v2261 = vpack.c.b16 %v2247, %v2247
    %v2262 = vpack.c.b16 %v2248, %v2248
    %v2263 = vpack.c.b16 %v2249, %v2249
    %v2264 = vpack.c.b16 %v2250, %v2250
    %v2265 = vpack.c.b16 %v2251, %v2251
    %vm2266 = vsmask.f32 4368
    %vm2267 = vmor %vm148, %vm2266
    %v2269 = vshrl.u32 %v2252, 16
    %v2271 = vrot.slane %v2269, 7
    %v2272 = vshll.u32 %v2252, 16
    %v2274 = vor.u32 %v2271, %v2272
    %v2275 = vrot.slane %v2271, 4
    %v2277 = vshrl.u32 %v2253, 16
    %v2279 = vrot.slane %v2277, 7
    %v2280 = vshll.u32 %v2253, 16
    %v2282 = vor.u32 %v2279, %v2280
    %v2283 = vsel %vm2267, %v2275, %v2282
    %v2284 = vrot.slane %v2279, 4
    %v2286 = vshrl.u32 %v2254, 16
    %v2288 = vrot.slane %v2286, 7
    %v2289 = vshll.u32 %v2254, 16
    %v2291 = vor.u32 %v2288, %v2289
    %v2292 = vsel %vm2267, %v2284, %v2291
    %v2293 = vrot.slane %v2288, 4
    %v2295 = vshrl.u32 %v2255, 16
    %v2297 = vrot.slane %v2295, 7
    %v2298 = vshll.u32 %v2255, 16
    %v2300 = vor.u32 %v2297, %v2298
    %v2301 = vsel %vm2267, %v2293, %v2300
    %v2302 = vrot.slane %v2297, 4
    %v2304 = vshrl.u32 %v2256, 16
    %v2306 = vrot.slane %v2304, 7
    %v2307 = vshll.u32 %v2256, 16
    %v2309 = vor.u32 %v2306, %v2307
    %v2310 = vsel %vm2267, %v2302, %v2309
    %v2311 = vrot.slane %v2306, 4
    %v2313 = vshrl.u32 %v2257, 16
    %v2315 = vrot.slane %v2313, 7
    %v2316 = vshll.u32 %v2257, 16
    %v2318 = vor.u32 %v2315, %v2316
    %v2319 = vsel %vm2267, %v2311, %v2318
    %v2320 = vrot.slane %v2315, 4
    %v2322 = vshrl.u32 %v2258, 16
    %v2324 = vrot.slane %v2322, 7
    %v2325 = vshll.u32 %v2258, 16
    %v2327 = vor.u32 %v2324, %v2325
    %v2328 = vsel %vm2267, %v2320, %v2327
    %v2329 = vrot.slane %v2324, 4
    %v2331 = vshrl.u32 %v2259, 16
    %v2333 = vrot.slane %v2331, 7
    %v2334 = vshll.u32 %v2259, 16
    %v2336 = vor.u32 %v2333, %v2334
    %v2337 = vsel %vm2267, %v2329, %v2336
    %v2338 = vrot.slane %v2333, 4
    %v2340 = vshrl.u32 %v2260, 16
    %v2342 = vrot.slane %v2340, 7
    %v2343 = vshll.u32 %v2260, 16
    %v2345 = vor.u32 %v2342, %v2343
    %v2346 = vsel %vm2267, %v2338, %v2345
    %v2347 = vrot.slane %v2342, 4
    %v2349 = vshrl.u32 %v2261, 16
    %v2351 = vrot.slane %v2349, 7
    %v2352 = vshll.u32 %v2261, 16
    %v2354 = vor.u32 %v2351, %v2352
    %v2355 = vsel %vm2267, %v2347, %v2354
    %v2356 = vrot.slane %v2351, 4
    %v2358 = vshrl.u32 %v2262, 16
    %v2360 = vrot.slane %v2358, 7
    %v2361 = vshll.u32 %v2262, 16
    %v2363 = vor.u32 %v2360, %v2361
    %v2364 = vsel %vm2267, %v2356, %v2363
    %v2365 = vrot.slane %v2360, 4
    %v2367 = vshrl.u32 %v2263, 16
    %v2369 = vrot.slane %v2367, 7
    %v2370 = vshll.u32 %v2263, 16
    %v2372 = vor.u32 %v2369, %v2370
    %v2373 = vsel %vm2267, %v2365, %v2372
    %v2374 = vrot.slane %v2369, 4
    %v2376 = vshrl.u32 %v2264, 16
    %v2378 = vrot.slane %v2376, 7
    %v2379 = vshll.u32 %v2264, 16
    %v2381 = vor.u32 %v2378, %v2379
    %v2382 = vsel %vm2267, %v2374, %v2381
    %v2383 = vrot.slane %v2378, 4
    %v2385 = vshrl.u32 %v2265, 16
    %v2387 = vrot.slane %v2385, 7
    %v2388 = vshll.u32 %v2265, 16
    %v2390 = vor.u32 %v2387, %v2388
    %v2391 = vsel %vm2267, %v2383, %v2390
    %v2392 = vrot.slane %v2387, 4
    %v2408 = vld [vmem:[#allocation2 + $0x4] sm:$0xf]
    %v2409 = vsel %vm155, %v2274, %v2408
    %2410 = vst [vmem:[#allocation2 + $0x4] sm:$0xf] %v2409
    %2411 = vst [vmem:[#allocation2 + $0x8] sm:$0xf] %v2283
    %2412 = vst [vmem:[#allocation2 + $0xc] sm:$0xf] %v2292
    %2413 = vst [vmem:[#allocation2 + $0x10] sm:$0xf] %v2301
    %2414 = vst [vmem:[#allocation2 + $0x14] sm:$0xf] %v2310
    %2415 = vst [vmem:[#allocation2 + $0x18] sm:$0xf] %v2319
    %2416 = vst [vmem:[#allocation2 + $0x1c] sm:$0xf] %v2328
    %2417 = vst [vmem:[#allocation2 + $0x20] sm:$0xf] %v2337
    %2418 = vst [vmem:[#allocation2 + $0x24] sm:$0xf] %v2346
    %2419 = vst [vmem:[#allocation2 + $0x28] sm:$0xf] %v2355
    %2420 = vst [vmem:[#allocation2 + $0x2c] sm:$0xf] %v2364
    %2421 = vst [vmem:[#allocation2 + $0x30] sm:$0xf] %v2373
    %2422 = vst [vmem:[#allocation2 + $0x34] sm:$0xf] %v2382
    %2423 = vst [vmem:[#allocation2 + $0x38] sm:$0xf] %v2391
    %v2424 = vld [vmem:[#allocation2 + $0x3c] sm:$0x1]
    %v2425 = vsel %vm149, %v2392, %v2424
    %2426 = vst [vmem:[#allocation2 + $0x3c] sm:$0x1] %v2425
    %v2427 = vld [vmem:[#allocation2] sm:$0xf]
    %v2428 = vld [vmem:[#allocation2 + $0x4] sm:$0xf]
    %v2429 = vld [vmem:[#allocation2 + $0x8] sm:$0xf]
    %v2430 = vld [vmem:[#allocation2 + $0xc] sm:$0xf]
    %v2431 = vld [vmem:[#allocation2 + $0x10] sm:$0xf]
    %v2432 = vld [vmem:[#allocation2 + $0x14] sm:$0xf]
    %v2433 = vld [vmem:[#allocation2 + $0x18] sm:$0xf]
    %v2434 = vld [vmem:[#allocation2 + $0x1c] sm:$0xf]
    %v2435 = vld [vmem:[#allocation2 + $0x20] sm:$0xf]
    %v2436 = vld [vmem:[#allocation2 + $0x24] sm:$0xf]
    %v2437 = vld [vmem:[#allocation2 + $0x28] sm:$0xf]
    %v2438 = vld [vmem:[#allocation2 + $0x2c] sm:$0xf]
    %v2439 = vld [vmem:[#allocation2 + $0x30] sm:$0xf]
    %v2440 = vld [vmem:[#allocation2 + $0x34] sm:$0xf]
    %v2455 = vunpack.c.l.b16 %v2427
    %v2456 = vunpack.c.l.b16 %v2428
    %v2457 = vunpack.c.l.b16 %v2429
    %v2458 = vunpack.c.l.b16 %v2430
    %v2459 = vunpack.c.l.b16 %v2431
    %v2460 = vunpack.c.l.b16 %v2432
    %v2461 = vunpack.c.l.b16 %v2433
    %v2462 = vunpack.c.l.b16 %v2434
    %v2463 = vunpack.c.l.b16 %v2435
    %v2464 = vunpack.c.l.b16 %v2436
    %v2465 = vunpack.c.l.b16 %v2437
    %v2466 = vunpack.c.l.b16 %v2438
    %v2467 = vunpack.c.l.b16 %v2439
    %v2468 = vunpack.c.l.b16 %v2440
    %v2469 = vpack.c.b16 %v2456, %v2455
    %v2470 = vpack.c.b16 %v2458, %v2457
    %v2471 = vpack.c.b16 %v2460, %v2459
    %v2472 = vpack.c.b16 %v2462, %v2461
    %v2473 = vpack.c.b16 %v2464, %v2463
    %v2474 = vpack.c.b16 %v2466, %v2465
    %v2475 = vpack.c.b16 %v2468, %v2467
    %2483 = vst [vmem:[#allocation4] sm:$0xff] %v2469
    %2484 = vst [vmem:[#allocation4 + $0x48] sm:$0xff] %v2470
    %2485 = vst [vmem:[#allocation4 + $0x90] sm:$0xff] %v2471
    %2486 = vst [vmem:[#allocation4 + $0xd8] sm:$0xff] %v2472
    %2487 = vst [vmem:[#allocation4 + $0x120] sm:$0xff] %v2473
    %2488 = vst [vmem:[#allocation4 + $0x168] sm:$0xff] %v2474
    %2489 = vst [vmem:[#allocation4 + $0x1b0] sm:$0xff] %v2475
    %v2490 = vld [vmem:[#allocation2] sm:$0xf]
    %v2491 = vld [vmem:[#allocation2 + $0x4] sm:$0xf]
    %v2492 = vld [vmem:[#allocation2 + $0x8] sm:$0xf]
    %v2493 = vld [vmem:[#allocation2 + $0xc] sm:$0xf]
    %v2494 = vld [vmem:[#allocation2 + $0x10] sm:$0xf]
    %v2495 = vld [vmem:[#allocation2 + $0x14] sm:$0xf]
    %v2496 = vld [vmem:[#allocation2 + $0x18] sm:$0xf]
    %v2497 = vld [vmem:[#allocation2 + $0x1c] sm:$0xf]
    %v2498 = vld [vmem:[#allocation2 + $0x20] sm:$0xf]
    %v2499 = vld [vmem:[#allocation2 + $0x24] sm:$0xf]
    %v2500 = vld [vmem:[#allocation2 + $0x28] sm:$0xf]
    %v2501 = vld [vmem:[#allocation2 + $0x2c] sm:$0xf]
    %v2502 = vld [vmem:[#allocation2 + $0x30] sm:$0xf]
    %v2503 = vld [vmem:[#allocation2 + $0x34] sm:$0xf]
    %v2504 = vld [vmem:[#allocation2 + $0x38] sm:$0x1]
    %v2520 = vunpack.c.l.b16 %v2490
    %v2521 = vunpack.c.l.b16 %v2491
    %v2522 = vunpack.c.l.b16 %v2492
    %v2523 = vunpack.c.l.b16 %v2493
    %v2524 = vunpack.c.l.b16 %v2494
    %v2525 = vunpack.c.l.b16 %v2495
    %v2526 = vunpack.c.l.b16 %v2496
    %v2527 = vunpack.c.l.b16 %v2497
    %v2528 = vunpack.c.l.b16 %v2498
    %v2529 = vunpack.c.l.b16 %v2499
    %v2530 = vunpack.c.l.b16 %v2500
    %v2531 = vunpack.c.l.b16 %v2501
    %v2532 = vunpack.c.l.b16 %v2502
    %v2533 = vunpack.c.l.b16 %v2503
    %v2534 = vunpack.c.l.b16 %v2504
    %v2535 = vpack.c.b16 %v2521, %v2520
    %v2536 = vpack.c.b16 %v2523, %v2522
    %v2537 = vpack.c.b16 %v2525, %v2524
    %v2538 = vpack.c.b16 %v2527, %v2526
    %v2539 = vpack.c.b16 %v2529, %v2528
    %v2540 = vpack.c.b16 %v2531, %v2530
    %v2541 = vpack.c.b16 %v2533, %v2532
    %v2542 = vpack.c.b16 %v2534, %v2534
    %v2544 = vshrl.u32 %v2535, 16
    %v2546 = vshll.u32 %v2535, 16
    %v2548 = vrot.slane %v2546, 1
    %v2549 = vor.u32 %v2544, %v2548
    %v2551 = vshll.u32 %v2536, 16
    %v2553 = vrot.slane %v2551, 1
    %v2554 = vsel %vm298, %v2549, %v2553
    %v2555 = vshrl.u32 %v2536, 16
    %v2557 = vor.u32 %v2555, %v2553
    %v2559 = vshll.u32 %v2537, 16
    %v2561 = vrot.slane %v2559, 1
    %v2562 = vsel %vm298, %v2557, %v2561
    %v2563 = vshrl.u32 %v2537, 16
    %v2565 = vor.u32 %v2563, %v2561
    %v2567 = vshll.u32 %v2538, 16
    %v2569 = vrot.slane %v2567, 1
    %v2570 = vsel %vm298, %v2565, %v2569
    %v2571 = vshrl.u32 %v2538, 16
    %v2573 = vor.u32 %v2571, %v2569
    %v2575 = vshll.u32 %v2539, 16
    %v2577 = vrot.slane %v2575, 1
    %v2578 = vsel %vm298, %v2573, %v2577
    %v2579 = vshrl.u32 %v2539, 16
    %v2581 = vor.u32 %v2579, %v2577
    %v2583 = vshll.u32 %v2540, 16
    %v2585 = vrot.slane %v2583, 1
    %v2586 = vsel %vm298, %v2581, %v2585
    %v2587 = vshrl.u32 %v2540, 16
    %v2589 = vor.u32 %v2587, %v2585
    %v2591 = vshll.u32 %v2541, 16
    %v2593 = vrot.slane %v2591, 1
    %v2594 = vsel %vm298, %v2589, %v2593
    %v2595 = vshrl.u32 %v2541, 16
    %v2597 = vor.u32 %v2595, %v2593
    %v2599 = vshll.u32 %v2542, 16
    %v2601 = vrot.slane %v2599, 1
    %v2602 = vsel %vm298, %v2597, %v2601
    %2610 = vst [vmem:[#allocation4 + $0x8] sm:$0xff] %v2554
    %2611 = vst [vmem:[#allocation4 + $0x50] sm:$0xff] %v2562
    %2612 = vst [vmem:[#allocation4 + $0x98] sm:$0xff] %v2570
    %2613 = vst [vmem:[#allocation4 + $0xe0] sm:$0xff] %v2578
    %2614 = vst [vmem:[#allocation4 + $0x128] sm:$0xff] %v2586
    %2615 = vst [vmem:[#allocation4 + $0x170] sm:$0xff] %v2594
    %2616 = vst [vmem:[#allocation4 + $0x1b8] sm:$0xff] %v2602
    %v2617 = vld [vmem:[#allocation2] sm:$0xe]
    %v2618 = vld [vmem:[#allocation2 + $0x4] sm:$0xf]
    %v2619 = vld [vmem:[#allocation2 + $0x8] sm:$0xf]
    %v2620 = vld [vmem:[#allocation2 + $0xc] sm:$0xf]
    %v2621 = vld [vmem:[#allocation2 + $0x10] sm:$0xf]
    %v2622 = vld [vmem:[#allocation2 + $0x14] sm:$0xf]
    %v2623 = vld [vmem:[#allocation2 + $0x18] sm:$0xf]
    %v2624 = vld [vmem:[#allocation2 + $0x1c] sm:$0xf]
    %v2625 = vld [vmem:[#allocation2 + $0x20] sm:$0xf]
    %v2626 = vld [vmem:[#allocation2 + $0x24] sm:$0xf]
    %v2627 = vld [vmem:[#allocation2 + $0x28] sm:$0xf]
    %v2628 = vld [vmem:[#allocation2 + $0x2c] sm:$0xf]
    %v2629 = vld [vmem:[#allocation2 + $0x30] sm:$0xf]
    %v2630 = vld [vmem:[#allocation2 + $0x34] sm:$0xf]
    %v2631 = vld [vmem:[#allocation2 + $0x38] sm:$0x1]
    %v2647 = vunpack.c.l.b16 %v2617
    %v2648 = vunpack.c.l.b16 %v2618
    %v2649 = vunpack.c.l.b16 %v2619
    %v2650 = vunpack.c.l.b16 %v2620
    %v2651 = vunpack.c.l.b16 %v2621
    %v2652 = vunpack.c.l.b16 %v2622
    %v2653 = vunpack.c.l.b16 %v2623
    %v2654 = vunpack.c.l.b16 %v2624
    %v2655 = vunpack.c.l.b16 %v2625
    %v2656 = vunpack.c.l.b16 %v2626
    %v2657 = vunpack.c.l.b16 %v2627
    %v2658 = vunpack.c.l.b16 %v2628
    %v2659 = vunpack.c.l.b16 %v2629
    %v2660 = vunpack.c.l.b16 %v2630
    %v2661 = vunpack.c.l.b16 %v2631
    %v2662 = vpack.c.b16 %v2648, %v2647
    %v2663 = vpack.c.b16 %v2650, %v2649
    %v2664 = vpack.c.b16 %v2652, %v2651
    %v2665 = vpack.c.b16 %v2654, %v2653
    %v2666 = vpack.c.b16 %v2656, %v2655
    %v2667 = vpack.c.b16 %v2658, %v2657
    %v2668 = vpack.c.b16 %v2660, %v2659
    %v2669 = vpack.c.b16 %v2661, %v2661
    %v2670 = vrot.slane %v2662, 1
    %v2671 = vrot.slane %v2663, 1
    %v2672 = vsel %vm426, %v2670, %v2671
    %v2673 = vrot.slane %v2664, 1
    %v2674 = vsel %vm426, %v2671, %v2673
    %v2675 = vrot.slane %v2665, 1
    %v2676 = vsel %vm426, %v2673, %v2675
    %v2677 = vrot.slane %v2666, 1
    %v2678 = vsel %vm426, %v2675, %v2677
    %v2679 = vrot.slane %v2667, 1
    %v2680 = vsel %vm426, %v2677, %v2679
    %v2681 = vrot.slane %v2668, 1
    %v2682 = vsel %vm426, %v2679, %v2681
    %v2683 = vrot.slane %v2669, 1
    %v2684 = vsel %vm426, %v2681, %v2683
    %2692 = vst [vmem:[#allocation4 + $0x10] sm:$0xff] %v2672
    %2693 = vst [vmem:[#allocation4 + $0x58] sm:$0xff] %v2674
    %2694 = vst [vmem:[#allocation4 + $0xa0] sm:$0xff] %v2676
    %2695 = vst [vmem:[#allocation4 + $0xe8] sm:$0xff] %v2678
    %2696 = vst [vmem:[#allocation4 + $0x130] sm:$0xff] %v2680
    %2697 = vst [vmem:[#allocation4 + $0x178] sm:$0xff] %v2682
    %2698 = vst [vmem:[#allocation4 + $0x1c0] sm:$0xff] %v2684
    %v2699 = vld [vmem:[#allocation2 + $0x4] sm:$0xf]
    %v2700 = vld [vmem:[#allocation2 + $0x8] sm:$0xf]
    %v2701 = vld [vmem:[#allocation2 + $0xc] sm:$0xf]
    %v2702 = vld [vmem:[#allocation2 + $0x10] sm:$0xf]
    %v2703 = vld [vmem:[#allocation2 + $0x14] sm:$0xf]
    %v2704 = vld [vmem:[#allocation2 + $0x18] sm:$0xf]
    %v2705 = vld [vmem:[#allocation2 + $0x1c] sm:$0xf]
    %v2706 = vld [vmem:[#allocation2 + $0x20] sm:$0xf]
    %v2707 = vld [vmem:[#allocation2 + $0x24] sm:$0xf]
    %v2708 = vld [vmem:[#allocation2 + $0x28] sm:$0xf]
    %v2709 = vld [vmem:[#allocation2 + $0x2c] sm:$0xf]
    %v2710 = vld [vmem:[#allocation2 + $0x30] sm:$0xf]
    %v2711 = vld [vmem:[#allocation2 + $0x34] sm:$0xf]
    %v2712 = vld [vmem:[#allocation2 + $0x38] sm:$0xf]
    %v2727 = vunpack.c.l.b16 %v2699
    %v2728 = vunpack.c.l.b16 %v2700
    %v2729 = vunpack.c.l.b16 %v2701
    %v2730 = vunpack.c.l.b16 %v2702
    %v2731 = vunpack.c.l.b16 %v2703
    %v2732 = vunpack.c.l.b16 %v2704
    %v2733 = vunpack.c.l.b16 %v2705
    %v2734 = vunpack.c.l.b16 %v2706
    %v2735 = vunpack.c.l.b16 %v2707
    %v2736 = vunpack.c.l.b16 %v2708
    %v2737 = vunpack.c.l.b16 %v2709
    %v2738 = vunpack.c.l.b16 %v2710
    %v2739 = vunpack.c.l.b16 %v2711
    %v2740 = vunpack.c.l.b16 %v2712
    %v2741 = vpack.c.b16 %v2728, %v2727
    %v2742 = vpack.c.b16 %v2730, %v2729
    %v2743 = vpack.c.b16 %v2732, %v2731
    %v2744 = vpack.c.b16 %v2734, %v2733
    %v2745 = vpack.c.b16 %v2736, %v2735
    %v2746 = vpack.c.b16 %v2738, %v2737
    %v2747 = vpack.c.b16 %v2740, %v2739
    %2755 = vst [vmem:[#allocation4 + $0x18] sm:$0xff] %v2741
    %2756 = vst [vmem:[#allocation4 + $0x60] sm:$0xff] %v2742
    %2757 = vst [vmem:[#allocation4 + $0xa8] sm:$0xff] %v2743
    %2758 = vst [vmem:[#allocation4 + $0xf0] sm:$0xff] %v2744
    %2759 = vst [vmem:[#allocation4 + $0x138] sm:$0xff] %v2745
    %2760 = vst [vmem:[#allocation4 + $0x180] sm:$0xff] %v2746
    %2761 = vst [vmem:[#allocation4 + $0x1c8] sm:$0xff] %v2747
    %v2762 = vld [vmem:[#allocation2 + $0x4] sm:$0xf]
    %v2763 = vld [vmem:[#allocation2 + $0x8] sm:$0xf]
    %v2764 = vld [vmem:[#allocation2 + $0xc] sm:$0xf]
    %v2765 = vld [vmem:[#allocation2 + $0x10] sm:$0xf]
    %v2766 = vld [vmem:[#allocation2 + $0x14] sm:$0xf]
    %v2767 = vld [vmem:[#allocation2 + $0x18] sm:$0xf]
    %v2768 = vld [vmem:[#allocation2 + $0x1c] sm:$0xf]
    %v2769 = vld [vmem:[#allocation2 + $0x20] sm:$0xf]
    %v2770 = vld [vmem:[#allocation2 + $0x24] sm:$0xf]
    %v2771 = vld [vmem:[#allocation2 + $0x28] sm:$0xf]
    %v2772 = vld [vmem:[#allocation2 + $0x2c] sm:$0xf]
    %v2773 = vld [vmem:[#allocation2 + $0x30] sm:$0xf]
    %v2774 = vld [vmem:[#allocation2 + $0x34] sm:$0xf]
    %v2775 = vld [vmem:[#allocation2 + $0x38] sm:$0xf]
    %v2776 = vld [vmem:[#allocation2 + $0x3c] sm:$0x1]
    %v2792 = vunpack.c.l.b16 %v2762
    %v2793 = vunpack.c.l.b16 %v2763
    %v2794 = vunpack.c.l.b16 %v2764
    %v2795 = vunpack.c.l.b16 %v2765
    %v2796 = vunpack.c.l.b16 %v2766
    %v2797 = vunpack.c.l.b16 %v2767
    %v2798 = vunpack.c.l.b16 %v2768
    %v2799 = vunpack.c.l.b16 %v2769
    %v2800 = vunpack.c.l.b16 %v2770
    %v2801 = vunpack.c.l.b16 %v2771
    %v2802 = vunpack.c.l.b16 %v2772
    %v2803 = vunpack.c.l.b16 %v2773
    %v2804 = vunpack.c.l.b16 %v2774
    %v2805 = vunpack.c.l.b16 %v2775
    %v2806 = vunpack.c.l.b16 %v2776
    %v2807 = vpack.c.b16 %v2793, %v2792
    %v2808 = vpack.c.b16 %v2795, %v2794
    %v2809 = vpack.c.b16 %v2797, %v2796
    %v2810 = vpack.c.b16 %v2799, %v2798
    %v2811 = vpack.c.b16 %v2801, %v2800
    %v2812 = vpack.c.b16 %v2803, %v2802
    %v2813 = vpack.c.b16 %v2805, %v2804
    %v2814 = vpack.c.b16 %v2806, %v2806
    %v2816 = vshrl.u32 %v2807, 16
    %v2818 = vshll.u32 %v2807, 16
    %v2820 = vrot.slane %v2818, 1
    %v2821 = vor.u32 %v2816, %v2820
    %v2823 = vshll.u32 %v2808, 16
    %v2825 = vrot.slane %v2823, 1
    %v2826 = vsel %vm298, %v2821, %v2825
    %v2827 = vshrl.u32 %v2808, 16
    %v2829 = vor.u32 %v2827, %v2825
    %v2831 = vshll.u32 %v2809, 16
    %v2833 = vrot.slane %v2831, 1
    %v2834 = vsel %vm298, %v2829, %v2833
    %v2835 = vshrl.u32 %v2809, 16
    %v2837 = vor.u32 %v2835, %v2833
    %v2839 = vshll.u32 %v2810, 16
    %v2841 = vrot.slane %v2839, 1
    %v2842 = vsel %vm298, %v2837, %v2841
    %v2843 = vshrl.u32 %v2810, 16
    %v2845 = vor.u32 %v2843, %v2841
    %v2847 = vshll.u32 %v2811, 16
    %v2849 = vrot.slane %v2847, 1
    %v2850 = vsel %vm298, %v2845, %v2849
    %v2851 = vshrl.u32 %v2811, 16
    %v2853 = vor.u32 %v2851, %v2849
    %v2855 = vshll.u32 %v2812, 16
    %v2857 = vrot.slane %v2855, 1
    %v2858 = vsel %vm298, %v2853, %v2857
    %v2859 = vshrl.u32 %v2812, 16
    %v2861 = vor.u32 %v2859, %v2857
    %v2863 = vshll.u32 %v2813, 16
    %v2865 = vrot.slane %v2863, 1
    %v2866 = vsel %vm298, %v2861, %v2865
    %v2867 = vshrl.u32 %v2813, 16
    %v2869 = vor.u32 %v2867, %v2865
    %v2871 = vshll.u32 %v2814, 16
    %v2873 = vrot.slane %v2871, 1
    %v2874 = vsel %vm298, %v2869, %v2873
    %2882 = vst [vmem:[#allocation4 + $0x20] sm:$0xff] %v2826
    %2883 = vst [vmem:[#allocation4 + $0x68] sm:$0xff] %v2834
    %2884 = vst [vmem:[#allocation4 + $0xb0] sm:$0xff] %v2842
    %2885 = vst [vmem:[#allocation4 + $0xf8] sm:$0xff] %v2850
    %2886 = vst [vmem:[#allocation4 + $0x140] sm:$0xff] %v2858
    %2887 = vst [vmem:[#allocation4 + $0x188] sm:$0xff] %v2866
    %2888 = vst [vmem:[#allocation4 + $0x1d0] sm:$0xff] %v2874
    %v2889 = vld [vmem:[#allocation2 + $0x4] sm:$0xe]
    %v2890 = vld [vmem:[#allocation2 + $0x8] sm:$0xf]
    %v2891 = vld [vmem:[#allocation2 + $0xc] sm:$0xf]
    %v2892 = vld [vmem:[#allocation2 + $0x10] sm:$0xf]
    %v2893 = vld [vmem:[#allocation2 + $0x14] sm:$0xf]
    %v2894 = vld [vmem:[#allocation2 + $0x18] sm:$0xf]
    %v2895 = vld [vmem:[#allocation2 + $0x1c] sm:$0xf]
    %v2896 = vld [vmem:[#allocation2 + $0x20] sm:$0xf]
    %v2897 = vld [vmem:[#allocation2 + $0x24] sm:$0xf]
    %v2898 = vld [vmem:[#allocation2 + $0x28] sm:$0xf]
    %v2899 = vld [vmem:[#allocation2 + $0x2c] sm:$0xf]
    %v2900 = vld [vmem:[#allocation2 + $0x30] sm:$0xf]
    %v2901 = vld [vmem:[#allocation2 + $0x34] sm:$0xf]
    %v2902 = vld [vmem:[#allocation2 + $0x38] sm:$0xf]
    %v2903 = vld [vmem:[#allocation2 + $0x3c] sm:$0x1]
    %v2919 = vunpack.c.l.b16 %v2889
    %v2920 = vunpack.c.l.b16 %v2890
    %v2921 = vunpack.c.l.b16 %v2891
    %v2922 = vunpack.c.l.b16 %v2892
    %v2923 = vunpack.c.l.b16 %v2893
    %v2924 = vunpack.c.l.b16 %v2894
    %v2925 = vunpack.c.l.b16 %v2895
    %v2926 = vunpack.c.l.b16 %v2896
    %v2927 = vunpack.c.l.b16 %v2897
    %v2928 = vunpack.c.l.b16 %v2898
    %v2929 = vunpack.c.l.b16 %v2899
    %v2930 = vunpack.c.l.b16 %v2900
    %v2931 = vunpack.c.l.b16 %v2901
    %v2932 = vunpack.c.l.b16 %v2902
    %v2933 = vunpack.c.l.b16 %v2903
    %v2934 = vpack.c.b16 %v2920, %v2919
    %v2935 = vpack.c.b16 %v2922, %v2921
    %v2936 = vpack.c.b16 %v2924, %v2923
    %v2937 = vpack.c.b16 %v2926, %v2925
    %v2938 = vpack.c.b16 %v2928, %v2927
    %v2939 = vpack.c.b16 %v2930, %v2929
    %v2940 = vpack.c.b16 %v2932, %v2931
    %v2941 = vpack.c.b16 %v2933, %v2933
    %v2942 = vrot.slane %v2934, 1
    %v2943 = vrot.slane %v2935, 1
    %v2944 = vsel %vm426, %v2942, %v2943
    %v2945 = vrot.slane %v2936, 1
    %v2946 = vsel %vm426, %v2943, %v2945
    %v2947 = vrot.slane %v2937, 1
    %v2948 = vsel %vm426, %v2945, %v2947
    %v2949 = vrot.slane %v2938, 1
    %v2950 = vsel %vm426, %v2947, %v2949
    %v2951 = vrot.slane %v2939, 1
    %v2952 = vsel %vm426, %v2949, %v2951
    %v2953 = vrot.slane %v2940, 1
    %v2954 = vsel %vm426, %v2951, %v2953
    %v2955 = vrot.slane %v2941, 1
    %v2956 = vsel %vm426, %v2953, %v2955
    %2964 = vst [vmem:[#allocation4 + $0x28] sm:$0xff] %v2944
    %2965 = vst [vmem:[#allocation4 + $0x70] sm:$0xff] %v2946
    %2966 = vst [vmem:[#allocation4 + $0xb8] sm:$0xff] %v2948
    %2967 = vst [vmem:[#allocation4 + $0x100] sm:$0xff] %v2950
    %2968 = vst [vmem:[#allocation4 + $0x148] sm:$0xff] %v2952
    %2969 = vst [vmem:[#allocation4 + $0x190] sm:$0xff] %v2954
    %2970 = vst [vmem:[#allocation4 + $0x1d8] sm:$0xff] %v2956
    %v2971 = vld [vmem:[#allocation2 + $0x8] sm:$0xf]
    %v2972 = vld [vmem:[#allocation2 + $0xc] sm:$0xf]
    %v2973 = vld [vmem:[#allocation2 + $0x10] sm:$0xf]
    %v2974 = vld [vmem:[#allocation2 + $0x14] sm:$0xf]
    %v2975 = vld [vmem:[#allocation2 + $0x18] sm:$0xf]
    %v2976 = vld [vmem:[#allocation2 + $0x1c] sm:$0xf]
    %v2977 = vld [vmem:[#allocation2 + $0x20] sm:$0xf]
    %v2978 = vld [vmem:[#allocation2 + $0x24] sm:$0xf]
    %v2979 = vld [vmem:[#allocation2 + $0x28] sm:$0xf]
    %v2980 = vld [vmem:[#allocation2 + $0x2c] sm:$0xf]
    %v2981 = vld [vmem:[#allocation2 + $0x30] sm:$0xf]
    %v2982 = vld [vmem:[#allocation2 + $0x34] sm:$0xf]
    %v2983 = vld [vmem:[#allocation2 + $0x38] sm:$0xf]
    %v2984 = vld [vmem:[#allocation2 + $0x3c] sm:$0xf]
    %v2999 = vunpack.c.l.b16 %v2971
    %v3000 = vunpack.c.l.b16 %v2972
    %v3001 = vunpack.c.l.b16 %v2973
    %v3002 = vunpack.c.l.b16 %v2974
    %v3003 = vunpack.c.l.b16 %v2975
    %v3004 = vunpack.c.l.b16 %v2976
    %v3005 = vunpack.c.l.b16 %v2977
    %v3006 = vunpack.c.l.b16 %v2978
    %v3007 = vunpack.c.l.b16 %v2979
    %v3008 = vunpack.c.l.b16 %v2980
    %v3009 = vunpack.c.l.b16 %v2981
    %v3010 = vunpack.c.l.b16 %v2982
    %v3011 = vunpack.c.l.b16 %v2983
    %v3012 = vunpack.c.l.b16 %v2984
    %v3013 = vpack.c.b16 %v3000, %v2999
    %v3014 = vpack.c.b16 %v3002, %v3001
    %v3015 = vpack.c.b16 %v3004, %v3003
    %v3016 = vpack.c.b16 %v3006, %v3005
    %v3017 = vpack.c.b16 %v3008, %v3007
    %v3018 = vpack.c.b16 %v3010, %v3009
    %v3019 = vpack.c.b16 %v3012, %v3011
    %3027 = vst [vmem:[#allocation4 + $0x30] sm:$0xff] %v3013
    %3028 = vst [vmem:[#allocation4 + $0x78] sm:$0xff] %v3014
    %3029 = vst [vmem:[#allocation4 + $0xc0] sm:$0xff] %v3015
    %3030 = vst [vmem:[#allocation4 + $0x108] sm:$0xff] %v3016
    %3031 = vst [vmem:[#allocation4 + $0x150] sm:$0xff] %v3017
    %3032 = vst [vmem:[#allocation4 + $0x198] sm:$0xff] %v3018
    %3033 = vst [vmem:[#allocation4 + $0x1e0] sm:$0xff] %v3019
    %v3034 = vld [vmem:[#allocation2 + $0x8] sm:$0xf]
    %v3035 = vld [vmem:[#allocation2 + $0xc] sm:$0xf]
    %v3036 = vld [vmem:[#allocation2 + $0x10] sm:$0xf]
    %v3037 = vld [vmem:[#allocation2 + $0x14] sm:$0xf]
    %v3038 = vld [vmem:[#allocation2 + $0x18] sm:$0xf]
    %v3039 = vld [vmem:[#allocation2 + $0x1c] sm:$0xf]
    %v3040 = vld [vmem:[#allocation2 + $0x20] sm:$0xf]
    %v3041 = vld [vmem:[#allocation2 + $0x24] sm:$0xf]
    %v3042 = vld [vmem:[#allocation2 + $0x28] sm:$0xf]
    %v3043 = vld [vmem:[#allocation2 + $0x2c] sm:$0xf]
    %v3044 = vld [vmem:[#allocation2 + $0x30] sm:$0xf]
    %v3045 = vld [vmem:[#allocation2 + $0x34] sm:$0xf]
    %v3046 = vld [vmem:[#allocation2 + $0x38] sm:$0xf]
    %v3047 = vld [vmem:[#allocation2 + $0x3c] sm:$0xf]
    %v3048 = vld [vmem:[#allocation2 + $0x40] sm:$0x1]
    %v3064 = vunpack.c.l.b16 %v3034
    %v3065 = vunpack.c.l.b16 %v3035
    %v3066 = vunpack.c.l.b16 %v3036
    %v3067 = vunpack.c.l.b16 %v3037
    %v3068 = vunpack.c.l.b16 %v3038
    %v3069 = vunpack.c.l.b16 %v3039
    %v3070 = vunpack.c.l.b16 %v3040
    %v3071 = vunpack.c.l.b16 %v3041
    %v3072 = vunpack.c.l.b16 %v3042
    %v3073 = vunpack.c.l.b16 %v3043
    %v3074 = vunpack.c.l.b16 %v3044
    %v3075 = vunpack.c.l.b16 %v3045
    %v3076 = vunpack.c.l.b16 %v3046
    %v3077 = vunpack.c.l.b16 %v3047
    %v3078 = vunpack.c.l.b16 %v3048
    %v3079 = vpack.c.b16 %v3065, %v3064
    %v3080 = vpack.c.b16 %v3067, %v3066
    %v3081 = vpack.c.b16 %v3069, %v3068
    %v3082 = vpack.c.b16 %v3071, %v3070
    %v3083 = vpack.c.b16 %v3073, %v3072
    %v3084 = vpack.c.b16 %v3075, %v3074
    %v3085 = vpack.c.b16 %v3077, %v3076
    %v3086 = vpack.c.b16 %v3078, %v3078
    %v3088 = vshrl.u32 %v3079, 16
    %v3090 = vshll.u32 %v3079, 16
    %v3092 = vrot.slane %v3090, 1
    %v3093 = vor.u32 %v3088, %v3092
    %v3095 = vshll.u32 %v3080, 16
    %v3097 = vrot.slane %v3095, 1
    %v3098 = vsel %vm298, %v3093, %v3097
    %v3099 = vshrl.u32 %v3080, 16
    %v3101 = vor.u32 %v3099, %v3097
    %v3103 = vshll.u32 %v3081, 16
    %v3105 = vrot.slane %v3103, 1
    %v3106 = vsel %vm298, %v3101, %v3105
    %v3107 = vshrl.u32 %v3081, 16
    %v3109 = vor.u32 %v3107, %v3105
    %v3111 = vshll.u32 %v3082, 16
    %v3113 = vrot.slane %v3111, 1
    %v3114 = vsel %vm298, %v3109, %v3113
    %v3115 = vshrl.u32 %v3082, 16
    %v3117 = vor.u32 %v3115, %v3113
    %v3119 = vshll.u32 %v3083, 16
    %v3121 = vrot.slane %v3119, 1
    %v3122 = vsel %vm298, %v3117, %v3121
    %v3123 = vshrl.u32 %v3083, 16
    %v3125 = vor.u32 %v3123, %v3121
    %v3127 = vshll.u32 %v3084, 16
    %v3129 = vrot.slane %v3127, 1
    %v3130 = vsel %vm298, %v3125, %v3129
    %v3131 = vshrl.u32 %v3084, 16
    %v3133 = vor.u32 %v3131, %v3129
    %v3135 = vshll.u32 %v3085, 16
    %v3137 = vrot.slane %v3135, 1
    %v3138 = vsel %vm298, %v3133, %v3137
    %v3139 = vshrl.u32 %v3085, 16
    %v3141 = vor.u32 %v3139, %v3137
    %v3143 = vshll.u32 %v3086, 16
    %v3145 = vrot.slane %v3143, 1
    %v3146 = vsel %vm298, %v3141, %v3145
    %3154 = vst [vmem:[#allocation4 + $0x38] sm:$0xff] %v3098
    %3155 = vst [vmem:[#allocation4 + $0x80] sm:$0xff] %v3106
    %3156 = vst [vmem:[#allocation4 + $0xc8] sm:$0xff] %v3114
    %3157 = vst [vmem:[#allocation4 + $0x110] sm:$0xff] %v3122
    %3158 = vst [vmem:[#allocation4 + $0x158] sm:$0xff] %v3130
    %3159 = vst [vmem:[#allocation4 + $0x1a0] sm:$0xff] %v3138
    %3160 = vst [vmem:[#allocation4 + $0x1e8] sm:$0xff] %v3146
    %v3161 = vld [vmem:[#allocation2 + $0x8] sm:$0xe]
    %v3162 = vld [vmem:[#allocation2 + $0xc] sm:$0xf]
    %v3163 = vld [vmem:[#allocation2 + $0x10] sm:$0xf]
    %v3164 = vld [vmem:[#allocation2 + $0x14] sm:$0xf]
    %v3165 = vld [vmem:[#allocation2 + $0x18] sm:$0xf]
    %v3166 = vld [vmem:[#allocation2 + $0x1c] sm:$0xf]
    %v3167 = vld [vmem:[#allocation2 + $0x20] sm:$0xf]
    %v3168 = vld [vmem:[#allocation2 + $0x24] sm:$0xf]
    %v3169 = vld [vmem:[#allocation2 + $0x28] sm:$0xf]
    %v3170 = vld [vmem:[#allocation2 + $0x2c] sm:$0xf]
    %v3171 = vld [vmem:[#allocation2 + $0x30] sm:$0xf]
    %v3172 = vld [vmem:[#allocation2 + $0x34] sm:$0xf]
    %v3173 = vld [vmem:[#allocation2 + $0x38] sm:$0xf]
    %v3174 = vld [vmem:[#allocation2 + $0x3c] sm:$0xf]
    %v3175 = vld [vmem:[#allocation2 + $0x40] sm:$0x1]
    %v3191 = vunpack.c.l.b16 %v3161
    %v3192 = vunpack.c.l.b16 %v3162
    %v3193 = vunpack.c.l.b16 %v3163
    %v3194 = vunpack.c.l.b16 %v3164
    %v3195 = vunpack.c.l.b16 %v3165
    %v3196 = vunpack.c.l.b16 %v3166
    %v3197 = vunpack.c.l.b16 %v3167
    %v3198 = vunpack.c.l.b16 %v3168
    %v3199 = vunpack.c.l.b16 %v3169
    %v3200 = vunpack.c.l.b16 %v3170
    %v3201 = vunpack.c.l.b16 %v3171
    %v3202 = vunpack.c.l.b16 %v3172
    %v3203 = vunpack.c.l.b16 %v3173
    %v3204 = vunpack.c.l.b16 %v3174
    %v3205 = vunpack.c.l.b16 %v3175
    %v3206 = vpack.c.b16 %v3192, %v3191
    %v3207 = vpack.c.b16 %v3194, %v3193
    %v3208 = vpack.c.b16 %v3196, %v3195
    %v3209 = vpack.c.b16 %v3198, %v3197
    %v3210 = vpack.c.b16 %v3200, %v3199
    %v3211 = vpack.c.b16 %v3202, %v3201
    %v3212 = vpack.c.b16 %v3204, %v3203
    %v3213 = vpack.c.b16 %v3205, %v3205
    %v3214 = vrot.slane %v3206, 1
    %v3215 = vrot.slane %v3207, 1
    %v3216 = vsel %vm426, %v3214, %v3215
    %v3217 = vrot.slane %v3208, 1
    %v3218 = vsel %vm426, %v3215, %v3217
    %v3219 = vrot.slane %v3209, 1
    %v3220 = vsel %vm426, %v3217, %v3219
    %v3221 = vrot.slane %v3210, 1
    %v3222 = vsel %vm426, %v3219, %v3221
    %v3223 = vrot.slane %v3211, 1
    %v3224 = vsel %vm426, %v3221, %v3223
    %v3225 = vrot.slane %v3212, 1
    %v3226 = vsel %vm426, %v3223, %v3225
    %v3227 = vrot.slane %v3213, 1
    %v3228 = vsel %vm426, %v3225, %v3227
    %3236 = vst [vmem:[#allocation4 + $0x40] sm:$0xff] %v3216
    %3237 = vst [vmem:[#allocation4 + $0x88] sm:$0xff] %v3218
    %3238 = vst [vmem:[#allocation4 + $0xd0] sm:$0xff] %v3220
    %3239 = vst [vmem:[#allocation4 + $0x118] sm:$0xff] %v3222
    %3240 = vst [vmem:[#allocation4 + $0x160] sm:$0xff] %v3224
    %3241 = vst [vmem:[#allocation4 + $0x1a8] sm:$0xff] %v3226
    %3242 = vst [vmem:[#allocation4 + $0x1f0] sm:$0xff] %v3228
    %v3243 = vld [vmem:[#allocation4] sm:$0xff]
    %v3244 = vld [vmem:[#allocation4 + $0x8] sm:$0xff]
    %v3245 = vld [vmem:[#allocation4 + $0x10] sm:$0xff]
    %v3246 = vld [vmem:[#allocation4 + $0x18] sm:$0xff]
    %v3247 = vld [vmem:[#allocation4 + $0x20] sm:$0xff]
    %v3248 = vld [vmem:[#allocation4 + $0x28] sm:$0xff]
    %v3249 = vld [vmem:[#allocation4 + $0x30] sm:$0xff]
    %v3250 = vld [vmem:[#allocation4 + $0x38] sm:$0xff]
    %v3251 = vld [vmem:[#allocation4 + $0x40] sm:$0xff]
    %v3252 = vld [vmem:[#allocation4 + $0x48] sm:$0xff]
    %v3253 = vld [vmem:[#allocation4 + $0x50] sm:$0xff]
    %v3254 = vld [vmem:[#allocation4 + $0x58] sm:$0xff]
    %v3255 = vld [vmem:[#allocation4 + $0x60] sm:$0xff]
    %v3256 = vld [vmem:[#allocation4 + $0x68] sm:$0xff]
    %v3257 = vld [vmem:[#allocation4 + $0x70] sm:$0xff]
    %v3258 = vld [vmem:[#allocation4 + $0x78] sm:$0xff]
    %v3259 = vld [vmem:[#allocation4 + $0x80] sm:$0xff]
    %v3260 = vld [vmem:[#allocation4 + $0x88] sm:$0xff]
    %v3261 = vld [vmem:[#allocation4 + $0x90] sm:$0xff]
    %v3262 = vld [vmem:[#allocation4 + $0x98] sm:$0xff]
    %v3263 = vld [vmem:[#allocation4 + $0xa0] sm:$0xff]
    %v3264 = vld [vmem:[#allocation4 + $0xa8] sm:$0xff]
    %v3265 = vld [vmem:[#allocation4 + $0xb0] sm:$0xff]
    %v3266 = vld [vmem:[#allocation4 + $0xb8] sm:$0xff]
    %v3267 = vld [vmem:[#allocation4 + $0xc0] sm:$0xff]
    %v3268 = vld [vmem:[#allocation4 + $0xc8] sm:$0xff]
    %v3269 = vld [vmem:[#allocation4 + $0xd0] sm:$0xff]
    %v3270 = vld [vmem:[#allocation4 + $0xd8] sm:$0xff]
    %v3271 = vld [vmem:[#allocation4 + $0xe0] sm:$0xff]
    %v3272 = vld [vmem:[#allocation4 + $0xe8] sm:$0xff]
    %v3273 = vld [vmem:[#allocation4 + $0xf0] sm:$0xff]
    %v3274 = vld [vmem:[#allocation4 + $0xf8] sm:$0xff]
    %v3275 = vld [vmem:[#allocation4 + $0x100] sm:$0xff]
    %v3276 = vld [vmem:[#allocation4 + $0x108] sm:$0xff]
    %v3277 = vld [vmem:[#allocation4 + $0x110] sm:$0xff]
    %v3278 = vld [vmem:[#allocation4 + $0x118] sm:$0xff]
    %v3279 = vld [vmem:[#allocation4 + $0x120] sm:$0xff]
    %v3280 = vld [vmem:[#allocation4 + $0x128] sm:$0xff]
    %v3281 = vld [vmem:[#allocation4 + $0x130] sm:$0xff]
    %v3282 = vld [vmem:[#allocation4 + $0x138] sm:$0xff]
    %v3283 = vld [vmem:[#allocation4 + $0x140] sm:$0xff]
    %v3284 = vld [vmem:[#allocation4 + $0x148] sm:$0xff]
    %v3285 = vld [vmem:[#allocation4 + $0x150] sm:$0xff]
    %v3286 = vld [vmem:[#allocation4 + $0x158] sm:$0xff]
    %v3287 = vld [vmem:[#allocation4 + $0x160] sm:$0xff]
    %v3288 = vld [vmem:[#allocation4 + $0x168] sm:$0xff]
    %v3289 = vld [vmem:[#allocation4 + $0x170] sm:$0xff]
    %v3290 = vld [vmem:[#allocation4 + $0x178] sm:$0xff]
    %v3291 = vld [vmem:[#allocation4 + $0x180] sm:$0xff]
    %v3292 = vld [vmem:[#allocation4 + $0x188] sm:$0xff]
    %v3293 = vld [vmem:[#allocation4 + $0x190] sm:$0xff]
    %v3294 = vld [vmem:[#allocation4 + $0x198] sm:$0xff]
    %v3295 = vld [vmem:[#allocation4 + $0x1a0] sm:$0xff]
    %v3296 = vld [vmem:[#allocation4 + $0x1a8] sm:$0xff]
    %v3297 = vld [vmem:[#allocation4 + $0x1b0] sm:$0xff]
    %v3298 = vld [vmem:[#allocation4 + $0x1b8] sm:$0xff]
    %v3299 = vld [vmem:[#allocation4 + $0x1c0] sm:$0xff]
    %v3300 = vld [vmem:[#allocation4 + $0x1c8] sm:$0xff]
    %v3301 = vld [vmem:[#allocation4 + $0x1d0] sm:$0xff]
    %v3302 = vld [vmem:[#allocation4 + $0x1d8] sm:$0xff]
    %v3303 = vld [vmem:[#allocation4 + $0x1e0] sm:$0xff]
    %v3304 = vld [vmem:[#allocation4 + $0x1e8] sm:$0xff]
    %v3305 = vld [vmem:[#allocation4 + $0x1f0] sm:$0xff]
    %v3306 = vld [vmem:[#allocation5] sm:$0xf]
    %v3307 = vld [vmem:[#allocation5 + $0x4] sm:$0xf]
    %v3308 = vld [vmem:[#allocation5 + $0x8] sm:$0xf]
    %v3309 = vld [vmem:[#allocation5 + $0xc] sm:$0xf]
    %v3310 = vld [vmem:[#allocation5 + $0x10] sm:$0xf]
    %v3311 = vld [vmem:[#allocation5 + $0x14] sm:$0xf]
    %v3312 = vld [vmem:[#allocation5 + $0x18] sm:$0xf]
    %v3313 = vld [vmem:[#allocation5 + $0x1c] sm:$0xf]
    %v3314 = vld [vmem:[#allocation5 + $0x20] sm:$0xf]
    %v3315 = vld [vmem:[#allocation5 + $0x24] sm:$0xf]
    %v3316 = vld [vmem:[#allocation5 + $0x28] sm:$0xf]
    %v3317 = vld [vmem:[#allocation5 + $0x2c] sm:$0xf]
    %v3318 = vld [vmem:[#allocation5 + $0x30] sm:$0xf]
    %v3319 = vld [vmem:[#allocation5 + $0x34] sm:$0xf]
    %v3320 = vld [vmem:[#allocation5 + $0x38] sm:$0xf]
    %v3321 = vld [vmem:[#allocation5 + $0x3c] sm:$0xf]
    %v3322 = vld [vmem:[#allocation5 + $0x40] sm:$0xf]
    %v3323 = vld [vmem:[#allocation5 + $0x44] sm:$0xf]
    %v3324 = vld [vmem:[#allocation5 + $0x48] sm:$0xf]
    %v3325 = vld [vmem:[#allocation5 + $0x4c] sm:$0xf]
    %v3326 = vld [vmem:[#allocation5 + $0x50] sm:$0xf]
    %v3327 = vld [vmem:[#allocation5 + $0x54] sm:$0xf]
    %v3328 = vld [vmem:[#allocation5 + $0x58] sm:$0xf]
    %v3329 = vld [vmem:[#allocation5 + $0x5c] sm:$0xf]
    %v3330 = vld [vmem:[#allocation5 + $0x60] sm:$0xf]
    %v3331 = vld [vmem:[#allocation5 + $0x64] sm:$0xf]
    %v3332 = vld [vmem:[#allocation5 + $0x68] sm:$0xf]
    %v3333 = vld [vmem:[#allocation5 + $0x6c] sm:$0xf]
    %v3334 = vld [vmem:[#allocation5 + $0x70] sm:$0xf]
    %v3335 = vld [vmem:[#allocation5 + $0x74] sm:$0xf]
    %v3336 = vld [vmem:[#allocation5 + $0x78] sm:$0xf]
    %v3337 = vld [vmem:[#allocation5 + $0x7c] sm:$0xf]
    %v3338 = vld [vmem:[#allocation5 + $0x80] sm:$0xf]
    %v3339 = vld [vmem:[#allocation5 + $0x84] sm:$0xf]
    %v3340 = vld [vmem:[#allocation5 + $0x88] sm:$0xf]
    %v3341 = vld [vmem:[#allocation5 + $0x8c] sm:$0xf]
    %v3342 = vld [vmem:[#allocation5 + $0x90] sm:$0xf]
    %v3343 = vld [vmem:[#allocation5 + $0x94] sm:$0xf]
    %v3344 = vld [vmem:[#allocation5 + $0x98] sm:$0xf]
    %v3345 = vld [vmem:[#allocation5 + $0x9c] sm:$0xf]
    %v3346 = vld [vmem:[#allocation5 + $0xa0] sm:$0xf]
    %v3347 = vld [vmem:[#allocation5 + $0xa4] sm:$0xf]
    %v3348 = vld [vmem:[#allocation5 + $0xa8] sm:$0xf]
    %v3349 = vld [vmem:[#allocation5 + $0xac] sm:$0xf]
    %v3350 = vld [vmem:[#allocation5 + $0xb0] sm:$0xf]
    %v3351 = vld [vmem:[#allocation5 + $0xb4] sm:$0xf]
    %v3352 = vld [vmem:[#allocation5 + $0xb8] sm:$0xf]
    %v3353 = vld [vmem:[#allocation5 + $0xbc] sm:$0xf]
    %v3354 = vld [vmem:[#allocation5 + $0xc0] sm:$0xf]
    %v3355 = vld [vmem:[#allocation5 + $0xc4] sm:$0xf]
    %v3356 = vld [vmem:[#allocation5 + $0xc8] sm:$0xf]
    %v3357 = vld [vmem:[#allocation5 + $0xcc] sm:$0xf]
    %v3358 = vld [vmem:[#allocation5 + $0xd0] sm:$0xf]
    %v3359 = vld [vmem:[#allocation5 + $0xd4] sm:$0xf]
    %v3360 = vld [vmem:[#allocation5 + $0xd8] sm:$0xf]
    %v3361 = vld [vmem:[#allocation5 + $0xdc] sm:$0xf]
    %v3362 = vld [vmem:[#allocation5 + $0xe0] sm:$0xf]
    %v3363 = vld [vmem:[#allocation5 + $0xe4] sm:$0xf]
    %v3364 = vld [vmem:[#allocation5 + $0xe8] sm:$0xf]
    %v3365 = vld [vmem:[#allocation5 + $0xec] sm:$0xf]
    %v3366 = vld [vmem:[#allocation5 + $0xf0] sm:$0xf]
    %v3367 = vld [vmem:[#allocation5 + $0xf4] sm:$0xf]
    %v3368 = vld [vmem:[#allocation5 + $0xf8] sm:$0xf]
    %v3369 = vld [vmem:[#allocation5 + $0xfc] sm:$0xf]
    %v3370 = vld [vmem:[#allocation5 + $0x100] sm:$0xf]
    %v3371 = vld [vmem:[#allocation5 + $0x104] sm:$0xf]
    %v3372 = vld [vmem:[#allocation5 + $0x108] sm:$0xf]
    %v3373 = vld [vmem:[#allocation5 + $0x10c] sm:$0xf]
    %v3374 = vld [vmem:[#allocation5 + $0x110] sm:$0xf]
    %v3375 = vld [vmem:[#allocation5 + $0x114] sm:$0xf]
    %v3376 = vld [vmem:[#allocation5 + $0x118] sm:$0xf]
    %v3377 = vld [vmem:[#allocation5 + $0x11c] sm:$0xf]
    %v3378 = vld [vmem:[#allocation5 + $0x120] sm:$0xf]
    %v3379 = vld [vmem:[#allocation5 + $0x124] sm:$0xf]
    %v3380 = vld [vmem:[#allocation5 + $0x128] sm:$0xf]
    %v3381 = vld [vmem:[#allocation5 + $0x12c] sm:$0xf]
    %v3382 = vld [vmem:[#allocation5 + $0x130] sm:$0xf]
    %v3383 = vld [vmem:[#allocation5 + $0x134] sm:$0xf]
    %v3384 = vld [vmem:[#allocation5 + $0x138] sm:$0xf]
    %v3385 = vld [vmem:[#allocation5 + $0x13c] sm:$0xf]
    %v3386 = vld [vmem:[#allocation5 + $0x140] sm:$0xf]
    %v3387 = vld [vmem:[#allocation5 + $0x144] sm:$0xf]
    %v3388 = vld [vmem:[#allocation5 + $0x148] sm:$0xf]
    %v3389 = vld [vmem:[#allocation5 + $0x14c] sm:$0xf]
    %v3390 = vld [vmem:[#allocation5 + $0x150] sm:$0xf]
    %v3391 = vld [vmem:[#allocation5 + $0x154] sm:$0xf]
    %v3392 = vld [vmem:[#allocation5 + $0x158] sm:$0xf]
    %v3393 = vld [vmem:[#allocation5 + $0x15c] sm:$0xf]
    %v3394 = vld [vmem:[#allocation5 + $0x160] sm:$0xf]
    %v3395 = vld [vmem:[#allocation5 + $0x164] sm:$0xf]
    %v3396 = vld [vmem:[#allocation5 + $0x168] sm:$0xf]
    %v3397 = vld [vmem:[#allocation5 + $0x16c] sm:$0xf]
    %v3398 = vld [vmem:[#allocation5 + $0x170] sm:$0xf]
    %v3399 = vld [vmem:[#allocation5 + $0x174] sm:$0xf]
    %v3400 = vld [vmem:[#allocation5 + $0x178] sm:$0xf]
    %v3401 = vld [vmem:[#allocation5 + $0x17c] sm:$0xf]
    %v3402 = vld [vmem:[#allocation5 + $0x180] sm:$0xf]
    %v3403 = vld [vmem:[#allocation5 + $0x184] sm:$0xf]
    %v3404 = vld [vmem:[#allocation5 + $0x188] sm:$0xf]
    %v3405 = vld [vmem:[#allocation5 + $0x18c] sm:$0xf]
    %v3406 = vld [vmem:[#allocation5 + $0x190] sm:$0xf]
    %v3407 = vld [vmem:[#allocation5 + $0x194] sm:$0xf]
    %v3408 = vld [vmem:[#allocation5 + $0x198] sm:$0xf]
    %v3409 = vld [vmem:[#allocation5 + $0x19c] sm:$0xf]
    %v3410 = vld [vmem:[#allocation5 + $0x1a0] sm:$0xf]
    %v3411 = vld [vmem:[#allocation5 + $0x1a4] sm:$0xf]
    %v3412 = vld [vmem:[#allocation5 + $0x1a8] sm:$0xf]
    %v3413 = vld [vmem:[#allocation5 + $0x1ac] sm:$0xf]
    %v3414 = vld [vmem:[#allocation5 + $0x1b0] sm:$0xf]
    %v3415 = vld [vmem:[#allocation5 + $0x1b4] sm:$0xf]
    %v3416 = vld [vmem:[#allocation5 + $0x1b8] sm:$0xf]
    %v3417 = vld [vmem:[#allocation5 + $0x1bc] sm:$0xf]
    %v3418 = vld [vmem:[#allocation5 + $0x1c0] sm:$0xf]
    %v3419 = vld [vmem:[#allocation5 + $0x1c4] sm:$0xf]
    %v3420 = vld [vmem:[#allocation5 + $0x1c8] sm:$0xf]
    %v3421 = vld [vmem:[#allocation5 + $0x1cc] sm:$0xf]
    %v3422 = vld [vmem:[#allocation5 + $0x1d0] sm:$0xf]
    %v3423 = vld [vmem:[#allocation5 + $0x1d4] sm:$0xf]
    %v3424 = vld [vmem:[#allocation5 + $0x1d8] sm:$0xf]
    %v3425 = vld [vmem:[#allocation5 + $0x1dc] sm:$0xf]
    %v3426 = vld [vmem:[#allocation5 + $0x1e0] sm:$0xf]
    %v3427 = vld [vmem:[#allocation5 + $0x1e4] sm:$0xf]
    %v3428 = vld [vmem:[#allocation5 + $0x1e8] sm:$0xf]
    %v3429 = vld [vmem:[#allocation5 + $0x1ec] sm:$0xf]
    %v3430 = vld [vmem:[#allocation5 + $0x1f0] sm:$0xf]
    %v3431 = vld [vmem:[#allocation5 + $0x1f4] sm:$0xf]
    %v3432 = vld [vmem:[#allocation5 + $0x1f8] sm:$0xf]
    %v3433 = vld [vmem:[#allocation5 + $0x1fc] sm:$0xf]
    %v3434 = vld [vmem:[#allocation5 + $0x200] sm:$0xf]
    %v3435 = vld [vmem:[#allocation5 + $0x204] sm:$0xf]
    %v3436 = vld [vmem:[#allocation5 + $0x208] sm:$0xf]
    %v3437 = vld [vmem:[#allocation5 + $0x20c] sm:$0xf]
    %v3438 = vld [vmem:[#allocation5 + $0x210] sm:$0xf]
    %v3439 = vld [vmem:[#allocation5 + $0x214] sm:$0xf]
    %v3440 = vld [vmem:[#allocation5 + $0x218] sm:$0xf]
    %v3441 = vld [vmem:[#allocation5 + $0x21c] sm:$0xf]
    %v3442 = vld [vmem:[#allocation5 + $0x220] sm:$0xf]
    %v3443 = vld [vmem:[#allocation5 + $0x224] sm:$0xf]
    %v3444 = vld [vmem:[#allocation5 + $0x228] sm:$0xf]
    %v3445 = vld [vmem:[#allocation5 + $0x22c] sm:$0xf]
    %v3446 = vld [vmem:[#allocation5 + $0x230] sm:$0xf]
    %v3447 = vld [vmem:[#allocation5 + $0x234] sm:$0xf]
    %v3448 = vld [vmem:[#allocation5 + $0x238] sm:$0xf]
    %v3449 = vld [vmem:[#allocation5 + $0x23c] sm:$0xf]
    %v3594 = vunpack.c.l.b16 %v3306
    %v3595 = vunpack.c.l.b16 %v3307
    %v3596 = vunpack.c.l.b16 %v3308
    %v3597 = vunpack.c.l.b16 %v3309
    %v3598 = vunpack.c.l.b16 %v3310
    %v3599 = vunpack.c.l.b16 %v3311
    %v3600 = vunpack.c.l.b16 %v3312
    %v3601 = vunpack.c.l.b16 %v3313
    %v3602 = vunpack.c.l.b16 %v3314
    %v3603 = vunpack.c.l.b16 %v3315
    %v3604 = vunpack.c.l.b16 %v3316
    %v3605 = vunpack.c.l.b16 %v3317
    %v3606 = vunpack.c.l.b16 %v3318
    %v3607 = vunpack.c.l.b16 %v3319
    %v3608 = vunpack.c.l.b16 %v3320
    %v3609 = vunpack.c.l.b16 %v3321
    %v3610 = vunpack.c.l.b16 %v3322
    %v3611 = vunpack.c.l.b16 %v3323
    %v3612 = vunpack.c.l.b16 %v3324
    %v3613 = vunpack.c.l.b16 %v3325
    %v3614 = vunpack.c.l.b16 %v3326
    %v3615 = vunpack.c.l.b16 %v3327
    %v3616 = vunpack.c.l.b16 %v3328
    %v3617 = vunpack.c.l.b16 %v3329
    %v3618 = vunpack.c.l.b16 %v3330
    %v3619 = vunpack.c.l.b16 %v3331
    %v3620 = vunpack.c.l.b16 %v3332
    %v3621 = vunpack.c.l.b16 %v3333
    %v3622 = vunpack.c.l.b16 %v3334
    %v3623 = vunpack.c.l.b16 %v3335
    %v3624 = vunpack.c.l.b16 %v3336
    %v3625 = vunpack.c.l.b16 %v3337
    %v3626 = vunpack.c.l.b16 %v3338
    %v3627 = vunpack.c.l.b16 %v3339
    %v3628 = vunpack.c.l.b16 %v3340
    %v3629 = vunpack.c.l.b16 %v3341
    %v3630 = vunpack.c.l.b16 %v3342
    %v3631 = vunpack.c.l.b16 %v3343
    %v3632 = vunpack.c.l.b16 %v3344
    %v3633 = vunpack.c.l.b16 %v3345
    %v3634 = vunpack.c.l.b16 %v3346
    %v3635 = vunpack.c.l.b16 %v3347
    %v3636 = vunpack.c.l.b16 %v3348
    %v3637 = vunpack.c.l.b16 %v3349
    %v3638 = vunpack.c.l.b16 %v3350
    %v3639 = vunpack.c.l.b16 %v3351
    %v3640 = vunpack.c.l.b16 %v3352
    %v3641 = vunpack.c.l.b16 %v3353
    %v3642 = vunpack.c.l.b16 %v3354
    %v3643 = vunpack.c.l.b16 %v3355
    %v3644 = vunpack.c.l.b16 %v3356
    %v3645 = vunpack.c.l.b16 %v3357
    %v3646 = vunpack.c.l.b16 %v3358
    %v3647 = vunpack.c.l.b16 %v3359
    %v3648 = vunpack.c.l.b16 %v3360
    %v3649 = vunpack.c.l.b16 %v3361
    %v3650 = vunpack.c.l.b16 %v3362
    %v3651 = vunpack.c.l.b16 %v3363
    %v3652 = vunpack.c.l.b16 %v3364
    %v3653 = vunpack.c.l.b16 %v3365
    %v3654 = vunpack.c.l.b16 %v3366
    %v3655 = vunpack.c.l.b16 %v3367
    %v3656 = vunpack.c.l.b16 %v3368
    %v3657 = vunpack.c.l.b16 %v3369
    %v3658 = vunpack.c.l.b16 %v3370
    %v3659 = vunpack.c.l.b16 %v3371
    %v3660 = vunpack.c.l.b16 %v3372
    %v3661 = vunpack.c.l.b16 %v3373
    %v3662 = vunpack.c.l.b16 %v3374
    %v3663 = vunpack.c.l.b16 %v3375
    %v3664 = vunpack.c.l.b16 %v3376
    %v3665 = vunpack.c.l.b16 %v3377
    %v3666 = vunpack.c.l.b16 %v3378
    %v3667 = vunpack.c.l.b16 %v3379
    %v3668 = vunpack.c.l.b16 %v3380
    %v3669 = vunpack.c.l.b16 %v3381
    %v3670 = vunpack.c.l.b16 %v3382
    %v3671 = vunpack.c.l.b16 %v3383
    %v3672 = vunpack.c.l.b16 %v3384
    %v3673 = vunpack.c.l.b16 %v3385
    %v3674 = vunpack.c.l.b16 %v3386
    %v3675 = vunpack.c.l.b16 %v3387
    %v3676 = vunpack.c.l.b16 %v3388
    %v3677 = vunpack.c.l.b16 %v3389
    %v3678 = vunpack.c.l.b16 %v3390
    %v3679 = vunpack.c.l.b16 %v3391
    %v3680 = vunpack.c.l.b16 %v3392
    %v3681 = vunpack.c.l.b16 %v3393
    %v3682 = vunpack.c.l.b16 %v3394
    %v3683 = vunpack.c.l.b16 %v3395
    %v3684 = vunpack.c.l.b16 %v3396
    %v3685 = vunpack.c.l.b16 %v3397
    %v3686 = vunpack.c.l.b16 %v3398
    %v3687 = vunpack.c.l.b16 %v3399
    %v3688 = vunpack.c.l.b16 %v3400
    %v3689 = vunpack.c.l.b16 %v3401
    %v3690 = vunpack.c.l.b16 %v3402
    %v3691 = vunpack.c.l.b16 %v3403
    %v3692 = vunpack.c.l.b16 %v3404
    %v3693 = vunpack.c.l.b16 %v3405
    %v3694 = vunpack.c.l.b16 %v3406
    %v3695 = vunpack.c.l.b16 %v3407
    %v3696 = vunpack.c.l.b16 %v3408
    %v3697 = vunpack.c.l.b16 %v3409
    %v3698 = vunpack.c.l.b16 %v3410
    %v3699 = vunpack.c.l.b16 %v3411
    %v3700 = vunpack.c.l.b16 %v3412
    %v3701 = vunpack.c.l.b16 %v3413
    %v3702 = vunpack.c.l.b16 %v3414
    %v3703 = vunpack.c.l.b16 %v3415
    %v3704 = vunpack.c.l.b16 %v3416
    %v3705 = vunpack.c.l.b16 %v3417
    %v3706 = vunpack.c.l.b16 %v3418
    %v3707 = vunpack.c.l.b16 %v3419
    %v3708 = vunpack.c.l.b16 %v3420
    %v3709 = vunpack.c.l.b16 %v3421
    %v3710 = vunpack.c.l.b16 %v3422
    %v3711 = vunpack.c.l.b16 %v3423
    %v3712 = vunpack.c.l.b16 %v3424
    %v3713 = vunpack.c.l.b16 %v3425
    %v3714 = vunpack.c.l.b16 %v3426
    %v3715 = vunpack.c.l.b16 %v3427
    %v3716 = vunpack.c.l.b16 %v3428
    %v3717 = vunpack.c.l.b16 %v3429
    %v3718 = vunpack.c.l.b16 %v3430
    %v3719 = vunpack.c.l.b16 %v3431
    %v3720 = vunpack.c.l.b16 %v3432
    %v3721 = vunpack.c.l.b16 %v3433
    %v3722 = vunpack.c.l.b16 %v3434
    %v3723 = vunpack.c.l.b16 %v3435
    %v3724 = vunpack.c.l.b16 %v3436
    %v3725 = vunpack.c.l.b16 %v3437
    %v3726 = vunpack.c.l.b16 %v3438
    %v3727 = vunpack.c.l.b16 %v3439
    %v3728 = vunpack.c.l.b16 %v3440
    %v3729 = vunpack.c.l.b16 %v3441
    %v3730 = vunpack.c.l.b16 %v3442
    %v3731 = vunpack.c.l.b16 %v3443
    %v3732 = vunpack.c.l.b16 %v3444
    %v3733 = vunpack.c.l.b16 %v3445
    %v3734 = vunpack.c.l.b16 %v3446
    %v3735 = vunpack.c.l.b16 %v3447
    %v3736 = vunpack.c.l.b16 %v3448
    %v3737 = vunpack.c.l.b16 %v3449
    %v3738 = vpack.c.b16 %v3595, %v3594
    %v3739 = vpack.c.b16 %v3597, %v3596
    %v3740 = vpack.c.b16 %v3599, %v3598
    %v3741 = vpack.c.b16 %v3601, %v3600
    %v3742 = vpack.c.b16 %v3603, %v3602
    %v3743 = vpack.c.b16 %v3605, %v3604
    %v3744 = vpack.c.b16 %v3607, %v3606
    %v3745 = vpack.c.b16 %v3609, %v3608
    %v3746 = vpack.c.b16 %v3611, %v3610
    %v3747 = vpack.c.b16 %v3613, %v3612
    %v3748 = vpack.c.b16 %v3615, %v3614
    %v3749 = vpack.c.b16 %v3617, %v3616
    %v3750 = vpack.c.b16 %v3619, %v3618
    %v3751 = vpack.c.b16 %v3621, %v3620
    %v3752 = vpack.c.b16 %v3623, %v3622
    %v3753 = vpack.c.b16 %v3625, %v3624
    %v3754 = vpack.c.b16 %v3627, %v3626
    %v3755 = vpack.c.b16 %v3629, %v3628
    %v3756 = vpack.c.b16 %v3631, %v3630
    %v3757 = vpack.c.b16 %v3633, %v3632
    %v3758 = vpack.c.b16 %v3635, %v3634
    %v3759 = vpack.c.b16 %v3637, %v3636
    %v3760 = vpack.c.b16 %v3639, %v3638
    %v3761 = vpack.c.b16 %v3641, %v3640
    %v3762 = vpack.c.b16 %v3643, %v3642
    %v3763 = vpack.c.b16 %v3645, %v3644
    %v3764 = vpack.c.b16 %v3647, %v3646
    %v3765 = vpack.c.b16 %v3649, %v3648
    %v3766 = vpack.c.b16 %v3651, %v3650
    %v3767 = vpack.c.b16 %v3653, %v3652
    %v3768 = vpack.c.b16 %v3655, %v3654
    %v3769 = vpack.c.b16 %v3657, %v3656
    %v3770 = vpack.c.b16 %v3659, %v3658
    %v3771 = vpack.c.b16 %v3661, %v3660
    %v3772 = vpack.c.b16 %v3663, %v3662
    %v3773 = vpack.c.b16 %v3665, %v3664
    %v3774 = vpack.c.b16 %v3667, %v3666
    %v3775 = vpack.c.b16 %v3669, %v3668
    %v3776 = vpack.c.b16 %v3671, %v3670
    %v3777 = vpack.c.b16 %v3673, %v3672
    %v3778 = vpack.c.b16 %v3675, %v3674
    %v3779 = vpack.c.b16 %v3677, %v3676
    %v3780 = vpack.c.b16 %v3679, %v3678
    %v3781 = vpack.c.b16 %v3681, %v3680
    %v3782 = vpack.c.b16 %v3683, %v3682
    %v3783 = vpack.c.b16 %v3685, %v3684
    %v3784 = vpack.c.b16 %v3687, %v3686
    %v3785 = vpack.c.b16 %v3689, %v3688
    %v3786 = vpack.c.b16 %v3691, %v3690
    %v3787 = vpack.c.b16 %v3693, %v3692
    %v3788 = vpack.c.b16 %v3695, %v3694
    %v3789 = vpack.c.b16 %v3697, %v3696
    %v3790 = vpack.c.b16 %v3699, %v3698
    %v3791 = vpack.c.b16 %v3701, %v3700
    %v3792 = vpack.c.b16 %v3703, %v3702
    %v3793 = vpack.c.b16 %v3705, %v3704
    %v3794 = vpack.c.b16 %v3707, %v3706
    %v3795 = vpack.c.b16 %v3709, %v3708
    %v3796 = vpack.c.b16 %v3711, %v3710
    %v3797 = vpack.c.b16 %v3713, %v3712
    %v3798 = vpack.c.b16 %v3715, %v3714
    %v3799 = vpack.c.b16 %v3717, %v3716
    %v3800 = vpack.c.b16 %v3719, %v3718
    %v3801 = vpack.c.b16 %v3721, %v3720
    %v3802 = vpack.c.b16 %v3723, %v3722
    %v3803 = vpack.c.b16 %v3725, %v3724
    %v3804 = vpack.c.b16 %v3727, %v3726
    %v3805 = vpack.c.b16 %v3729, %v3728
    %v3806 = vpack.c.b16 %v3731, %v3730
    %v3807 = vpack.c.b16 %v3733, %v3732
    %v3808 = vpack.c.b16 %v3735, %v3734
    %v3809 = vpack.c.b16 %v3737, %v3736
    %3882 = vmatprep.subr.bf16.mxu0 0
    %3883 = vmatpush1.bf16.msra.mxu0 %v3738
    %3884 = vmatprep.subr.bf16.mxu0 0
    %3885 = vmatpush1.bf16.msra.mxu0 %v3739
    %3886 = vmatprep.subr.bf16.mxu0 0
    %3887 = vmatpush1.bf16.msra.mxu0 %v3740
    %3888 = vmatprep.subr.bf16.mxu0 0
    %3889 = vmatpush1.bf16.msra.mxu0 %v3741
    %3890 = vmatprep.subr.bf16.mxu0 0
    %3891 = vmatpush1.bf16.msra.mxu0 %v3742
    %3892 = vmatprep.subr.bf16.mxu0 0
    %3893 = vmatpush1.bf16.msra.mxu0 %v3743
    %3894 = vmatprep.subr.bf16.mxu0 0
    %3895 = vmatpush1.bf16.msra.mxu0 %v3744
    %3896 = vmatprep.subr.bf16.mxu0 0
    %3897 = vmatpush1.bf16.msra.mxu0 %v3745
    %3898 = vmatprep.subr.bf16.mxu0 0
    %3899 = vmatpush1.bf16.msra.mxu0 %v3746
    %3900 = vmatprep.subr.bf16.mxu0 0
    %3901 = vmatpush1.bf16.msra.mxu0 %v3747
    %3902 = vmatprep.subr.bf16.mxu0 0
    %3903 = vmatpush1.bf16.msra.mxu0 %v3748
    %3904 = vmatprep.subr.bf16.mxu0 0
    %3905 = vmatpush1.bf16.msra.mxu0 %v3749
    %3906 = vmatprep.subr.bf16.mxu0 0
    %3907 = vmatpush1.bf16.msra.mxu0 %v3750
    %3908 = vmatprep.subr.bf16.mxu0 0
    %3909 = vmatpush1.bf16.msra.mxu0 %v3751
    %3910 = vmatprep.subr.bf16.mxu0 0
    %3911 = vmatpush1.bf16.msra.mxu0 %v3752
    %3912 = vmatprep.subr.bf16.mxu0 0
    %3913 = vmatpush1.bf16.msra.mxu0 %v3753
    %3914 = vmatprep.mubr.bf16.mxu0 %v3244
    %3915 = vmatmul.mubr.bf16.gmra.mrb[0].mxu0 %v3243
    %v3916 = vpop.f32.mrb[0].mxu0
    %v3917 = vadd.f32 0.0, %v3916
    %v3918 = vpop.f32.mrb[0].mxu0
    %v3919 = vpop.f32.mrb[0].mxu0
    %v3920 = vadd.f32 0.0, %v3919
    %v3921 = vpop.f32.mrb[0].mxu0
    %3922 = vmatprep.mubr.bf16.mxu0 %v3253
    %3923 = vmatmul.mubr.bf16.gmra.mrb[0].mxu0 %v3252
    %v3924 = vpop.f32.mrb[0].mxu0
    %v3925 = vadd.f32 0.0, %v3924
    %v3926 = vpop.f32.mrb[0].mxu0
    %v3927 = vpop.f32.mrb[0].mxu0
    %v3928 = vadd.f32 0.0, %v3927
    %v3929 = vpop.f32.mrb[0].mxu0
    %3930 = vmatprep.mubr.bf16.mxu0 %v3262
    %3931 = vmatmul.mubr.bf16.gmra.mrb[0].mxu0 %v3261
    %v3932 = vpop.f32.mrb[0].mxu0
    %v3933 = vadd.f32 0.0, %v3932
    %v3934 = vpop.f32.mrb[0].mxu0
    %v3935 = vpop.f32.mrb[0].mxu0
    %v3936 = vadd.f32 0.0, %v3935
    %v3937 = vpop.f32.mrb[0].mxu0
    %3938 = vmatprep.mubr.bf16.mxu0 %v3271
    %3939 = vmatmul.mubr.bf16.gmra.mrb[0].mxu0 %v3270
    %v3940 = vpop.f32.mrb[0].mxu0
    %v3941 = vadd.f32 0.0, %v3940
    %v3942 = vpop.f32.mrb[0].mxu0
    %v3943 = vpop.f32.mrb[0].mxu0
    %v3944 = vadd.f32 0.0, %v3943
    %v3945 = vpop.f32.mrb[0].mxu0
    %3946 = vmatprep.mubr.bf16.mxu0 %v3280
    %3947 = vmatmul.mubr.bf16.gmra.mrb[0].mxu0 %v3279
    %v3948 = vpop.f32.mrb[0].mxu0
    %v3949 = vadd.f32 0.0, %v3948
    %v3950 = vpop.f32.mrb[0].mxu0
    %v3951 = vpop.f32.mrb[0].mxu0
    %v3952 = vadd.f32 0.0, %v3951
    %v3953 = vpop.f32.mrb[0].mxu0
    %3954 = vmatprep.mubr.bf16.mxu0 %v3289
    %3955 = vmatmul.mubr.bf16.gmra.mrb[0].mxu0 %v3288
    %v3956 = vpop.f32.mrb[0].mxu0
    %v3957 = vadd.f32 0.0, %v3956
    %v3958 = vpop.f32.mrb[0].mxu0
    %v3959 = vpop.f32.mrb[0].mxu0
    %v3960 = vadd.f32 0.0, %v3959
    %v3961 = vpop.f32.mrb[0].mxu0
    %3962 = vmatprep.mubr.bf16.mxu0 %v3298
    %3963 = vmatmul.mubr.bf16.gmra.mrb[0].mxu0 %v3297
    %v3964 = vpop.f32.mrb[0].mxu0
    %v3965 = vadd.f32 0.0, %v3964
    %v3966 = vpop.f32.mrb[0].mxu0
    %v3967 = vpop.f32.mrb[0].mxu0
    %v3968 = vadd.f32 0.0, %v3967
    %v3969 = vpop.f32.mrb[0].mxu0
    %3970 = vdwg.mxu0
    %3971 = vmatprep.subr.bf16.mxu0 0
    %3972 = vmatpush1.bf16.msra.mxu0 %v3754
    %3973 = vmatprep.subr.bf16.mxu0 0
    %3974 = vmatpush1.bf16.msra.mxu0 %v3755
    %3975 = vmatprep.subr.bf16.mxu0 0
    %3976 = vmatpush1.bf16.msra.mxu0 %v3756
    %3977 = vmatprep.subr.bf16.mxu0 0
    %3978 = vmatpush1.bf16.msra.mxu0 %v3757
    %3979 = vmatprep.subr.bf16.mxu0 0
    %3980 = vmatpush1.bf16.msra.mxu0 %v3758
    %3981 = vmatprep.subr.bf16.mxu0 0
    %3982 = vmatpush1.bf16.msra.mxu0 %v3759
    %3983 = vmatprep.subr.bf16.mxu0 0
    %3984 = vmatpush1.bf16.msra.mxu0 %v3760
    %3985 = vmatprep.subr.bf16.mxu0 0
    %3986 = vmatpush1.bf16.msra.mxu0 %v3761
    %3987 = vmatprep.subr.bf16.mxu0 0
    %3988 = vmatpush1.bf16.msra.mxu0 %v3762
    %3989 = vmatprep.subr.bf16.mxu0 0
    %3990 = vmatpush1.bf16.msra.mxu0 %v3763
    %3991 = vmatprep.subr.bf16.mxu0 0
    %3992 = vmatpush1.bf16.msra.mxu0 %v3764
    %3993 = vmatprep.subr.bf16.mxu0 0
    %3994 = vmatpush1.bf16.msra.mxu0 %v3765
    %3995 = vmatprep.subr.bf16.mxu0 0
    %3996 = vmatpush1.bf16.msra.mxu0 %v3766
    %3997 = vmatprep.subr.bf16.mxu0 0
    %3998 = vmatpush1.bf16.msra.mxu0 %v3767
    %3999 = vmatprep.subr.bf16.mxu0 0
    %4000 = vmatpush1.bf16.msra.mxu0 %v3768
    %4001 = vmatprep.subr.bf16.mxu0 0
    %4002 = vmatpush1.bf16.msra.mxu0 %v3769
    %4003 = vmatprep.mubr.bf16.mxu0 %v3246
    %4004 = vmatmul.mubr.bf16.gmra.mrb[0].mxu0 %v3245
    %v4005 = vpop.f32.mrb[0].mxu0
    %v4006 = vadd.f32 %v3917, %v4005
    %v4007 = vpop.f32.mrb[0].mxu0
    %v4008 = vpop.f32.mrb[0].mxu0
    %v4009 = vadd.f32 %v3920, %v4008
    %v4010 = vpop.f32.mrb[0].mxu0
    %4011 = vmatprep.mubr.bf16.mxu0 %v3255
    %4012 = vmatmul.mubr.bf16.gmra.mrb[0].mxu0 %v3254
    %v4013 = vpop.f32.mrb[0].mxu0
    %v4014 = vadd.f32 %v3925, %v4013
    %v4015 = vpop.f32.mrb[0].mxu0
    %v4016 = vpop.f32.mrb[0].mxu0
    %v4017 = vadd.f32 %v3928, %v4016
    %v4018 = vpop.f32.mrb[0].mxu0
    %4019 = vmatprep.mubr.bf16.mxu0 %v3264
    %4020 = vmatmul.mubr.bf16.gmra.mrb[0].mxu0 %v3263
    %v4021 = vpop.f32.mrb[0].mxu0
    %v4022 = vadd.f32 %v3933, %v4021
    %v4023 = vpop.f32.mrb[0].mxu0
    %v4024 = vpop.f32.mrb[0].mxu0
    %v4025 = vadd.f32 %v3936, %v4024
    %v4026 = vpop.f32.mrb[0].mxu0
    %4027 = vmatprep.mubr.bf16.mxu0 %v3273
    %4028 = vmatmul.mubr.bf16.gmra.mrb[0].mxu0 %v3272
    %v4029 = vpop.f32.mrb[0].mxu0
    %v4030 = vadd.f32 %v3941, %v4029
    %v4031 = vpop.f32.mrb[0].mxu0
    %v4032 = vpop.f32.mrb[0].mxu0
    %v4033 = vadd.f32 %v3944, %v4032
    %v4034 = vpop.f32.mrb[0].mxu0
    %4035 = vmatprep.mubr.bf16.mxu0 %v3282
    %4036 = vmatmul.mubr.bf16.gmra.mrb[0].mxu0 %v3281
    %v4037 = vpop.f32.mrb[0].mxu0
    %v4038 = vadd.f32 %v3949, %v4037
    %v4039 = vpop.f32.mrb[0].mxu0
    %v4040 = vpop.f32.mrb[0].mxu0
    %v4041 = vadd.f32 %v3952, %v4040
    %v4042 = vpop.f32.mrb[0].mxu0
    %4043 = vmatprep.mubr.bf16.mxu0 %v3291
    %4044 = vmatmul.mubr.bf16.gmra.mrb[0].mxu0 %v3290
    %v4045 = vpop.f32.mrb[0].mxu0
    %v4046 = vadd.f32 %v3957, %v4045
    %v4047 = vpop.f32.mrb[0].mxu0
    %v4048 = vpop.f32.mrb[0].mxu0
    %v4049 = vadd.f32 %v3960, %v4048
    %v4050 = vpop.f32.mrb[0].mxu0
    %4051 = vmatprep.mubr.bf16.mxu0 %v3300
    %4052 = vmatmul.mubr.bf16.gmra.mrb[0].mxu0 %v3299
    %v4053 = vpop.f32.mrb[0].mxu0
    %v4054 = vadd.f32 %v3965, %v4053
    %v4055 = vpop.f32.mrb[0].mxu0
    %v4056 = vpop.f32.mrb[0].mxu0
    %v4057 = vadd.f32 %v3968, %v4056
    %v4058 = vpop.f32.mrb[0].mxu0
    %4059 = vdwg.mxu0
    %4060 = vmatprep.subr.bf16.mxu0 0
    %4061 = vmatpush1.bf16.msra.mxu0 %v3770
    %4062 = vmatprep.subr.bf16.mxu0 0
    %4063 = vmatpush1.bf16.msra.mxu0 %v3771
    %4064 = vmatprep.subr.bf16.mxu0 0
    %4065 = vmatpush1.bf16.msra.mxu0 %v3772
    %4066 = vmatprep.subr.bf16.mxu0 0
    %4067 = vmatpush1.bf16.msra.mxu0 %v3773
    %4068 = vmatprep.subr.bf16.mxu0 0
    %4069 = vmatpush1.bf16.msra.mxu0 %v3774
    %4070 = vmatprep.subr.bf16.mxu0 0
    %4071 = vmatpush1.bf16.msra.mxu0 %v3775
    %4072 = vmatprep.subr.bf16.mxu0 0
    %4073 = vmatpush1.bf16.msra.mxu0 %v3776
    %4074 = vmatprep.subr.bf16.mxu0 0
    %4075 = vmatpush1.bf16.msra.mxu0 %v3777
    %4076 = vmatprep.subr.bf16.mxu0 0
    %4077 = vmatpush1.bf16.msra.mxu0 %v3778
    %4078 = vmatprep.subr.bf16.mxu0 0
    %4079 = vmatpush1.bf16.msra.mxu0 %v3779
    %4080 = vmatprep.subr.bf16.mxu0 0
    %4081 = vmatpush1.bf16.msra.mxu0 %v3780
    %4082 = vmatprep.subr.bf16.mxu0 0
    %4083 = vmatpush1.bf16.msra.mxu0 %v3781
    %4084 = vmatprep.subr.bf16.mxu0 0
    %4085 = vmatpush1.bf16.msra.mxu0 %v3782
    %4086 = vmatprep.subr.bf16.mxu0 0
    %4087 = vmatpush1.bf16.msra.mxu0 %v3783
    %4088 = vmatprep.subr.bf16.mxu0 0
    %4089 = vmatpush1.bf16.msra.mxu0 %v3784
    %4090 = vmatprep.subr.bf16.mxu0 0
    %4091 = vmatpush1.bf16.msra.mxu0 %v3785
    %4092 = vmatprep.mubr.bf16.mxu0 %v3248
    %4093 = vmatmul.mubr.bf16.gmra.mrb[0].mxu0 %v3247
    %v4094 = vpop.f32.mrb[0].mxu0
    %v4095 = vadd.f32 %v4006, %v4094
    %v4096 = vpop.f32.mrb[0].mxu0
    %v4097 = vpop.f32.mrb[0].mxu0
    %v4098 = vadd.f32 %v4009, %v4097
    %v4099 = vpop.f32.mrb[0].mxu0
    %4100 = vmatprep.mubr.bf16.mxu0 %v3257
    %4101 = vmatmul.mubr.bf16.gmra.mrb[0].mxu0 %v3256
    %v4102 = vpop.f32.mrb[0].mxu0
    %v4103 = vadd.f32 %v4014, %v4102
    %v4104 = vpop.f32.mrb[0].mxu0
    %v4105 = vpop.f32.mrb[0].mxu0
    %v4106 = vadd.f32 %v4017, %v4105
    %v4107 = vpop.f32.mrb[0].mxu0
    %4108 = vmatprep.mubr.bf16.mxu0 %v3266
    %4109 = vmatmul.mubr.bf16.gmra.mrb[0].mxu0 %v3265
    %v4110 = vpop.f32.mrb[0].mxu0
    %v4111 = vadd.f32 %v4022, %v4110
    %v4112 = vpop.f32.mrb[0].mxu0
    %v4113 = vpop.f32.mrb[0].mxu0
    %v4114 = vadd.f32 %v4025, %v4113
    %v4115 = vpop.f32.mrb[0].mxu0
    %4116 = vmatprep.mubr.bf16.mxu0 %v3275
    %4117 = vmatmul.mubr.bf16.gmra.mrb[0].mxu0 %v3274
    %v4118 = vpop.f32.mrb[0].mxu0
    %v4119 = vadd.f32 %v4030, %v4118
    %v4120 = vpop.f32.mrb[0].mxu0
    %v4121 = vpop.f32.mrb[0].mxu0
    %v4122 = vadd.f32 %v4033, %v4121
    %v4123 = vpop.f32.mrb[0].mxu0
    %4124 = vmatprep.mubr.bf16.mxu0 %v3284
    %4125 = vmatmul.mubr.bf16.gmra.mrb[0].mxu0 %v3283
    %v4126 = vpop.f32.mrb[0].mxu0
    %v4127 = vadd.f32 %v4038, %v4126
    %v4128 = vpop.f32.mrb[0].mxu0
    %v4129 = vpop.f32.mrb[0].mxu0
    %v4130 = vadd.f32 %v4041, %v4129
    %v4131 = vpop.f32.mrb[0].mxu0
    %4132 = vmatprep.mubr.bf16.mxu0 %v3293
    %4133 = vmatmul.mubr.bf16.gmra.mrb[0].mxu0 %v3292
    %v4134 = vpop.f32.mrb[0].mxu0
    %v4135 = vadd.f32 %v4046, %v4134
    %v4136 = vpop.f32.mrb[0].mxu0
    %v4137 = vpop.f32.mrb[0].mxu0
    %v4138 = vadd.f32 %v4049, %v4137
    %v4139 = vpop.f32.mrb[0].mxu0
    %4140 = vmatprep.mubr.bf16.mxu0 %v3302
    %4141 = vmatmul.mubr.bf16.gmra.mrb[0].mxu0 %v3301
    %v4142 = vpop.f32.mrb[0].mxu0
    %v4143 = vadd.f32 %v4054, %v4142
    %v4144 = vpop.f32.mrb[0].mxu0
    %v4145 = vpop.f32.mrb[0].mxu0
    %v4146 = vadd.f32 %v4057, %v4145
    %v4147 = vpop.f32.mrb[0].mxu0
    %4148 = vdwg.mxu0
    %4149 = vmatprep.subr.bf16.mxu0 0
    %4150 = vmatpush1.bf16.msra.mxu0 %v3786
    %4151 = vmatprep.subr.bf16.mxu0 0
    %4152 = vmatpush1.bf16.msra.mxu0 %v3787
    %4153 = vmatprep.subr.bf16.mxu0 0
    %4154 = vmatpush1.bf16.msra.mxu0 %v3788
    %4155 = vmatprep.subr.bf16.mxu0 0
    %4156 = vmatpush1.bf16.msra.mxu0 %v3789
    %4157 = vmatprep.subr.bf16.mxu0 0
    %4158 = vmatpush1.bf16.msra.mxu0 %v3790
    %4159 = vmatprep.subr.bf16.mxu0 0
    %4160 = vmatpush1.bf16.msra.mxu0 %v3791
    %4161 = vmatprep.subr.bf16.mxu0 0
    %4162 = vmatpush1.bf16.msra.mxu0 %v3792
    %4163 = vmatprep.subr.bf16.mxu0 0
    %4164 = vmatpush1.bf16.msra.mxu0 %v3793
    %4165 = vmatprep.subr.bf16.mxu0 0
    %4166 = vmatpush1.bf16.msra.mxu0 %v3794
    %4167 = vmatprep.subr.bf16.mxu0 0
    %4168 = vmatpush1.bf16.msra.mxu0 %v3795
    %4169 = vmatprep.subr.bf16.mxu0 0
    %4170 = vmatpush1.bf16.msra.mxu0 %v3796
    %4171 = vmatprep.subr.bf16.mxu0 0
    %4172 = vmatpush1.bf16.msra.mxu0 %v3797
    %4173 = vmatprep.subr.bf16.mxu0 0
    %4174 = vmatpush1.bf16.msra.mxu0 %v3798
    %4175 = vmatprep.subr.bf16.mxu0 0
    %4176 = vmatpush1.bf16.msra.mxu0 %v3799
    %4177 = vmatprep.subr.bf16.mxu0 0
    %4178 = vmatpush1.bf16.msra.mxu0 %v3800
    %4179 = vmatprep.subr.bf16.mxu0 0
    %4180 = vmatpush1.bf16.msra.mxu0 %v3801
    %4181 = vmatprep.mubr.bf16.mxu0 %v3250
    %4182 = vmatmul.mubr.bf16.gmra.mrb[0].mxu0 %v3249
    %v4183 = vpop.f32.mrb[0].mxu0
    %v4184 = vadd.f32 %v4095, %v4183
    %v4185 = vpop.f32.mrb[0].mxu0
    %v4186 = vpop.f32.mrb[0].mxu0
    %v4187 = vadd.f32 %v4098, %v4186
    %v4188 = vpop.f32.mrb[0].mxu0
    %4189 = vmatprep.mubr.bf16.mxu0 %v3259
    %4190 = vmatmul.mubr.bf16.gmra.mrb[0].mxu0 %v3258
    %v4191 = vpop.f32.mrb[0].mxu0
    %v4192 = vadd.f32 %v4103, %v4191
    %v4193 = vpop.f32.mrb[0].mxu0
    %v4194 = vpop.f32.mrb[0].mxu0
    %v4195 = vadd.f32 %v4106, %v4194
    %v4196 = vpop.f32.mrb[0].mxu0
    %4197 = vmatprep.mubr.bf16.mxu0 %v3268
    %4198 = vmatmul.mubr.bf16.gmra.mrb[0].mxu0 %v3267
    %v4199 = vpop.f32.mrb[0].mxu0
    %v4200 = vadd.f32 %v4111, %v4199
    %v4201 = vpop.f32.mrb[0].mxu0
    %v4202 = vpop.f32.mrb[0].mxu0
    %v4203 = vadd.f32 %v4114, %v4202
    %v4204 = vpop.f32.mrb[0].mxu0
    %4205 = vmatprep.mubr.bf16.mxu0 %v3277
    %4206 = vmatmul.mubr.bf16.gmra.mrb[0].mxu0 %v3276
    %v4207 = vpop.f32.mrb[0].mxu0
    %v4208 = vadd.f32 %v4119, %v4207
    %v4209 = vpop.f32.mrb[0].mxu0
    %v4210 = vpop.f32.mrb[0].mxu0
    %v4211 = vadd.f32 %v4122, %v4210
    %v4212 = vpop.f32.mrb[0].mxu0
    %4213 = vmatprep.mubr.bf16.mxu0 %v3286
    %4214 = vmatmul.mubr.bf16.gmra.mrb[0].mxu0 %v3285
    %v4215 = vpop.f32.mrb[0].mxu0
    %v4216 = vadd.f32 %v4127, %v4215
    %v4217 = vpop.f32.mrb[0].mxu0
    %v4218 = vpop.f32.mrb[0].mxu0
    %v4219 = vadd.f32 %v4130, %v4218
    %v4220 = vpop.f32.mrb[0].mxu0
    %4221 = vmatprep.mubr.bf16.mxu0 %v3295
    %4222 = vmatmul.mubr.bf16.gmra.mrb[0].mxu0 %v3294
    %v4223 = vpop.f32.mrb[0].mxu0
    %v4224 = vadd.f32 %v4135, %v4223
    %v4225 = vpop.f32.mrb[0].mxu0
    %v4226 = vpop.f32.mrb[0].mxu0
    %v4227 = vadd.f32 %v4138, %v4226
    %v4228 = vpop.f32.mrb[0].mxu0
    %4229 = vmatprep.mubr.bf16.mxu0 %v3304
    %4230 = vmatmul.mubr.bf16.gmra.mrb[0].mxu0 %v3303
    %v4231 = vpop.f32.mrb[0].mxu0
    %v4232 = vadd.f32 %v4143, %v4231
    %v4233 = vpop.f32.mrb[0].mxu0
    %v4234 = vpop.f32.mrb[0].mxu0
    %v4235 = vadd.f32 %v4146, %v4234
    %v4236 = vpop.f32.mrb[0].mxu0
    %4237 = vdwg.mxu0
    %4238 = vmatprep.subr.bf16.mxu0 0
    %4239 = vmatpush1.bf16.msra.mxu0 %v3802
    %4240 = vmatprep.subr.bf16.mxu0 0
    %4241 = vmatpush1.bf16.msra.mxu0 %v3803
    %4242 = vmatprep.subr.bf16.mxu0 0
    %4243 = vmatpush1.bf16.msra.mxu0 %v3804
    %4244 = vmatprep.subr.bf16.mxu0 0
    %4245 = vmatpush1.bf16.msra.mxu0 %v3805
    %4246 = vmatprep.subr.bf16.mxu0 0
    %4247 = vmatpush1.bf16.msra.mxu0 %v3806
    %4248 = vmatprep.subr.bf16.mxu0 0
    %4249 = vmatpush1.bf16.msra.mxu0 %v3807
    %4250 = vmatprep.subr.bf16.mxu0 0
    %4251 = vmatpush1.bf16.msra.mxu0 %v3808
    %4252 = vmatprep.subr.bf16.mxu0 0
    %4253 = vmatpush1.bf16.msra.mxu0 %v3809
    %4254 = vmatprep.subr.bf16.mxu0 0
    %4255 = vmatpush1.bf16.msra.mxu0 0
    %4256 = vmatprep.subr.bf16.mxu0 0
    %4257 = vmatpush1.bf16.msra.mxu0 0
    %4258 = vmatprep.subr.bf16.mxu0 0
    %4259 = vmatpush1.bf16.msra.mxu0 0
    %4260 = vmatprep.subr.bf16.mxu0 0
    %4261 = vmatpush1.bf16.msra.mxu0 0
    %4262 = vmatprep.subr.bf16.mxu0 0
    %4263 = vmatpush1.bf16.msra.mxu0 0
    %4264 = vmatprep.subr.bf16.mxu0 0
    %4265 = vmatpush1.bf16.msra.mxu0 0
    %4266 = vmatprep.subr.bf16.mxu0 0
    %4267 = vmatpush1.bf16.msra.mxu0 0
    %4268 = vmatprep.subr.bf16.mxu0 0
    %4269 = vmatpush1.bf16.msra.mxu0 0
    %4270 = vmatprep.mubr.bf16.mxu0 0
    %4271 = vmatmul.mubr.bf16.gmra.mrb[0].mxu0 %v3251
    %v4272 = vpop.f32.mrb[0].mxu0
    %v4273 = vadd.f32 %v4184, %v4272
    %v4274 = vpop.f32.mrb[0].mxu0
    %v4275 = vpop.f32.mrb[0].mxu0
    %v4276 = vadd.f32 %v4187, %v4275
    %v4277 = vpop.f32.mrb[0].mxu0
    %4278 = vmatprep.mubr.bf16.mxu0 0
    %4279 = vmatmul.mubr.bf16.gmra.mrb[0].mxu0 %v3260
    %v4280 = vpop.f32.mrb[0].mxu0
    %v4281 = vadd.f32 %v4192, %v4280
    %v4282 = vpop.f32.mrb[0].mxu0
    %v4283 = vpop.f32.mrb[0].mxu0
    %v4284 = vadd.f32 %v4195, %v4283
    %v4285 = vpop.f32.mrb[0].mxu0
    %4286 = vmatprep.mubr.bf16.mxu0 0
    %4287 = vmatmul.mubr.bf16.gmra.mrb[0].mxu0 %v3269
    %v4288 = vpop.f32.mrb[0].mxu0
    %v4289 = vadd.f32 %v4200, %v4288
    %v4290 = vpop.f32.mrb[0].mxu0
    %v4291 = vpop.f32.mrb[0].mxu0
    %v4292 = vadd.f32 %v4203, %v4291
    %v4293 = vpop.f32.mrb[0].mxu0
    %4294 = vmatprep.mubr.bf16.mxu0 0
    %4295 = vmatmul.mubr.bf16.gmra.mrb[0].mxu0 %v3278
    %v4296 = vpop.f32.mrb[0].mxu0
    %v4297 = vadd.f32 %v4208, %v4296
    %v4298 = vpop.f32.mrb[0].mxu0
    %v4299 = vpop.f32.mrb[0].mxu0
    %v4300 = vadd.f32 %v4211, %v4299
    %v4301 = vpop.f32.mrb[0].mxu0
    %4302 = vmatprep.mubr.bf16.mxu0 0
    %4303 = vmatmul.mubr.bf16.gmra.mrb[0].mxu0 %v3287
    %v4304 = vpop.f32.mrb[0].mxu0
    %v4305 = vadd.f32 %v4216, %v4304
    %v4306 = vpop.f32.mrb[0].mxu0
    %v4307 = vpop.f32.mrb[0].mxu0
    %v4308 = vadd.f32 %v4219, %v4307
    %v4309 = vpop.f32.mrb[0].mxu0
    %4310 = vmatprep.mubr.bf16.mxu0 0
    %4311 = vmatmul.mubr.bf16.gmra.mrb[0].mxu0 %v3296
    %v4312 = vpop.f32.mrb[0].mxu0
    %v4313 = vadd.f32 %v4224, %v4312
    %v4314 = vpop.f32.mrb[0].mxu0
    %v4315 = vpop.f32.mrb[0].mxu0
    %v4316 = vadd.f32 %v4227, %v4315
    %v4317 = vpop.f32.mrb[0].mxu0
    %4318 = vmatprep.mubr.bf16.mxu0 0
    %4319 = vmatmul.mubr.bf16.gmra.mrb[0].mxu0 %v3305
    %v4320 = vpop.f32.mrb[0].mxu0
    %v4321 = vadd.f32 %v4232, %v4320
    %v4322 = vpop.f32.mrb[0].mxu0
    %v4323 = vpop.f32.mrb[0].mxu0
    %v4324 = vadd.f32 %v4235, %v4323
    %v4325 = vpop.f32.mrb[0].mxu0
    %4326 = vdwg.mxu0
    %s4327 = scalar_lea.vmem %s5, 1
    %v4328 = vld [vmem:[%s4327] sm:$0x1]
    %v4330 = vlaneseq
    %v4331 = vshrl.u32 %v4330, 7
    %v4332 = vsub.s32 0, %v4331
    %v4333 = vrot.slane %v4328, %v4332
    %v4335 = vmul.f32 %v4273, %v4333
    %v4336 = vmul.f32 %v4276, %v4333
    %v4337 = vmul.f32 %v4281, %v4333
    %v4338 = vmul.f32 %v4284, %v4333
    %v4339 = vmul.f32 %v4289, %v4333
    %v4340 = vmul.f32 %v4292, %v4333
    %v4341 = vmul.f32 %v4297, %v4333
    %v4342 = vmul.f32 %v4300, %v4333
    %v4343 = vmul.f32 %v4305, %v4333
    %v4344 = vmul.f32 %v4308, %v4333
    %v4345 = vmul.f32 %v4313, %v4333
    %v4346 = vmul.f32 %v4316, %v4333
    %v4347 = vmul.f32 %v4321, %v4333
    %v4348 = vmul.f32 %v4324, %v4333
    %s4349 = scalar_lea.vmem %s6, 1
    %v4350 = vld [vmem:[%s4349] sm:$0x1]
    %v4352 = vlaneseq
    %v4353 = vshrl.u32 %v4352, 7
    %v4354 = vsub.s32 0, %v4353
    %v4355 = vrot.slane %v4350, %v4354
    %v4357 = vadd.f32 %v4335, %v4355
    %v4358 = vadd.f32 %v4336, %v4355
    %v4359 = vadd.f32 %v4337, %v4355
    %v4360 = vadd.f32 %v4338, %v4355
    %v4361 = vadd.f32 %v4339, %v4355
    %v4362 = vadd.f32 %v4340, %v4355
    %v4363 = vadd.f32 %v4341, %v4355
    %v4364 = vadd.f32 %v4342, %v4355
    %v4365 = vadd.f32 %v4343, %v4355
    %v4366 = vadd.f32 %v4344, %v4355
    %v4367 = vadd.f32 %v4345, %v4355
    %v4368 = vadd.f32 %v4346, %v4355
    %v4369 = vadd.f32 %v4347, %v4355
    %v4370 = vadd.f32 %v4348, %v4355
    %v4371 = vmax.f32 %v4357, 0.0
    %v4372 = vmax.f32 %v4358, 0.0
    %v4373 = vmax.f32 %v4359, 0.0
    %v4374 = vmax.f32 %v4360, 0.0
    %v4375 = vmax.f32 %v4361, 0.0
    %v4376 = vmax.f32 %v4362, 0.0
    %v4377 = vmax.f32 %v4363, 0.0
    %v4378 = vmax.f32 %v4364, 0.0
    %v4379 = vmax.f32 %v4365, 0.0
    %v4380 = vmax.f32 %v4366, 0.0
    %v4381 = vmax.f32 %v4367, 0.0
    %v4382 = vmax.f32 %v4368, 0.0
    %v4383 = vmax.f32 %v4369, 0.0
    %v4384 = vmax.f32 %v4370, 0.0
    %v4385 = vmul.f32 %v4371, %v2143
    %v4386 = vmul.f32 %v4372, %v2148
    %v4387 = vmul.f32 %v4373, %v2153
    %v4388 = vmul.f32 %v4374, %v2158
    %v4389 = vmul.f32 %v4375, %v2163
    %v4390 = vmul.f32 %v4376, %v2168
    %v4391 = vmul.f32 %v4377, %v2173
    %v4392 = vmul.f32 %v4378, %v2178
    %v4393 = vmul.f32 %v4379, %v2183
    %v4394 = vmul.f32 %v4380, %v2188
    %v4395 = vmul.f32 %v4381, %v2193
    %v4396 = vmul.f32 %v4382, %v2198
    %v4397 = vmul.f32 %v4383, %v2203
    %v4398 = vmul.f32 %v4384, %v2208
    %v4399 = vpack.c.bf16 %v4386, %v4385
    %v4400 = vpack.c.bf16 %v4388, %v4387
    %v4401 = vpack.c.bf16 %v4390, %v4389
    %v4402 = vpack.c.bf16 %v4392, %v4391
    %v4403 = vpack.c.bf16 %v4394, %v4393
    %v4404 = vpack.c.bf16 %v4396, %v4395
    %v4405 = vpack.c.bf16 %v4398, %v4397
    %v4413 = vunpack.c.l.b16 %v4399
    %v4414 = vunpack.c.h.b16 %v4399
    %v4415 = vunpack.c.l.b16 %v4400
    %v4416 = vunpack.c.h.b16 %v4400
    %v4417 = vunpack.c.l.b16 %v4401
    %v4418 = vunpack.c.h.b16 %v4401
    %v4419 = vunpack.c.l.b16 %v4402
    %v4420 = vunpack.c.h.b16 %v4402
    %v4421 = vunpack.c.l.b16 %v4403
    %v4422 = vunpack.c.h.b16 %v4403
    %v4423 = vunpack.c.l.b16 %v4404
    %v4424 = vunpack.c.h.b16 %v4404
    %v4425 = vunpack.c.l.b16 %v4405
    %v4426 = vunpack.c.h.b16 %v4405
    %v4427 = vpack.c.b16 %v4413, %v4413
    %v4428 = vpack.c.b16 %v4414, %v4414
    %v4429 = vpack.c.b16 %v4415, %v4415
    %v4430 = vpack.c.b16 %v4416, %v4416
    %v4431 = vpack.c.b16 %v4417, %v4417
    %v4432 = vpack.c.b16 %v4418, %v4418
    %v4433 = vpack.c.b16 %v4419, %v4419
    %v4434 = vpack.c.b16 %v4420, %v4420
    %v4435 = vpack.c.b16 %v4421, %v4421
    %v4436 = vpack.c.b16 %v4422, %v4422
    %v4437 = vpack.c.b16 %v4423, %v4423
    %v4438 = vpack.c.b16 %v4424, %v4424
    %v4439 = vpack.c.b16 %v4425, %v4425
    %v4440 = vpack.c.b16 %v4426, %v4426
    %v4442 = vshrl.u32 %v4427, 16
    %v4444 = vrot.slane %v4442, 7
    %v4445 = vshll.u32 %v4427, 16
    %v4447 = vor.u32 %v4444, %v4445
    %v4448 = vrot.slane %v4444, 4
    %v4450 = vshrl.u32 %v4428, 16
    %v4452 = vrot.slane %v4450, 7
    %v4453 = vshll.u32 %v4428, 16
    %v4455 = vor.u32 %v4452, %v4453
    %v4456 = vsel %vm2267, %v4448, %v4455
    %v4457 = vrot.slane %v4452, 4
    %v4459 = vshrl.u32 %v4429, 16
    %v4461 = vrot.slane %v4459, 7
    %v4462 = vshll.u32 %v4429, 16
    %v4464 = vor.u32 %v4461, %v4462
    %v4465 = vsel %vm2267, %v4457, %v4464
    %v4466 = vrot.slane %v4461, 4
    %v4468 = vshrl.u32 %v4430, 16
    %v4470 = vrot.slane %v4468, 7
    %v4471 = vshll.u32 %v4430, 16
    %v4473 = vor.u32 %v4470, %v4471
    %v4474 = vsel %vm2267, %v4466, %v4473
    %v4475 = vrot.slane %v4470, 4
    %v4477 = vshrl.u32 %v4431, 16
    %v4479 = vrot.slane %v4477, 7
    %v4480 = vshll.u32 %v4431, 16
    %v4482 = vor.u32 %v4479, %v4480
    %v4483 = vsel %vm2267, %v4475, %v4482
    %v4484 = vrot.slane %v4479, 4
    %v4486 = vshrl.u32 %v4432, 16
    %v4488 = vrot.slane %v4486, 7
    %v4489 = vshll.u32 %v4432, 16
    %v4491 = vor.u32 %v4488, %v4489
    %v4492 = vsel %vm2267, %v4484, %v4491
    %v4493 = vrot.slane %v4488, 4
    %v4495 = vshrl.u32 %v4433, 16
    %v4497 = vrot.slane %v4495, 7
    %v4498 = vshll.u32 %v4433, 16
    %v4500 = vor.u32 %v4497, %v4498
    %v4501 = vsel %vm2267, %v4493, %v4500
    %v4502 = vrot.slane %v4497, 4
    %v4504 = vshrl.u32 %v4434, 16
    %v4506 = vrot.slane %v4504, 7
    %v4507 = vshll.u32 %v4434, 16
    %v4509 = vor.u32 %v4506, %v4507
    %v4510 = vsel %vm2267, %v4502, %v4509
    %v4511 = vrot.slane %v4506, 4
    %v4513 = vshrl.u32 %v4435, 16
    %v4515 = vrot.slane %v4513, 7
    %v4516 = vshll.u32 %v4435, 16
    %v4518 = vor.u32 %v4515, %v4516
    %v4519 = vsel %vm2267, %v4511, %v4518
    %v4520 = vrot.slane %v4515, 4
    %v4522 = vshrl.u32 %v4436, 16
    %v4524 = vrot.slane %v4522, 7
    %v4525 = vshll.u32 %v4436, 16
    %v4527 = vor.u32 %v4524, %v4525
    %v4528 = vsel %vm2267, %v4520, %v4527
    %v4529 = vrot.slane %v4524, 4
    %v4531 = vshrl.u32 %v4437, 16
    %v4533 = vrot.slane %v4531, 7
    %v4534 = vshll.u32 %v4437, 16
    %v4536 = vor.u32 %v4533, %v4534
    %v4537 = vsel %vm2267, %v4529, %v4536
    %v4538 = vrot.slane %v4533, 4
    %v4540 = vshrl.u32 %v4438, 16
    %v4542 = vrot.slane %v4540, 7
    %v4543 = vshll.u32 %v4438, 16
    %v4545 = vor.u32 %v4542, %v4543
    %v4546 = vsel %vm2267, %v4538, %v4545
    %v4547 = vrot.slane %v4542, 4
    %v4549 = vshrl.u32 %v4439, 16
    %v4551 = vrot.slane %v4549, 7
    %v4552 = vshll.u32 %v4439, 16
    %v4554 = vor.u32 %v4551, %v4552
    %v4555 = vsel %vm2267, %v4547, %v4554
    %v4556 = vrot.slane %v4551, 4
    %v4558 = vshrl.u32 %v4440, 16
    %v4560 = vrot.slane %v4558, 7
    %v4561 = vshll.u32 %v4440, 16
    %v4563 = vor.u32 %v4560, %v4561
    %v4564 = vsel %vm2267, %v4556, %v4563
    %v4565 = vrot.slane %v4560, 4
    %v4581 = vld [vmem:[#allocation3 + $0x4] sm:$0xf]
    %v4582 = vsel %vm155, %v4447, %v4581
    %4583 = vst [vmem:[#allocation3 + $0x4] sm:$0xf] %v4582
    %4584 = vst [vmem:[#allocation3 + $0x8] sm:$0xf] %v4456
    %4585 = vst [vmem:[#allocation3 + $0xc] sm:$0xf] %v4465
    %4586 = vst [vmem:[#allocation3 + $0x10] sm:$0xf] %v4474
    %4587 = vst [vmem:[#allocation3 + $0x14] sm:$0xf] %v4483
    %4588 = vst [vmem:[#allocation3 + $0x18] sm:$0xf] %v4492
    %4589 = vst [vmem:[#allocation3 + $0x1c] sm:$0xf] %v4501
    %4590 = vst [vmem:[#allocation3 + $0x20] sm:$0xf] %v4510
    %4591 = vst [vmem:[#allocation3 + $0x24] sm:$0xf] %v4519
    %4592 = vst [vmem:[#allocation3 + $0x28] sm:$0xf] %v4528
    %4593 = vst [vmem:[#allocation3 + $0x2c] sm:$0xf] %v4537
    %4594 = vst [vmem:[#allocation3 + $0x30] sm:$0xf] %v4546
    %4595 = vst [vmem:[#allocation3 + $0x34] sm:$0xf] %v4555
    %4596 = vst [vmem:[#allocation3 + $0x38] sm:$0xf] %v4564
    %v4597 = vld [vmem:[#allocation3 + $0x3c] sm:$0x1]
    %v4598 = vsel %vm149, %v4565, %v4597
    %4599 = vst [vmem:[#allocation3 + $0x3c] sm:$0x1] %v4598
    %v4600 = vld [vmem:[#allocation3] sm:$0xf]
    %v4601 = vld [vmem:[#allocation3 + $0x4] sm:$0xf]
    %v4602 = vld [vmem:[#allocation3 + $0x8] sm:$0xf]
    %v4603 = vld [vmem:[#allocation3 + $0xc] sm:$0xf]
    %v4604 = vld [vmem:[#allocation3 + $0x10] sm:$0xf]
    %v4605 = vld [vmem:[#allocation3 + $0x14] sm:$0xf]
    %v4606 = vld [vmem:[#allocation3 + $0x18] sm:$0xf]
    %v4607 = vld [vmem:[#allocation3 + $0x1c] sm:$0xf]
    %v4608 = vld [vmem:[#allocation3 + $0x20] sm:$0xf]
    %v4609 = vld [vmem:[#allocation3 + $0x24] sm:$0xf]
    %v4610 = vld [vmem:[#allocation3 + $0x28] sm:$0xf]
    %v4611 = vld [vmem:[#allocation3 + $0x2c] sm:$0xf]
    %v4612 = vld [vmem:[#allocation3 + $0x30] sm:$0xf]
    %v4613 = vld [vmem:[#allocation3 + $0x34] sm:$0xf]
    %v4628 = vunpack.c.l.b16 %v4600
    %v4629 = vunpack.c.l.b16 %v4601
    %v4630 = vunpack.c.l.b16 %v4602
    %v4631 = vunpack.c.l.b16 %v4603
    %v4632 = vunpack.c.l.b16 %v4604
    %v4633 = vunpack.c.l.b16 %v4605
    %v4634 = vunpack.c.l.b16 %v4606
    %v4635 = vunpack.c.l.b16 %v4607
    %v4636 = vunpack.c.l.b16 %v4608
    %v4637 = vunpack.c.l.b16 %v4609
    %v4638 = vunpack.c.l.b16 %v4610
    %v4639 = vunpack.c.l.b16 %v4611
    %v4640 = vunpack.c.l.b16 %v4612
    %v4641 = vunpack.c.l.b16 %v4613
    %v4642 = vpack.c.b16 %v4629, %v4628
    %v4643 = vpack.c.b16 %v4631, %v4630
    %v4644 = vpack.c.b16 %v4633, %v4632
    %v4645 = vpack.c.b16 %v4635, %v4634
    %v4646 = vpack.c.b16 %v4637, %v4636
    %v4647 = vpack.c.b16 %v4639, %v4638
    %v4648 = vpack.c.b16 %v4641, %v4640
    %4656 = vst [vmem:[#allocation4] sm:$0xff] %v4642
    %4657 = vst [vmem:[#allocation4 + $0x48] sm:$0xff] %v4643
    %4658 = vst [vmem:[#allocation4 + $0x90] sm:$0xff] %v4644
    %4659 = vst [vmem:[#allocation4 + $0xd8] sm:$0xff] %v4645
    %4660 = vst [vmem:[#allocation4 + $0x120] sm:$0xff] %v4646
    %4661 = vst [vmem:[#allocation4 + $0x168] sm:$0xff] %v4647
    %4662 = vst [vmem:[#allocation4 + $0x1b0] sm:$0xff] %v4648
    %v4663 = vld [vmem:[#allocation3] sm:$0xf]
    %v4664 = vld [vmem:[#allocation3 + $0x4] sm:$0xf]
    %v4665 = vld [vmem:[#allocation3 + $0x8] sm:$0xf]
    %v4666 = vld [vmem:[#allocation3 + $0xc] sm:$0xf]
    %v4667 = vld [vmem:[#allocation3 + $0x10] sm:$0xf]
    %v4668 = vld [vmem:[#allocation3 + $0x14] sm:$0xf]
    %v4669 = vld [vmem:[#allocation3 + $0x18] sm:$0xf]
    %v4670 = vld [vmem:[#allocation3 + $0x1c] sm:$0xf]
    %v4671 = vld [vmem:[#allocation3 + $0x20] sm:$0xf]
    %v4672 = vld [vmem:[#allocation3 + $0x24] sm:$0xf]
    %v4673 = vld [vmem:[#allocation3 + $0x28] sm:$0xf]
    %v4674 = vld [vmem:[#allocation3 + $0x2c] sm:$0xf]
    %v4675 = vld [vmem:[#allocation3 + $0x30] sm:$0xf]
    %v4676 = vld [vmem:[#allocation3 + $0x34] sm:$0xf]
    %v4677 = vld [vmem:[#allocation3 + $0x38] sm:$0x1]
    %v4693 = vunpack.c.l.b16 %v4663
    %v4694 = vunpack.c.l.b16 %v4664
    %v4695 = vunpack.c.l.b16 %v4665
    %v4696 = vunpack.c.l.b16 %v4666
    %v4697 = vunpack.c.l.b16 %v4667
    %v4698 = vunpack.c.l.b16 %v4668
    %v4699 = vunpack.c.l.b16 %v4669
    %v4700 = vunpack.c.l.b16 %v4670
    %v4701 = vunpack.c.l.b16 %v4671
    %v4702 = vunpack.c.l.b16 %v4672
    %v4703 = vunpack.c.l.b16 %v4673
    %v4704 = vunpack.c.l.b16 %v4674
    %v4705 = vunpack.c.l.b16 %v4675
    %v4706 = vunpack.c.l.b16 %v4676
    %v4707 = vunpack.c.l.b16 %v4677
    %v4708 = vpack.c.b16 %v4694, %v4693
    %v4709 = vpack.c.b16 %v4696, %v4695
    %v4710 = vpack.c.b16 %v4698, %v4697
    %v4711 = vpack.c.b16 %v4700, %v4699
    %v4712 = vpack.c.b16 %v4702, %v4701
    %v4713 = vpack.c.b16 %v4704, %v4703
    %v4714 = vpack.c.b16 %v4706, %v4705
    %v4715 = vpack.c.b16 %v4707, %v4707
    %v4717 = vshrl.u32 %v4708, 16
    %v4719 = vshll.u32 %v4708, 16
    %v4721 = vrot.slane %v4719, 1
    %v4722 = vor.u32 %v4717, %v4721
    %v4724 = vshll.u32 %v4709, 16
    %v4726 = vrot.slane %v4724, 1
    %v4727 = vsel %vm298, %v4722, %v4726
    %v4728 = vshrl.u32 %v4709, 16
    %v4730 = vor.u32 %v4728, %v4726
    %v4732 = vshll.u32 %v4710, 16
    %v4734 = vrot.slane %v4732, 1
    %v4735 = vsel %vm298, %v4730, %v4734
    %v4736 = vshrl.u32 %v4710, 16
    %v4738 = vor.u32 %v4736, %v4734
    %v4740 = vshll.u32 %v4711, 16
    %v4742 = vrot.slane %v4740, 1
    %v4743 = vsel %vm298, %v4738, %v4742
    %v4744 = vshrl.u32 %v4711, 16
    %v4746 = vor.u32 %v4744, %v4742
    %v4748 = vshll.u32 %v4712, 16
    %v4750 = vrot.slane %v4748, 1
    %v4751 = vsel %vm298, %v4746, %v4750
    %v4752 = vshrl.u32 %v4712, 16
    %v4754 = vor.u32 %v4752, %v4750
    %v4756 = vshll.u32 %v4713, 16
    %v4758 = vrot.slane %v4756, 1
    %v4759 = vsel %vm298, %v4754, %v4758
    %v4760 = vshrl.u32 %v4713, 16
    %v4762 = vor.u32 %v4760, %v4758
    %v4764 = vshll.u32 %v4714, 16
    %v4766 = vrot.slane %v4764, 1
    %v4767 = vsel %vm298, %v4762, %v4766
    %v4768 = vshrl.u32 %v4714, 16
    %v4770 = vor.u32 %v4768, %v4766
    %v4772 = vshll.u32 %v4715, 16
    %v4774 = vrot.slane %v4772, 1
    %v4775 = vsel %vm298, %v4770, %v4774
    %4783 = vst [vmem:[#allocation4 + $0x8] sm:$0xff] %v4727
    %4784 = vst [vmem:[#allocation4 + $0x50] sm:$0xff] %v4735
    %4785 = vst [vmem:[#allocation4 + $0x98] sm:$0xff] %v4743
    %4786 = vst [vmem:[#allocation4 + $0xe0] sm:$0xff] %v4751
    %4787 = vst [vmem:[#allocation4 + $0x128] sm:$0xff] %v4759
    %4788 = vst [vmem:[#allocation4 + $0x170] sm:$0xff] %v4767
    %4789 = vst [vmem:[#allocation4 + $0x1b8] sm:$0xff] %v4775
    %v4790 = vld [vmem:[#allocation3] sm:$0xe]
    %v4791 = vld [vmem:[#allocation3 + $0x4] sm:$0xf]
    %v4792 = vld [vmem:[#allocation3 + $0x8] sm:$0xf]
    %v4793 = vld [vmem:[#allocation3 + $0xc] sm:$0xf]
    %v4794 = vld [vmem:[#allocation3 + $0x10] sm:$0xf]
    %v4795 = vld [vmem:[#allocation3 + $0x14] sm:$0xf]
    %v4796 = vld [vmem:[#allocation3 + $0x18] sm:$0xf]
    %v4797 = vld [vmem:[#allocation3 + $0x1c] sm:$0xf]
    %v4798 = vld [vmem:[#allocation3 + $0x20] sm:$0xf]
    %v4799 = vld [vmem:[#allocation3 + $0x24] sm:$0xf]
    %v4800 = vld [vmem:[#allocation3 + $0x28] sm:$0xf]
    %v4801 = vld [vmem:[#allocation3 + $0x2c] sm:$0xf]
    %v4802 = vld [vmem:[#allocation3 + $0x30] sm:$0xf]
    %v4803 = vld [vmem:[#allocation3 + $0x34] sm:$0xf]
    %v4804 = vld [vmem:[#allocation3 + $0x38] sm:$0x1]
    %v4820 = vunpack.c.l.b16 %v4790
    %v4821 = vunpack.c.l.b16 %v4791
    %v4822 = vunpack.c.l.b16 %v4792
    %v4823 = vunpack.c.l.b16 %v4793
    %v4824 = vunpack.c.l.b16 %v4794
    %v4825 = vunpack.c.l.b16 %v4795
    %v4826 = vunpack.c.l.b16 %v4796
    %v4827 = vunpack.c.l.b16 %v4797
    %v4828 = vunpack.c.l.b16 %v4798
    %v4829 = vunpack.c.l.b16 %v4799
    %v4830 = vunpack.c.l.b16 %v4800
    %v4831 = vunpack.c.l.b16 %v4801
    %v4832 = vunpack.c.l.b16 %v4802
    %v4833 = vunpack.c.l.b16 %v4803
    %v4834 = vunpack.c.l.b16 %v4804
    %v4835 = vpack.c.b16 %v4821, %v4820
    %v4836 = vpack.c.b16 %v4823, %v4822
    %v4837 = vpack.c.b16 %v4825, %v4824
    %v4838 = vpack.c.b16 %v4827, %v4826
    %v4839 = vpack.c.b16 %v4829, %v4828
    %v4840 = vpack.c.b16 %v4831, %v4830
    %v4841 = vpack.c.b16 %v4833, %v4832
    %v4842 = vpack.c.b16 %v4834, %v4834
    %v4843 = vrot.slane %v4835, 1
    %v4844 = vrot.slane %v4836, 1
    %v4845 = vsel %vm426, %v4843, %v4844
    %v4846 = vrot.slane %v4837, 1
    %v4847 = vsel %vm426, %v4844, %v4846
    %v4848 = vrot.slane %v4838, 1
    %v4849 = vsel %vm426, %v4846, %v4848
    %v4850 = vrot.slane %v4839, 1
    %v4851 = vsel %vm426, %v4848, %v4850
    %v4852 = vrot.slane %v4840, 1
    %v4853 = vsel %vm426, %v4850, %v4852
    %v4854 = vrot.slane %v4841, 1
    %v4855 = vsel %vm426, %v4852, %v4854
    %v4856 = vrot.slane %v4842, 1
    %v4857 = vsel %vm426, %v4854, %v4856
    %4865 = vst [vmem:[#allocation4 + $0x10] sm:$0xff] %v4845
    %4866 = vst [vmem:[#allocation4 + $0x58] sm:$0xff] %v4847
    %4867 = vst [vmem:[#allocation4 + $0xa0] sm:$0xff] %v4849
    %4868 = vst [vmem:[#allocation4 + $0xe8] sm:$0xff] %v4851
    %4869 = vst [vmem:[#allocation4 + $0x130] sm:$0xff] %v4853
    %4870 = vst [vmem:[#allocation4 + $0x178] sm:$0xff] %v4855
    %4871 = vst [vmem:[#allocation4 + $0x1c0] sm:$0xff] %v4857
    %v4872 = vld [vmem:[#allocation3 + $0x4] sm:$0xf]
    %v4873 = vld [vmem:[#allocation3 + $0x8] sm:$0xf]
    %v4874 = vld [vmem:[#allocation3 + $0xc] sm:$0xf]
    %v4875 = vld [vmem:[#allocation3 + $0x10] sm:$0xf]
    %v4876 = vld [vmem:[#allocation3 + $0x14] sm:$0xf]
    %v4877 = vld [vmem:[#allocation3 + $0x18] sm:$0xf]
    %v4878 = vld [vmem:[#allocation3 + $0x1c] sm:$0xf]
    %v4879 = vld [vmem:[#allocation3 + $0x20] sm:$0xf]
    %v4880 = vld [vmem:[#allocation3 + $0x24] sm:$0xf]
    %v4881 = vld [vmem:[#allocation3 + $0x28] sm:$0xf]
    %v4882 = vld [vmem:[#allocation3 + $0x2c] sm:$0xf]
    %v4883 = vld [vmem:[#allocation3 + $0x30] sm:$0xf]
    %v4884 = vld [vmem:[#allocation3 + $0x34] sm:$0xf]
    %v4885 = vld [vmem:[#allocation3 + $0x38] sm:$0xf]
    %v4900 = vunpack.c.l.b16 %v4872
    %v4901 = vunpack.c.l.b16 %v4873
    %v4902 = vunpack.c.l.b16 %v4874
    %v4903 = vunpack.c.l.b16 %v4875
    %v4904 = vunpack.c.l.b16 %v4876
    %v4905 = vunpack.c.l.b16 %v4877
    %v4906 = vunpack.c.l.b16 %v4878
    %v4907 = vunpack.c.l.b16 %v4879
    %v4908 = vunpack.c.l.b16 %v4880
    %v4909 = vunpack.c.l.b16 %v4881
    %v4910 = vunpack.c.l.b16 %v4882
    %v4911 = vunpack.c.l.b16 %v4883
    %v4912 = vunpack.c.l.b16 %v4884
    %v4913 = vunpack.c.l.b16 %v4885
    %v4914 = vpack.c.b16 %v4901, %v4900
    %v4915 = vpack.c.b16 %v4903, %v4902
    %v4916 = vpack.c.b16 %v4905, %v4904
    %v4917 = vpack.c.b16 %v4907, %v4906
    %v4918 = vpack.c.b16 %v4909, %v4908
    %v4919 = vpack.c.b16 %v4911, %v4910
    %v4920 = vpack.c.b16 %v4913, %v4912
    %4928 = vst [vmem:[#allocation4 + $0x18] sm:$0xff] %v4914
    %4929 = vst [vmem:[#allocation4 + $0x60] sm:$0xff] %v4915
    %4930 = vst [vmem:[#allocation4 + $0xa8] sm:$0xff] %v4916
    %4931 = vst [vmem:[#allocation4 + $0xf0] sm:$0xff] %v4917
    %4932 = vst [vmem:[#allocation4 + $0x138] sm:$0xff] %v4918
    %4933 = vst [vmem:[#allocation4 + $0x180] sm:$0xff] %v4919
    %4934 = vst [vmem:[#allocation4 + $0x1c8] sm:$0xff] %v4920
    %v4935 = vld [vmem:[#allocation3 + $0x4] sm:$0xf]
    %v4936 = vld [vmem:[#allocation3 + $0x8] sm:$0xf]
    %v4937 = vld [vmem:[#allocation3 + $0xc] sm:$0xf]
    %v4938 = vld [vmem:[#allocation3 + $0x10] sm:$0xf]
    %v4939 = vld [vmem:[#allocation3 + $0x14] sm:$0xf]
    %v4940 = vld [vmem:[#allocation3 + $0x18] sm:$0xf]
    %v4941 = vld [vmem:[#allocation3 + $0x1c] sm:$0xf]
    %v4942 = vld [vmem:[#allocation3 + $0x20] sm:$0xf]
    %v4943 = vld [vmem:[#allocation3 + $0x24] sm:$0xf]
    %v4944 = vld [vmem:[#allocation3 + $0x28] sm:$0xf]
    %v4945 = vld [vmem:[#allocation3 + $0x2c] sm:$0xf]
    %v4946 = vld [vmem:[#allocation3 + $0x30] sm:$0xf]
    %v4947 = vld [vmem:[#allocation3 + $0x34] sm:$0xf]
    %v4948 = vld [vmem:[#allocation3 + $0x38] sm:$0xf]
    %v4949 = vld [vmem:[#allocation3 + $0x3c] sm:$0x1]
    %v4965 = vunpack.c.l.b16 %v4935
    %v4966 = vunpack.c.l.b16 %v4936
    %v4967 = vunpack.c.l.b16 %v4937
    %v4968 = vunpack.c.l.b16 %v4938
    %v4969 = vunpack.c.l.b16 %v4939
    %v4970 = vunpack.c.l.b16 %v4940
    %v4971 = vunpack.c.l.b16 %v4941
    %v4972 = vunpack.c.l.b16 %v4942
    %v4973 = vunpack.c.l.b16 %v4943
    %v4974 = vunpack.c.l.b16 %v4944
    %v4975 = vunpack.c.l.b16 %v4945
    %v4976 = vunpack.c.l.b16 %v4946
    %v4977 = vunpack.c.l.b16 %v4947
    %v4978 = vunpack.c.l.b16 %v4948
    %v4979 = vunpack.c.l.b16 %v4949
    %v4980 = vpack.c.b16 %v4966, %v4965
    %v4981 = vpack.c.b16 %v4968, %v4967
    %v4982 = vpack.c.b16 %v4970, %v4969
    %v4983 = vpack.c.b16 %v4972, %v4971
    %v4984 = vpack.c.b16 %v4974, %v4973
    %v4985 = vpack.c.b16 %v4976, %v4975
    %v4986 = vpack.c.b16 %v4978, %v4977
    %v4987 = vpack.c.b16 %v4979, %v4979
    %v4989 = vshrl.u32 %v4980, 16
    %v4991 = vshll.u32 %v4980, 16
    %v4993 = vrot.slane %v4991, 1
    %v4994 = vor.u32 %v4989, %v4993
    %v4996 = vshll.u32 %v4981, 16
    %v4998 = vrot.slane %v4996, 1
    %v4999 = vsel %vm298, %v4994, %v4998
    %v5000 = vshrl.u32 %v4981, 16
    %v5002 = vor.u32 %v5000, %v4998
    %v5004 = vshll.u32 %v4982, 16
    %v5006 = vrot.slane %v5004, 1
    %v5007 = vsel %vm298, %v5002, %v5006
    %v5008 = vshrl.u32 %v4982, 16
    %v5010 = vor.u32 %v5008, %v5006
    %v5012 = vshll.u32 %v4983, 16
    %v5014 = vrot.slane %v5012, 1
    %v5015 = vsel %vm298, %v5010, %v5014
    %v5016 = vshrl.u32 %v4983, 16
    %v5018 = vor.u32 %v5016, %v5014
    %v5020 = vshll.u32 %v4984, 16
    %v5022 = vrot.slane %v5020, 1
    %v5023 = vsel %vm298, %v5018, %v5022
    %v5024 = vshrl.u32 %v4984, 16
    %v5026 = vor.u32 %v5024, %v5022
    %v5028 = vshll.u32 %v4985, 16
    %v5030 = vrot.slane %v5028, 1
    %v5031 = vsel %vm298, %v5026, %v5030
    %v5032 = vshrl.u32 %v4985, 16
    %v5034 = vor.u32 %v5032, %v5030
    %v5036 = vshll.u32 %v4986, 16
    %v5038 = vrot.slane %v5036, 1
    %v5039 = vsel %vm298, %v5034, %v5038
    %v5040 = vshrl.u32 %v4986, 16
    %v5042 = vor.u32 %v5040, %v5038
    %v5044 = vshll.u32 %v4987, 16
    %v5046 = vrot.slane %v5044, 1
    %v5047 = vsel %vm298, %v5042, %v5046
    %5055 = vst [vmem:[#allocation4 + $0x20] sm:$0xff] %v4999
    %5056 = vst [vmem:[#allocation4 + $0x68] sm:$0xff] %v5007
    %5057 = vst [vmem:[#allocation4 + $0xb0] sm:$0xff] %v5015
    %5058 = vst [vmem:[#allocation4 + $0xf8] sm:$0xff] %v5023
    %5059 = vst [vmem:[#allocation4 + $0x140] sm:$0xff] %v5031
    %5060 = vst [vmem:[#allocation4 + $0x188] sm:$0xff] %v5039
    %5061 = vst [vmem:[#allocation4 + $0x1d0] sm:$0xff] %v5047
    %v5062 = vld [vmem:[#allocation3 + $0x4] sm:$0xe]
    %v5063 = vld [vmem:[#allocation3 + $0x8] sm:$0xf]
    %v5064 = vld [vmem:[#allocation3 + $0xc] sm:$0xf]
    %v5065 = vld [vmem:[#allocation3 + $0x10] sm:$0xf]
    %v5066 = vld [vmem:[#allocation3 + $0x14] sm:$0xf]
    %v5067 = vld [vmem:[#allocation3 + $0x18] sm:$0xf]
    %v5068 = vld [vmem:[#allocation3 + $0x1c] sm:$0xf]
    %v5069 = vld [vmem:[#allocation3 + $0x20] sm:$0xf]
    %v5070 = vld [vmem:[#allocation3 + $0x24] sm:$0xf]
    %v5071 = vld [vmem:[#allocation3 + $0x28] sm:$0xf]
    %v5072 = vld [vmem:[#allocation3 + $0x2c] sm:$0xf]
    %v5073 = vld [vmem:[#allocation3 + $0x30] sm:$0xf]
    %v5074 = vld [vmem:[#allocation3 + $0x34] sm:$0xf]
    %v5075 = vld [vmem:[#allocation3 + $0x38] sm:$0xf]
    %v5076 = vld [vmem:[#allocation3 + $0x3c] sm:$0x1]
    %v5092 = vunpack.c.l.b16 %v5062
    %v5093 = vunpack.c.l.b16 %v5063
    %v5094 = vunpack.c.l.b16 %v5064
    %v5095 = vunpack.c.l.b16 %v5065
    %v5096 = vunpack.c.l.b16 %v5066
    %v5097 = vunpack.c.l.b16 %v5067
    %v5098 = vunpack.c.l.b16 %v5068
    %v5099 = vunpack.c.l.b16 %v5069
    %v5100 = vunpack.c.l.b16 %v5070
    %v5101 = vunpack.c.l.b16 %v5071
    %v5102 = vunpack.c.l.b16 %v5072
    %v5103 = vunpack.c.l.b16 %v5073
    %v5104 = vunpack.c.l.b16 %v5074
    %v5105 = vunpack.c.l.b16 %v5075
    %v5106 = vunpack.c.l.b16 %v5076
    %v5107 = vpack.c.b16 %v5093, %v5092
    %v5108 = vpack.c.b16 %v5095, %v5094
    %v5109 = vpack.c.b16 %v5097, %v5096
    %v5110 = vpack.c.b16 %v5099, %v5098
    %v5111 = vpack.c.b16 %v5101, %v5100
    %v5112 = vpack.c.b16 %v5103, %v5102
    %v5113 = vpack.c.b16 %v5105, %v5104
    %v5114 = vpack.c.b16 %v5106, %v5106
    %v5115 = vrot.slane %v5107, 1
    %v5116 = vrot.slane %v5108, 1
    %v5117 = vsel %vm426, %v5115, %v5116
    %v5118 = vrot.slane %v5109, 1
    %v5119 = vsel %vm426, %v5116, %v5118
    %v5120 = vrot.slane %v5110, 1
    %v5121 = vsel %vm426, %v5118, %v5120
    %v5122 = vrot.slane %v5111, 1
    %v5123 = vsel %vm426, %v5120, %v5122
    %v5124 = vrot.slane %v5112, 1
    %v5125 = vsel %vm426, %v5122, %v5124
    %v5126 = vrot.slane %v5113, 1
    %v5127 = vsel %vm426, %v5124, %v5126
    %v5128 = vrot.slane %v5114, 1
    %v5129 = vsel %vm426, %v5126, %v5128
    %5137 = vst [vmem:[#allocation4 + $0x28] sm:$0xff] %v5117
    %5138 = vst [vmem:[#allocation4 + $0x70] sm:$0xff] %v5119
    %5139 = vst [vmem:[#allocation4 + $0xb8] sm:$0xff] %v5121
    %5140 = vst [vmem:[#allocation4 + $0x100] sm:$0xff] %v5123
    %5141 = vst [vmem:[#allocation4 + $0x148] sm:$0xff] %v5125
    %5142 = vst [vmem:[#allocation4 + $0x190] sm:$0xff] %v5127
    %5143 = vst [vmem:[#allocation4 + $0x1d8] sm:$0xff] %v5129
    %v5144 = vld [vmem:[#allocation3 + $0x8] sm:$0xf]
    %v5145 = vld [vmem:[#allocation3 + $0xc] sm:$0xf]
    %v5146 = vld [vmem:[#allocation3 + $0x10] sm:$0xf]
    %v5147 = vld [vmem:[#allocation3 + $0x14] sm:$0xf]
    %v5148 = vld [vmem:[#allocation3 + $0x18] sm:$0xf]
    %v5149 = vld [vmem:[#allocation3 + $0x1c] sm:$0xf]
    %v5150 = vld [vmem:[#allocation3 + $0x20] sm:$0xf]
    %v5151 = vld [vmem:[#allocation3 + $0x24] sm:$0xf]
    %v5152 = vld [vmem:[#allocation3 + $0x28] sm:$0xf]
    %v5153 = vld [vmem:[#allocation3 + $0x2c] sm:$0xf]
    %v5154 = vld [vmem:[#allocation3 + $0x30] sm:$0xf]
    %v5155 = vld [vmem:[#allocation3 + $0x34] sm:$0xf]
    %v5156 = vld [vmem:[#allocation3 + $0x38] sm:$0xf]
    %v5157 = vld [vmem:[#allocation3 + $0x3c] sm:$0xf]
    %v5172 = vunpack.c.l.b16 %v5144
    %v5173 = vunpack.c.l.b16 %v5145
    %v5174 = vunpack.c.l.b16 %v5146
    %v5175 = vunpack.c.l.b16 %v5147
    %v5176 = vunpack.c.l.b16 %v5148
    %v5177 = vunpack.c.l.b16 %v5149
    %v5178 = vunpack.c.l.b16 %v5150
    %v5179 = vunpack.c.l.b16 %v5151
    %v5180 = vunpack.c.l.b16 %v5152
    %v5181 = vunpack.c.l.b16 %v5153
    %v5182 = vunpack.c.l.b16 %v5154
    %v5183 = vunpack.c.l.b16 %v5155
    %v5184 = vunpack.c.l.b16 %v5156
    %v5185 = vunpack.c.l.b16 %v5157
    %v5186 = vpack.c.b16 %v5173, %v5172
    %v5187 = vpack.c.b16 %v5175, %v5174
    %v5188 = vpack.c.b16 %v5177, %v5176
    %v5189 = vpack.c.b16 %v5179, %v5178
    %v5190 = vpack.c.b16 %v5181, %v5180
    %v5191 = vpack.c.b16 %v5183, %v5182
    %v5192 = vpack.c.b16 %v5185, %v5184
    %5200 = vst [vmem:[#allocation4 + $0x30] sm:$0xff] %v5186
    %5201 = vst [vmem:[#allocation4 + $0x78] sm:$0xff] %v5187
    %5202 = vst [vmem:[#allocation4 + $0xc0] sm:$0xff] %v5188
    %5203 = vst [vmem:[#allocation4 + $0x108] sm:$0xff] %v5189
    %5204 = vst [vmem:[#allocation4 + $0x150] sm:$0xff] %v5190
    %5205 = vst [vmem:[#allocation4 + $0x198] sm:$0xff] %v5191
    %5206 = vst [vmem:[#allocation4 + $0x1e0] sm:$0xff] %v5192
    %v5207 = vld [vmem:[#allocation3 + $0x8] sm:$0xf]
    %v5208 = vld [vmem:[#allocation3 + $0xc] sm:$0xf]
    %v5209 = vld [vmem:[#allocation3 + $0x10] sm:$0xf]
    %v5210 = vld [vmem:[#allocation3 + $0x14] sm:$0xf]
    %v5211 = vld [vmem:[#allocation3 + $0x18] sm:$0xf]
    %v5212 = vld [vmem:[#allocation3 + $0x1c] sm:$0xf]
    %v5213 = vld [vmem:[#allocation3 + $0x20] sm:$0xf]
    %v5214 = vld [vmem:[#allocation3 + $0x24] sm:$0xf]
    %v5215 = vld [vmem:[#allocation3 + $0x28] sm:$0xf]
    %v5216 = vld [vmem:[#allocation3 + $0x2c] sm:$0xf]
    %v5217 = vld [vmem:[#allocation3 + $0x30] sm:$0xf]
    %v5218 = vld [vmem:[#allocation3 + $0x34] sm:$0xf]
    %v5219 = vld [vmem:[#allocation3 + $0x38] sm:$0xf]
    %v5220 = vld [vmem:[#allocation3 + $0x3c] sm:$0xf]
    %v5221 = vld [vmem:[#allocation3 + $0x40] sm:$0x1]
    %v5237 = vunpack.c.l.b16 %v5207
    %v5238 = vunpack.c.l.b16 %v5208
    %v5239 = vunpack.c.l.b16 %v5209
    %v5240 = vunpack.c.l.b16 %v5210
    %v5241 = vunpack.c.l.b16 %v5211
    %v5242 = vunpack.c.l.b16 %v5212
    %v5243 = vunpack.c.l.b16 %v5213
    %v5244 = vunpack.c.l.b16 %v5214
    %v5245 = vunpack.c.l.b16 %v5215
    %v5246 = vunpack.c.l.b16 %v5216
    %v5247 = vunpack.c.l.b16 %v5217
    %v5248 = vunpack.c.l.b16 %v5218
    %v5249 = vunpack.c.l.b16 %v5219
    %v5250 = vunpack.c.l.b16 %v5220
    %v5251 = vunpack.c.l.b16 %v5221
    %v5252 = vpack.c.b16 %v5238, %v5237
    %v5253 = vpack.c.b16 %v5240, %v5239
    %v5254 = vpack.c.b16 %v5242, %v5241
    %v5255 = vpack.c.b16 %v5244, %v5243
    %v5256 = vpack.c.b16 %v5246, %v5245
    %v5257 = vpack.c.b16 %v5248, %v5247
    %v5258 = vpack.c.b16 %v5250, %v5249
    %v5259 = vpack.c.b16 %v5251, %v5251
    %v5261 = vshrl.u32 %v5252, 16
    %v5263 = vshll.u32 %v5252, 16
    %v5265 = vrot.slane %v5263, 1
    %v5266 = vor.u32 %v5261, %v5265
    %v5268 = vshll.u32 %v5253, 16
    %v5270 = vrot.slane %v5268, 1
    %v5271 = vsel %vm298, %v5266, %v5270
    %v5272 = vshrl.u32 %v5253, 16
    %v5274 = vor.u32 %v5272, %v5270
    %v5276 = vshll.u32 %v5254, 16
    %v5278 = vrot.slane %v5276, 1
    %v5279 = vsel %vm298, %v5274, %v5278
    %v5280 = vshrl.u32 %v5254, 16
    %v5282 = vor.u32 %v5280, %v5278
    %v5284 = vshll.u32 %v5255, 16
    %v5286 = vrot.slane %v5284, 1
    %v5287 = vsel %vm298, %v5282, %v5286
    %v5288 = vshrl.u32 %v5255, 16
    %v5290 = vor.u32 %v5288, %v5286
    %v5292 = vshll.u32 %v5256, 16
    %v5294 = vrot.slane %v5292, 1
    %v5295 = vsel %vm298, %v5290, %v5294
    %v5296 = vshrl.u32 %v5256, 16
    %v5298 = vor.u32 %v5296, %v5294
    %v5300 = vshll.u32 %v5257, 16
    %v5302 = vrot.slane %v5300, 1
    %v5303 = vsel %vm298, %v5298, %v5302
    %v5304 = vshrl.u32 %v5257, 16
    %v5306 = vor.u32 %v5304, %v5302
    %v5308 = vshll.u32 %v5258, 16
    %v5310 = vrot.slane %v5308, 1
    %v5311 = vsel %vm298, %v5306, %v5310
    %v5312 = vshrl.u32 %v5258, 16
    %v5314 = vor.u32 %v5312, %v5310
    %v5316 = vshll.u32 %v5259, 16
    %v5318 = vrot.slane %v5316, 1
    %v5319 = vsel %vm298, %v5314, %v5318
    %5327 = vst [vmem:[#allocation4 + $0x38] sm:$0xff] %v5271
    %5328 = vst [vmem:[#allocation4 + $0x80] sm:$0xff] %v5279
    %5329 = vst [vmem:[#allocation4 + $0xc8] sm:$0xff] %v5287
    %5330 = vst [vmem:[#allocation4 + $0x110] sm:$0xff] %v5295
    %5331 = vst [vmem:[#allocation4 + $0x158] sm:$0xff] %v5303
    %5332 = vst [vmem:[#allocation4 + $0x1a0] sm:$0xff] %v5311
    %5333 = vst [vmem:[#allocation4 + $0x1e8] sm:$0xff] %v5319
    %v5334 = vld [vmem:[#allocation3 + $0x8] sm:$0xe]
    %v5335 = vld [vmem:[#allocation3 + $0xc] sm:$0xf]
    %v5336 = vld [vmem:[#allocation3 + $0x10] sm:$0xf]
    %v5337 = vld [vmem:[#allocation3 + $0x14] sm:$0xf]
    %v5338 = vld [vmem:[#allocation3 + $0x18] sm:$0xf]
    %v5339 = vld [vmem:[#allocation3 + $0x1c] sm:$0xf]
    %v5340 = vld [vmem:[#allocation3 + $0x20] sm:$0xf]
    %v5341 = vld [vmem:[#allocation3 + $0x24] sm:$0xf]
    %v5342 = vld [vmem:[#allocation3 + $0x28] sm:$0xf]
    %v5343 = vld [vmem:[#allocation3 + $0x2c] sm:$0xf]
    %v5344 = vld [vmem:[#allocation3 + $0x30] sm:$0xf]
    %v5345 = vld [vmem:[#allocation3 + $0x34] sm:$0xf]
    %v5346 = vld [vmem:[#allocation3 + $0x38] sm:$0xf]
    %v5347 = vld [vmem:[#allocation3 + $0x3c] sm:$0xf]
    %v5348 = vld [vmem:[#allocation3 + $0x40] sm:$0x1]
    %v5364 = vunpack.c.l.b16 %v5334
    %v5365 = vunpack.c.l.b16 %v5335
    %v5366 = vunpack.c.l.b16 %v5336
    %v5367 = vunpack.c.l.b16 %v5337
    %v5368 = vunpack.c.l.b16 %v5338
    %v5369 = vunpack.c.l.b16 %v5339
    %v5370 = vunpack.c.l.b16 %v5340
    %v5371 = vunpack.c.l.b16 %v5341
    %v5372 = vunpack.c.l.b16 %v5342
    %v5373 = vunpack.c.l.b16 %v5343
    %v5374 = vunpack.c.l.b16 %v5344
    %v5375 = vunpack.c.l.b16 %v5345
    %v5376 = vunpack.c.l.b16 %v5346
    %v5377 = vunpack.c.l.b16 %v5347
    %v5378 = vunpack.c.l.b16 %v5348
    %v5379 = vpack.c.b16 %v5365, %v5364
    %v5380 = vpack.c.b16 %v5367, %v5366
    %v5381 = vpack.c.b16 %v5369, %v5368
    %v5382 = vpack.c.b16 %v5371, %v5370
    %v5383 = vpack.c.b16 %v5373, %v5372
    %v5384 = vpack.c.b16 %v5375, %v5374
    %v5385 = vpack.c.b16 %v5377, %v5376
    %v5386 = vpack.c.b16 %v5378, %v5378
    %v5387 = vrot.slane %v5379, 1
    %v5388 = vrot.slane %v5380, 1
    %v5389 = vsel %vm426, %v5387, %v5388
    %v5390 = vrot.slane %v5381, 1
    %v5391 = vsel %vm426, %v5388, %v5390
    %v5392 = vrot.slane %v5382, 1
    %v5393 = vsel %vm426, %v5390, %v5392
    %v5394 = vrot.slane %v5383, 1
    %v5395 = vsel %vm426, %v5392, %v5394
    %v5396 = vrot.slane %v5384, 1
    %v5397 = vsel %vm426, %v5394, %v5396
    %v5398 = vrot.slane %v5385, 1
    %v5399 = vsel %vm426, %v5396, %v5398
    %v5400 = vrot.slane %v5386, 1
    %v5401 = vsel %vm426, %v5398, %v5400
    %5409 = vst [vmem:[#allocation4 + $0x40] sm:$0xff] %v5389
    %5410 = vst [vmem:[#allocation4 + $0x88] sm:$0xff] %v5391
    %5411 = vst [vmem:[#allocation4 + $0xd0] sm:$0xff] %v5393
    %5412 = vst [vmem:[#allocation4 + $0x118] sm:$0xff] %v5395
    %5413 = vst [vmem:[#allocation4 + $0x160] sm:$0xff] %v5397
    %5414 = vst [vmem:[#allocation4 + $0x1a8] sm:$0xff] %v5399
    %5415 = vst [vmem:[#allocation4 + $0x1f0] sm:$0xff] %v5401
    %v5416 = vld [vmem:[#allocation4] sm:$0xff]
    %v5417 = vld [vmem:[#allocation4 + $0x8] sm:$0xff]
    %v5418 = vld [vmem:[#allocation4 + $0x10] sm:$0xff]
    %v5419 = vld [vmem:[#allocation4 + $0x18] sm:$0xff]
    %v5420 = vld [vmem:[#allocation4 + $0x20] sm:$0xff]
    %v5421 = vld [vmem:[#allocation4 + $0x28] sm:$0xff]
    %v5422 = vld [vmem:[#allocation4 + $0x30] sm:$0xff]
    %v5423 = vld [vmem:[#allocation4 + $0x38] sm:$0xff]
    %v5424 = vld [vmem:[#allocation4 + $0x40] sm:$0xff]
    %v5425 = vld [vmem:[#allocation4 + $0x48] sm:$0xff]
    %v5426 = vld [vmem:[#allocation4 + $0x50] sm:$0xff]
    %v5427 = vld [vmem:[#allocation4 + $0x58] sm:$0xff]
    %v5428 = vld [vmem:[#allocation4 + $0x60] sm:$0xff]
    %v5429 = vld [vmem:[#allocation4 + $0x68] sm:$0xff]
    %v5430 = vld [vmem:[#allocation4 + $0x70] sm:$0xff]
    %v5431 = vld [vmem:[#allocation4 + $0x78] sm:$0xff]
    %v5432 = vld [vmem:[#allocation4 + $0x80] sm:$0xff]
    %v5433 = vld [vmem:[#allocation4 + $0x88] sm:$0xff]
    %v5434 = vld [vmem:[#allocation4 + $0x90] sm:$0xff]
    %v5435 = vld [vmem:[#allocation4 + $0x98] sm:$0xff]
    %v5436 = vld [vmem:[#allocation4 + $0xa0] sm:$0xff]
    %v5437 = vld [vmem:[#allocation4 + $0xa8] sm:$0xff]
    %v5438 = vld [vmem:[#allocation4 + $0xb0] sm:$0xff]
    %v5439 = vld [vmem:[#allocation4 + $0xb8] sm:$0xff]
    %v5440 = vld [vmem:[#allocation4 + $0xc0] sm:$0xff]
    %v5441 = vld [vmem:[#allocation4 + $0xc8] sm:$0xff]
    %v5442 = vld [vmem:[#allocation4 + $0xd0] sm:$0xff]
    %v5443 = vld [vmem:[#allocation4 + $0xd8] sm:$0xff]
    %v5444 = vld [vmem:[#allocation4 + $0xe0] sm:$0xff]
    %v5445 = vld [vmem:[#allocation4 + $0xe8] sm:$0xff]
    %v5446 = vld [vmem:[#allocation4 + $0xf0] sm:$0xff]
    %v5447 = vld [vmem:[#allocation4 + $0xf8] sm:$0xff]
    %v5448 = vld [vmem:[#allocation4 + $0x100] sm:$0xff]
    %v5449 = vld [vmem:[#allocation4 + $0x108] sm:$0xff]
    %v5450 = vld [vmem:[#allocation4 + $0x110] sm:$0xff]
    %v5451 = vld [vmem:[#allocation4 + $0x118] sm:$0xff]
    %v5452 = vld [vmem:[#allocation4 + $0x120] sm:$0xff]
    %v5453 = vld [vmem:[#allocation4 + $0x128] sm:$0xff]
    %v5454 = vld [vmem:[#allocation4 + $0x130] sm:$0xff]
    %v5455 = vld [vmem:[#allocation4 + $0x138] sm:$0xff]
    %v5456 = vld [vmem:[#allocation4 + $0x140] sm:$0xff]
    %v5457 = vld [vmem:[#allocation4 + $0x148] sm:$0xff]
    %v5458 = vld [vmem:[#allocation4 + $0x150] sm:$0xff]
    %v5459 = vld [vmem:[#allocation4 + $0x158] sm:$0xff]
    %v5460 = vld [vmem:[#allocation4 + $0x160] sm:$0xff]
    %v5461 = vld [vmem:[#allocation4 + $0x168] sm:$0xff]
    %v5462 = vld [vmem:[#allocation4 + $0x170] sm:$0xff]
    %v5463 = vld [vmem:[#allocation4 + $0x178] sm:$0xff]
    %v5464 = vld [vmem:[#allocation4 + $0x180] sm:$0xff]
    %v5465 = vld [vmem:[#allocation4 + $0x188] sm:$0xff]
    %v5466 = vld [vmem:[#allocation4 + $0x190] sm:$0xff]
    %v5467 = vld [vmem:[#allocation4 + $0x198] sm:$0xff]
    %v5468 = vld [vmem:[#allocation4 + $0x1a0] sm:$0xff]
    %v5469 = vld [vmem:[#allocation4 + $0x1a8] sm:$0xff]
    %v5470 = vld [vmem:[#allocation4 + $0x1b0] sm:$0xff]
    %v5471 = vld [vmem:[#allocation4 + $0x1b8] sm:$0xff]
    %v5472 = vld [vmem:[#allocation4 + $0x1c0] sm:$0xff]
    %v5473 = vld [vmem:[#allocation4 + $0x1c8] sm:$0xff]
    %v5474 = vld [vmem:[#allocation4 + $0x1d0] sm:$0xff]
    %v5475 = vld [vmem:[#allocation4 + $0x1d8] sm:$0xff]
    %v5476 = vld [vmem:[#allocation4 + $0x1e0] sm:$0xff]
    %v5477 = vld [vmem:[#allocation4 + $0x1e8] sm:$0xff]
    %v5478 = vld [vmem:[#allocation4 + $0x1f0] sm:$0xff]
    %v5479 = vld [vmem:[#allocation7] sm:$0xf]
    %v5480 = vld [vmem:[#allocation7 + $0x4] sm:$0xf]
    %v5481 = vld [vmem:[#allocation7 + $0x8] sm:$0xf]
    %v5482 = vld [vmem:[#allocation7 + $0xc] sm:$0xf]
    %v5483 = vld [vmem:[#allocation7 + $0x10] sm:$0xf]
    %v5484 = vld [vmem:[#allocation7 + $0x14] sm:$0xf]
    %v5485 = vld [vmem:[#allocation7 + $0x18] sm:$0xf]
    %v5486 = vld [vmem:[#allocation7 + $0x1c] sm:$0xf]
    %v5487 = vld [vmem:[#allocation7 + $0x20] sm:$0xf]
    %v5488 = vld [vmem:[#allocation7 + $0x24] sm:$0xf]
    %v5489 = vld [vmem:[#allocation7 + $0x28] sm:$0xf]
    %v5490 = vld [vmem:[#allocation7 + $0x2c] sm:$0xf]
    %v5491 = vld [vmem:[#allocation7 + $0x30] sm:$0xf]
    %v5492 = vld [vmem:[#allocation7 + $0x34] sm:$0xf]
    %v5493 = vld [vmem:[#allocation7 + $0x38] sm:$0xf]
    %v5494 = vld [vmem:[#allocation7 + $0x3c] sm:$0xf]
    %v5495 = vld [vmem:[#allocation7 + $0x40] sm:$0xf]
    %v5496 = vld [vmem:[#allocation7 + $0x44] sm:$0xf]
    %v5497 = vld [vmem:[#allocation7 + $0x48] sm:$0xf]
    %v5498 = vld [vmem:[#allocation7 + $0x4c] sm:$0xf]
    %v5499 = vld [vmem:[#allocation7 + $0x50] sm:$0xf]
    %v5500 = vld [vmem:[#allocation7 + $0x54] sm:$0xf]
    %v5501 = vld [vmem:[#allocation7 + $0x58] sm:$0xf]
    %v5502 = vld [vmem:[#allocation7 + $0x5c] sm:$0xf]
    %v5503 = vld [vmem:[#allocation7 + $0x60] sm:$0xf]
    %v5504 = vld [vmem:[#allocation7 + $0x64] sm:$0xf]
    %v5505 = vld [vmem:[#allocation7 + $0x68] sm:$0xf]
    %v5506 = vld [vmem:[#allocation7 + $0x6c] sm:$0xf]
    %v5507 = vld [vmem:[#allocation7 + $0x70] sm:$0xf]
    %v5508 = vld [vmem:[#allocation7 + $0x74] sm:$0xf]
    %v5509 = vld [vmem:[#allocation7 + $0x78] sm:$0xf]
    %v5510 = vld [vmem:[#allocation7 + $0x7c] sm:$0xf]
    %v5511 = vld [vmem:[#allocation7 + $0x80] sm:$0xf]
    %v5512 = vld [vmem:[#allocation7 + $0x84] sm:$0xf]
    %v5513 = vld [vmem:[#allocation7 + $0x88] sm:$0xf]
    %v5514 = vld [vmem:[#allocation7 + $0x8c] sm:$0xf]
    %v5515 = vld [vmem:[#allocation7 + $0x90] sm:$0xf]
    %v5516 = vld [vmem:[#allocation7 + $0x94] sm:$0xf]
    %v5517 = vld [vmem:[#allocation7 + $0x98] sm:$0xf]
    %v5518 = vld [vmem:[#allocation7 + $0x9c] sm:$0xf]
    %v5519 = vld [vmem:[#allocation7 + $0xa0] sm:$0xf]
    %v5520 = vld [vmem:[#allocation7 + $0xa4] sm:$0xf]
    %v5521 = vld [vmem:[#allocation7 + $0xa8] sm:$0xf]
    %v5522 = vld [vmem:[#allocation7 + $0xac] sm:$0xf]
    %v5523 = vld [vmem:[#allocation7 + $0xb0] sm:$0xf]
    %v5524 = vld [vmem:[#allocation7 + $0xb4] sm:$0xf]
    %v5525 = vld [vmem:[#allocation7 + $0xb8] sm:$0xf]
    %v5526 = vld [vmem:[#allocation7 + $0xbc] sm:$0xf]
    %v5527 = vld [vmem:[#allocation7 + $0xc0] sm:$0xf]
    %v5528 = vld [vmem:[#allocation7 + $0xc4] sm:$0xf]
    %v5529 = vld [vmem:[#allocation7 + $0xc8] sm:$0xf]
    %v5530 = vld [vmem:[#allocation7 + $0xcc] sm:$0xf]
    %v5531 = vld [vmem:[#allocation7 + $0xd0] sm:$0xf]
    %v5532 = vld [vmem:[#allocation7 + $0xd4] sm:$0xf]
    %v5533 = vld [vmem:[#allocation7 + $0xd8] sm:$0xf]
    %v5534 = vld [vmem:[#allocation7 + $0xdc] sm:$0xf]
    %v5535 = vld [vmem:[#allocation7 + $0xe0] sm:$0xf]
    %v5536 = vld [vmem:[#allocation7 + $0xe4] sm:$0xf]
    %v5537 = vld [vmem:[#allocation7 + $0xe8] sm:$0xf]
    %v5538 = vld [vmem:[#allocation7 + $0xec] sm:$0xf]
    %v5539 = vld [vmem:[#allocation7 + $0xf0] sm:$0xf]
    %v5540 = vld [vmem:[#allocation7 + $0xf4] sm:$0xf]
    %v5541 = vld [vmem:[#allocation7 + $0xf8] sm:$0xf]
    %v5542 = vld [vmem:[#allocation7 + $0xfc] sm:$0xf]
    %v5543 = vld [vmem:[#allocation7 + $0x100] sm:$0xf]
    %v5544 = vld [vmem:[#allocation7 + $0x104] sm:$0xf]
    %v5545 = vld [vmem:[#allocation7 + $0x108] sm:$0xf]
    %v5546 = vld [vmem:[#allocation7 + $0x10c] sm:$0xf]
    %v5547 = vld [vmem:[#allocation7 + $0x110] sm:$0xf]
    %v5548 = vld [vmem:[#allocation7 + $0x114] sm:$0xf]
    %v5549 = vld [vmem:[#allocation7 + $0x118] sm:$0xf]
    %v5550 = vld [vmem:[#allocation7 + $0x11c] sm:$0xf]
    %v5551 = vld [vmem:[#allocation7 + $0x120] sm:$0xf]
    %v5552 = vld [vmem:[#allocation7 + $0x124] sm:$0xf]
    %v5553 = vld [vmem:[#allocation7 + $0x128] sm:$0xf]
    %v5554 = vld [vmem:[#allocation7 + $0x12c] sm:$0xf]
    %v5555 = vld [vmem:[#allocation7 + $0x130] sm:$0xf]
    %v5556 = vld [vmem:[#allocation7 + $0x134] sm:$0xf]
    %v5557 = vld [vmem:[#allocation7 + $0x138] sm:$0xf]
    %v5558 = vld [vmem:[#allocation7 + $0x13c] sm:$0xf]
    %v5559 = vld [vmem:[#allocation7 + $0x140] sm:$0xf]
    %v5560 = vld [vmem:[#allocation7 + $0x144] sm:$0xf]
    %v5561 = vld [vmem:[#allocation7 + $0x148] sm:$0xf]
    %v5562 = vld [vmem:[#allocation7 + $0x14c] sm:$0xf]
    %v5563 = vld [vmem:[#allocation7 + $0x150] sm:$0xf]
    %v5564 = vld [vmem:[#allocation7 + $0x154] sm:$0xf]
    %v5565 = vld [vmem:[#allocation7 + $0x158] sm:$0xf]
    %v5566 = vld [vmem:[#allocation7 + $0x15c] sm:$0xf]
    %v5567 = vld [vmem:[#allocation7 + $0x160] sm:$0xf]
    %v5568 = vld [vmem:[#allocation7 + $0x164] sm:$0xf]
    %v5569 = vld [vmem:[#allocation7 + $0x168] sm:$0xf]
    %v5570 = vld [vmem:[#allocation7 + $0x16c] sm:$0xf]
    %v5571 = vld [vmem:[#allocation7 + $0x170] sm:$0xf]
    %v5572 = vld [vmem:[#allocation7 + $0x174] sm:$0xf]
    %v5573 = vld [vmem:[#allocation7 + $0x178] sm:$0xf]
    %v5574 = vld [vmem:[#allocation7 + $0x17c] sm:$0xf]
    %v5575 = vld [vmem:[#allocation7 + $0x180] sm:$0xf]
    %v5576 = vld [vmem:[#allocation7 + $0x184] sm:$0xf]
    %v5577 = vld [vmem:[#allocation7 + $0x188] sm:$0xf]
    %v5578 = vld [vmem:[#allocation7 + $0x18c] sm:$0xf]
    %v5579 = vld [vmem:[#allocation7 + $0x190] sm:$0xf]
    %v5580 = vld [vmem:[#allocation7 + $0x194] sm:$0xf]
    %v5581 = vld [vmem:[#allocation7 + $0x198] sm:$0xf]
    %v5582 = vld [vmem:[#allocation7 + $0x19c] sm:$0xf]
    %v5583 = vld [vmem:[#allocation7 + $0x1a0] sm:$0xf]
    %v5584 = vld [vmem:[#allocation7 + $0x1a4] sm:$0xf]
    %v5585 = vld [vmem:[#allocation7 + $0x1a8] sm:$0xf]
    %v5586 = vld [vmem:[#allocation7 + $0x1ac] sm:$0xf]
    %v5587 = vld [vmem:[#allocation7 + $0x1b0] sm:$0xf]
    %v5588 = vld [vmem:[#allocation7 + $0x1b4] sm:$0xf]
    %v5589 = vld [vmem:[#allocation7 + $0x1b8] sm:$0xf]
    %v5590 = vld [vmem:[#allocation7 + $0x1bc] sm:$0xf]
    %v5591 = vld [vmem:[#allocation7 + $0x1c0] sm:$0xf]
    %v5592 = vld [vmem:[#allocation7 + $0x1c4] sm:$0xf]
    %v5593 = vld [vmem:[#allocation7 + $0x1c8] sm:$0xf]
    %v5594 = vld [vmem:[#allocation7 + $0x1cc] sm:$0xf]
    %v5595 = vld [vmem:[#allocation7 + $0x1d0] sm:$0xf]
    %v5596 = vld [vmem:[#allocation7 + $0x1d4] sm:$0xf]
    %v5597 = vld [vmem:[#allocation7 + $0x1d8] sm:$0xf]
    %v5598 = vld [vmem:[#allocation7 + $0x1dc] sm:$0xf]
    %v5599 = vld [vmem:[#allocation7 + $0x1e0] sm:$0xf]
    %v5600 = vld [vmem:[#allocation7 + $0x1e4] sm:$0xf]
    %v5601 = vld [vmem:[#allocation7 + $0x1e8] sm:$0xf]
    %v5602 = vld [vmem:[#allocation7 + $0x1ec] sm:$0xf]
    %v5603 = vld [vmem:[#allocation7 + $0x1f0] sm:$0xf]
    %v5604 = vld [vmem:[#allocation7 + $0x1f4] sm:$0xf]
    %v5605 = vld [vmem:[#allocation7 + $0x1f8] sm:$0xf]
    %v5606 = vld [vmem:[#allocation7 + $0x1fc] sm:$0xf]
    %v5607 = vld [vmem:[#allocation7 + $0x200] sm:$0xf]
    %v5608 = vld [vmem:[#allocation7 + $0x204] sm:$0xf]
    %v5609 = vld [vmem:[#allocation7 + $0x208] sm:$0xf]
    %v5610 = vld [vmem:[#allocation7 + $0x20c] sm:$0xf]
    %v5611 = vld [vmem:[#allocation7 + $0x210] sm:$0xf]
    %v5612 = vld [vmem:[#allocation7 + $0x214] sm:$0xf]
    %v5613 = vld [vmem:[#allocation7 + $0x218] sm:$0xf]
    %v5614 = vld [vmem:[#allocation7 + $0x21c] sm:$0xf]
    %v5615 = vld [vmem:[#allocation7 + $0x220] sm:$0xf]
    %v5616 = vld [vmem:[#allocation7 + $0x224] sm:$0xf]
    %v5617 = vld [vmem:[#allocation7 + $0x228] sm:$0xf]
    %v5618 = vld [vmem:[#allocation7 + $0x22c] sm:$0xf]
    %v5619 = vld [vmem:[#allocation7 + $0x230] sm:$0xf]
    %v5620 = vld [vmem:[#allocation7 + $0x234] sm:$0xf]
    %v5621 = vld [vmem:[#allocation7 + $0x238] sm:$0xf]
    %v5622 = vld [vmem:[#allocation7 + $0x23c] sm:$0xf]
    %v5767 = vunpack.c.l.b16 %v5479
    %v5768 = vunpack.c.l.b16 %v5480
    %v5769 = vunpack.c.l.b16 %v5481
    %v5770 = vunpack.c.l.b16 %v5482
    %v5771 = vunpack.c.l.b16 %v5483
    %v5772 = vunpack.c.l.b16 %v5484
    %v5773 = vunpack.c.l.b16 %v5485
    %v5774 = vunpack.c.l.b16 %v5486
    %v5775 = vunpack.c.l.b16 %v5487
    %v5776 = vunpack.c.l.b16 %v5488
    %v5777 = vunpack.c.l.b16 %v5489
    %v5778 = vunpack.c.l.b16 %v5490
    %v5779 = vunpack.c.l.b16 %v5491
    %v5780 = vunpack.c.l.b16 %v5492
    %v5781 = vunpack.c.l.b16 %v5493
    %v5782 = vunpack.c.l.b16 %v5494
    %v5783 = vunpack.c.l.b16 %v5495
    %v5784 = vunpack.c.l.b16 %v5496
    %v5785 = vunpack.c.l.b16 %v5497
    %v5786 = vunpack.c.l.b16 %v5498
    %v5787 = vunpack.c.l.b16 %v5499
    %v5788 = vunpack.c.l.b16 %v5500
    %v5789 = vunpack.c.l.b16 %v5501
    %v5790 = vunpack.c.l.b16 %v5502
    %v5791 = vunpack.c.l.b16 %v5503
    %v5792 = vunpack.c.l.b16 %v5504
    %v5793 = vunpack.c.l.b16 %v5505
    %v5794 = vunpack.c.l.b16 %v5506
    %v5795 = vunpack.c.l.b16 %v5507
    %v5796 = vunpack.c.l.b16 %v5508
    %v5797 = vunpack.c.l.b16 %v5509
    %v5798 = vunpack.c.l.b16 %v5510
    %v5799 = vunpack.c.l.b16 %v5511
    %v5800 = vunpack.c.l.b16 %v5512
    %v5801 = vunpack.c.l.b16 %v5513
    %v5802 = vunpack.c.l.b16 %v5514
    %v5803 = vunpack.c.l.b16 %v5515
    %v5804 = vunpack.c.l.b16 %v5516
    %v5805 = vunpack.c.l.b16 %v5517
    %v5806 = vunpack.c.l.b16 %v5518
    %v5807 = vunpack.c.l.b16 %v5519
    %v5808 = vunpack.c.l.b16 %v5520
    %v5809 = vunpack.c.l.b16 %v5521
    %v5810 = vunpack.c.l.b16 %v5522
    %v5811 = vunpack.c.l.b16 %v5523
    %v5812 = vunpack.c.l.b16 %v5524
    %v5813 = vunpack.c.l.b16 %v5525
    %v5814 = vunpack.c.l.b16 %v5526
    %v5815 = vunpack.c.l.b16 %v5527
    %v5816 = vunpack.c.l.b16 %v5528
    %v5817 = vunpack.c.l.b16 %v5529
    %v5818 = vunpack.c.l.b16 %v5530
    %v5819 = vunpack.c.l.b16 %v5531
    %v5820 = vunpack.c.l.b16 %v5532
    %v5821 = vunpack.c.l.b16 %v5533
    %v5822 = vunpack.c.l.b16 %v5534
    %v5823 = vunpack.c.l.b16 %v5535
    %v5824 = vunpack.c.l.b16 %v5536
    %v5825 = vunpack.c.l.b16 %v5537
    %v5826 = vunpack.c.l.b16 %v5538
    %v5827 = vunpack.c.l.b16 %v5539
    %v5828 = vunpack.c.l.b16 %v5540
    %v5829 = vunpack.c.l.b16 %v5541
    %v5830 = vunpack.c.l.b16 %v5542
    %v5831 = vunpack.c.l.b16 %v5543
    %v5832 = vunpack.c.l.b16 %v5544
    %v5833 = vunpack.c.l.b16 %v5545
    %v5834 = vunpack.c.l.b16 %v5546
    %v5835 = vunpack.c.l.b16 %v5547
    %v5836 = vunpack.c.l.b16 %v5548
    %v5837 = vunpack.c.l.b16 %v5549
    %v5838 = vunpack.c.l.b16 %v5550
    %v5839 = vunpack.c.l.b16 %v5551
    %v5840 = vunpack.c.l.b16 %v5552
    %v5841 = vunpack.c.l.b16 %v5553
    %v5842 = vunpack.c.l.b16 %v5554
    %v5843 = vunpack.c.l.b16 %v5555
    %v5844 = vunpack.c.l.b16 %v5556
    %v5845 = vunpack.c.l.b16 %v5557
    %v5846 = vunpack.c.l.b16 %v5558
    %v5847 = vunpack.c.l.b16 %v5559
    %v5848 = vunpack.c.l.b16 %v5560
    %v5849 = vunpack.c.l.b16 %v5561
    %v5850 = vunpack.c.l.b16 %v5562
    %v5851 = vunpack.c.l.b16 %v5563
    %v5852 = vunpack.c.l.b16 %v5564
    %v5853 = vunpack.c.l.b16 %v5565
    %v5854 = vunpack.c.l.b16 %v5566
    %v5855 = vunpack.c.l.b16 %v5567
    %v5856 = vunpack.c.l.b16 %v5568
    %v5857 = vunpack.c.l.b16 %v5569
    %v5858 = vunpack.c.l.b16 %v5570
    %v5859 = vunpack.c.l.b16 %v5571
    %v5860 = vunpack.c.l.b16 %v5572
    %v5861 = vunpack.c.l.b16 %v5573
    %v5862 = vunpack.c.l.b16 %v5574
    %v5863 = vunpack.c.l.b16 %v5575
    %v5864 = vunpack.c.l.b16 %v5576
    %v5865 = vunpack.c.l.b16 %v5577
    %v5866 = vunpack.c.l.b16 %v5578
    %v5867 = vunpack.c.l.b16 %v5579
    %v5868 = vunpack.c.l.b16 %v5580
    %v5869 = vunpack.c.l.b16 %v5581
    %v5870 = vunpack.c.l.b16 %v5582
    %v5871 = vunpack.c.l.b16 %v5583
    %v5872 = vunpack.c.l.b16 %v5584
    %v5873 = vunpack.c.l.b16 %v5585
    %v5874 = vunpack.c.l.b16 %v5586
    %v5875 = vunpack.c.l.b16 %v5587
    %v5876 = vunpack.c.l.b16 %v5588
    %v5877 = vunpack.c.l.b16 %v5589
    %v5878 = vunpack.c.l.b16 %v5590
    %v5879 = vunpack.c.l.b16 %v5591
    %v5880 = vunpack.c.l.b16 %v5592
    %v5881 = vunpack.c.l.b16 %v5593
    %v5882 = vunpack.c.l.b16 %v5594
    %v5883 = vunpack.c.l.b16 %v5595
    %v5884 = vunpack.c.l.b16 %v5596
    %v5885 = vunpack.c.l.b16 %v5597
    %v5886 = vunpack.c.l.b16 %v5598
    %v5887 = vunpack.c.l.b16 %v5599
    %v5888 = vunpack.c.l.b16 %v5600
    %v5889 = vunpack.c.l.b16 %v5601
    %v5890 = vunpack.c.l.b16 %v5602
    %v5891 = vunpack.c.l.b16 %v5603
    %v5892 = vunpack.c.l.b16 %v5604
    %v5893 = vunpack.c.l.b16 %v5605
    %v5894 = vunpack.c.l.b16 %v5606
    %v5895 = vunpack.c.l.b16 %v5607
    %v5896 = vunpack.c.l.b16 %v5608
    %v5897 = vunpack.c.l.b16 %v5609
    %v5898 = vunpack.c.l.b16 %v5610
    %v5899 = vunpack.c.l.b16 %v5611
    %v5900 = vunpack.c.l.b16 %v5612
    %v5901 = vunpack.c.l.b16 %v5613
    %v5902 = vunpack.c.l.b16 %v5614
    %v5903 = vunpack.c.l.b16 %v5615
    %v5904 = vunpack.c.l.b16 %v5616
    %v5905 = vunpack.c.l.b16 %v5617
    %v5906 = vunpack.c.l.b16 %v5618
    %v5907 = vunpack.c.l.b16 %v5619
    %v5908 = vunpack.c.l.b16 %v5620
    %v5909 = vunpack.c.l.b16 %v5621
    %v5910 = vunpack.c.l.b16 %v5622
    %v5911 = vpack.c.b16 %v5768, %v5767
    %v5912 = vpack.c.b16 %v5770, %v5769
    %v5913 = vpack.c.b16 %v5772, %v5771
    %v5914 = vpack.c.b16 %v5774, %v5773
    %v5915 = vpack.c.b16 %v5776, %v5775
    %v5916 = vpack.c.b16 %v5778, %v5777
    %v5917 = vpack.c.b16 %v5780, %v5779
    %v5918 = vpack.c.b16 %v5782, %v5781
    %v5919 = vpack.c.b16 %v5784, %v5783
    %v5920 = vpack.c.b16 %v5786, %v5785
    %v5921 = vpack.c.b16 %v5788, %v5787
    %v5922 = vpack.c.b16 %v5790, %v5789
    %v5923 = vpack.c.b16 %v5792, %v5791
    %v5924 = vpack.c.b16 %v5794, %v5793
    %v5925 = vpack.c.b16 %v5796, %v5795
    %v5926 = vpack.c.b16 %v5798, %v5797
    %v5927 = vpack.c.b16 %v5800, %v5799
    %v5928 = vpack.c.b16 %v5802, %v5801
    %v5929 = vpack.c.b16 %v5804, %v5803
    %v5930 = vpack.c.b16 %v5806, %v5805
    %v5931 = vpack.c.b16 %v5808, %v5807
    %v5932 = vpack.c.b16 %v5810, %v5809
    %v5933 = vpack.c.b16 %v5812, %v5811
    %v5934 = vpack.c.b16 %v5814, %v5813
    %v5935 = vpack.c.b16 %v5816, %v5815
    %v5936 = vpack.c.b16 %v5818, %v5817
    %v5937 = vpack.c.b16 %v5820, %v5819
    %v5938 = vpack.c.b16 %v5822, %v5821
    %v5939 = vpack.c.b16 %v5824, %v5823
    %v5940 = vpack.c.b16 %v5826, %v5825
    %v5941 = vpack.c.b16 %v5828, %v5827
    %v5942 = vpack.c.b16 %v5830, %v5829
    %v5943 = vpack.c.b16 %v5832, %v5831
    %v5944 = vpack.c.b16 %v5834, %v5833
    %v5945 = vpack.c.b16 %v5836, %v5835
    %v5946 = vpack.c.b16 %v5838, %v5837
    %v5947 = vpack.c.b16 %v5840, %v5839
    %v5948 = vpack.c.b16 %v5842, %v5841
    %v5949 = vpack.c.b16 %v5844, %v5843
    %v5950 = vpack.c.b16 %v5846, %v5845
    %v5951 = vpack.c.b16 %v5848, %v5847
    %v5952 = vpack.c.b16 %v5850, %v5849
    %v5953 = vpack.c.b16 %v5852, %v5851
    %v5954 = vpack.c.b16 %v5854, %v5853
    %v5955 = vpack.c.b16 %v5856, %v5855
    %v5956 = vpack.c.b16 %v5858, %v5857
    %v5957 = vpack.c.b16 %v5860, %v5859
    %v5958 = vpack.c.b16 %v5862, %v5861
    %v5959 = vpack.c.b16 %v5864, %v5863
    %v5960 = vpack.c.b16 %v5866, %v5865
    %v5961 = vpack.c.b16 %v5868, %v5867
    %v5962 = vpack.c.b16 %v5870, %v5869
    %v5963 = vpack.c.b16 %v5872, %v5871
    %v5964 = vpack.c.b16 %v5874, %v5873
    %v5965 = vpack.c.b16 %v5876, %v5875
    %v5966 = vpack.c.b16 %v5878, %v5877
    %v5967 = vpack.c.b16 %v5880, %v5879
    %v5968 = vpack.c.b16 %v5882, %v5881
    %v5969 = vpack.c.b16 %v5884, %v5883
    %v5970 = vpack.c.b16 %v5886, %v5885
    %v5971 = vpack.c.b16 %v5888, %v5887
    %v5972 = vpack.c.b16 %v5890, %v5889
    %v5973 = vpack.c.b16 %v5892, %v5891
    %v5974 = vpack.c.b16 %v5894, %v5893
    %v5975 = vpack.c.b16 %v5896, %v5895
    %v5976 = vpack.c.b16 %v5898, %v5897
    %v5977 = vpack.c.b16 %v5900, %v5899
    %v5978 = vpack.c.b16 %v5902, %v5901
    %v5979 = vpack.c.b16 %v5904, %v5903
    %v5980 = vpack.c.b16 %v5906, %v5905
    %v5981 = vpack.c.b16 %v5908, %v5907
    %v5982 = vpack.c.b16 %v5910, %v5909
    %6055 = vmatprep.subr.bf16.mxu0 0
    %6056 = vmatpush1.bf16.msra.mxu0 %v5911
    %6057 = vmatprep.subr.bf16.mxu0 0
    %6058 = vmatpush1.bf16.msra.mxu0 %v5912
    %6059 = vmatprep.subr.bf16.mxu0 0
    %6060 = vmatpush1.bf16.msra.mxu0 %v5913
    %6061 = vmatprep.subr.bf16.mxu0 0
    %6062 = vmatpush1.bf16.msra.mxu0 %v5914
    %6063 = vmatprep.subr.bf16.mxu0 0
    %6064 = vmatpush1.bf16.msra.mxu0 %v5915
    %6065 = vmatprep.subr.bf16.mxu0 0
    %6066 = vmatpush1.bf16.msra.mxu0 %v5916
    %6067 = vmatprep.subr.bf16.mxu0 0
    %6068 = vmatpush1.bf16.msra.mxu0 %v5917
    %6069 = vmatprep.subr.bf16.mxu0 0
    %6070 = vmatpush1.bf16.msra.mxu0 %v5918
    %6071 = vmatprep.subr.bf16.mxu0 0
    %6072 = vmatpush1.bf16.msra.mxu0 %v5919
    %6073 = vmatprep.subr.bf16.mxu0 0
    %6074 = vmatpush1.bf16.msra.mxu0 %v5920
    %6075 = vmatprep.subr.bf16.mxu0 0
    %6076 = vmatpush1.bf16.msra.mxu0 %v5921
    %6077 = vmatprep.subr.bf16.mxu0 0
    %6078 = vmatpush1.bf16.msra.mxu0 %v5922
    %6079 = vmatprep.subr.bf16.mxu0 0
    %6080 = vmatpush1.bf16.msra.mxu0 %v5923
    %6081 = vmatprep.subr.bf16.mxu0 0
    %6082 = vmatpush1.bf16.msra.mxu0 %v5924
    %6083 = vmatprep.subr.bf16.mxu0 0
    %6084 = vmatpush1.bf16.msra.mxu0 %v5925
    %6085 = vmatprep.subr.bf16.mxu0 0
    %6086 = vmatpush1.bf16.msra.mxu0 %v5926
    %6087 = vmatprep.mubr.bf16.mxu0 %v5417
    %6088 = vmatmul.mubr.bf16.gmra.mrb[0].mxu0 %v5416
    %v6089 = vpop.f32.mrb[0].mxu0
    %v6090 = vadd.f32 0.0, %v6089
    %v6091 = vpop.f32.mrb[0].mxu0
    %v6092 = vpop.f32.mrb[0].mxu0
    %v6093 = vadd.f32 0.0, %v6092
    %v6094 = vpop.f32.mrb[0].mxu0
    %6095 = vmatprep.mubr.bf16.mxu0 %v5426
    %6096 = vmatmul.mubr.bf16.gmra.mrb[0].mxu0 %v5425
    %v6097 = vpop.f32.mrb[0].mxu0
    %v6098 = vadd.f32 0.0, %v6097
    %v6099 = vpop.f32.mrb[0].mxu0
    %v6100 = vpop.f32.mrb[0].mxu0
    %v6101 = vadd.f32 0.0, %v6100
    %v6102 = vpop.f32.mrb[0].mxu0
    %6103 = vmatprep.mubr.bf16.mxu0 %v5435
    %6104 = vmatmul.mubr.bf16.gmra.mrb[0].mxu0 %v5434
    %v6105 = vpop.f32.mrb[0].mxu0
    %v6106 = vadd.f32 0.0, %v6105
    %v6107 = vpop.f32.mrb[0].mxu0
    %v6108 = vpop.f32.mrb[0].mxu0
    %v6109 = vadd.f32 0.0, %v6108
    %v6110 = vpop.f32.mrb[0].mxu0
    %6111 = vmatprep.mubr.bf16.mxu0 %v5444
    %6112 = vmatmul.mubr.bf16.gmra.mrb[0].mxu0 %v5443
    %v6113 = vpop.f32.mrb[0].mxu0
    %v6114 = vadd.f32 0.0, %v6113
    %v6115 = vpop.f32.mrb[0].mxu0
    %v6116 = vpop.f32.mrb[0].mxu0
    %v6117 = vadd.f32 0.0, %v6116
    %v6118 = vpop.f32.mrb[0].mxu0
    %6119 = vmatprep.mubr.bf16.mxu0 %v5453
    %6120 = vmatmul.mubr.bf16.gmra.mrb[0].mxu0 %v5452
    %v6121 = vpop.f32.mrb[0].mxu0
    %v6122 = vadd.f32 0.0, %v6121
    %v6123 = vpop.f32.mrb[0].mxu0
    %v6124 = vpop.f32.mrb[0].mxu0
    %v6125 = vadd.f32 0.0, %v6124
    %v6126 = vpop.f32.mrb[0].mxu0
    %6127 = vmatprep.mubr.bf16.mxu0 %v5462
    %6128 = vmatmul.mubr.bf16.gmra.mrb[0].mxu0 %v5461
    %v6129 = vpop.f32.mrb[0].mxu0
    %v6130 = vadd.f32 0.0, %v6129
    %v6131 = vpop.f32.mrb[0].mxu0
    %v6132 = vpop.f32.mrb[0].mxu0
    %v6133 = vadd.f32 0.0, %v6132
    %v6134 = vpop.f32.mrb[0].mxu0
    %6135 = vmatprep.mubr.bf16.mxu0 %v5471
    %6136 = vmatmul.mubr.bf16.gmra.mrb[0].mxu0 %v5470
    %v6137 = vpop.f32.mrb[0].mxu0
    %v6138 = vadd.f32 0.0, %v6137
    %v6139 = vpop.f32.mrb[0].mxu0
    %v6140 = vpop.f32.mrb[0].mxu0
    %v6141 = vadd.f32 0.0, %v6140
    %v6142 = vpop.f32.mrb[0].mxu0
    %6143 = vdwg.mxu0
    %6144 = vmatprep.subr.bf16.mxu0 0
    %6145 = vmatpush1.bf16.msra.mxu0 %v5927
    %6146 = vmatprep.subr.bf16.mxu0 0
    %6147 = vmatpush1.bf16.msra.mxu0 %v5928
    %6148 = vmatprep.subr.bf16.mxu0 0
    %6149 = vmatpush1.bf16.msra.mxu0 %v5929
    %6150 = vmatprep.subr.bf16.mxu0 0
    %6151 = vmatpush1.bf16.msra.mxu0 %v5930
    %6152 = vmatprep.subr.bf16.mxu0 0
    %6153 = vmatpush1.bf16.msra.mxu0 %v5931
    %6154 = vmatprep.subr.bf16.mxu0 0
    %6155 = vmatpush1.bf16.msra.mxu0 %v5932
    %6156 = vmatprep.subr.bf16.mxu0 0
    %6157 = vmatpush1.bf16.msra.mxu0 %v5933
    %6158 = vmatprep.subr.bf16.mxu0 0
    %6159 = vmatpush1.bf16.msra.mxu0 %v5934
    %6160 = vmatprep.subr.bf16.mxu0 0
    %6161 = vmatpush1.bf16.msra.mxu0 %v5935
    %6162 = vmatprep.subr.bf16.mxu0 0
    %6163 = vmatpush1.bf16.msra.mxu0 %v5936
    %6164 = vmatprep.subr.bf16.mxu0 0
    %6165 = vmatpush1.bf16.msra.mxu0 %v5937
    %6166 = vmatprep.subr.bf16.mxu0 0
    %6167 = vmatpush1.bf16.msra.mxu0 %v5938
    %6168 = vmatprep.subr.bf16.mxu0 0
    %6169 = vmatpush1.bf16.msra.mxu0 %v5939
    %6170 = vmatprep.subr.bf16.mxu0 0
    %6171 = vmatpush1.bf16.msra.mxu0 %v5940
    %6172 = vmatprep.subr.bf16.mxu0 0
    %6173 = vmatpush1.bf16.msra.mxu0 %v5941
    %6174 = vmatprep.subr.bf16.mxu0 0
    %6175 = vmatpush1.bf16.msra.mxu0 %v5942
    %6176 = vmatprep.mubr.bf16.mxu0 %v5419
    %6177 = vmatmul.mubr.bf16.gmra.mrb[0].mxu0 %v5418
    %v6178 = vpop.f32.mrb[0].mxu0
    %v6179 = vadd.f32 %v6090, %v6178
    %v6180 = vpop.f32.mrb[0].mxu0
    %v6181 = vpop.f32.mrb[0].mxu0
    %v6182 = vadd.f32 %v6093, %v6181
    %v6183 = vpop.f32.mrb[0].mxu0
    %6184 = vmatprep.mubr.bf16.mxu0 %v5428
    %6185 = vmatmul.mubr.bf16.gmra.mrb[0].mxu0 %v5427
    %v6186 = vpop.f32.mrb[0].mxu0
    %v6187 = vadd.f32 %v6098, %v6186
    %v6188 = vpop.f32.mrb[0].mxu0
    %v6189 = vpop.f32.mrb[0].mxu0
    %v6190 = vadd.f32 %v6101, %v6189
    %v6191 = vpop.f32.mrb[0].mxu0
    %6192 = vmatprep.mubr.bf16.mxu0 %v5437
    %6193 = vmatmul.mubr.bf16.gmra.mrb[0].mxu0 %v5436
    %v6194 = vpop.f32.mrb[0].mxu0
    %v6195 = vadd.f32 %v6106, %v6194
    %v6196 = vpop.f32.mrb[0].mxu0
    %v6197 = vpop.f32.mrb[0].mxu0
    %v6198 = vadd.f32 %v6109, %v6197
    %v6199 = vpop.f32.mrb[0].mxu0
    %6200 = vmatprep.mubr.bf16.mxu0 %v5446
    %6201 = vmatmul.mubr.bf16.gmra.mrb[0].mxu0 %v5445
    %v6202 = vpop.f32.mrb[0].mxu0
    %v6203 = vadd.f32 %v6114, %v6202
    %v6204 = vpop.f32.mrb[0].mxu0
    %v6205 = vpop.f32.mrb[0].mxu0
    %v6206 = vadd.f32 %v6117, %v6205
    %v6207 = vpop.f32.mrb[0].mxu0
    %6208 = vmatprep.mubr.bf16.mxu0 %v5455
    %6209 = vmatmul.mubr.bf16.gmra.mrb[0].mxu0 %v5454
    %v6210 = vpop.f32.mrb[0].mxu0
    %v6211 = vadd.f32 %v6122, %v6210
    %v6212 = vpop.f32.mrb[0].mxu0
    %v6213 = vpop.f32.mrb[0].mxu0
    %v6214 = vadd.f32 %v6125, %v6213
    %v6215 = vpop.f32.mrb[0].mxu0
    %6216 = vmatprep.mubr.bf16.mxu0 %v5464
    %6217 = vmatmul.mubr.bf16.gmra.mrb[0].mxu0 %v5463
    %v6218 = vpop.f32.mrb[0].mxu0
    %v6219 = vadd.f32 %v6130, %v6218
    %v6220 = vpop.f32.mrb[0].mxu0
    %v6221 = vpop.f32.mrb[0].mxu0
    %v6222 = vadd.f32 %v6133, %v6221
    %v6223 = vpop.f32.mrb[0].mxu0
    %6224 = vmatprep.mubr.bf16.mxu0 %v5473
    %6225 = vmatmul.mubr.bf16.gmra.mrb[0].mxu0 %v5472
    %v6226 = vpop.f32.mrb[0].mxu0
    %v6227 = vadd.f32 %v6138, %v6226
    %v6228 = vpop.f32.mrb[0].mxu0
    %v6229 = vpop.f32.mrb[0].mxu0
    %v6230 = vadd.f32 %v6141, %v6229
    %v6231 = vpop.f32.mrb[0].mxu0
    %6232 = vdwg.mxu0
    %6233 = vmatprep.subr.bf16.mxu0 0
    %6234 = vmatpush1.bf16.msra.mxu0 %v5943
    %6235 = vmatprep.subr.bf16.mxu0 0
    %6236 = vmatpush1.bf16.msra.mxu0 %v5944
    %6237 = vmatprep.subr.bf16.mxu0 0
    %6238 = vmatpush1.bf16.msra.mxu0 %v5945
    %6239 = vmatprep.subr.bf16.mxu0 0
    %6240 = vmatpush1.bf16.msra.mxu0 %v5946
    %6241 = vmatprep.subr.bf16.mxu0 0
    %6242 = vmatpush1.bf16.msra.mxu0 %v5947
    %6243 = vmatprep.subr.bf16.mxu0 0
    %6244 = vmatpush1.bf16.msra.mxu0 %v5948
    %6245 = vmatprep.subr.bf16.mxu0 0
    %6246 = vmatpush1.bf16.msra.mxu0 %v5949
    %6247 = vmatprep.subr.bf16.mxu0 0
    %6248 = vmatpush1.bf16.msra.mxu0 %v5950
    %6249 = vmatprep.subr.bf16.mxu0 0
    %6250 = vmatpush1.bf16.msra.mxu0 %v5951
    %6251 = vmatprep.subr.bf16.mxu0 0
    %6252 = vmatpush1.bf16.msra.mxu0 %v5952
    %6253 = vmatprep.subr.bf16.mxu0 0
    %6254 = vmatpush1.bf16.msra.mxu0 %v5953
    %6255 = vmatprep.subr.bf16.mxu0 0
    %6256 = vmatpush1.bf16.msra.mxu0 %v5954
    %6257 = vmatprep.subr.bf16.mxu0 0
    %6258 = vmatpush1.bf16.msra.mxu0 %v5955
    %6259 = vmatprep.subr.bf16.mxu0 0
    %6260 = vmatpush1.bf16.msra.mxu0 %v5956
    %6261 = vmatprep.subr.bf16.mxu0 0
    %6262 = vmatpush1.bf16.msra.mxu0 %v5957
    %6263 = vmatprep.subr.bf16.mxu0 0
    %6264 = vmatpush1.bf16.msra.mxu0 %v5958
    %6265 = vmatprep.mubr.bf16.mxu0 %v5421
    %6266 = vmatmul.mubr.bf16.gmra.mrb[0].mxu0 %v5420
    %v6267 = vpop.f32.mrb[0].mxu0
    %v6268 = vadd.f32 %v6179, %v6267
    %v6269 = vpop.f32.mrb[0].mxu0
    %v6270 = vpop.f32.mrb[0].mxu0
    %v6271 = vadd.f32 %v6182, %v6270
    %v6272 = vpop.f32.mrb[0].mxu0
    %6273 = vmatprep.mubr.bf16.mxu0 %v5430
    %6274 = vmatmul.mubr.bf16.gmra.mrb[0].mxu0 %v5429
    %v6275 = vpop.f32.mrb[0].mxu0
    %v6276 = vadd.f32 %v6187, %v6275
    %v6277 = vpop.f32.mrb[0].mxu0
    %v6278 = vpop.f32.mrb[0].mxu0
    %v6279 = vadd.f32 %v6190, %v6278
    %v6280 = vpop.f32.mrb[0].mxu0
    %6281 = vmatprep.mubr.bf16.mxu0 %v5439
    %6282 = vmatmul.mubr.bf16.gmra.mrb[0].mxu0 %v5438
    %v6283 = vpop.f32.mrb[0].mxu0
    %v6284 = vadd.f32 %v6195, %v6283
    %v6285 = vpop.f32.mrb[0].mxu0
    %v6286 = vpop.f32.mrb[0].mxu0
    %v6287 = vadd.f32 %v6198, %v6286
    %v6288 = vpop.f32.mrb[0].mxu0
    %6289 = vmatprep.mubr.bf16.mxu0 %v5448
    %6290 = vmatmul.mubr.bf16.gmra.mrb[0].mxu0 %v5447
    %v6291 = vpop.f32.mrb[0].mxu0
    %v6292 = vadd.f32 %v6203, %v6291
    %v6293 = vpop.f32.mrb[0].mxu0
    %v6294 = vpop.f32.mrb[0].mxu0
    %v6295 = vadd.f32 %v6206, %v6294
    %v6296 = vpop.f32.mrb[0].mxu0
    %6297 = vmatprep.mubr.bf16.mxu0 %v5457
    %6298 = vmatmul.mubr.bf16.gmra.mrb[0].mxu0 %v5456
    %v6299 = vpop.f32.mrb[0].mxu0
    %v6300 = vadd.f32 %v6211, %v6299
    %v6301 = vpop.f32.mrb[0].mxu0
    %v6302 = vpop.f32.mrb[0].mxu0
    %v6303 = vadd.f32 %v6214, %v6302
    %v6304 = vpop.f32.mrb[0].mxu0
    %6305 = vmatprep.mubr.bf16.mxu0 %v5466
    %6306 = vmatmul.mubr.bf16.gmra.mrb[0].mxu0 %v5465
    %v6307 = vpop.f32.mrb[0].mxu0
    %v6308 = vadd.f32 %v6219, %v6307
    %v6309 = vpop.f32.mrb[0].mxu0
    %v6310 = vpop.f32.mrb[0].mxu0
    %v6311 = vadd.f32 %v6222, %v6310
    %v6312 = vpop.f32.mrb[0].mxu0
    %6313 = vmatprep.mubr.bf16.mxu0 %v5475
    %6314 = vmatmul.mubr.bf16.gmra.mrb[0].mxu0 %v5474
    %v6315 = vpop.f32.mrb[0].mxu0
    %v6316 = vadd.f32 %v6227, %v6315
    %v6317 = vpop.f32.mrb[0].mxu0
    %v6318 = vpop.f32.mrb[0].mxu0
    %v6319 = vadd.f32 %v6230, %v6318
    %v6320 = vpop.f32.mrb[0].mxu0
    %6321 = vdwg.mxu0
    %6322 = vmatprep.subr.bf16.mxu0 0
    %6323 = vmatpush1.bf16.msra.mxu0 %v5959
    %6324 = vmatprep.subr.bf16.mxu0 0
    %6325 = vmatpush1.bf16.msra.mxu0 %v5960
    %6326 = vmatprep.subr.bf16.mxu0 0
    %6327 = vmatpush1.bf16.msra.mxu0 %v5961
    %6328 = vmatprep.subr.bf16.mxu0 0
    %6329 = vmatpush1.bf16.msra.mxu0 %v5962
    %6330 = vmatprep.subr.bf16.mxu0 0
    %6331 = vmatpush1.bf16.msra.mxu0 %v5963
    %6332 = vmatprep.subr.bf16.mxu0 0
    %6333 = vmatpush1.bf16.msra.mxu0 %v5964
    %6334 = vmatprep.subr.bf16.mxu0 0
    %6335 = vmatpush1.bf16.msra.mxu0 %v5965
    %6336 = vmatprep.subr.bf16.mxu0 0
    %6337 = vmatpush1.bf16.msra.mxu0 %v5966
    %6338 = vmatprep.subr.bf16.mxu0 0
    %6339 = vmatpush1.bf16.msra.mxu0 %v5967
    %6340 = vmatprep.subr.bf16.mxu0 0
    %6341 = vmatpush1.bf16.msra.mxu0 %v5968
    %6342 = vmatprep.subr.bf16.mxu0 0
    %6343 = vmatpush1.bf16.msra.mxu0 %v5969
    %6344 = vmatprep.subr.bf16.mxu0 0
    %6345 = vmatpush1.bf16.msra.mxu0 %v5970
    %6346 = vmatprep.subr.bf16.mxu0 0
    %6347 = vmatpush1.bf16.msra.mxu0 %v5971
    %6348 = vmatprep.subr.bf16.mxu0 0
    %6349 = vmatpush1.bf16.msra.mxu0 %v5972
    %6350 = vmatprep.subr.bf16.mxu0 0
    %6351 = vmatpush1.bf16.msra.mxu0 %v5973
    %6352 = vmatprep.subr.bf16.mxu0 0
    %6353 = vmatpush1.bf16.msra.mxu0 %v5974
    %6354 = vmatprep.mubr.bf16.mxu0 %v5423
    %6355 = vmatmul.mubr.bf16.gmra.mrb[0].mxu0 %v5422
    %v6356 = vpop.f32.mrb[0].mxu0
    %v6357 = vadd.f32 %v6268, %v6356
    %v6358 = vpop.f32.mrb[0].mxu0
    %v6359 = vpop.f32.mrb[0].mxu0
    %v6360 = vadd.f32 %v6271, %v6359
    %v6361 = vpop.f32.mrb[0].mxu0
    %6362 = vmatprep.mubr.bf16.mxu0 %v5432
    %6363 = vmatmul.mubr.bf16.gmra.mrb[0].mxu0 %v5431
    %v6364 = vpop.f32.mrb[0].mxu0
    %v6365 = vadd.f32 %v6276, %v6364
    %v6366 = vpop.f32.mrb[0].mxu0
    %v6367 = vpop.f32.mrb[0].mxu0
    %v6368 = vadd.f32 %v6279, %v6367
    %v6369 = vpop.f32.mrb[0].mxu0
    %6370 = vmatprep.mubr.bf16.mxu0 %v5441
    %6371 = vmatmul.mubr.bf16.gmra.mrb[0].mxu0 %v5440
    %v6372 = vpop.f32.mrb[0].mxu0
    %v6373 = vadd.f32 %v6284, %v6372
    %v6374 = vpop.f32.mrb[0].mxu0
    %v6375 = vpop.f32.mrb[0].mxu0
    %v6376 = vadd.f32 %v6287, %v6375
    %v6377 = vpop.f32.mrb[0].mxu0
    %6378 = vmatprep.mubr.bf16.mxu0 %v5450
    %6379 = vmatmul.mubr.bf16.gmra.mrb[0].mxu0 %v5449
    %v6380 = vpop.f32.mrb[0].mxu0
    %v6381 = vadd.f32 %v6292, %v6380
    %v6382 = vpop.f32.mrb[0].mxu0
    %v6383 = vpop.f32.mrb[0].mxu0
    %v6384 = vadd.f32 %v6295, %v6383
    %v6385 = vpop.f32.mrb[0].mxu0
    %6386 = vmatprep.mubr.bf16.mxu0 %v5459
    %6387 = vmatmul.mubr.bf16.gmra.mrb[0].mxu0 %v5458
    %v6388 = vpop.f32.mrb[0].mxu0
    %v6389 = vadd.f32 %v6300, %v6388
    %v6390 = vpop.f32.mrb[0].mxu0
    %v6391 = vpop.f32.mrb[0].mxu0
    %v6392 = vadd.f32 %v6303, %v6391
    %v6393 = vpop.f32.mrb[0].mxu0
    %6394 = vmatprep.mubr.bf16.mxu0 %v5468
    %6395 = vmatmul.mubr.bf16.gmra.mrb[0].mxu0 %v5467
    %v6396 = vpop.f32.mrb[0].mxu0
    %v6397 = vadd.f32 %v6308, %v6396
    %v6398 = vpop.f32.mrb[0].mxu0
    %v6399 = vpop.f32.mrb[0].mxu0
    %v6400 = vadd.f32 %v6311, %v6399
    %v6401 = vpop.f32.mrb[0].mxu0
    %6402 = vmatprep.mubr.bf16.mxu0 %v5477
    %6403 = vmatmul.mubr.bf16.gmra.mrb[0].mxu0 %v5476
    %v6404 = vpop.f32.mrb[0].mxu0
    %v6405 = vadd.f32 %v6316, %v6404
    %v6406 = vpop.f32.mrb[0].mxu0
    %v6407 = vpop.f32.mrb[0].mxu0
    %v6408 = vadd.f32 %v6319, %v6407
    %v6409 = vpop.f32.mrb[0].mxu0
    %6410 = vdwg.mxu0
    %6411 = vmatprep.subr.bf16.mxu0 0
    %6412 = vmatpush1.bf16.msra.mxu0 %v5975
    %6413 = vmatprep.subr.bf16.mxu0 0
    %6414 = vmatpush1.bf16.msra.mxu0 %v5976
    %6415 = vmatprep.subr.bf16.mxu0 0
    %6416 = vmatpush1.bf16.msra.mxu0 %v5977
    %6417 = vmatprep.subr.bf16.mxu0 0
    %6418 = vmatpush1.bf16.msra.mxu0 %v5978
    %6419 = vmatprep.subr.bf16.mxu0 0
    %6420 = vmatpush1.bf16.msra.mxu0 %v5979
    %6421 = vmatprep.subr.bf16.mxu0 0
    %6422 = vmatpush1.bf16.msra.mxu0 %v5980
    %6423 = vmatprep.subr.bf16.mxu0 0
    %6424 = vmatpush1.bf16.msra.mxu0 %v5981
    %6425 = vmatprep.subr.bf16.mxu0 0
    %6426 = vmatpush1.bf16.msra.mxu0 %v5982
    %6427 = vmatprep.subr.bf16.mxu0 0
    %6428 = vmatpush1.bf16.msra.mxu0 0
    %6429 = vmatprep.subr.bf16.mxu0 0
    %6430 = vmatpush1.bf16.msra.mxu0 0
    %6431 = vmatprep.subr.bf16.mxu0 0
    %6432 = vmatpush1.bf16.msra.mxu0 0
    %6433 = vmatprep.subr.bf16.mxu0 0
    %6434 = vmatpush1.bf16.msra.mxu0 0
    %6435 = vmatprep.subr.bf16.mxu0 0
    %6436 = vmatpush1.bf16.msra.mxu0 0
    %6437 = vmatprep.subr.bf16.mxu0 0
    %6438 = vmatpush1.bf16.msra.mxu0 0
    %6439 = vmatprep.subr.bf16.mxu0 0
    %6440 = vmatpush1.bf16.msra.mxu0 0
    %6441 = vmatprep.subr.bf16.mxu0 0
    %6442 = vmatpush1.bf16.msra.mxu0 0
    %6443 = vmatprep.mubr.bf16.mxu0 0
    %6444 = vmatmul.mubr.bf16.gmra.mrb[0].mxu0 %v5424
    %v6445 = vpop.f32.mrb[0].mxu0
    %v6446 = vadd.f32 %v6357, %v6445
    %v6447 = vpop.f32.mrb[0].mxu0
    %v6448 = vpop.f32.mrb[0].mxu0
    %v6449 = vadd.f32 %v6360, %v6448
    %v6450 = vpop.f32.mrb[0].mxu0
    %6451 = vmatprep.mubr.bf16.mxu0 0
    %6452 = vmatmul.mubr.bf16.gmra.mrb[0].mxu0 %v5433
    %v6453 = vpop.f32.mrb[0].mxu0
    %v6454 = vadd.f32 %v6365, %v6453
    %v6455 = vpop.f32.mrb[0].mxu0
    %v6456 = vpop.f32.mrb[0].mxu0
    %v6457 = vadd.f32 %v6368, %v6456
    %v6458 = vpop.f32.mrb[0].mxu0
    %6459 = vmatprep.mubr.bf16.mxu0 0
    %6460 = vmatmul.mubr.bf16.gmra.mrb[0].mxu0 %v5442
    %v6461 = vpop.f32.mrb[0].mxu0
    %v6462 = vadd.f32 %v6373, %v6461
    %v6463 = vpop.f32.mrb[0].mxu0
    %v6464 = vpop.f32.mrb[0].mxu0
    %v6465 = vadd.f32 %v6376, %v6464
    %v6466 = vpop.f32.mrb[0].mxu0
    %6467 = vmatprep.mubr.bf16.mxu0 0
    %6468 = vmatmul.mubr.bf16.gmra.mrb[0].mxu0 %v5451
    %v6469 = vpop.f32.mrb[0].mxu0
    %v6470 = vadd.f32 %v6381, %v6469
    %v6471 = vpop.f32.mrb[0].mxu0
    %v6472 = vpop.f32.mrb[0].mxu0
    %v6473 = vadd.f32 %v6384, %v6472
    %v6474 = vpop.f32.mrb[0].mxu0
    %6475 = vmatprep.mubr.bf16.mxu0 0
    %6476 = vmatmul.mubr.bf16.gmra.mrb[0].mxu0 %v5460
    %v6477 = vpop.f32.mrb[0].mxu0
    %v6478 = vadd.f32 %v6389, %v6477
    %v6479 = vpop.f32.mrb[0].mxu0
    %v6480 = vpop.f32.mrb[0].mxu0
    %v6481 = vadd.f32 %v6392, %v6480
    %v6482 = vpop.f32.mrb[0].mxu0
    %6483 = vmatprep.mubr.bf16.mxu0 0
    %6484 = vmatmul.mubr.bf16.gmra.mrb[0].mxu0 %v5469
    %v6485 = vpop.f32.mrb[0].mxu0
    %v6486 = vadd.f32 %v6397, %v6485
    %v6487 = vpop.f32.mrb[0].mxu0
    %v6488 = vpop.f32.mrb[0].mxu0
    %v6489 = vadd.f32 %v6400, %v6488
    %v6490 = vpop.f32.mrb[0].mxu0
    %6491 = vmatprep.mubr.bf16.mxu0 0
    %6492 = vmatmul.mubr.bf16.gmra.mrb[0].mxu0 %v5478
    %v6493 = vpop.f32.mrb[0].mxu0
    %v6494 = vadd.f32 %v6405, %v6493
    %v6495 = vpop.f32.mrb[0].mxu0
    %v6496 = vpop.f32.mrb[0].mxu0
    %v6497 = vadd.f32 %v6408, %v6496
    %v6498 = vpop.f32.mrb[0].mxu0
    %6499 = vdwg.mxu0
    %s6500 = scalar_lea.vmem %s5, 2
    %v6501 = vld [vmem:[%s6500] sm:$0x1]
    %v6503 = vlaneseq
    %v6504 = vshrl.u32 %v6503, 7
    %v6505 = vsub.s32 0, %v6504
    %v6506 = vrot.slane %v6501, %v6505
    %v6508 = vmul.f32 %v6446, %v6506
    %v6509 = vmul.f32 %v6449, %v6506
    %v6510 = vmul.f32 %v6454, %v6506
    %v6511 = vmul.f32 %v6457, %v6506
    %v6512 = vmul.f32 %v6462, %v6506
    %v6513 = vmul.f32 %v6465, %v6506
    %v6514 = vmul.f32 %v6470, %v6506
    %v6515 = vmul.f32 %v6473, %v6506
    %v6516 = vmul.f32 %v6478, %v6506
    %v6517 = vmul.f32 %v6481, %v6506
    %v6518 = vmul.f32 %v6486, %v6506
    %v6519 = vmul.f32 %v6489, %v6506
    %v6520 = vmul.f32 %v6494, %v6506
    %v6521 = vmul.f32 %v6497, %v6506
    %s6522 = scalar_lea.vmem %s6, 2
    %v6523 = vld [vmem:[%s6522] sm:$0x1]
    %v6525 = vlaneseq
    %v6526 = vshrl.u32 %v6525, 7
    %v6527 = vsub.s32 0, %v6526
    %v6528 = vrot.slane %v6523, %v6527
    %v6530 = vadd.f32 %v6508, %v6528
    %v6531 = vadd.f32 %v6509, %v6528
    %v6532 = vadd.f32 %v6510, %v6528
    %v6533 = vadd.f32 %v6511, %v6528
    %v6534 = vadd.f32 %v6512, %v6528
    %v6535 = vadd.f32 %v6513, %v6528
    %v6536 = vadd.f32 %v6514, %v6528
    %v6537 = vadd.f32 %v6515, %v6528
    %v6538 = vadd.f32 %v6516, %v6528
    %v6539 = vadd.f32 %v6517, %v6528
    %v6540 = vadd.f32 %v6518, %v6528
    %v6541 = vadd.f32 %v6519, %v6528
    %v6542 = vadd.f32 %v6520, %v6528
    %v6543 = vadd.f32 %v6521, %v6528
    %v6544 = vmax.f32 %v6530, 0.0
    %v6545 = vmax.f32 %v6531, 0.0
    %v6546 = vmax.f32 %v6532, 0.0
    %v6547 = vmax.f32 %v6533, 0.0
    %v6548 = vmax.f32 %v6534, 0.0
    %v6549 = vmax.f32 %v6535, 0.0
    %v6550 = vmax.f32 %v6536, 0.0
    %v6551 = vmax.f32 %v6537, 0.0
    %v6552 = vmax.f32 %v6538, 0.0
    %v6553 = vmax.f32 %v6539, 0.0
    %v6554 = vmax.f32 %v6540, 0.0
    %v6555 = vmax.f32 %v6541, 0.0
    %v6556 = vmax.f32 %v6542, 0.0
    %v6557 = vmax.f32 %v6543, 0.0
    %v6558 = vmul.f32 %v6544, %v2143
    %v6559 = vmul.f32 %v6545, %v2148
    %v6560 = vmul.f32 %v6546, %v2153
    %v6561 = vmul.f32 %v6547, %v2158
    %v6562 = vmul.f32 %v6548, %v2163
    %v6563 = vmul.f32 %v6549, %v2168
    %v6564 = vmul.f32 %v6550, %v2173
    %v6565 = vmul.f32 %v6551, %v2178
    %v6566 = vmul.f32 %v6552, %v2183
    %v6567 = vmul.f32 %v6553, %v2188
    %v6568 = vmul.f32 %v6554, %v2193
    %v6569 = vmul.f32 %v6555, %v2198
    %v6570 = vmul.f32 %v6556, %v2203
    %v6571 = vmul.f32 %v6557, %v2208
    %v6572 = vpack.c.bf16 %v6559, %v6558
    %v6573 = vpack.c.bf16 %v6561, %v6560
    %v6574 = vpack.c.bf16 %v6563, %v6562
    %v6575 = vpack.c.bf16 %v6565, %v6564
    %v6576 = vpack.c.bf16 %v6567, %v6566
    %v6577 = vpack.c.bf16 %v6569, %v6568
    %v6578 = vpack.c.bf16 %v6571, %v6570
    %v6586 = vunpack.c.l.b16 %v6572
    %v6587 = vunpack.c.h.b16 %v6572
    %v6588 = vunpack.c.l.b16 %v6573
    %v6589 = vunpack.c.h.b16 %v6573
    %v6590 = vunpack.c.l.b16 %v6574
    %v6591 = vunpack.c.h.b16 %v6574
    %v6592 = vunpack.c.l.b16 %v6575
    %v6593 = vunpack.c.h.b16 %v6575
    %v6594 = vunpack.c.l.b16 %v6576
    %v6595 = vunpack.c.h.b16 %v6576
    %v6596 = vunpack.c.l.b16 %v6577
    %v6597 = vunpack.c.h.b16 %v6577
    %v6598 = vunpack.c.l.b16 %v6578
    %v6599 = vunpack.c.h.b16 %v6578
    %v6600 = vpack.c.b16 %v6586, %v6586
    %v6601 = vpack.c.b16 %v6587, %v6587
    %v6602 = vpack.c.b16 %v6588, %v6588
    %v6603 = vpack.c.b16 %v6589, %v6589
    %v6604 = vpack.c.b16 %v6590, %v6590
    %v6605 = vpack.c.b16 %v6591, %v6591
    %v6606 = vpack.c.b16 %v6592, %v6592
    %v6607 = vpack.c.b16 %v6593, %v6593
    %v6608 = vpack.c.b16 %v6594, %v6594
    %v6609 = vpack.c.b16 %v6595, %v6595
    %v6610 = vpack.c.b16 %v6596, %v6596
    %v6611 = vpack.c.b16 %v6597, %v6597
    %v6612 = vpack.c.b16 %v6598, %v6598
    %v6613 = vpack.c.b16 %v6599, %v6599
    %v6615 = vshrl.u32 %v6600, 16
    %v6617 = vrot.slane %v6615, 7
    %v6618 = vshll.u32 %v6600, 16
    %v6620 = vor.u32 %v6617, %v6618
    %v6621 = vrot.slane %v6617, 4
    %v6623 = vshrl.u32 %v6601, 16
    %v6625 = vrot.slane %v6623, 7
    %v6626 = vshll.u32 %v6601, 16
    %v6628 = vor.u32 %v6625, %v6626
    %v6629 = vsel %vm2267, %v6621, %v6628
    %v6630 = vrot.slane %v6625, 4
    %v6632 = vshrl.u32 %v6602, 16
    %v6634 = vrot.slane %v6632, 7
    %v6635 = vshll.u32 %v6602, 16
    %v6637 = vor.u32 %v6634, %v6635
    %v6638 = vsel %vm2267, %v6630, %v6637
    %v6639 = vrot.slane %v6634, 4
    %v6641 = vshrl.u32 %v6603, 16
    %v6643 = vrot.slane %v6641, 7
    %v6644 = vshll.u32 %v6603, 16
    %v6646 = vor.u32 %v6643, %v6644
    %v6647 = vsel %vm2267, %v6639, %v6646
    %v6648 = vrot.slane %v6643, 4
    %v6650 = vshrl.u32 %v6604, 16
    %v6652 = vrot.slane %v6650, 7
    %v6653 = vshll.u32 %v6604, 16
    %v6655 = vor.u32 %v6652, %v6653
    %v6656 = vsel %vm2267, %v6648, %v6655
    %v6657 = vrot.slane %v6652, 4
    %v6659 = vshrl.u32 %v6605, 16
    %v6661 = vrot.slane %v6659, 7
    %v6662 = vshll.u32 %v6605, 16
    %v6664 = vor.u32 %v6661, %v6662
    %v6665 = vsel %vm2267, %v6657, %v6664
    %v6666 = vrot.slane %v6661, 4
    %v6668 = vshrl.u32 %v6606, 16
    %v6670 = vrot.slane %v6668, 7
    %v6671 = vshll.u32 %v6606, 16
    %v6673 = vor.u32 %v6670, %v6671
    %v6674 = vsel %vm2267, %v6666, %v6673
    %v6675 = vrot.slane %v6670, 4
    %v6677 = vshrl.u32 %v6607, 16
    %v6679 = vrot.slane %v6677, 7
    %v6680 = vshll.u32 %v6607, 16
    %v6682 = vor.u32 %v6679, %v6680
    %v6683 = vsel %vm2267, %v6675, %v6682
    %v6684 = vrot.slane %v6679, 4
    %v6686 = vshrl.u32 %v6608, 16
    %v6688 = vrot.slane %v6686, 7
    %v6689 = vshll.u32 %v6608, 16
    %v6691 = vor.u32 %v6688, %v6689
    %v6692 = vsel %vm2267, %v6684, %v6691
    %v6693 = vrot.slane %v6688, 4
    %v6695 = vshrl.u32 %v6609, 16
    %v6697 = vrot.slane %v6695, 7
    %v6698 = vshll.u32 %v6609, 16
    %v6700 = vor.u32 %v6697, %v6698
    %v6701 = vsel %vm2267, %v6693, %v6700
    %v6702 = vrot.slane %v6697, 4
    %v6704 = vshrl.u32 %v6610, 16
    %v6706 = vrot.slane %v6704, 7
    %v6707 = vshll.u32 %v6610, 16
    %v6709 = vor.u32 %v6706, %v6707
    %v6710 = vsel %vm2267, %v6702, %v6709
    %v6711 = vrot.slane %v6706, 4
    %v6713 = vshrl.u32 %v6611, 16
    %v6715 = vrot.slane %v6713, 7
    %v6716 = vshll.u32 %v6611, 16
    %v6718 = vor.u32 %v6715, %v6716
    %v6719 = vsel %vm2267, %v6711, %v6718
    %v6720 = vrot.slane %v6715, 4
    %v6722 = vshrl.u32 %v6612, 16
    %v6724 = vrot.slane %v6722, 7
    %v6725 = vshll.u32 %v6612, 16
    %v6727 = vor.u32 %v6724, %v6725
    %v6728 = vsel %vm2267, %v6720, %v6727
    %v6729 = vrot.slane %v6724, 4
    %v6731 = vshrl.u32 %v6613, 16
    %v6733 = vrot.slane %v6731, 7
    %v6734 = vshll.u32 %v6613, 16
    %v6736 = vor.u32 %v6733, %v6734
    %v6737 = vsel %vm2267, %v6729, %v6736
    %v6738 = vrot.slane %v6733, 4
    %v6754 = vld [vmem:[#allocation2 + $0x4] sm:$0xf]
    %v6755 = vsel %vm155, %v6620, %v6754
    %6756 = vst [vmem:[#allocation2 + $0x4] sm:$0xf] %v6755
    %6757 = vst [vmem:[#allocation2 + $0x8] sm:$0xf] %v6629
    %6758 = vst [vmem:[#allocation2 + $0xc] sm:$0xf] %v6638
    %6759 = vst [vmem:[#allocation2 + $0x10] sm:$0xf] %v6647
    %6760 = vst [vmem:[#allocation2 + $0x14] sm:$0xf] %v6656
    %6761 = vst [vmem:[#allocation2 + $0x18] sm:$0xf] %v6665
    %6762 = vst [vmem:[#allocation2 + $0x1c] sm:$0xf] %v6674
    %6763 = vst [vmem:[#allocation2 + $0x20] sm:$0xf] %v6683
    %6764 = vst [vmem:[#allocation2 + $0x24] sm:$0xf] %v6692
    %6765 = vst [vmem:[#allocation2 + $0x28] sm:$0xf] %v6701
    %6766 = vst [vmem:[#allocation2 + $0x2c] sm:$0xf] %v6710
    %6767 = vst [vmem:[#allocation2 + $0x30] sm:$0xf] %v6719
    %6768 = vst [vmem:[#allocation2 + $0x34] sm:$0xf] %v6728
    %6769 = vst [vmem:[#allocation2 + $0x38] sm:$0xf] %v6737
    %v6770 = vld [vmem:[#allocation2 + $0x3c] sm:$0x1]
    %v6771 = vsel %vm149, %v6738, %v6770
    %6772 = vst [vmem:[#allocation2 + $0x3c] sm:$0x1] %v6771
    %v6773 = vld [vmem:[#allocation2] sm:$0xf]
    %v6774 = vld [vmem:[#allocation2 + $0x4] sm:$0xf]
    %v6775 = vld [vmem:[#allocation2 + $0x8] sm:$0xf]
    %v6776 = vld [vmem:[#allocation2 + $0xc] sm:$0xf]
    %v6777 = vld [vmem:[#allocation2 + $0x10] sm:$0xf]
    %v6778 = vld [vmem:[#allocation2 + $0x14] sm:$0xf]
    %v6779 = vld [vmem:[#allocation2 + $0x18] sm:$0xf]
    %v6780 = vld [vmem:[#allocation2 + $0x1c] sm:$0xf]
    %v6781 = vld [vmem:[#allocation2 + $0x20] sm:$0xf]
    %v6782 = vld [vmem:[#allocation2 + $0x24] sm:$0xf]
    %v6783 = vld [vmem:[#allocation2 + $0x28] sm:$0xf]
    %v6784 = vld [vmem:[#allocation2 + $0x2c] sm:$0xf]
    %v6785 = vld [vmem:[#allocation2 + $0x30] sm:$0xf]
    %v6786 = vld [vmem:[#allocation2 + $0x34] sm:$0xf]
    %v6801 = vunpack.c.l.b16 %v6773
    %v6802 = vunpack.c.l.b16 %v6774
    %v6803 = vunpack.c.l.b16 %v6775
    %v6804 = vunpack.c.l.b16 %v6776
    %v6805 = vunpack.c.l.b16 %v6777
    %v6806 = vunpack.c.l.b16 %v6778
    %v6807 = vunpack.c.l.b16 %v6779
    %v6808 = vunpack.c.l.b16 %v6780
    %v6809 = vunpack.c.l.b16 %v6781
    %v6810 = vunpack.c.l.b16 %v6782
    %v6811 = vunpack.c.l.b16 %v6783
    %v6812 = vunpack.c.l.b16 %v6784
    %v6813 = vunpack.c.l.b16 %v6785
    %v6814 = vunpack.c.l.b16 %v6786
    %v6815 = vpack.c.b16 %v6802, %v6801
    %v6816 = vpack.c.b16 %v6804, %v6803
    %v6817 = vpack.c.b16 %v6806, %v6805
    %v6818 = vpack.c.b16 %v6808, %v6807
    %v6819 = vpack.c.b16 %v6810, %v6809
    %v6820 = vpack.c.b16 %v6812, %v6811
    %v6821 = vpack.c.b16 %v6814, %v6813
    %6829 = vst [vmem:[#allocation4] sm:$0xff] %v6815
    %6830 = vst [vmem:[#allocation4 + $0x48] sm:$0xff] %v6816
    %6831 = vst [vmem:[#allocation4 + $0x90] sm:$0xff] %v6817
    %6832 = vst [vmem:[#allocation4 + $0xd8] sm:$0xff] %v6818
    %6833 = vst [vmem:[#allocation4 + $0x120] sm:$0xff] %v6819
    %6834 = vst [vmem:[#allocation4 + $0x168] sm:$0xff] %v6820
    %6835 = vst [vmem:[#allocation4 + $0x1b0] sm:$0xff] %v6821
    %v6836 = vld [vmem:[#allocation2] sm:$0xf]
    %v6837 = vld [vmem:[#allocation2 + $0x4] sm:$0xf]
    %v6838 = vld [vmem:[#allocation2 + $0x8] sm:$0xf]
    %v6839 = vld [vmem:[#allocation2 + $0xc] sm:$0xf]
    %v6840 = vld [vmem:[#allocation2 + $0x10] sm:$0xf]
    %v6841 = vld [vmem:[#allocation2 + $0x14] sm:$0xf]
    %v6842 = vld [vmem:[#allocation2 + $0x18] sm:$0xf]
    %v6843 = vld [vmem:[#allocation2 + $0x1c] sm:$0xf]
    %v6844 = vld [vmem:[#allocation2 + $0x20] sm:$0xf]
    %v6845 = vld [vmem:[#allocation2 + $0x24] sm:$0xf]
    %v6846 = vld [vmem:[#allocation2 + $0x28] sm:$0xf]
    %v6847 = vld [vmem:[#allocation2 + $0x2c] sm:$0xf]
    %v6848 = vld [vmem:[#allocation2 + $0x30] sm:$0xf]
    %v6849 = vld [vmem:[#allocation2 + $0x34] sm:$0xf]
    %v6850 = vld [vmem:[#allocation2 + $0x38] sm:$0x1]
    %v6866 = vunpack.c.l.b16 %v6836
    %v6867 = vunpack.c.l.b16 %v6837
    %v6868 = vunpack.c.l.b16 %v6838
    %v6869 = vunpack.c.l.b16 %v6839
    %v6870 = vunpack.c.l.b16 %v6840
    %v6871 = vunpack.c.l.b16 %v6841
    %v6872 = vunpack.c.l.b16 %v6842
    %v6873 = vunpack.c.l.b16 %v6843
    %v6874 = vunpack.c.l.b16 %v6844
    %v6875 = vunpack.c.l.b16 %v6845
    %v6876 = vunpack.c.l.b16 %v6846
    %v6877 = vunpack.c.l.b16 %v6847
    %v6878 = vunpack.c.l.b16 %v6848
    %v6879 = vunpack.c.l.b16 %v6849
    %v6880 = vunpack.c.l.b16 %v6850
    %v6881 = vpack.c.b16 %v6867, %v6866
    %v6882 = vpack.c.b16 %v6869, %v6868
    %v6883 = vpack.c.b16 %v6871, %v6870
    %v6884 = vpack.c.b16 %v6873, %v6872
    %v6885 = vpack.c.b16 %v6875, %v6874
    %v6886 = vpack.c.b16 %v6877, %v6876
    %v6887 = vpack.c.b16 %v6879, %v6878
    %v6888 = vpack.c.b16 %v6880, %v6880
    %v6890 = vshrl.u32 %v6881, 16
    %v6892 = vshll.u32 %v6881, 16
    %v6894 = vrot.slane %v6892, 1
    %v6895 = vor.u32 %v6890, %v6894
    %v6897 = vshll.u32 %v6882, 16
    %v6899 = vrot.slane %v6897, 1
    %v6900 = vsel %vm298, %v6895, %v6899
    %v6901 = vshrl.u32 %v6882, 16
    %v6903 = vor.u32 %v6901, %v6899
    %v6905 = vshll.u32 %v6883, 16
    %v6907 = vrot.slane %v6905, 1
    %v6908 = vsel %vm298, %v6903, %v6907
    %v6909 = vshrl.u32 %v6883, 16
    %v6911 = vor.u32 %v6909, %v6907
    %v6913 = vshll.u32 %v6884, 16
    %v6915 = vrot.slane %v6913, 1
    %v6916 = vsel %vm298, %v6911, %v6915
    %v6917 = vshrl.u32 %v6884, 16
    %v6919 = vor.u32 %v6917, %v6915
    %v6921 = vshll.u32 %v6885, 16
    %v6923 = vrot.slane %v6921, 1
    %v6924 = vsel %vm298, %v6919, %v6923
    %v6925 = vshrl.u32 %v6885, 16
    %v6927 = vor.u32 %v6925, %v6923
    %v6929 = vshll.u32 %v6886, 16
    %v6931 = vrot.slane %v6929, 1
    %v6932 = vsel %vm298, %v6927, %v6931
    %v6933 = vshrl.u32 %v6886, 16
    %v6935 = vor.u32 %v6933, %v6931
    %v6937 = vshll.u32 %v6887, 16
    %v6939 = vrot.slane %v6937, 1
    %v6940 = vsel %vm298, %v6935, %v6939
    %v6941 = vshrl.u32 %v6887, 16
    %v6943 = vor.u32 %v6941, %v6939
    %v6945 = vshll.u32 %v6888, 16
    %v6947 = vrot.slane %v6945, 1
    %v6948 = vsel %vm298, %v6943, %v6947
    %6956 = vst [vmem:[#allocation4 + $0x8] sm:$0xff] %v6900
    %6957 = vst [vmem:[#allocation4 + $0x50] sm:$0xff] %v6908
    %6958 = vst [vmem:[#allocation4 + $0x98] sm:$0xff] %v6916
    %6959 = vst [vmem:[#allocation4 + $0xe0] sm:$0xff] %v6924
    %6960 = vst [vmem:[#allocation4 + $0x128] sm:$0xff] %v6932
    %6961 = vst [vmem:[#allocation4 + $0x170] sm:$0xff] %v6940
    %6962 = vst [vmem:[#allocation4 + $0x1b8] sm:$0xff] %v6948
    %v6963 = vld [vmem:[#allocation2] sm:$0xe]
    %v6964 = vld [vmem:[#allocation2 + $0x4] sm:$0xf]
    %v6965 = vld [vmem:[#allocation2 + $0x8] sm:$0xf]
    %v6966 = vld [vmem:[#allocation2 + $0xc] sm:$0xf]
    %v6967 = vld [vmem:[#allocation2 + $0x10] sm:$0xf]
    %v6968 = vld [vmem:[#allocation2 + $0x14] sm:$0xf]
    %v6969 = vld [vmem:[#allocation2 + $0x18] sm:$0xf]
    %v6970 = vld [vmem:[#allocation2 + $0x1c] sm:$0xf]
    %v6971 = vld [vmem:[#allocation2 + $0x20] sm:$0xf]
    %v6972 = vld [vmem:[#allocation2 + $0x24] sm:$0xf]
    %v6973 = vld [vmem:[#allocation2 + $0x28] sm:$0xf]
    %v6974 = vld [vmem:[#allocation2 + $0x2c] sm:$0xf]
    %v6975 = vld [vmem:[#allocation2 + $0x30] sm:$0xf]
    %v6976 = vld [vmem:[#allocation2 + $0x34] sm:$0xf]
    %v6977 = vld [vmem:[#allocation2 + $0x38] sm:$0x1]
    %v6993 = vunpack.c.l.b16 %v6963
    %v6994 = vunpack.c.l.b16 %v6964
    %v6995 = vunpack.c.l.b16 %v6965
    %v6996 = vunpack.c.l.b16 %v6966
    %v6997 = vunpack.c.l.b16 %v6967
    %v6998 = vunpack.c.l.b16 %v6968
    %v6999 = vunpack.c.l.b16 %v6969
    %v7000 = vunpack.c.l.b16 %v6970
    %v7001 = vunpack.c.l.b16 %v6971
    %v7002 = vunpack.c.l.b16 %v6972
    %v7003 = vunpack.c.l.b16 %v6973
    %v7004 = vunpack.c.l.b16 %v6974
    %v7005 = vunpack.c.l.b16 %v6975
    %v7006 = vunpack.c.l.b16 %v6976
    %v7007 = vunpack.c.l.b16 %v6977
    %v7008 = vpack.c.b16 %v6994, %v6993
    %v7009 = vpack.c.b16 %v6996, %v6995
    %v7010 = vpack.c.b16 %v6998, %v6997
    %v7011 = vpack.c.b16 %v7000, %v6999
    %v7012 = vpack.c.b16 %v7002, %v7001
    %v7013 = vpack.c.b16 %v7004, %v7003
    %v7014 = vpack.c.b16 %v7006, %v7005
    %v7015 = vpack.c.b16 %v7007, %v7007
    %v7016 = vrot.slane %v7008, 1
    %v7017 = vrot.slane %v7009, 1
    %v7018 = vsel %vm426, %v7016, %v7017
    %v7019 = vrot.slane %v7010, 1
    %v7020 = vsel %vm426, %v7017, %v7019
    %v7021 = vrot.slane %v7011, 1
    %v7022 = vsel %vm426, %v7019, %v7021
    %v7023 = vrot.slane %v7012, 1
    %v7024 = vsel %vm426, %v7021, %v7023
    %v7025 = vrot.slane %v7013, 1
    %v7026 = vsel %vm426, %v7023, %v7025
    %v7027 = vrot.slane %v7014, 1
    %v7028 = vsel %vm426, %v7025, %v7027
    %v7029 = vrot.slane %v7015, 1
    %v7030 = vsel %vm426, %v7027, %v7029
    %7038 = vst [vmem:[#allocation4 + $0x10] sm:$0xff] %v7018
    %7039 = vst [vmem:[#allocation4 + $0x58] sm:$0xff] %v7020
    %7040 = vst [vmem:[#allocation4 + $0xa0] sm:$0xff] %v7022
    %7041 = vst [vmem:[#allocation4 + $0xe8] sm:$0xff] %v7024
    %7042 = vst [vmem:[#allocation4 + $0x130] sm:$0xff] %v7026
    %7043 = vst [vmem:[#allocation4 + $0x178] sm:$0xff] %v7028
    %7044 = vst [vmem:[#allocation4 + $0x1c0] sm:$0xff] %v7030
    %v7045 = vld [vmem:[#allocation2 + $0x4] sm:$0xf]
    %v7046 = vld [vmem:[#allocation2 + $0x8] sm:$0xf]
    %v7047 = vld [vmem:[#allocation2 + $0xc] sm:$0xf]
    %v7048 = vld [vmem:[#allocation2 + $0x10] sm:$0xf]
    %v7049 = vld [vmem:[#allocation2 + $0x14] sm:$0xf]
    %v7050 = vld [vmem:[#allocation2 + $0x18] sm:$0xf]
    %v7051 = vld [vmem:[#allocation2 + $0x1c] sm:$0xf]
    %v7052 = vld [vmem:[#allocation2 + $0x20] sm:$0xf]
    %v7053 = vld [vmem:[#allocation2 + $0x24] sm:$0xf]
    %v7054 = vld [vmem:[#allocation2 + $0x28] sm:$0xf]
    %v7055 = vld [vmem:[#allocation2 + $0x2c] sm:$0xf]
    %v7056 = vld [vmem:[#allocation2 + $0x30] sm:$0xf]
    %v7057 = vld [vmem:[#allocation2 + $0x34] sm:$0xf]
    %v7058 = vld [vmem:[#allocation2 + $0x38] sm:$0xf]
    %v7073 = vunpack.c.l.b16 %v7045
    %v7074 = vunpack.c.l.b16 %v7046
    %v7075 = vunpack.c.l.b16 %v7047
    %v7076 = vunpack.c.l.b16 %v7048
    %v7077 = vunpack.c.l.b16 %v7049
    %v7078 = vunpack.c.l.b16 %v7050
    %v7079 = vunpack.c.l.b16 %v7051
    %v7080 = vunpack.c.l.b16 %v7052
    %v7081 = vunpack.c.l.b16 %v7053
    %v7082 = vunpack.c.l.b16 %v7054
    %v7083 = vunpack.c.l.b16 %v7055
    %v7084 = vunpack.c.l.b16 %v7056
    %v7085 = vunpack.c.l.b16 %v7057
    %v7086 = vunpack.c.l.b16 %v7058
    %v7087 = vpack.c.b16 %v7074, %v7073
    %v7088 = vpack.c.b16 %v7076, %v7075
    %v7089 = vpack.c.b16 %v7078, %v7077
    %v7090 = vpack.c.b16 %v7080, %v7079
    %v7091 = vpack.c.b16 %v7082, %v7081
    %v7092 = vpack.c.b16 %v7084, %v7083
    %v7093 = vpack.c.b16 %v7086, %v7085
    %7101 = vst [vmem:[#allocation4 + $0x18] sm:$0xff] %v7087
    %7102 = vst [vmem:[#allocation4 + $0x60] sm:$0xff] %v7088
    %7103 = vst [vmem:[#allocation4 + $0xa8] sm:$0xff] %v7089
    %7104 = vst [vmem:[#allocation4 + $0xf0] sm:$0xff] %v7090
    %7105 = vst [vmem:[#allocation4 + $0x138] sm:$0xff] %v7091
    %7106 = vst [vmem:[#allocation4 + $0x180] sm:$0xff] %v7092
    %7107 = vst [vmem:[#allocation4 + $0x1c8] sm:$0xff] %v7093
    %v7108 = vld [vmem:[#allocation2 + $0x4] sm:$0xf]
    %v7109 = vld [vmem:[#allocation2 + $0x8] sm:$0xf]
    %v7110 = vld [vmem:[#allocation2 + $0xc] sm:$0xf]
    %v7111 = vld [vmem:[#allocation2 + $0x10] sm:$0xf]
    %v7112 = vld [vmem:[#allocation2 + $0x14] sm:$0xf]
    %v7113 = vld [vmem:[#allocation2 + $0x18] sm:$0xf]
    %v7114 = vld [vmem:[#allocation2 + $0x1c] sm:$0xf]
    %v7115 = vld [vmem:[#allocation2 + $0x20] sm:$0xf]
    %v7116 = vld [vmem:[#allocation2 + $0x24] sm:$0xf]
    %v7117 = vld [vmem:[#allocation2 + $0x28] sm:$0xf]
    %v7118 = vld [vmem:[#allocation2 + $0x2c] sm:$0xf]
    %v7119 = vld [vmem:[#allocation2 + $0x30] sm:$0xf]
    %v7120 = vld [vmem:[#allocation2 + $0x34] sm:$0xf]
    %v7121 = vld [vmem:[#allocation2 + $0x38] sm:$0xf]
    %v7122 = vld [vmem:[#allocation2 + $0x3c] sm:$0x1]
    %v7138 = vunpack.c.l.b16 %v7108
    %v7139 = vunpack.c.l.b16 %v7109
    %v7140 = vunpack.c.l.b16 %v7110
    %v7141 = vunpack.c.l.b16 %v7111
    %v7142 = vunpack.c.l.b16 %v7112
    %v7143 = vunpack.c.l.b16 %v7113
    %v7144 = vunpack.c.l.b16 %v7114
    %v7145 = vunpack.c.l.b16 %v7115
    %v7146 = vunpack.c.l.b16 %v7116
    %v7147 = vunpack.c.l.b16 %v7117
    %v7148 = vunpack.c.l.b16 %v7118
    %v7149 = vunpack.c.l.b16 %v7119
    %v7150 = vunpack.c.l.b16 %v7120
    %v7151 = vunpack.c.l.b16 %v7121
    %v7152 = vunpack.c.l.b16 %v7122
    %v7153 = vpack.c.b16 %v7139, %v7138
    %v7154 = vpack.c.b16 %v7141, %v7140
    %v7155 = vpack.c.b16 %v7143, %v7142
    %v7156 = vpack.c.b16 %v7145, %v7144
    %v7157 = vpack.c.b16 %v7147, %v7146
    %v7158 = vpack.c.b16 %v7149, %v7148
    %v7159 = vpack.c.b16 %v7151, %v7150
    %v7160 = vpack.c.b16 %v7152, %v7152
    %v7162 = vshrl.u32 %v7153, 16
    %v7164 = vshll.u32 %v7153, 16
    %v7166 = vrot.slane %v7164, 1
    %v7167 = vor.u32 %v7162, %v7166
    %v7169 = vshll.u32 %v7154, 16
    %v7171 = vrot.slane %v7169, 1
    %v7172 = vsel %vm298, %v7167, %v7171
    %v7173 = vshrl.u32 %v7154, 16
    %v7175 = vor.u32 %v7173, %v7171
    %v7177 = vshll.u32 %v7155, 16
    %v7179 = vrot.slane %v7177, 1
    %v7180 = vsel %vm298, %v7175, %v7179
    %v7181 = vshrl.u32 %v7155, 16
    %v7183 = vor.u32 %v7181, %v7179
    %v7185 = vshll.u32 %v7156, 16
    %v7187 = vrot.slane %v7185, 1
    %v7188 = vsel %vm298, %v7183, %v7187
    %v7189 = vshrl.u32 %v7156, 16
    %v7191 = vor.u32 %v7189, %v7187
    %v7193 = vshll.u32 %v7157, 16
    %v7195 = vrot.slane %v7193, 1
    %v7196 = vsel %vm298, %v7191, %v7195
    %v7197 = vshrl.u32 %v7157, 16
    %v7199 = vor.u32 %v7197, %v7195
    %v7201 = vshll.u32 %v7158, 16
    %v7203 = vrot.slane %v7201, 1
    %v7204 = vsel %vm298, %v7199, %v7203
    %v7205 = vshrl.u32 %v7158, 16
    %v7207 = vor.u32 %v7205, %v7203
    %v7209 = vshll.u32 %v7159, 16
    %v7211 = vrot.slane %v7209, 1
    %v7212 = vsel %vm298, %v7207, %v7211
    %v7213 = vshrl.u32 %v7159, 16
    %v7215 = vor.u32 %v7213, %v7211
    %v7217 = vshll.u32 %v7160, 16
    %v7219 = vrot.slane %v7217, 1
    %v7220 = vsel %vm298, %v7215, %v7219
    %7228 = vst [vmem:[#allocation4 + $0x20] sm:$0xff] %v7172
    %7229 = vst [vmem:[#allocation4 + $0x68] sm:$0xff] %v7180
    %7230 = vst [vmem:[#allocation4 + $0xb0] sm:$0xff] %v7188
    %7231 = vst [vmem:[#allocation4 + $0xf8] sm:$0xff] %v7196
    %7232 = vst [vmem:[#allocation4 + $0x140] sm:$0xff] %v7204
    %7233 = vst [vmem:[#allocation4 + $0x188] sm:$0xff] %v7212
    %7234 = vst [vmem:[#allocation4 + $0x1d0] sm:$0xff] %v7220
    %v7235 = vld [vmem:[#allocation2 + $0x4] sm:$0xe]
    %v7236 = vld [vmem:[#allocation2 + $0x8] sm:$0xf]
    %v7237 = vld [vmem:[#allocation2 + $0xc] sm:$0xf]
    %v7238 = vld [vmem:[#allocation2 + $0x10] sm:$0xf]
    %v7239 = vld [vmem:[#allocation2 + $0x14] sm:$0xf]
    %v7240 = vld [vmem:[#allocation2 + $0x18] sm:$0xf]
    %v7241 = vld [vmem:[#allocation2 + $0x1c] sm:$0xf]
    %v7242 = vld [vmem:[#allocation2 + $0x20] sm:$0xf]
    %v7243 = vld [vmem:[#allocation2 + $0x24] sm:$0xf]
    %v7244 = vld [vmem:[#allocation2 + $0x28] sm:$0xf]
    %v7245 = vld [vmem:[#allocation2 + $0x2c] sm:$0xf]
    %v7246 = vld [vmem:[#allocation2 + $0x30] sm:$0xf]
    %v7247 = vld [vmem:[#allocation2 + $0x34] sm:$0xf]
    %v7248 = vld [vmem:[#allocation2 + $0x38] sm:$0xf]
    %v7249 = vld [vmem:[#allocation2 + $0x3c] sm:$0x1]
    %v7265 = vunpack.c.l.b16 %v7235
    %v7266 = vunpack.c.l.b16 %v7236
    %v7267 = vunpack.c.l.b16 %v7237
    %v7268 = vunpack.c.l.b16 %v7238
    %v7269 = vunpack.c.l.b16 %v7239
    %v7270 = vunpack.c.l.b16 %v7240
    %v7271 = vunpack.c.l.b16 %v7241
    %v7272 = vunpack.c.l.b16 %v7242
    %v7273 = vunpack.c.l.b16 %v7243
    %v7274 = vunpack.c.l.b16 %v7244
    %v7275 = vunpack.c.l.b16 %v7245
    %v7276 = vunpack.c.l.b16 %v7246
    %v7277 = vunpack.c.l.b16 %v7247
    %v7278 = vunpack.c.l.b16 %v7248
    %v7279 = vunpack.c.l.b16 %v7249
    %v7280 = vpack.c.b16 %v7266, %v7265
    %v7281 = vpack.c.b16 %v7268, %v7267
    %v7282 = vpack.c.b16 %v7270, %v7269
    %v7283 = vpack.c.b16 %v7272, %v7271
    %v7284 = vpack.c.b16 %v7274, %v7273
    %v7285 = vpack.c.b16 %v7276, %v7275
    %v7286 = vpack.c.b16 %v7278, %v7277
    %v7287 = vpack.c.b16 %v7279, %v7279
    %v7288 = vrot.slane %v7280, 1
    %v7289 = vrot.slane %v7281, 1
    %v7290 = vsel %vm426, %v7288, %v7289
    %v7291 = vrot.slane %v7282, 1
    %v7292 = vsel %vm426, %v7289, %v7291
    %v7293 = vrot.slane %v7283, 1
    %v7294 = vsel %vm426, %v7291, %v7293
    %v7295 = vrot.slane %v7284, 1
    %v7296 = vsel %vm426, %v7293, %v7295
    %v7297 = vrot.slane %v7285, 1
    %v7298 = vsel %vm426, %v7295, %v7297
    %v7299 = vrot.slane %v7286, 1
    %v7300 = vsel %vm426, %v7297, %v7299
    %v7301 = vrot.slane %v7287, 1
    %v7302 = vsel %vm426, %v7299, %v7301
    %7310 = vst [vmem:[#allocation4 + $0x28] sm:$0xff] %v7290
    %7311 = vst [vmem:[#allocation4 + $0x70] sm:$0xff] %v7292
    %7312 = vst [vmem:[#allocation4 + $0xb8] sm:$0xff] %v7294
    %7313 = vst [vmem:[#allocation4 + $0x100] sm:$0xff] %v7296
    %7314 = vst [vmem:[#allocation4 + $0x148] sm:$0xff] %v7298
    %7315 = vst [vmem:[#allocation4 + $0x190] sm:$0xff] %v7300
    %7316 = vst [vmem:[#allocation4 + $0x1d8] sm:$0xff] %v7302
    %v7317 = vld [vmem:[#allocation2 + $0x8] sm:$0xf]
    %v7318 = vld [vmem:[#allocation2 + $0xc] sm:$0xf]
    %v7319 = vld [vmem:[#allocation2 + $0x10] sm:$0xf]
    %v7320 = vld [vmem:[#allocation2 + $0x14] sm:$0xf]
    %v7321 = vld [vmem:[#allocation2 + $0x18] sm:$0xf]
    %v7322 = vld [vmem:[#allocation2 + $0x1c] sm:$0xf]
    %v7323 = vld [vmem:[#allocation2 + $0x20] sm:$0xf]
    %v7324 = vld [vmem:[#allocation2 + $0x24] sm:$0xf]
    %v7325 = vld [vmem:[#allocation2 + $0x28] sm:$0xf]
    %v7326 = vld [vmem:[#allocation2 + $0x2c] sm:$0xf]
    %v7327 = vld [vmem:[#allocation2 + $0x30] sm:$0xf]
    %v7328 = vld [vmem:[#allocation2 + $0x34] sm:$0xf]
    %v7329 = vld [vmem:[#allocation2 + $0x38] sm:$0xf]
    %v7330 = vld [vmem:[#allocation2 + $0x3c] sm:$0xf]
    %v7345 = vunpack.c.l.b16 %v7317
    %v7346 = vunpack.c.l.b16 %v7318
    %v7347 = vunpack.c.l.b16 %v7319
    %v7348 = vunpack.c.l.b16 %v7320
    %v7349 = vunpack.c.l.b16 %v7321
    %v7350 = vunpack.c.l.b16 %v7322
    %v7351 = vunpack.c.l.b16 %v7323
    %v7352 = vunpack.c.l.b16 %v7324
    %v7353 = vunpack.c.l.b16 %v7325
    %v7354 = vunpack.c.l.b16 %v7326
    %v7355 = vunpack.c.l.b16 %v7327
    %v7356 = vunpack.c.l.b16 %v7328
    %v7357 = vunpack.c.l.b16 %v7329
    %v7358 = vunpack.c.l.b16 %v7330
    %v7359 = vpack.c.b16 %v7346, %v7345
    %v7360 = vpack.c.b16 %v7348, %v7347
    %v7361 = vpack.c.b16 %v7350, %v7349
    %v7362 = vpack.c.b16 %v7352, %v7351
    %v7363 = vpack.c.b16 %v7354, %v7353
    %v7364 = vpack.c.b16 %v7356, %v7355
    %v7365 = vpack.c.b16 %v7358, %v7357
    %7373 = vst [vmem:[#allocation4 + $0x30] sm:$0xff] %v7359
    %7374 = vst [vmem:[#allocation4 + $0x78] sm:$0xff] %v7360
    %7375 = vst [vmem:[#allocation4 + $0xc0] sm:$0xff] %v7361
    %7376 = vst [vmem:[#allocation4 + $0x108] sm:$0xff] %v7362
    %7377 = vst [vmem:[#allocation4 + $0x150] sm:$0xff] %v7363
    %7378 = vst [vmem:[#allocation4 + $0x198] sm:$0xff] %v7364
    %7379 = vst [vmem:[#allocation4 + $0x1e0] sm:$0xff] %v7365
    %v7380 = vld [vmem:[#allocation2 + $0x8] sm:$0xf]
    %v7381 = vld [vmem:[#allocation2 + $0xc] sm:$0xf]
    %v7382 = vld [vmem:[#allocation2 + $0x10] sm:$0xf]
    %v7383 = vld [vmem:[#allocation2 + $0x14] sm:$0xf]
    %v7384 = vld [vmem:[#allocation2 + $0x18] sm:$0xf]
    %v7385 = vld [vmem:[#allocation2 + $0x1c] sm:$0xf]
    %v7386 = vld [vmem:[#allocation2 + $0x20] sm:$0xf]
    %v7387 = vld [vmem:[#allocation2 + $0x24] sm:$0xf]
    %v7388 = vld [vmem:[#allocation2 + $0x28] sm:$0xf]
    %v7389 = vld [vmem:[#allocation2 + $0x2c] sm:$0xf]
    %v7390 = vld [vmem:[#allocation2 + $0x30] sm:$0xf]
    %v7391 = vld [vmem:[#allocation2 + $0x34] sm:$0xf]
    %v7392 = vld [vmem:[#allocation2 + $0x38] sm:$0xf]
    %v7393 = vld [vmem:[#allocation2 + $0x3c] sm:$0xf]
    %v7394 = vld [vmem:[#allocation2 + $0x40] sm:$0x1]
    %v7410 = vunpack.c.l.b16 %v7380
    %v7411 = vunpack.c.l.b16 %v7381
    %v7412 = vunpack.c.l.b16 %v7382
    %v7413 = vunpack.c.l.b16 %v7383
    %v7414 = vunpack.c.l.b16 %v7384
    %v7415 = vunpack.c.l.b16 %v7385
    %v7416 = vunpack.c.l.b16 %v7386
    %v7417 = vunpack.c.l.b16 %v7387
    %v7418 = vunpack.c.l.b16 %v7388
    %v7419 = vunpack.c.l.b16 %v7389
    %v7420 = vunpack.c.l.b16 %v7390
    %v7421 = vunpack.c.l.b16 %v7391
    %v7422 = vunpack.c.l.b16 %v7392
    %v7423 = vunpack.c.l.b16 %v7393
    %v7424 = vunpack.c.l.b16 %v7394
    %v7425 = vpack.c.b16 %v7411, %v7410
    %v7426 = vpack.c.b16 %v7413, %v7412
    %v7427 = vpack.c.b16 %v7415, %v7414
    %v7428 = vpack.c.b16 %v7417, %v7416
    %v7429 = vpack.c.b16 %v7419, %v7418
    %v7430 = vpack.c.b16 %v7421, %v7420
    %v7431 = vpack.c.b16 %v7423, %v7422
    %v7432 = vpack.c.b16 %v7424, %v7424
    %v7434 = vshrl.u32 %v7425, 16
    %v7436 = vshll.u32 %v7425, 16
    %v7438 = vrot.slane %v7436, 1
    %v7439 = vor.u32 %v7434, %v7438
    %v7441 = vshll.u32 %v7426, 16
    %v7443 = vrot.slane %v7441, 1
    %v7444 = vsel %vm298, %v7439, %v7443
    %v7445 = vshrl.u32 %v7426, 16
    %v7447 = vor.u32 %v7445, %v7443
    %v7449 = vshll.u32 %v7427, 16
    %v7451 = vrot.slane %v7449, 1
    %v7452 = vsel %vm298, %v7447, %v7451
    %v7453 = vshrl.u32 %v7427, 16
    %v7455 = vor.u32 %v7453, %v7451
    %v7457 = vshll.u32 %v7428, 16
    %v7459 = vrot.slane %v7457, 1
    %v7460 = vsel %vm298, %v7455, %v7459
    %v7461 = vshrl.u32 %v7428, 16
    %v7463 = vor.u32 %v7461, %v7459
    %v7465 = vshll.u32 %v7429, 16
    %v7467 = vrot.slane %v7465, 1
    %v7468 = vsel %vm298, %v7463, %v7467
    %v7469 = vshrl.u32 %v7429, 16
    %v7471 = vor.u32 %v7469, %v7467
    %v7473 = vshll.u32 %v7430, 16
    %v7475 = vrot.slane %v7473, 1
    %v7476 = vsel %vm298, %v7471, %v7475
    %v7477 = vshrl.u32 %v7430, 16
    %v7479 = vor.u32 %v7477, %v7475
    %v7481 = vshll.u32 %v7431, 16
    %v7483 = vrot.slane %v7481, 1
    %v7484 = vsel %vm298, %v7479, %v7483
    %v7485 = vshrl.u32 %v7431, 16
    %v7487 = vor.u32 %v7485, %v7483
    %v7489 = vshll.u32 %v7432, 16
    %v7491 = vrot.slane %v7489, 1
    %v7492 = vsel %vm298, %v7487, %v7491
    %7500 = vst [vmem:[#allocation4 + $0x38] sm:$0xff] %v7444
    %7501 = vst [vmem:[#allocation4 + $0x80] sm:$0xff] %v7452
    %7502 = vst [vmem:[#allocation4 + $0xc8] sm:$0xff] %v7460
    %7503 = vst [vmem:[#allocation4 + $0x110] sm:$0xff] %v7468
    %7504 = vst [vmem:[#allocation4 + $0x158] sm:$0xff] %v7476
    %7505 = vst [vmem:[#allocation4 + $0x1a0] sm:$0xff] %v7484
    %7506 = vst [vmem:[#allocation4 + $0x1e8] sm:$0xff] %v7492
    %v7507 = vld [vmem:[#allocation2 + $0x8] sm:$0xe]
    %v7508 = vld [vmem:[#allocation2 + $0xc] sm:$0xf]
    %v7509 = vld [vmem:[#allocation2 + $0x10] sm:$0xf]
    %v7510 = vld [vmem:[#allocation2 + $0x14] sm:$0xf]
    %v7511 = vld [vmem:[#allocation2 + $0x18] sm:$0xf]
    %v7512 = vld [vmem:[#allocation2 + $0x1c] sm:$0xf]
    %v7513 = vld [vmem:[#allocation2 + $0x20] sm:$0xf]
    %v7514 = vld [vmem:[#allocation2 + $0x24] sm:$0xf]
    %v7515 = vld [vmem:[#allocation2 + $0x28] sm:$0xf]
    %v7516 = vld [vmem:[#allocation2 + $0x2c] sm:$0xf]
    %v7517 = vld [vmem:[#allocation2 + $0x30] sm:$0xf]
    %v7518 = vld [vmem:[#allocation2 + $0x34] sm:$0xf]
    %v7519 = vld [vmem:[#allocation2 + $0x38] sm:$0xf]
    %v7520 = vld [vmem:[#allocation2 + $0x3c] sm:$0xf]
    %v7521 = vld [vmem:[#allocation2 + $0x40] sm:$0x1]
    %v7537 = vunpack.c.l.b16 %v7507
    %v7538 = vunpack.c.l.b16 %v7508
    %v7539 = vunpack.c.l.b16 %v7509
    %v7540 = vunpack.c.l.b16 %v7510
    %v7541 = vunpack.c.l.b16 %v7511
    %v7542 = vunpack.c.l.b16 %v7512
    %v7543 = vunpack.c.l.b16 %v7513
    %v7544 = vunpack.c.l.b16 %v7514
    %v7545 = vunpack.c.l.b16 %v7515
    %v7546 = vunpack.c.l.b16 %v7516
    %v7547 = vunpack.c.l.b16 %v7517
    %v7548 = vunpack.c.l.b16 %v7518
    %v7549 = vunpack.c.l.b16 %v7519
    %v7550 = vunpack.c.l.b16 %v7520
    %v7551 = vunpack.c.l.b16 %v7521
    %v7552 = vpack.c.b16 %v7538, %v7537
    %v7553 = vpack.c.b16 %v7540, %v7539
    %v7554 = vpack.c.b16 %v7542, %v7541
    %v7555 = vpack.c.b16 %v7544, %v7543
    %v7556 = vpack.c.b16 %v7546, %v7545
    %v7557 = vpack.c.b16 %v7548, %v7547
    %v7558 = vpack.c.b16 %v7550, %v7549
    %v7559 = vpack.c.b16 %v7551, %v7551
    %v7560 = vrot.slane %v7552, 1
    %v7561 = vrot.slane %v7553, 1
    %v7562 = vsel %vm426, %v7560, %v7561
    %v7563 = vrot.slane %v7554, 1
    %v7564 = vsel %vm426, %v7561, %v7563
    %v7565 = vrot.slane %v7555, 1
    %v7566 = vsel %vm426, %v7563, %v7565
    %v7567 = vrot.slane %v7556, 1
    %v7568 = vsel %vm426, %v7565, %v7567
    %v7569 = vrot.slane %v7557, 1
    %v7570 = vsel %vm426, %v7567, %v7569
    %v7571 = vrot.slane %v7558, 1
    %v7572 = vsel %vm426, %v7569, %v7571
    %v7573 = vrot.slane %v7559, 1
    %v7574 = vsel %vm426, %v7571, %v7573
    %7582 = vst [vmem:[#allocation4 + $0x40] sm:$0xff] %v7562
    %7583 = vst [vmem:[#allocation4 + $0x88] sm:$0xff] %v7564
    %7584 = vst [vmem:[#allocation4 + $0xd0] sm:$0xff] %v7566
    %7585 = vst [vmem:[#allocation4 + $0x118] sm:$0xff] %v7568
    %7586 = vst [vmem:[#allocation4 + $0x160] sm:$0xff] %v7570
    %7587 = vst [vmem:[#allocation4 + $0x1a8] sm:$0xff] %v7572
    %7588 = vst [vmem:[#allocation4 + $0x1f0] sm:$0xff] %v7574
    %v7589 = vld [vmem:[#allocation4] sm:$0xff]
    %v7590 = vld [vmem:[#allocation4 + $0x8] sm:$0xff]
    %v7591 = vld [vmem:[#allocation4 + $0x10] sm:$0xff]
    %v7592 = vld [vmem:[#allocation4 + $0x18] sm:$0xff]
    %v7593 = vld [vmem:[#allocation4 + $0x20] sm:$0xff]
    %v7594 = vld [vmem:[#allocation4 + $0x28] sm:$0xff]
    %v7595 = vld [vmem:[#allocation4 + $0x30] sm:$0xff]
    %v7596 = vld [vmem:[#allocation4 + $0x38] sm:$0xff]
    %v7597 = vld [vmem:[#allocation4 + $0x40] sm:$0xff]
    %v7598 = vld [vmem:[#allocation4 + $0x48] sm:$0xff]
    %v7599 = vld [vmem:[#allocation4 + $0x50] sm:$0xff]
    %v7600 = vld [vmem:[#allocation4 + $0x58] sm:$0xff]
    %v7601 = vld [vmem:[#allocation4 + $0x60] sm:$0xff]
    %v7602 = vld [vmem:[#allocation4 + $0x68] sm:$0xff]
    %v7603 = vld [vmem:[#allocation4 + $0x70] sm:$0xff]
    %v7604 = vld [vmem:[#allocation4 + $0x78] sm:$0xff]
    %v7605 = vld [vmem:[#allocation4 + $0x80] sm:$0xff]
    %v7606 = vld [vmem:[#allocation4 + $0x88] sm:$0xff]
    %v7607 = vld [vmem:[#allocation4 + $0x90] sm:$0xff]
    %v7608 = vld [vmem:[#allocation4 + $0x98] sm:$0xff]
    %v7609 = vld [vmem:[#allocation4 + $0xa0] sm:$0xff]
    %v7610 = vld [vmem:[#allocation4 + $0xa8] sm:$0xff]
    %v7611 = vld [vmem:[#allocation4 + $0xb0] sm:$0xff]
    %v7612 = vld [vmem:[#allocation4 + $0xb8] sm:$0xff]
    %v7613 = vld [vmem:[#allocation4 + $0xc0] sm:$0xff]
    %v7614 = vld [vmem:[#allocation4 + $0xc8] sm:$0xff]
    %v7615 = vld [vmem:[#allocation4 + $0xd0] sm:$0xff]
    %v7616 = vld [vmem:[#allocation4 + $0xd8] sm:$0xff]
    %v7617 = vld [vmem:[#allocation4 + $0xe0] sm:$0xff]
    %v7618 = vld [vmem:[#allocation4 + $0xe8] sm:$0xff]
    %v7619 = vld [vmem:[#allocation4 + $0xf0] sm:$0xff]
    %v7620 = vld [vmem:[#allocation4 + $0xf8] sm:$0xff]
    %v7621 = vld [vmem:[#allocation4 + $0x100] sm:$0xff]
    %v7622 = vld [vmem:[#allocation4 + $0x108] sm:$0xff]
    %v7623 = vld [vmem:[#allocation4 + $0x110] sm:$0xff]
    %v7624 = vld [vmem:[#allocation4 + $0x118] sm:$0xff]
    %v7625 = vld [vmem:[#allocation4 + $0x120] sm:$0xff]
    %v7626 = vld [vmem:[#allocation4 + $0x128] sm:$0xff]
    %v7627 = vld [vmem:[#allocation4 + $0x130] sm:$0xff]
    %v7628 = vld [vmem:[#allocation4 + $0x138] sm:$0xff]
    %v7629 = vld [vmem:[#allocation4 + $0x140] sm:$0xff]
    %v7630 = vld [vmem:[#allocation4 + $0x148] sm:$0xff]
    %v7631 = vld [vmem:[#allocation4 + $0x150] sm:$0xff]
    %v7632 = vld [vmem:[#allocation4 + $0x158] sm:$0xff]
    %v7633 = vld [vmem:[#allocation4 + $0x160] sm:$0xff]
    %v7634 = vld [vmem:[#allocation4 + $0x168] sm:$0xff]
    %v7635 = vld [vmem:[#allocation4 + $0x170] sm:$0xff]
    %v7636 = vld [vmem:[#allocation4 + $0x178] sm:$0xff]
    %v7637 = vld [vmem:[#allocation4 + $0x180] sm:$0xff]
    %v7638 = vld [vmem:[#allocation4 + $0x188] sm:$0xff]
    %v7639 = vld [vmem:[#allocation4 + $0x190] sm:$0xff]
    %v7640 = vld [vmem:[#allocation4 + $0x198] sm:$0xff]
    %v7641 = vld [vmem:[#allocation4 + $0x1a0] sm:$0xff]
    %v7642 = vld [vmem:[#allocation4 + $0x1a8] sm:$0xff]
    %v7643 = vld [vmem:[#allocation4 + $0x1b0] sm:$0xff]
    %v7644 = vld [vmem:[#allocation4 + $0x1b8] sm:$0xff]
    %v7645 = vld [vmem:[#allocation4 + $0x1c0] sm:$0xff]
    %v7646 = vld [vmem:[#allocation4 + $0x1c8] sm:$0xff]
    %v7647 = vld [vmem:[#allocation4 + $0x1d0] sm:$0xff]
    %v7648 = vld [vmem:[#allocation4 + $0x1d8] sm:$0xff]
    %v7649 = vld [vmem:[#allocation4 + $0x1e0] sm:$0xff]
    %v7650 = vld [vmem:[#allocation4 + $0x1e8] sm:$0xff]
    %v7651 = vld [vmem:[#allocation4 + $0x1f0] sm:$0xff]
    %v7652 = vld [vmem:[#allocation9] sm:$0xf]
    %v7653 = vld [vmem:[#allocation9 + $0x4] sm:$0xf]
    %v7654 = vld [vmem:[#allocation9 + $0x8] sm:$0xf]
    %v7655 = vld [vmem:[#allocation9 + $0xc] sm:$0xf]
    %v7656 = vld [vmem:[#allocation9 + $0x10] sm:$0xf]
    %v7657 = vld [vmem:[#allocation9 + $0x14] sm:$0xf]
    %v7658 = vld [vmem:[#allocation9 + $0x18] sm:$0xf]
    %v7659 = vld [vmem:[#allocation9 + $0x1c] sm:$0xf]
    %v7660 = vld [vmem:[#allocation9 + $0x20] sm:$0xf]
    %v7661 = vld [vmem:[#allocation9 + $0x24] sm:$0xf]
    %v7662 = vld [vmem:[#allocation9 + $0x28] sm:$0xf]
    %v7663 = vld [vmem:[#allocation9 + $0x2c] sm:$0xf]
    %v7664 = vld [vmem:[#allocation9 + $0x30] sm:$0xf]
    %v7665 = vld [vmem:[#allocation9 + $0x34] sm:$0xf]
    %v7666 = vld [vmem:[#allocation9 + $0x38] sm:$0xf]
    %v7667 = vld [vmem:[#allocation9 + $0x3c] sm:$0xf]
    %v7668 = vld [vmem:[#allocation9 + $0x40] sm:$0xf]
    %v7669 = vld [vmem:[#allocation9 + $0x44] sm:$0xf]
    %v7670 = vld [vmem:[#allocation9 + $0x48] sm:$0xf]
    %v7671 = vld [vmem:[#allocation9 + $0x4c] sm:$0xf]
    %v7672 = vld [vmem:[#allocation9 + $0x50] sm:$0xf]
    %v7673 = vld [vmem:[#allocation9 + $0x54] sm:$0xf]
    %v7674 = vld [vmem:[#allocation9 + $0x58] sm:$0xf]
    %v7675 = vld [vmem:[#allocation9 + $0x5c] sm:$0xf]
    %v7676 = vld [vmem:[#allocation9 + $0x60] sm:$0xf]
    %v7677 = vld [vmem:[#allocation9 + $0x64] sm:$0xf]
    %v7678 = vld [vmem:[#allocation9 + $0x68] sm:$0xf]
    %v7679 = vld [vmem:[#allocation9 + $0x6c] sm:$0xf]
    %v7680 = vld [vmem:[#allocation9 + $0x70] sm:$0xf]
    %v7681 = vld [vmem:[#allocation9 + $0x74] sm:$0xf]
    %v7682 = vld [vmem:[#allocation9 + $0x78] sm:$0xf]
    %v7683 = vld [vmem:[#allocation9 + $0x7c] sm:$0xf]
    %v7684 = vld [vmem:[#allocation9 + $0x80] sm:$0xf]
    %v7685 = vld [vmem:[#allocation9 + $0x84] sm:$0xf]
    %v7686 = vld [vmem:[#allocation9 + $0x88] sm:$0xf]
    %v7687 = vld [vmem:[#allocation9 + $0x8c] sm:$0xf]
    %v7688 = vld [vmem:[#allocation9 + $0x90] sm:$0xf]
    %v7689 = vld [vmem:[#allocation9 + $0x94] sm:$0xf]
    %v7690 = vld [vmem:[#allocation9 + $0x98] sm:$0xf]
    %v7691 = vld [vmem:[#allocation9 + $0x9c] sm:$0xf]
    %v7692 = vld [vmem:[#allocation9 + $0xa0] sm:$0xf]
    %v7693 = vld [vmem:[#allocation9 + $0xa4] sm:$0xf]
    %v7694 = vld [vmem:[#allocation9 + $0xa8] sm:$0xf]
    %v7695 = vld [vmem:[#allocation9 + $0xac] sm:$0xf]
    %v7696 = vld [vmem:[#allocation9 + $0xb0] sm:$0xf]
    %v7697 = vld [vmem:[#allocation9 + $0xb4] sm:$0xf]
    %v7698 = vld [vmem:[#allocation9 + $0xb8] sm:$0xf]
    %v7699 = vld [vmem:[#allocation9 + $0xbc] sm:$0xf]
    %v7700 = vld [vmem:[#allocation9 + $0xc0] sm:$0xf]
    %v7701 = vld [vmem:[#allocation9 + $0xc4] sm:$0xf]
    %v7702 = vld [vmem:[#allocation9 + $0xc8] sm:$0xf]
    %v7703 = vld [vmem:[#allocation9 + $0xcc] sm:$0xf]
    %v7704 = vld [vmem:[#allocation9 + $0xd0] sm:$0xf]
    %v7705 = vld [vmem:[#allocation9 + $0xd4] sm:$0xf]
    %v7706 = vld [vmem:[#allocation9 + $0xd8] sm:$0xf]
    %v7707 = vld [vmem:[#allocation9 + $0xdc] sm:$0xf]
    %v7708 = vld [vmem:[#allocation9 + $0xe0] sm:$0xf]
    %v7709 = vld [vmem:[#allocation9 + $0xe4] sm:$0xf]
    %v7710 = vld [vmem:[#allocation9 + $0xe8] sm:$0xf]
    %v7711 = vld [vmem:[#allocation9 + $0xec] sm:$0xf]
    %v7712 = vld [vmem:[#allocation9 + $0xf0] sm:$0xf]
    %v7713 = vld [vmem:[#allocation9 + $0xf4] sm:$0xf]
    %v7714 = vld [vmem:[#allocation9 + $0xf8] sm:$0xf]
    %v7715 = vld [vmem:[#allocation9 + $0xfc] sm:$0xf]
    %v7716 = vld [vmem:[#allocation9 + $0x100] sm:$0xf]
    %v7717 = vld [vmem:[#allocation9 + $0x104] sm:$0xf]
    %v7718 = vld [vmem:[#allocation9 + $0x108] sm:$0xf]
    %v7719 = vld [vmem:[#allocation9 + $0x10c] sm:$0xf]
    %v7720 = vld [vmem:[#allocation9 + $0x110] sm:$0xf]
    %v7721 = vld [vmem:[#allocation9 + $0x114] sm:$0xf]
    %v7722 = vld [vmem:[#allocation9 + $0x118] sm:$0xf]
    %v7723 = vld [vmem:[#allocation9 + $0x11c] sm:$0xf]
    %v7724 = vld [vmem:[#allocation9 + $0x120] sm:$0xf]
    %v7725 = vld [vmem:[#allocation9 + $0x124] sm:$0xf]
    %v7726 = vld [vmem:[#allocation9 + $0x128] sm:$0xf]
    %v7727 = vld [vmem:[#allocation9 + $0x12c] sm:$0xf]
    %v7728 = vld [vmem:[#allocation9 + $0x130] sm:$0xf]
    %v7729 = vld [vmem:[#allocation9 + $0x134] sm:$0xf]
    %v7730 = vld [vmem:[#allocation9 + $0x138] sm:$0xf]
    %v7731 = vld [vmem:[#allocation9 + $0x13c] sm:$0xf]
    %v7732 = vld [vmem:[#allocation9 + $0x140] sm:$0xf]
    %v7733 = vld [vmem:[#allocation9 + $0x144] sm:$0xf]
    %v7734 = vld [vmem:[#allocation9 + $0x148] sm:$0xf]
    %v7735 = vld [vmem:[#allocation9 + $0x14c] sm:$0xf]
    %v7736 = vld [vmem:[#allocation9 + $0x150] sm:$0xf]
    %v7737 = vld [vmem:[#allocation9 + $0x154] sm:$0xf]
    %v7738 = vld [vmem:[#allocation9 + $0x158] sm:$0xf]
    %v7739 = vld [vmem:[#allocation9 + $0x15c] sm:$0xf]
    %v7740 = vld [vmem:[#allocation9 + $0x160] sm:$0xf]
    %v7741 = vld [vmem:[#allocation9 + $0x164] sm:$0xf]
    %v7742 = vld [vmem:[#allocation9 + $0x168] sm:$0xf]
    %v7743 = vld [vmem:[#allocation9 + $0x16c] sm:$0xf]
    %v7744 = vld [vmem:[#allocation9 + $0x170] sm:$0xf]
    %v7745 = vld [vmem:[#allocation9 + $0x174] sm:$0xf]
    %v7746 = vld [vmem:[#allocation9 + $0x178] sm:$0xf]
    %v7747 = vld [vmem:[#allocation9 + $0x17c] sm:$0xf]
    %v7748 = vld [vmem:[#allocation9 + $0x180] sm:$0xf]
    %v7749 = vld [vmem:[#allocation9 + $0x184] sm:$0xf]
    %v7750 = vld [vmem:[#allocation9 + $0x188] sm:$0xf]
    %v7751 = vld [vmem:[#allocation9 + $0x18c] sm:$0xf]
    %v7752 = vld [vmem:[#allocation9 + $0x190] sm:$0xf]
    %v7753 = vld [vmem:[#allocation9 + $0x194] sm:$0xf]
    %v7754 = vld [vmem:[#allocation9 + $0x198] sm:$0xf]
    %v7755 = vld [vmem:[#allocation9 + $0x19c] sm:$0xf]
    %v7756 = vld [vmem:[#allocation9 + $0x1a0] sm:$0xf]
    %v7757 = vld [vmem:[#allocation9 + $0x1a4] sm:$0xf]
    %v7758 = vld [vmem:[#allocation9 + $0x1a8] sm:$0xf]
    %v7759 = vld [vmem:[#allocation9 + $0x1ac] sm:$0xf]
    %v7760 = vld [vmem:[#allocation9 + $0x1b0] sm:$0xf]
    %v7761 = vld [vmem:[#allocation9 + $0x1b4] sm:$0xf]
    %v7762 = vld [vmem:[#allocation9 + $0x1b8] sm:$0xf]
    %v7763 = vld [vmem:[#allocation9 + $0x1bc] sm:$0xf]
    %v7764 = vld [vmem:[#allocation9 + $0x1c0] sm:$0xf]
    %v7765 = vld [vmem:[#allocation9 + $0x1c4] sm:$0xf]
    %v7766 = vld [vmem:[#allocation9 + $0x1c8] sm:$0xf]
    %v7767 = vld [vmem:[#allocation9 + $0x1cc] sm:$0xf]
    %v7768 = vld [vmem:[#allocation9 + $0x1d0] sm:$0xf]
    %v7769 = vld [vmem:[#allocation9 + $0x1d4] sm:$0xf]
    %v7770 = vld [vmem:[#allocation9 + $0x1d8] sm:$0xf]
    %v7771 = vld [vmem:[#allocation9 + $0x1dc] sm:$0xf]
    %v7772 = vld [vmem:[#allocation9 + $0x1e0] sm:$0xf]
    %v7773 = vld [vmem:[#allocation9 + $0x1e4] sm:$0xf]
    %v7774 = vld [vmem:[#allocation9 + $0x1e8] sm:$0xf]
    %v7775 = vld [vmem:[#allocation9 + $0x1ec] sm:$0xf]
    %v7776 = vld [vmem:[#allocation9 + $0x1f0] sm:$0xf]
    %v7777 = vld [vmem:[#allocation9 + $0x1f4] sm:$0xf]
    %v7778 = vld [vmem:[#allocation9 + $0x1f8] sm:$0xf]
    %v7779 = vld [vmem:[#allocation9 + $0x1fc] sm:$0xf]
    %v7780 = vld [vmem:[#allocation9 + $0x200] sm:$0xf]
    %v7781 = vld [vmem:[#allocation9 + $0x204] sm:$0xf]
    %v7782 = vld [vmem:[#allocation9 + $0x208] sm:$0xf]
    %v7783 = vld [vmem:[#allocation9 + $0x20c] sm:$0xf]
    %v7784 = vld [vmem:[#allocation9 + $0x210] sm:$0xf]
    %v7785 = vld [vmem:[#allocation9 + $0x214] sm:$0xf]
    %v7786 = vld [vmem:[#allocation9 + $0x218] sm:$0xf]
    %v7787 = vld [vmem:[#allocation9 + $0x21c] sm:$0xf]
    %v7788 = vld [vmem:[#allocation9 + $0x220] sm:$0xf]
    %v7789 = vld [vmem:[#allocation9 + $0x224] sm:$0xf]
    %v7790 = vld [vmem:[#allocation9 + $0x228] sm:$0xf]
    %v7791 = vld [vmem:[#allocation9 + $0x22c] sm:$0xf]
    %v7792 = vld [vmem:[#allocation9 + $0x230] sm:$0xf]
    %v7793 = vld [vmem:[#allocation9 + $0x234] sm:$0xf]
    %v7794 = vld [vmem:[#allocation9 + $0x238] sm:$0xf]
    %v7795 = vld [vmem:[#allocation9 + $0x23c] sm:$0xf]
    %v7940 = vunpack.c.l.b16 %v7652
    %v7941 = vunpack.c.l.b16 %v7653
    %v7942 = vunpack.c.l.b16 %v7654
    %v7943 = vunpack.c.l.b16 %v7655
    %v7944 = vunpack.c.l.b16 %v7656
    %v7945 = vunpack.c.l.b16 %v7657
    %v7946 = vunpack.c.l.b16 %v7658
    %v7947 = vunpack.c.l.b16 %v7659
    %v7948 = vunpack.c.l.b16 %v7660
    %v7949 = vunpack.c.l.b16 %v7661
    %v7950 = vunpack.c.l.b16 %v7662
    %v7951 = vunpack.c.l.b16 %v7663
    %v7952 = vunpack.c.l.b16 %v7664
    %v7953 = vunpack.c.l.b16 %v7665
    %v7954 = vunpack.c.l.b16 %v7666
    %v7955 = vunpack.c.l.b16 %v7667
    %v7956 = vunpack.c.l.b16 %v7668
    %v7957 = vunpack.c.l.b16 %v7669
    %v7958 = vunpack.c.l.b16 %v7670
    %v7959 = vunpack.c.l.b16 %v7671
    %v7960 = vunpack.c.l.b16 %v7672
    %v7961 = vunpack.c.l.b16 %v7673
    %v7962 = vunpack.c.l.b16 %v7674
    %v7963 = vunpack.c.l.b16 %v7675
    %v7964 = vunpack.c.l.b16 %v7676
    %v7965 = vunpack.c.l.b16 %v7677
    %v7966 = vunpack.c.l.b16 %v7678
    %v7967 = vunpack.c.l.b16 %v7679
    %v7968 = vunpack.c.l.b16 %v7680
    %v7969 = vunpack.c.l.b16 %v7681
    %v7970 = vunpack.c.l.b16 %v7682
    %v7971 = vunpack.c.l.b16 %v7683
    %v7972 = vunpack.c.l.b16 %v7684
    %v7973 = vunpack.c.l.b16 %v7685
    %v7974 = vunpack.c.l.b16 %v7686
    %v7975 = vunpack.c.l.b16 %v7687
    %v7976 = vunpack.c.l.b16 %v7688
    %v7977 = vunpack.c.l.b16 %v7689
    %v7978 = vunpack.c.l.b16 %v7690
    %v7979 = vunpack.c.l.b16 %v7691
    %v7980 = vunpack.c.l.b16 %v7692
    %v7981 = vunpack.c.l.b16 %v7693
    %v7982 = vunpack.c.l.b16 %v7694
    %v7983 = vunpack.c.l.b16 %v7695
    %v7984 = vunpack.c.l.b16 %v7696
    %v7985 = vunpack.c.l.b16 %v7697
    %v7986 = vunpack.c.l.b16 %v7698
    %v7987 = vunpack.c.l.b16 %v7699
    %v7988 = vunpack.c.l.b16 %v7700
    %v7989 = vunpack.c.l.b16 %v7701
    %v7990 = vunpack.c.l.b16 %v7702
    %v7991 = vunpack.c.l.b16 %v7703
    %v7992 = vunpack.c.l.b16 %v7704
    %v7993 = vunpack.c.l.b16 %v7705
    %v7994 = vunpack.c.l.b16 %v7706
    %v7995 = vunpack.c.l.b16 %v7707
    %v7996 = vunpack.c.l.b16 %v7708
    %v7997 = vunpack.c.l.b16 %v7709
    %v7998 = vunpack.c.l.b16 %v7710
    %v7999 = vunpack.c.l.b16 %v7711
    %v8000 = vunpack.c.l.b16 %v7712
    %v8001 = vunpack.c.l.b16 %v7713
    %v8002 = vunpack.c.l.b16 %v7714
    %v8003 = vunpack.c.l.b16 %v7715
    %v8004 = vunpack.c.l.b16 %v7716
    %v8005 = vunpack.c.l.b16 %v7717
    %v8006 = vunpack.c.l.b16 %v7718
    %v8007 = vunpack.c.l.b16 %v7719
    %v8008 = vunpack.c.l.b16 %v7720
    %v8009 = vunpack.c.l.b16 %v7721
    %v8010 = vunpack.c.l.b16 %v7722
    %v8011 = vunpack.c.l.b16 %v7723
    %v8012 = vunpack.c.l.b16 %v7724
    %v8013 = vunpack.c.l.b16 %v7725
    %v8014 = vunpack.c.l.b16 %v7726
    %v8015 = vunpack.c.l.b16 %v7727
    %v8016 = vunpack.c.l.b16 %v7728
    %v8017 = vunpack.c.l.b16 %v7729
    %v8018 = vunpack.c.l.b16 %v7730
    %v8019 = vunpack.c.l.b16 %v7731
    %v8020 = vunpack.c.l.b16 %v7732
    %v8021 = vunpack.c.l.b16 %v7733
    %v8022 = vunpack.c.l.b16 %v7734
    %v8023 = vunpack.c.l.b16 %v7735
    %v8024 = vunpack.c.l.b16 %v7736
    %v8025 = vunpack.c.l.b16 %v7737
    %v8026 = vunpack.c.l.b16 %v7738
    %v8027 = vunpack.c.l.b16 %v7739
    %v8028 = vunpack.c.l.b16 %v7740
    %v8029 = vunpack.c.l.b16 %v7741
    %v8030 = vunpack.c.l.b16 %v7742
    %v8031 = vunpack.c.l.b16 %v7743
    %v8032 = vunpack.c.l.b16 %v7744
    %v8033 = vunpack.c.l.b16 %v7745
    %v8034 = vunpack.c.l.b16 %v7746
    %v8035 = vunpack.c.l.b16 %v7747
    %v8036 = vunpack.c.l.b16 %v7748
    %v8037 = vunpack.c.l.b16 %v7749
    %v8038 = vunpack.c.l.b16 %v7750
    %v8039 = vunpack.c.l.b16 %v7751
    %v8040 = vunpack.c.l.b16 %v7752
    %v8041 = vunpack.c.l.b16 %v7753
    %v8042 = vunpack.c.l.b16 %v7754
    %v8043 = vunpack.c.l.b16 %v7755
    %v8044 = vunpack.c.l.b16 %v7756
    %v8045 = vunpack.c.l.b16 %v7757
    %v8046 = vunpack.c.l.b16 %v7758
    %v8047 = vunpack.c.l.b16 %v7759
    %v8048 = vunpack.c.l.b16 %v7760
    %v8049 = vunpack.c.l.b16 %v7761
    %v8050 = vunpack.c.l.b16 %v7762
    %v8051 = vunpack.c.l.b16 %v7763
    %v8052 = vunpack.c.l.b16 %v7764
    %v8053 = vunpack.c.l.b16 %v7765
    %v8054 = vunpack.c.l.b16 %v7766
    %v8055 = vunpack.c.l.b16 %v7767
    %v8056 = vunpack.c.l.b16 %v7768
    %v8057 = vunpack.c.l.b16 %v7769
    %v8058 = vunpack.c.l.b16 %v7770
    %v8059 = vunpack.c.l.b16 %v7771
    %v8060 = vunpack.c.l.b16 %v7772
    %v8061 = vunpack.c.l.b16 %v7773
    %v8062 = vunpack.c.l.b16 %v7774
    %v8063 = vunpack.c.l.b16 %v7775
    %v8064 = vunpack.c.l.b16 %v7776
    %v8065 = vunpack.c.l.b16 %v7777
    %v8066 = vunpack.c.l.b16 %v7778
    %v8067 = vunpack.c.l.b16 %v7779
    %v8068 = vunpack.c.l.b16 %v7780
    %v8069 = vunpack.c.l.b16 %v7781
    %v8070 = vunpack.c.l.b16 %v7782
    %v8071 = vunpack.c.l.b16 %v7783
    %v8072 = vunpack.c.l.b16 %v7784
    %v8073 = vunpack.c.l.b16 %v7785
    %v8074 = vunpack.c.l.b16 %v7786
    %v8075 = vunpack.c.l.b16 %v7787
    %v8076 = vunpack.c.l.b16 %v7788
    %v8077 = vunpack.c.l.b16 %v7789
    %v8078 = vunpack.c.l.b16 %v7790
    %v8079 = vunpack.c.l.b16 %v7791
    %v8080 = vunpack.c.l.b16 %v7792
    %v8081 = vunpack.c.l.b16 %v7793
    %v8082 = vunpack.c.l.b16 %v7794
    %v8083 = vunpack.c.l.b16 %v7795
    %v8084 = vpack.c.b16 %v7941, %v7940
    %v8085 = vpack.c.b16 %v7943, %v7942
    %v8086 = vpack.c.b16 %v7945, %v7944
    %v8087 = vpack.c.b16 %v7947, %v7946
    %v8088 = vpack.c.b16 %v7949, %v7948
    %v8089 = vpack.c.b16 %v7951, %v7950
    %v8090 = vpack.c.b16 %v7953, %v7952
    %v8091 = vpack.c.b16 %v7955, %v7954
    %v8092 = vpack.c.b16 %v7957, %v7956
    %v8093 = vpack.c.b16 %v7959, %v7958
    %v8094 = vpack.c.b16 %v7961, %v7960
    %v8095 = vpack.c.b16 %v7963, %v7962
    %v8096 = vpack.c.b16 %v7965, %v7964
    %v8097 = vpack.c.b16 %v7967, %v7966
    %v8098 = vpack.c.b16 %v7969, %v7968
    %v8099 = vpack.c.b16 %v7971, %v7970
    %v8100 = vpack.c.b16 %v7973, %v7972
    %v8101 = vpack.c.b16 %v7975, %v7974
    %v8102 = vpack.c.b16 %v7977, %v7976
    %v8103 = vpack.c.b16 %v7979, %v7978
    %v8104 = vpack.c.b16 %v7981, %v7980
    %v8105 = vpack.c.b16 %v7983, %v7982
    %v8106 = vpack.c.b16 %v7985, %v7984
    %v8107 = vpack.c.b16 %v7987, %v7986
    %v8108 = vpack.c.b16 %v7989, %v7988
    %v8109 = vpack.c.b16 %v7991, %v7990
    %v8110 = vpack.c.b16 %v7993, %v7992
    %v8111 = vpack.c.b16 %v7995, %v7994
    %v8112 = vpack.c.b16 %v7997, %v7996
    %v8113 = vpack.c.b16 %v7999, %v7998
    %v8114 = vpack.c.b16 %v8001, %v8000
    %v8115 = vpack.c.b16 %v8003, %v8002
    %v8116 = vpack.c.b16 %v8005, %v8004
    %v8117 = vpack.c.b16 %v8007, %v8006
    %v8118 = vpack.c.b16 %v8009, %v8008
    %v8119 = vpack.c.b16 %v8011, %v8010
    %v8120 = vpack.c.b16 %v8013, %v8012
    %v8121 = vpack.c.b16 %v8015, %v8014
    %v8122 = vpack.c.b16 %v8017, %v8016
    %v8123 = vpack.c.b16 %v8019, %v8018
    %v8124 = vpack.c.b16 %v8021, %v8020
    %v8125 = vpack.c.b16 %v8023, %v8022
    %v8126 = vpack.c.b16 %v8025, %v8024
    %v8127 = vpack.c.b16 %v8027, %v8026
    %v8128 = vpack.c.b16 %v8029, %v8028
    %v8129 = vpack.c.b16 %v8031, %v8030
    %v8130 = vpack.c.b16 %v8033, %v8032
    %v8131 = vpack.c.b16 %v8035, %v8034
    %v8132 = vpack.c.b16 %v8037, %v8036
    %v8133 = vpack.c.b16 %v8039, %v8038
    %v8134 = vpack.c.b16 %v8041, %v8040
    %v8135 = vpack.c.b16 %v8043, %v8042
    %v8136 = vpack.c.b16 %v8045, %v8044
    %v8137 = vpack.c.b16 %v8047, %v8046
    %v8138 = vpack.c.b16 %v8049, %v8048
    %v8139 = vpack.c.b16 %v8051, %v8050
    %v8140 = vpack.c.b16 %v8053, %v8052
    %v8141 = vpack.c.b16 %v8055, %v8054
    %v8142 = vpack.c.b16 %v8057, %v8056
    %v8143 = vpack.c.b16 %v8059, %v8058
    %v8144 = vpack.c.b16 %v8061, %v8060
    %v8145 = vpack.c.b16 %v8063, %v8062
    %v8146 = vpack.c.b16 %v8065, %v8064
    %v8147 = vpack.c.b16 %v8067, %v8066
    %v8148 = vpack.c.b16 %v8069, %v8068
    %v8149 = vpack.c.b16 %v8071, %v8070
    %v8150 = vpack.c.b16 %v8073, %v8072
    %v8151 = vpack.c.b16 %v8075, %v8074
    %v8152 = vpack.c.b16 %v8077, %v8076
    %v8153 = vpack.c.b16 %v8079, %v8078
    %v8154 = vpack.c.b16 %v8081, %v8080
    %v8155 = vpack.c.b16 %v8083, %v8082
    %8228 = vmatprep.subr.bf16.mxu0 0
    %8229 = vmatpush1.bf16.msra.mxu0 %v8084
    %8230 = vmatprep.subr.bf16.mxu0 0
    %8231 = vmatpush1.bf16.msra.mxu0 %v8085
    %8232 = vmatprep.subr.bf16.mxu0 0
    %8233 = vmatpush1.bf16.msra.mxu0 %v8086
    %8234 = vmatprep.subr.bf16.mxu0 0
    %8235 = vmatpush1.bf16.msra.mxu0 %v8087
    %8236 = vmatprep.subr.bf16.mxu0 0
    %8237 = vmatpush1.bf16.msra.mxu0 %v8088
    %8238 = vmatprep.subr.bf16.mxu0 0
    %8239 = vmatpush1.bf16.msra.mxu0 %v8089
    %8240 = vmatprep.subr.bf16.mxu0 0
    %8241 = vmatpush1.bf16.msra.mxu0 %v8090
    %8242 = vmatprep.subr.bf16.mxu0 0
    %8243 = vmatpush1.bf16.msra.mxu0 %v8091
    %8244 = vmatprep.subr.bf16.mxu0 0
    %8245 = vmatpush1.bf16.msra.mxu0 %v8092
    %8246 = vmatprep.subr.bf16.mxu0 0
    %8247 = vmatpush1.bf16.msra.mxu0 %v8093
    %8248 = vmatprep.subr.bf16.mxu0 0
    %8249 = vmatpush1.bf16.msra.mxu0 %v8094
    %8250 = vmatprep.subr.bf16.mxu0 0
    %8251 = vmatpush1.bf16.msra.mxu0 %v8095
    %8252 = vmatprep.subr.bf16.mxu0 0
    %8253 = vmatpush1.bf16.msra.mxu0 %v8096
    %8254 = vmatprep.subr.bf16.mxu0 0
    %8255 = vmatpush1.bf16.msra.mxu0 %v8097
    %8256 = vmatprep.subr.bf16.mxu0 0
    %8257 = vmatpush1.bf16.msra.mxu0 %v8098
    %8258 = vmatprep.subr.bf16.mxu0 0
    %8259 = vmatpush1.bf16.msra.mxu0 %v8099
    %8260 = vmatprep.mubr.bf16.mxu0 %v7590
    %8261 = vmatmul.mubr.bf16.gmra.mrb[0].mxu0 %v7589
    %v8262 = vpop.f32.mrb[0].mxu0
    %v8263 = vadd.f32 0.0, %v8262
    %v8264 = vpop.f32.mrb[0].mxu0
    %v8265 = vpop.f32.mrb[0].mxu0
    %v8266 = vadd.f32 0.0, %v8265
    %v8267 = vpop.f32.mrb[0].mxu0
    %8268 = vmatprep.mubr.bf16.mxu0 %v7599
    %8269 = vmatmul.mubr.bf16.gmra.mrb[0].mxu0 %v7598
    %v8270 = vpop.f32.mrb[0].mxu0
    %v8271 = vadd.f32 0.0, %v8270
    %v8272 = vpop.f32.mrb[0].mxu0
    %v8273 = vpop.f32.mrb[0].mxu0
    %v8274 = vadd.f32 0.0, %v8273
    %v8275 = vpop.f32.mrb[0].mxu0
    %8276 = vmatprep.mubr.bf16.mxu0 %v7608
    %8277 = vmatmul.mubr.bf16.gmra.mrb[0].mxu0 %v7607
    %v8278 = vpop.f32.mrb[0].mxu0
    %v8279 = vadd.f32 0.0, %v8278
    %v8280 = vpop.f32.mrb[0].mxu0
    %v8281 = vpop.f32.mrb[0].mxu0
    %v8282 = vadd.f32 0.0, %v8281
    %v8283 = vpop.f32.mrb[0].mxu0
    %8284 = vmatprep.mubr.bf16.mxu0 %v7617
    %8285 = vmatmul.mubr.bf16.gmra.mrb[0].mxu0 %v7616
    %v8286 = vpop.f32.mrb[0].mxu0
    %v8287 = vadd.f32 0.0, %v8286
    %v8288 = vpop.f32.mrb[0].mxu0
    %v8289 = vpop.f32.mrb[0].mxu0
    %v8290 = vadd.f32 0.0, %v8289
    %v8291 = vpop.f32.mrb[0].mxu0
    %8292 = vmatprep.mubr.bf16.mxu0 %v7626
    %8293 = vmatmul.mubr.bf16.gmra.mrb[0].mxu0 %v7625
    %v8294 = vpop.f32.mrb[0].mxu0
    %v8295 = vadd.f32 0.0, %v8294
    %v8296 = vpop.f32.mrb[0].mxu0
    %v8297 = vpop.f32.mrb[0].mxu0
    %v8298 = vadd.f32 0.0, %v8297
    %v8299 = vpop.f32.mrb[0].mxu0
    %8300 = vmatprep.mubr.bf16.mxu0 %v7635
    %8301 = vmatmul.mubr.bf16.gmra.mrb[0].mxu0 %v7634
    %v8302 = vpop.f32.mrb[0].mxu0
    %v8303 = vadd.f32 0.0, %v8302
    %v8304 = vpop.f32.mrb[0].mxu0
    %v8305 = vpop.f32.mrb[0].mxu0
    %v8306 = vadd.f32 0.0, %v8305
    %v8307 = vpop.f32.mrb[0].mxu0
    %8308 = vmatprep.mubr.bf16.mxu0 %v7644
    %8309 = vmatmul.mubr.bf16.gmra.mrb[0].mxu0 %v7643
    %v8310 = vpop.f32.mrb[0].mxu0
    %v8311 = vadd.f32 0.0, %v8310
    %v8312 = vpop.f32.mrb[0].mxu0
    %v8313 = vpop.f32.mrb[0].mxu0
    %v8314 = vadd.f32 0.0, %v8313
    %v8315 = vpop.f32.mrb[0].mxu0
    %8316 = vdwg.mxu0
    %8317 = vmatprep.subr.bf16.mxu0 0
    %8318 = vmatpush1.bf16.msra.mxu0 %v8100
    %8319 = vmatprep.subr.bf16.mxu0 0
    %8320 = vmatpush1.bf16.msra.mxu0 %v8101
    %8321 = vmatprep.subr.bf16.mxu0 0
    %8322 = vmatpush1.bf16.msra.mxu0 %v8102
    %8323 = vmatprep.subr.bf16.mxu0 0
    %8324 = vmatpush1.bf16.msra.mxu0 %v8103
    %8325 = vmatprep.subr.bf16.mxu0 0
    %8326 = vmatpush1.bf16.msra.mxu0 %v8104
    %8327 = vmatprep.subr.bf16.mxu0 0
    %8328 = vmatpush1.bf16.msra.mxu0 %v8105
    %8329 = vmatprep.subr.bf16.mxu0 0
    %8330 = vmatpush1.bf16.msra.mxu0 %v8106
    %8331 = vmatprep.subr.bf16.mxu0 0
    %8332 = vmatpush1.bf16.msra.mxu0 %v8107
    %8333 = vmatprep.subr.bf16.mxu0 0
    %8334 = vmatpush1.bf16.msra.mxu0 %v8108
    %8335 = vmatprep.subr.bf16.mxu0 0
    %8336 = vmatpush1.bf16.msra.mxu0 %v8109
    %8337 = vmatprep.subr.bf16.mxu0 0
    %8338 = vmatpush1.bf16.msra.mxu0 %v8110
    %8339 = vmatprep.subr.bf16.mxu0 0
    %8340 = vmatpush1.bf16.msra.mxu0 %v8111
    %8341 = vmatprep.subr.bf16.mxu0 0
    %8342 = vmatpush1.bf16.msra.mxu0 %v8112
    %8343 = vmatprep.subr.bf16.mxu0 0
    %8344 = vmatpush1.bf16.msra.mxu0 %v8113
    %8345 = vmatprep.subr.bf16.mxu0 0
    %8346 = vmatpush1.bf16.msra.mxu0 %v8114
    %8347 = vmatprep.subr.bf16.mxu0 0
    %8348 = vmatpush1.bf16.msra.mxu0 %v8115
    %8349 = vmatprep.mubr.bf16.mxu0 %v7592
    %8350 = vmatmul.mubr.bf16.gmra.mrb[0].mxu0 %v7591
    %v8351 = vpop.f32.mrb[0].mxu0
    %v8352 = vadd.f32 %v8263, %v8351
    %v8353 = vpop.f32.mrb[0].mxu0
    %v8354 = vpop.f32.mrb[0].mxu0
    %v8355 = vadd.f32 %v8266, %v8354
    %v8356 = vpop.f32.mrb[0].mxu0
    %8357 = vmatprep.mubr.bf16.mxu0 %v7601
    %8358 = vmatmul.mubr.bf16.gmra.mrb[0].mxu0 %v7600
    %v8359 = vpop.f32.mrb[0].mxu0
    %v8360 = vadd.f32 %v8271, %v8359
    %v8361 = vpop.f32.mrb[0].mxu0
    %v8362 = vpop.f32.mrb[0].mxu0
    %v8363 = vadd.f32 %v8274, %v8362
    %v8364 = vpop.f32.mrb[0].mxu0
    %8365 = vmatprep.mubr.bf16.mxu0 %v7610
    %8366 = vmatmul.mubr.bf16.gmra.mrb[0].mxu0 %v7609
    %v8367 = vpop.f32.mrb[0].mxu0
    %v8368 = vadd.f32 %v8279, %v8367
    %v8369 = vpop.f32.mrb[0].mxu0
    %v8370 = vpop.f32.mrb[0].mxu0
    %v8371 = vadd.f32 %v8282, %v8370
    %v8372 = vpop.f32.mrb[0].mxu0
    %8373 = vmatprep.mubr.bf16.mxu0 %v7619
    %8374 = vmatmul.mubr.bf16.gmra.mrb[0].mxu0 %v7618
    %v8375 = vpop.f32.mrb[0].mxu0
    %v8376 = vadd.f32 %v8287, %v8375
    %v8377 = vpop.f32.mrb[0].mxu0
    %v8378 = vpop.f32.mrb[0].mxu0
    %v8379 = vadd.f32 %v8290, %v8378
    %v8380 = vpop.f32.mrb[0].mxu0
    %8381 = vmatprep.mubr.bf16.mxu0 %v7628
    %8382 = vmatmul.mubr.bf16.gmra.mrb[0].mxu0 %v7627
    %v8383 = vpop.f32.mrb[0].mxu0
    %v8384 = vadd.f32 %v8295, %v8383
    %v8385 = vpop.f32.mrb[0].mxu0
    %v8386 = vpop.f32.mrb[0].mxu0
    %v8387 = vadd.f32 %v8298, %v8386
    %v8388 = vpop.f32.mrb[0].mxu0
    %8389 = vmatprep.mubr.bf16.mxu0 %v7637
    %8390 = vmatmul.mubr.bf16.gmra.mrb[0].mxu0 %v7636
    %v8391 = vpop.f32.mrb[0].mxu0
    %v8392 = vadd.f32 %v8303, %v8391
    %v8393 = vpop.f32.mrb[0].mxu0
    %v8394 = vpop.f32.mrb[0].mxu0
    %v8395 = vadd.f32 %v8306, %v8394
    %v8396 = vpop.f32.mrb[0].mxu0
    %8397 = vmatprep.mubr.bf16.mxu0 %v7646
    %8398 = vmatmul.mubr.bf16.gmra.mrb[0].mxu0 %v7645
    %v8399 = vpop.f32.mrb[0].mxu0
    %v8400 = vadd.f32 %v8311, %v8399
    %v8401 = vpop.f32.mrb[0].mxu0
    %v8402 = vpop.f32.mrb[0].mxu0
    %v8403 = vadd.f32 %v8314, %v8402
    %v8404 = vpop.f32.mrb[0].mxu0
    %8405 = vdwg.mxu0
    %8406 = vmatprep.subr.bf16.mxu0 0
    %8407 = vmatpush1.bf16.msra.mxu0 %v8116
    %8408 = vmatprep.subr.bf16.mxu0 0
    %8409 = vmatpush1.bf16.msra.mxu0 %v8117
    %8410 = vmatprep.subr.bf16.mxu0 0
    %8411 = vmatpush1.bf16.msra.mxu0 %v8118
    %8412 = vmatprep.subr.bf16.mxu0 0
    %8413 = vmatpush1.bf16.msra.mxu0 %v8119
    %8414 = vmatprep.subr.bf16.mxu0 0
    %8415 = vmatpush1.bf16.msra.mxu0 %v8120
    %8416 = vmatprep.subr.bf16.mxu0 0
    %8417 = vmatpush1.bf16.msra.mxu0 %v8121
    %8418 = vmatprep.subr.bf16.mxu0 0
    %8419 = vmatpush1.bf16.msra.mxu0 %v8122
    %8420 = vmatprep.subr.bf16.mxu0 0
    %8421 = vmatpush1.bf16.msra.mxu0 %v8123
    %8422 = vmatprep.subr.bf16.mxu0 0
    %8423 = vmatpush1.bf16.msra.mxu0 %v8124
    %8424 = vmatprep.subr.bf16.mxu0 0
    %8425 = vmatpush1.bf16.msra.mxu0 %v8125
    %8426 = vmatprep.subr.bf16.mxu0 0
    %8427 = vmatpush1.bf16.msra.mxu0 %v8126
    %8428 = vmatprep.subr.bf16.mxu0 0
    %8429 = vmatpush1.bf16.msra.mxu0 %v8127
    %8430 = vmatprep.subr.bf16.mxu0 0
    %8431 = vmatpush1.bf16.msra.mxu0 %v8128
    %8432 = vmatprep.subr.bf16.mxu0 0
    %8433 = vmatpush1.bf16.msra.mxu0 %v8129
    %8434 = vmatprep.subr.bf16.mxu0 0
    %8435 = vmatpush1.bf16.msra.mxu0 %v8130
    %8436 = vmatprep.subr.bf16.mxu0 0
    %8437 = vmatpush1.bf16.msra.mxu0 %v8131
    %8438 = vmatprep.mubr.bf16.mxu0 %v7594
    %8439 = vmatmul.mubr.bf16.gmra.mrb[0].mxu0 %v7593
    %v8440 = vpop.f32.mrb[0].mxu0
    %v8441 = vadd.f32 %v8352, %v8440
    %v8442 = vpop.f32.mrb[0].mxu0
    %v8443 = vpop.f32.mrb[0].mxu0
    %v8444 = vadd.f32 %v8355, %v8443
    %v8445 = vpop.f32.mrb[0].mxu0
    %8446 = vmatprep.mubr.bf16.mxu0 %v7603
    %8447 = vmatmul.mubr.bf16.gmra.mrb[0].mxu0 %v7602
    %v8448 = vpop.f32.mrb[0].mxu0
    %v8449 = vadd.f32 %v8360, %v8448
    %v8450 = vpop.f32.mrb[0].mxu0
    %v8451 = vpop.f32.mrb[0].mxu0
    %v8452 = vadd.f32 %v8363, %v8451
    %v8453 = vpop.f32.mrb[0].mxu0
    %8454 = vmatprep.mubr.bf16.mxu0 %v7612
    %8455 = vmatmul.mubr.bf16.gmra.mrb[0].mxu0 %v7611
    %v8456 = vpop.f32.mrb[0].mxu0
    %v8457 = vadd.f32 %v8368, %v8456
    %v8458 = vpop.f32.mrb[0].mxu0
    %v8459 = vpop.f32.mrb[0].mxu0
    %v8460 = vadd.f32 %v8371, %v8459
    %v8461 = vpop.f32.mrb[0].mxu0
    %8462 = vmatprep.mubr.bf16.mxu0 %v7621
    %8463 = vmatmul.mubr.bf16.gmra.mrb[0].mxu0 %v7620
    %v8464 = vpop.f32.mrb[0].mxu0
    %v8465 = vadd.f32 %v8376, %v8464
    %v8466 = vpop.f32.mrb[0].mxu0
    %v8467 = vpop.f32.mrb[0].mxu0
    %v8468 = vadd.f32 %v8379, %v8467
    %v8469 = vpop.f32.mrb[0].mxu0
    %8470 = vmatprep.mubr.bf16.mxu0 %v7630
    %8471 = vmatmul.mubr.bf16.gmra.mrb[0].mxu0 %v7629
    %v8472 = vpop.f32.mrb[0].mxu0
    %v8473 = vadd.f32 %v8384, %v8472
    %v8474 = vpop.f32.mrb[0].mxu0
    %v8475 = vpop.f32.mrb[0].mxu0
    %v8476 = vadd.f32 %v8387, %v8475
    %v8477 = vpop.f32.mrb[0].mxu0
    %8478 = vmatprep.mubr.bf16.mxu0 %v7639
    %8479 = vmatmul.mubr.bf16.gmra.mrb[0].mxu0 %v7638
    %v8480 = vpop.f32.mrb[0].mxu0
    %v8481 = vadd.f32 %v8392, %v8480
    %v8482 = vpop.f32.mrb[0].mxu0
    %v8483 = vpop.f32.mrb[0].mxu0
    %v8484 = vadd.f32 %v8395, %v8483
    %v8485 = vpop.f32.mrb[0].mxu0
    %8486 = vmatprep.mubr.bf16.mxu0 %v7648
    %8487 = vmatmul.mubr.bf16.gmra.mrb[0].mxu0 %v7647
    %v8488 = vpop.f32.mrb[0].mxu0
    %v8489 = vadd.f32 %v8400, %v8488
    %v8490 = vpop.f32.mrb[0].mxu0
    %v8491 = vpop.f32.mrb[0].mxu0
    %v8492 = vadd.f32 %v8403, %v8491
    %v8493 = vpop.f32.mrb[0].mxu0
    %8494 = vdwg.mxu0
    %8495 = vmatprep.subr.bf16.mxu0 0
    %8496 = vmatpush1.bf16.msra.mxu0 %v8132
    %8497 = vmatprep.subr.bf16.mxu0 0
    %8498 = vmatpush1.bf16.msra.mxu0 %v8133
    %8499 = vmatprep.subr.bf16.mxu0 0
    %8500 = vmatpush1.bf16.msra.mxu0 %v8134
    %8501 = vmatprep.subr.bf16.mxu0 0
    %8502 = vmatpush1.bf16.msra.mxu0 %v8135
    %8503 = vmatprep.subr.bf16.mxu0 0
    %8504 = vmatpush1.bf16.msra.mxu0 %v8136
    %8505 = vmatprep.subr.bf16.mxu0 0
    %8506 = vmatpush1.bf16.msra.mxu0 %v8137
    %8507 = vmatprep.subr.bf16.mxu0 0
    %8508 = vmatpush1.bf16.msra.mxu0 %v8138
    %8509 = vmatprep.subr.bf16.mxu0 0
    %8510 = vmatpush1.bf16.msra.mxu0 %v8139
    %8511 = vmatprep.subr.bf16.mxu0 0
    %8512 = vmatpush1.bf16.msra.mxu0 %v8140
    %8513 = vmatprep.subr.bf16.mxu0 0
    %8514 = vmatpush1.bf16.msra.mxu0 %v8141
    %8515 = vmatprep.subr.bf16.mxu0 0
    %8516 = vmatpush1.bf16.msra.mxu0 %v8142
    %8517 = vmatprep.subr.bf16.mxu0 0
    %8518 = vmatpush1.bf16.msra.mxu0 %v8143
    %8519 = vmatprep.subr.bf16.mxu0 0
    %8520 = vmatpush1.bf16.msra.mxu0 %v8144
    %8521 = vmatprep.subr.bf16.mxu0 0
    %8522 = vmatpush1.bf16.msra.mxu0 %v8145
    %8523 = vmatprep.subr.bf16.mxu0 0
    %8524 = vmatpush1.bf16.msra.mxu0 %v8146
    %8525 = vmatprep.subr.bf16.mxu0 0
    %8526 = vmatpush1.bf16.msra.mxu0 %v8147
    %8527 = vmatprep.mubr.bf16.mxu0 %v7596
    %8528 = vmatmul.mubr.bf16.gmra.mrb[0].mxu0 %v7595
    %v8529 = vpop.f32.mrb[0].mxu0
    %v8530 = vadd.f32 %v8441, %v8529
    %v8531 = vpop.f32.mrb[0].mxu0
    %v8532 = vpop.f32.mrb[0].mxu0
    %v8533 = vadd.f32 %v8444, %v8532
    %v8534 = vpop.f32.mrb[0].mxu0
    %8535 = vmatprep.mubr.bf16.mxu0 %v7605
    %8536 = vmatmul.mubr.bf16.gmra.mrb[0].mxu0 %v7604
    %v8537 = vpop.f32.mrb[0].mxu0
    %v8538 = vadd.f32 %v8449, %v8537
    %v8539 = vpop.f32.mrb[0].mxu0
    %v8540 = vpop.f32.mrb[0].mxu0
    %v8541 = vadd.f32 %v8452, %v8540
    %v8542 = vpop.f32.mrb[0].mxu0
    %8543 = vmatprep.mubr.bf16.mxu0 %v7614
    %8544 = vmatmul.mubr.bf16.gmra.mrb[0].mxu0 %v7613
    %v8545 = vpop.f32.mrb[0].mxu0
    %v8546 = vadd.f32 %v8457, %v8545
    %v8547 = vpop.f32.mrb[0].mxu0
    %v8548 = vpop.f32.mrb[0].mxu0
    %v8549 = vadd.f32 %v8460, %v8548
    %v8550 = vpop.f32.mrb[0].mxu0
    %8551 = vmatprep.mubr.bf16.mxu0 %v7623
    %8552 = vmatmul.mubr.bf16.gmra.mrb[0].mxu0 %v7622
    %v8553 = vpop.f32.mrb[0].mxu0
    %v8554 = vadd.f32 %v8465, %v8553
    %v8555 = vpop.f32.mrb[0].mxu0
    %v8556 = vpop.f32.mrb[0].mxu0
    %v8557 = vadd.f32 %v8468, %v8556
    %v8558 = vpop.f32.mrb[0].mxu0
    %8559 = vmatprep.mubr.bf16.mxu0 %v7632
    %8560 = vmatmul.mubr.bf16.gmra.mrb[0].mxu0 %v7631
    %v8561 = vpop.f32.mrb[0].mxu0
    %v8562 = vadd.f32 %v8473, %v8561
    %v8563 = vpop.f32.mrb[0].mxu0
    %v8564 = vpop.f32.mrb[0].mxu0
    %v8565 = vadd.f32 %v8476, %v8564
    %v8566 = vpop.f32.mrb[0].mxu0
    %8567 = vmatprep.mubr.bf16.mxu0 %v7641
    %8568 = vmatmul.mubr.bf16.gmra.mrb[0].mxu0 %v7640
    %v8569 = vpop.f32.mrb[0].mxu0
    %v8570 = vadd.f32 %v8481, %v8569
    %v8571 = vpop.f32.mrb[0].mxu0
    %v8572 = vpop.f32.mrb[0].mxu0
    %v8573 = vadd.f32 %v8484, %v8572
    %v8574 = vpop.f32.mrb[0].mxu0
    %8575 = vmatprep.mubr.bf16.mxu0 %v7650
    %8576 = vmatmul.mubr.bf16.gmra.mrb[0].mxu0 %v7649
    %v8577 = vpop.f32.mrb[0].mxu0
    %v8578 = vadd.f32 %v8489, %v8577
    %v8579 = vpop.f32.mrb[0].mxu0
    %v8580 = vpop.f32.mrb[0].mxu0
    %v8581 = vadd.f32 %v8492, %v8580
    %v8582 = vpop.f32.mrb[0].mxu0
    %8583 = vdwg.mxu0
    %8584 = vmatprep.subr.bf16.mxu0 0
    %8585 = vmatpush1.bf16.msra.mxu0 %v8148
    %8586 = vmatprep.subr.bf16.mxu0 0
    %8587 = vmatpush1.bf16.msra.mxu0 %v8149
    %8588 = vmatprep.subr.bf16.mxu0 0
    %8589 = vmatpush1.bf16.msra.mxu0 %v8150
    %8590 = vmatprep.subr.bf16.mxu0 0
    %8591 = vmatpush1.bf16.msra.mxu0 %v8151
    %8592 = vmatprep.subr.bf16.mxu0 0
    %8593 = vmatpush1.bf16.msra.mxu0 %v8152
    %8594 = vmatprep.subr.bf16.mxu0 0
    %8595 = vmatpush1.bf16.msra.mxu0 %v8153
    %8596 = vmatprep.subr.bf16.mxu0 0
    %8597 = vmatpush1.bf16.msra.mxu0 %v8154
    %8598 = vmatprep.subr.bf16.mxu0 0
    %8599 = vmatpush1.bf16.msra.mxu0 %v8155
    %8600 = vmatprep.subr.bf16.mxu0 0
    %8601 = vmatpush1.bf16.msra.mxu0 0
    %8602 = vmatprep.subr.bf16.mxu0 0
    %8603 = vmatpush1.bf16.msra.mxu0 0
    %8604 = vmatprep.subr.bf16.mxu0 0
    %8605 = vmatpush1.bf16.msra.mxu0 0
    %8606 = vmatprep.subr.bf16.mxu0 0
    %8607 = vmatpush1.bf16.msra.mxu0 0
    %8608 = vmatprep.subr.bf16.mxu0 0
    %8609 = vmatpush1.bf16.msra.mxu0 0
    %8610 = vmatprep.subr.bf16.mxu0 0
    %8611 = vmatpush1.bf16.msra.mxu0 0
    %8612 = vmatprep.subr.bf16.mxu0 0
    %8613 = vmatpush1.bf16.msra.mxu0 0
    %8614 = vmatprep.subr.bf16.mxu0 0
    %8615 = vmatpush1.bf16.msra.mxu0 0
    %8616 = vmatprep.mubr.bf16.mxu0 0
    %8617 = vmatmul.mubr.bf16.gmra.mrb[0].mxu0 %v7597
    %v8618 = vpop.f32.mrb[0].mxu0
    %v8619 = vadd.f32 %v8530, %v8618
    %v8620 = vpop.f32.mrb[0].mxu0
    %v8621 = vpop.f32.mrb[0].mxu0
    %v8622 = vadd.f32 %v8533, %v8621
    %v8623 = vpop.f32.mrb[0].mxu0
    %8624 = vmatprep.mubr.bf16.mxu0 0
    %8625 = vmatmul.mubr.bf16.gmra.mrb[0].mxu0 %v7606
    %v8626 = vpop.f32.mrb[0].mxu0
    %v8627 = vadd.f32 %v8538, %v8626
    %v8628 = vpop.f32.mrb[0].mxu0
    %v8629 = vpop.f32.mrb[0].mxu0
    %v8630 = vadd.f32 %v8541, %v8629
    %v8631 = vpop.f32.mrb[0].mxu0
    %8632 = vmatprep.mubr.bf16.mxu0 0
    %8633 = vmatmul.mubr.bf16.gmra.mrb[0].mxu0 %v7615
    %v8634 = vpop.f32.mrb[0].mxu0
    %v8635 = vadd.f32 %v8546, %v8634
    %v8636 = vpop.f32.mrb[0].mxu0
    %v8637 = vpop.f32.mrb[0].mxu0
    %v8638 = vadd.f32 %v8549, %v8637
    %v8639 = vpop.f32.mrb[0].mxu0
    %8640 = vmatprep.mubr.bf16.mxu0 0
    %8641 = vmatmul.mubr.bf16.gmra.mrb[0].mxu0 %v7624
    %v8642 = vpop.f32.mrb[0].mxu0
    %v8643 = vadd.f32 %v8554, %v8642
    %v8644 = vpop.f32.mrb[0].mxu0
    %v8645 = vpop.f32.mrb[0].mxu0
    %v8646 = vadd.f32 %v8557, %v8645
    %v8647 = vpop.f32.mrb[0].mxu0
    %8648 = vmatprep.mubr.bf16.mxu0 0
    %8649 = vmatmul.mubr.bf16.gmra.mrb[0].mxu0 %v7633
    %v8650 = vpop.f32.mrb[0].mxu0
    %v8651 = vadd.f32 %v8562, %v8650
    %v8652 = vpop.f32.mrb[0].mxu0
    %v8653 = vpop.f32.mrb[0].mxu0
    %v8654 = vadd.f32 %v8565, %v8653
    %v8655 = vpop.f32.mrb[0].mxu0
    %8656 = vmatprep.mubr.bf16.mxu0 0
    %8657 = vmatmul.mubr.bf16.gmra.mrb[0].mxu0 %v7642
    %v8658 = vpop.f32.mrb[0].mxu0
    %v8659 = vadd.f32 %v8570, %v8658
    %v8660 = vpop.f32.mrb[0].mxu0
    %v8661 = vpop.f32.mrb[0].mxu0
    %v8662 = vadd.f32 %v8573, %v8661
    %v8663 = vpop.f32.mrb[0].mxu0
    %8664 = vmatprep.mubr.bf16.mxu0 0
    %8665 = vmatmul.mubr.bf16.gmra.mrb[0].mxu0 %v7651
    %v8666 = vpop.f32.mrb[0].mxu0
    %v8667 = vadd.f32 %v8578, %v8666
    %v8668 = vpop.f32.mrb[0].mxu0
    %v8669 = vpop.f32.mrb[0].mxu0
    %v8670 = vadd.f32 %v8581, %v8669
    %v8671 = vpop.f32.mrb[0].mxu0
    %8672 = vdwg.mxu0
    %s8673 = scalar_lea.vmem %s5, 3
    %v8674 = vld [vmem:[%s8673] sm:$0x1]
    %v8676 = vlaneseq
    %v8677 = vshrl.u32 %v8676, 7
    %v8678 = vsub.s32 0, %v8677
    %v8679 = vrot.slane %v8674, %v8678
    %v8681 = vmul.f32 %v8619, %v8679
    %v8682 = vmul.f32 %v8622, %v8679
    %v8683 = vmul.f32 %v8627, %v8679
    %v8684 = vmul.f32 %v8630, %v8679
    %v8685 = vmul.f32 %v8635, %v8679
    %v8686 = vmul.f32 %v8638, %v8679
    %v8687 = vmul.f32 %v8643, %v8679
    %v8688 = vmul.f32 %v8646, %v8679
    %v8689 = vmul.f32 %v8651, %v8679
    %v8690 = vmul.f32 %v8654, %v8679
    %v8691 = vmul.f32 %v8659, %v8679
    %v8692 = vmul.f32 %v8662, %v8679
    %v8693 = vmul.f32 %v8667, %v8679
    %v8694 = vmul.f32 %v8670, %v8679
    %s8695 = scalar_lea.vmem %s6, 3
    %v8696 = vld [vmem:[%s8695] sm:$0x1]
    %v8698 = vlaneseq
    %v8699 = vshrl.u32 %v8698, 7
    %v8700 = vsub.s32 0, %v8699
    %v8701 = vrot.slane %v8696, %v8700
    %v8703 = vadd.f32 %v8681, %v8701
    %v8704 = vadd.f32 %v8682, %v8701
    %v8705 = vadd.f32 %v8683, %v8701
    %v8706 = vadd.f32 %v8684, %v8701
    %v8707 = vadd.f32 %v8685, %v8701
    %v8708 = vadd.f32 %v8686, %v8701
    %v8709 = vadd.f32 %v8687, %v8701
    %v8710 = vadd.f32 %v8688, %v8701
    %v8711 = vadd.f32 %v8689, %v8701
    %v8712 = vadd.f32 %v8690, %v8701
    %v8713 = vadd.f32 %v8691, %v8701
    %v8714 = vadd.f32 %v8692, %v8701
    %v8715 = vadd.f32 %v8693, %v8701
    %v8716 = vadd.f32 %v8694, %v8701
    %v8717 = vmax.f32 %v8703, 0.0
    %v8718 = vmax.f32 %v8704, 0.0
    %v8719 = vmax.f32 %v8705, 0.0
    %v8720 = vmax.f32 %v8706, 0.0
    %v8721 = vmax.f32 %v8707, 0.0
    %v8722 = vmax.f32 %v8708, 0.0
    %v8723 = vmax.f32 %v8709, 0.0
    %v8724 = vmax.f32 %v8710, 0.0
    %v8725 = vmax.f32 %v8711, 0.0
    %v8726 = vmax.f32 %v8712, 0.0
    %v8727 = vmax.f32 %v8713, 0.0
    %v8728 = vmax.f32 %v8714, 0.0
    %v8729 = vmax.f32 %v8715, 0.0
    %v8730 = vmax.f32 %v8716, 0.0
    %v8731 = vld [vmem:[%s8] sm:$0x3]
    %vm8732 = vcmask 916480
    %v8734 = vsel %vm8732, %v8731, 0
    %8736 = vmatprep.subr.mxu0 0.0
    %8737 = vmatpush1.msra.mxu0 %v8717
    %8738 = vmatprep.subr.mxu0 0.0
    %8739 = vmatpush1.msra.mxu0 %v8718
    %8740 = vmatprep.subr.mxu0 0.0
    %8741 = vmatpush1.msra.mxu0 %v8719
    %8742 = vmatprep.subr.mxu0 0.0
    %8743 = vmatpush1.msra.mxu0 %v8720
    %8744 = vmatprep.subr.mxu0 0.0
    %8745 = vmatpush1.msra.mxu0 %v8721
    %8746 = vmatprep.subr.mxu0 0.0
    %8747 = vmatpush1.msra.mxu0 %v8722
    %8748 = vmatprep.subr.mxu0 0.0
    %8749 = vmatpush1.msra.mxu0 %v8723
    %8750 = vmatprep.subr.mxu0 0.0
    %8751 = vmatpush1.msra.mxu0 %v8724
    %8752 = vmatprep.subr.mxu0 0.0
    %8753 = vmatpush1.msra.mxu0 %v8725
    %8754 = vmatprep.subr.mxu0 0.0
    %8755 = vmatpush1.msra.mxu0 %v8726
    %8756 = vmatprep.subr.mxu0 0.0
    %8757 = vmatpush1.msra.mxu0 %v8727
    %8758 = vmatprep.subr.mxu0 0.0
    %8759 = vmatpush1.msra.mxu0 %v8728
    %8760 = vmatprep.subr.mxu0 0.0
    %8761 = vmatpush1.msra.mxu0 %v8729
    %8762 = vmatprep.subr.mxu0 0.0
    %8763 = vmatpush1.msra.mxu0 %v8730
    %8764 = vmatprep.subr.mxu0 0.0
    %8765 = vmatpush1.msra.mxu0 0.0
    %8766 = vmatprep.subr.mxu0 0.0
    %8767 = vmatpush1.msra.mxu0 0.0
    %8768 = vmatprep.subr.mxu0 0.0
    %8769 = vmatpush1.msra.mxu0 0.0
    %8770 = vmatprep.subr.mxu0 0.0
    %8771 = vmatpush1.msra.mxu0 0.0
    %8772 = vmatprep.subr.mxu0 0.0
    %8773 = vmatpush1.msra.mxu0 0.0
    %8774 = vmatprep.subr.mxu0 0.0
    %8775 = vmatpush1.msra.mxu0 0.0
    %8776 = vmatprep.subr.mxu0 0.0
    %8777 = vmatpush1.msra.mxu0 0.0
    %8778 = vmatprep.subr.mxu0 0.0
    %8779 = vmatpush1.msra.mxu0 0.0
    %8780 = vmatprep.subr.mxu0 0.0
    %8781 = vmatpush1.msra.mxu0 0.0
    %8782 = vmatprep.subr.mxu0 0.0
    %8783 = vmatpush1.msra.mxu0 0.0
    %8784 = vmatprep.subr.mxu0 0.0
    %8785 = vmatpush1.msra.mxu0 0.0
    %8786 = vmatprep.subr.mxu0 0.0
    %8787 = vmatpush1.msra.mxu0 0.0
    %8788 = vmatprep.subr.mxu0 0.0
    %8789 = vmatpush1.msra.mxu0 0.0
    %8790 = vmatprep.subr.mxu0 0.0
    %8791 = vmatpush1.msra.mxu0 0.0
    %8792 = vmatprep.subr.mxu0 0.0
    %8793 = vmatpush1.msra.mxu0 0.0
    %8794 = vmatprep.subr.mxu0 0.0
    %8795 = vmatpush1.msra.mxu0 0.0
    %8796 = vmatprep.subr.mxu0 0.0
    %8797 = vmatpush1.msra.mxu0 0.0
    %8798 = vmatprep.subr.mxu0 0.0
    %8799 = vmatpush1.msra.mxu0 0.0
    %8800 = vmatprep.mubr.f32.mxu0 0.0
    %8801 = vmatmul.mubr.f32.gmra.mrb[0].mxu0 %v8734
    %v8802 = vpop.f32.mrb[0].mxu0
    %v8803 = vadd.f32 0.0, %v8802
    %v8804 = vpop.f32.mrb[0].mxu0
    %8805 = vdwg.mxu0
    %v8806 = vld [vmem:[%s11] sm:$0xff]
    %v8807 = vld [vmem:[%s11 + $0x8] sm:$0xff]
    %v8808 = vld [vmem:[%s11 + $0x10] sm:$0xff]
    %v8809 = vld [vmem:[%s11 + $0x18] sm:$0xff]
    %v8810 = vld [vmem:[%s11 + $0x20] sm:$0xff]
    %v8811 = vld [vmem:[%s11 + $0x28] sm:$0xff]
    %v8812 = vld [vmem:[%s11 + $0x30] sm:$0xff]
    %v8813 = vld [vmem:[%s11 + $0x38] sm:$0xff]
    %v8814 = vld [vmem:[%s11 + $0x40] sm:$0xff]
    %v8815 = vld [vmem:[%s11 + $0x48] sm:$0xff]
    %v8816 = vld [vmem:[%s11 + $0x50] sm:$0xff]
    %v8817 = vld [vmem:[%s11 + $0x58] sm:$0xff]
    %v8818 = vld [vmem:[%s11 + $0x60] sm:$0xff]
    %v8819 = vld [vmem:[%s11 + $0x68] sm:$0xff]
    %v8820 = vld [vmem:[%s11 + $0x70] sm:$0xff]
    %v8821 = vld [vmem:[%s11 + $0x78] sm:$0xff]
    %v8822 = vld [vmem:[%s11 + $0x80] sm:$0xff]
    %v8823 = vld [vmem:[%s11 + $0x88] sm:$0xff]
    %v8824 = vld [vmem:[%s11 + $0x90] sm:$0xff]
    %v8825 = vld [vmem:[%s11 + $0x98] sm:$0x1f]
    %v8826 = vld [vmem:[#allocation12] sm:$0xff]
    %v8827 = vld [vmem:[#allocation12 + $0x8] sm:$0xff]
    %v8828 = vld [vmem:[#allocation12 + $0x10] sm:$0xff]
    %v8829 = vld [vmem:[#allocation12 + $0x18] sm:$0xff]
    %v8830 = vld [vmem:[#allocation12 + $0x20] sm:$0xff]
    %v8831 = vld [vmem:[#allocation12 + $0x28] sm:$0xff]
    %v8832 = vld [vmem:[#allocation12 + $0x30] sm:$0xff]
    %v8833 = vld [vmem:[#allocation12 + $0x38] sm:$0xff]
    %v8834 = vld [vmem:[%s15] sm:$0xff]
    %v8835 = vld [vmem:[%s15 + $0x8] sm:$0xff]
    %v8836 = vld [vmem:[%s15 + $0x10] sm:$0xff]
    %v8837 = vld [vmem:[%s15 + $0x18] sm:$0xff]
    %v8838 = vld [vmem:[%s15 + $0x20] sm:$0xff]
    %v8839 = vld [vmem:[%s15 + $0x28] sm:$0xff]
    %v8840 = vld [vmem:[%s15 + $0x30] sm:$0xff]
    %v8841 = vld [vmem:[%s15 + $0x38] sm:$0xff]
    %v8842 = vld [vmem:[%s15 + $0x40] sm:$0xff]
    %v8843 = vld [vmem:[%s15 + $0x48] sm:$0xff]
    %v8844 = vld [vmem:[%s15 + $0x50] sm:$0xff]
    %v8845 = vld [vmem:[%s15 + $0x58] sm:$0xff]
    %v8846 = vld [vmem:[%s15 + $0x60] sm:$0xff]
    %v8847 = vld [vmem:[%s15 + $0x68] sm:$0xff]
    %v8848 = vld [vmem:[%s15 + $0x70] sm:$0xff]
    %v8849 = vld [vmem:[%s15 + $0x78] sm:$0xff]
    %v8850 = vld [vmem:[#allocation10] sm:$0x1]
    %v8851 = vld [vmem:[#allocation13] sm:$0x1]
    %v8852 = vld [vmem:[#allocation15] sm:$0x3]
    %v8853 = vld [vmem:[%s10] sm:$0xff]
    %v8854 = vld [vmem:[%s10 + $0x8] sm:$0xff]
    %v8855 = vld [vmem:[%s10 + $0x10] sm:$0xff]
    %v8856 = vld [vmem:[%s10 + $0x18] sm:$0xff]
    %v8857 = vld [vmem:[%s10 + $0x20] sm:$0xff]
    %v8858 = vld [vmem:[%s10 + $0x28] sm:$0xff]
    %v8859 = vld [vmem:[%s10 + $0x30] sm:$0xff]
    %v8860 = vld [vmem:[%s10 + $0x38] sm:$0xff]
    %v8861 = vld [vmem:[%s10 + $0x40] sm:$0xff]
    %v8862 = vld [vmem:[%s10 + $0x48] sm:$0xff]
    %v8863 = vld [vmem:[%s10 + $0x50] sm:$0xff]
    %v8864 = vld [vmem:[%s10 + $0x58] sm:$0xff]
    %v8865 = vld [vmem:[%s10 + $0x60] sm:$0xff]
    %v8866 = vld [vmem:[%s10 + $0x68] sm:$0xff]
    %v8867 = vld [vmem:[%s10 + $0x70] sm:$0xff]
    %v8868 = vld [vmem:[%s10 + $0x78] sm:$0xff]
    %8869 = vmatprep.subr.mxu0 0.0
    %8870 = vmatpush1.msra.mxu0 %v8853
    %8871 = vmatprep.subr.mxu0 0.0
    %8872 = vmatpush1.msra.mxu0 %v8854
    %8873 = vmatprep.subr.mxu0 0.0
    %8874 = vmatpush1.msra.mxu0 %v8855
    %8875 = vmatprep.subr.mxu0 0.0
    %8876 = vmatpush1.msra.mxu0 %v8856
    %8877 = vmatprep.subr.mxu0 0.0
    %8878 = vmatpush1.msra.mxu0 %v8857
    %8879 = vmatprep.subr.mxu0 0.0
    %8880 = vmatpush1.msra.mxu0 %v8858
    %8881 = vmatprep.subr.mxu0 0.0
    %8882 = vmatpush1.msra.mxu0 %v8859
    %8883 = vmatprep.subr.mxu0 0.0
    %8884 = vmatpush1.msra.mxu0 %v8860
    %8885 = vmatprep.subr.mxu0 0.0
    %8886 = vmatpush1.msra.mxu0 %v8861
    %8887 = vmatprep.subr.mxu0 0.0
    %8888 = vmatpush1.msra.mxu0 %v8862
    %8889 = vmatprep.subr.mxu0 0.0
    %8890 = vmatpush1.msra.mxu0 %v8863
    %8891 = vmatprep.subr.mxu0 0.0
    %8892 = vmatpush1.msra.mxu0 %v8864
    %8893 = vmatprep.subr.mxu0 0.0
    %8894 = vmatpush1.msra.mxu0 %v8865
    %8895 = vmatprep.subr.mxu0 0.0
    %8896 = vmatpush1.msra.mxu0 %v8866
    %8897 = vmatprep.subr.mxu0 0.0
    %8898 = vmatpush1.msra.mxu0 %v8867
    %8899 = vmatprep.subr.mxu0 0.0
    %8900 = vmatpush1.msra.mxu0 %v8868
    %8901 = vmatprep.subr.mxu0 0.0
    %8902 = vmatpush1.msra.mxu0 0.0
    %8903 = vmatprep.subr.mxu0 0.0
    %8904 = vmatpush1.msra.mxu0 0.0
    %8905 = vmatprep.subr.mxu0 0.0
    %8906 = vmatpush1.msra.mxu0 0.0
    %8907 = vmatprep.subr.mxu0 0.0
    %8908 = vmatpush1.msra.mxu0 0.0
    %8909 = vmatprep.subr.mxu0 0.0
    %8910 = vmatpush1.msra.mxu0 0.0
    %8911 = vmatprep.subr.mxu0 0.0
    %8912 = vmatpush1.msra.mxu0 0.0
    %8913 = vmatprep.subr.mxu0 0.0
    %8914 = vmatpush1.msra.mxu0 0.0
    %8915 = vmatprep.subr.mxu0 0.0
    %8916 = vmatpush1.msra.mxu0 0.0
    %8917 = vmatprep.subr.mxu0 0.0
    %8918 = vmatpush1.msra.mxu0 0.0
    %8919 = vmatprep.subr.mxu0 0.0
    %8920 = vmatpush1.msra.mxu0 0.0
    %8921 = vmatprep.subr.mxu0 0.0
    %8922 = vmatpush1.msra.mxu0 0.0
    %8923 = vmatprep.subr.mxu0 0.0
    %8924 = vmatpush1.msra.mxu0 0.0
    %8925 = vmatprep.subr.mxu0 0.0
    %8926 = vmatpush1.msra.mxu0 0.0
    %8927 = vmatprep.subr.mxu0 0.0
    %8928 = vmatpush1.msra.mxu0 0.0
    %8929 = vmatprep.subr.mxu0 0.0
    %8930 = vmatpush1.msra.mxu0 0.0
    %8931 = vmatprep.subr.mxu0 0.0
    %8932 = vmatpush1.msra.mxu0 0.0
    %8933 = vmatprep.mubr.f32.mxu0 0.0
    %8934 = vmatmul.mubr.f32.gmra.mrb[0].mxu0 %v8803
    %v8935 = vpop.f32.mrb[0].mxu0
    %v8936 = vadd.f32 0.0, %v8935
    %v8937 = vpop.f32.mrb[0].mxu0
    %8938 = vdwg.mxu0
    %v8939 = vld [vmem:[%s9] sm:$0xf]
    %v8942 = vunpack.c.l.s4 1983009808
    %v8943 = vunpack.c.0.s8 %v8942
    %v8944 = vlaneseq
    %v8945 = vshrl.u32 %v8944, 7
    %v8946 = vsub.s32 %v8943, %v8945
    %v8947 = vrot.slane %v8939, %v8946
    %v8948 = vcombine.high %v8947, %v8947
    %vm8950 = vcmask 236544
    %v8951 = vsel %vm8950, %v8948, 0
    %vm8953 = vcmask 1044480
    %v8955 = vsel %vm8953, %v8825, 0
    %8957 = vmatprep.subr.mxu0 0.0
    %8958 = vmatpush1.msra.mxu0 %v8806
    %8959 = vmatprep.subr.mxu0 0.0
    %8960 = vmatpush1.msra.mxu0 %v8807
    %8961 = vmatprep.subr.mxu0 0.0
    %8962 = vmatpush1.msra.mxu0 %v8808
    %8963 = vmatprep.subr.mxu0 0.0
    %8964 = vmatpush1.msra.mxu0 %v8809
    %8965 = vmatprep.subr.mxu0 0.0
    %8966 = vmatpush1.msra.mxu0 %v8810
    %8967 = vmatprep.subr.mxu0 0.0
    %8968 = vmatpush1.msra.mxu0 %v8811
    %8969 = vmatprep.subr.mxu0 0.0
    %8970 = vmatpush1.msra.mxu0 %v8812
    %8971 = vmatprep.subr.mxu0 0.0
    %8972 = vmatpush1.msra.mxu0 %v8813
    %8973 = vmatprep.subr.mxu0 0.0
    %8974 = vmatpush1.msra.mxu0 %v8814
    %8975 = vmatprep.subr.mxu0 0.0
    %8976 = vmatpush1.msra.mxu0 %v8815
    %8977 = vmatprep.subr.mxu0 0.0
    %8978 = vmatpush1.msra.mxu0 %v8816
    %8979 = vmatprep.subr.mxu0 0.0
    %8980 = vmatpush1.msra.mxu0 %v8817
    %8981 = vmatprep.subr.mxu0 0.0
    %8982 = vmatpush1.msra.mxu0 %v8818
    %8983 = vmatprep.subr.mxu0 0.0
    %8984 = vmatpush1.msra.mxu0 %v8819
    %8985 = vmatprep.subr.mxu0 0.0
    %8986 = vmatpush1.msra.mxu0 %v8820
    %8987 = vmatprep.subr.mxu0 0.0
    %8988 = vmatpush1.msra.mxu0 %v8821
    %8989 = vmatprep.subr.mxu0 0.0
    %8990 = vmatpush1.msra.mxu0 %v8822
    %8991 = vmatprep.subr.mxu0 0.0
    %8992 = vmatpush1.msra.mxu0 %v8823
    %8993 = vmatprep.subr.mxu0 0.0
    %8994 = vmatpush1.msra.mxu0 %v8824
    %8995 = vmatprep.subr.mxu0 0.0
    %8996 = vmatpush1.msra.mxu0 %v8955
    %8997 = vmatprep.subr.mxu0 0.0
    %8998 = vmatpush1.msra.mxu0 0.0
    %8999 = vmatprep.subr.mxu0 0.0
    %9000 = vmatpush1.msra.mxu0 0.0
    %9001 = vmatprep.subr.mxu0 0.0
    %9002 = vmatpush1.msra.mxu0 0.0
    %9003 = vmatprep.subr.mxu0 0.0
    %9004 = vmatpush1.msra.mxu0 0.0
    %9005 = vmatprep.subr.mxu0 0.0
    %9006 = vmatpush1.msra.mxu0 0.0
    %9007 = vmatprep.subr.mxu0 0.0
    %9008 = vmatpush1.msra.mxu0 0.0
    %9009 = vmatprep.subr.mxu0 0.0
    %9010 = vmatpush1.msra.mxu0 0.0
    %9011 = vmatprep.subr.mxu0 0.0
    %9012 = vmatpush1.msra.mxu0 0.0
    %9013 = vmatprep.subr.mxu0 0.0
    %9014 = vmatpush1.msra.mxu0 0.0
    %9015 = vmatprep.subr.mxu0 0.0
    %9016 = vmatpush1.msra.mxu0 0.0
    %9017 = vmatprep.subr.mxu0 0.0
    %9018 = vmatpush1.msra.mxu0 0.0
    %9019 = vmatprep.subr.mxu0 0.0
    %9020 = vmatpush1.msra.mxu0 0.0
    %9021 = vmatprep.mubr.f32.mxu0 %v8951
    %9022 = vmatmul.mubr.f32.gmra.mrb[0].mxu0 %v8947
    %v9023 = vpop.f32.mrb[0].mxu0
    %v9024 = vadd.f32 0.0, %v9023
    %v9025 = vpop.f32.mrb[0].mxu0
    %9026 = vdwg.mxu0
    %v9027 = vadd.f32 %v8936, %v9024
    %v9029 = vlaneseq
    %v9030 = vshrl.u32 %v9029, 7
    %v9031 = vsub.s32 0, %v9030
    %v9032 = vrot.slane %v8850, %v9031
    %v9034 = vadd.f32 %v9027, %v9032
    %v9035 = vmax.f32 %v9034, 0.0
    %v9037 = vlaneseq
    %v9038 = vshrl.u32 %v9037, 7
    %v9039 = vsub.s32 0, %v9038
    %v9040 = vrot.slane %v8851, %v9039
    %vm9042 = vcmask 523264
    %v9044 = vsel %vm9042, %v9035, 0
    %9046 = vmatprep.subr.mxu0 0.0
    %9047 = vmatpush1.msra.mxu0 %v8826
    %9048 = vmatprep.subr.mxu0 0.0
    %9049 = vmatpush1.msra.mxu0 %v8827
    %9050 = vmatprep.subr.mxu0 0.0
    %9051 = vmatpush1.msra.mxu0 %v8828
    %9052 = vmatprep.subr.mxu0 0.0
    %9053 = vmatpush1.msra.mxu0 %v8829
    %9054 = vmatprep.subr.mxu0 0.0
    %9055 = vmatpush1.msra.mxu0 %v8830
    %9056 = vmatprep.subr.mxu0 0.0
    %9057 = vmatpush1.msra.mxu0 %v8831
    %9058 = vmatprep.subr.mxu0 0.0
    %9059 = vmatpush1.msra.mxu0 %v8832
    %9060 = vmatprep.subr.mxu0 0.0
    %9061 = vmatpush1.msra.mxu0 %v8833
    %9062 = vmatprep.subr.mxu0 0.0
    %9063 = vmatpush1.msra.mxu0 0.0
    %9064 = vmatprep.subr.mxu0 0.0
    %9065 = vmatpush1.msra.mxu0 0.0
    %9066 = vmatprep.subr.mxu0 0.0
    %9067 = vmatpush1.msra.mxu0 0.0
    %9068 = vmatprep.subr.mxu0 0.0
    %9069 = vmatpush1.msra.mxu0 0.0
    %9070 = vmatprep.subr.mxu0 0.0
    %9071 = vmatpush1.msra.mxu0 0.0
    %9072 = vmatprep.subr.mxu0 0.0
    %9073 = vmatpush1.msra.mxu0 0.0
    %9074 = vmatprep.subr.mxu0 0.0
    %9075 = vmatpush1.msra.mxu0 0.0
    %9076 = vmatprep.subr.mxu0 0.0
    %9077 = vmatpush1.msra.mxu0 0.0
    %9078 = vmatprep.subr.mxu0 0.0
    %9079 = vmatpush1.msra.mxu0 0.0
    %9080 = vmatprep.subr.mxu0 0.0
    %9081 = vmatpush1.msra.mxu0 0.0
    %9082 = vmatprep.subr.mxu0 0.0
    %9083 = vmatpush1.msra.mxu0 0.0
    %9084 = vmatprep.subr.mxu0 0.0
    %9085 = vmatpush1.msra.mxu0 0.0
    %9086 = vmatprep.subr.mxu0 0.0
    %9087 = vmatpush1.msra.mxu0 0.0
    %9088 = vmatprep.subr.mxu0 0.0
    %9089 = vmatpush1.msra.mxu0 0.0
    %9090 = vmatprep.subr.mxu0 0.0
    %9091 = vmatpush1.msra.mxu0 0.0
    %9092 = vmatprep.subr.mxu0 0.0
    %9093 = vmatpush1.msra.mxu0 0.0
    %9094 = vmatprep.subr.mxu0 0.0
    %9095 = vmatpush1.msra.mxu0 0.0
    %9096 = vmatprep.subr.mxu0 0.0
    %9097 = vmatpush1.msra.mxu0 0.0
    %9098 = vmatprep.subr.mxu0 0.0
    %9099 = vmatpush1.msra.mxu0 0.0
    %9100 = vmatprep.subr.mxu0 0.0
    %9101 = vmatpush1.msra.mxu0 0.0
    %9102 = vmatprep.subr.mxu0 0.0
    %9103 = vmatpush1.msra.mxu0 0.0
    %9104 = vmatprep.subr.mxu0 0.0
    %9105 = vmatpush1.msra.mxu0 0.0
    %9106 = vmatprep.subr.mxu0 0.0
    %9107 = vmatpush1.msra.mxu0 0.0
    %9108 = vmatprep.subr.mxu0 0.0
    %9109 = vmatpush1.msra.mxu0 0.0
    %9110 = vmatprep.mubr.f32.mxu0 0.0
    %9111 = vmatmul.mubr.f32.gmra.mrb[0].mxu0 %v9044
    %v9112 = vpop.f32.mrb[0].mxu0
    %v9113 = vadd.f32 %v9040, %v9112
    %v9114 = vpop.f32.mrb[0].mxu0
    %9115 = vdwg.mxu0
    %v9116 = vmax.f32 %v9113, 0.0
    %v9118 = vsel %vm9042, %v9116, 0
    %9120 = vmatprep.subr.mxu0 %v8835
    %9121 = vmatpush1.msra.mxu0 %v8834
    %9122 = vmatprep.subr.mxu0 %v8837
    %9123 = vmatpush1.msra.mxu0 %v8836
    %9124 = vmatprep.subr.mxu0 %v8839
    %9125 = vmatpush1.msra.mxu0 %v8838
    %9126 = vmatprep.subr.mxu0 %v8841
    %9127 = vmatpush1.msra.mxu0 %v8840
    %9128 = vmatprep.subr.mxu0 %v8843
    %9129 = vmatpush1.msra.mxu0 %v8842
    %9130 = vmatprep.subr.mxu0 %v8845
    %9131 = vmatpush1.msra.mxu0 %v8844
    %9132 = vmatprep.subr.mxu0 %v8847
    %9133 = vmatpush1.msra.mxu0 %v8846
    %9134 = vmatprep.subr.mxu0 %v8849
    %9135 = vmatpush1.msra.mxu0 %v8848
    %9136 = vmatprep.subr.mxu0 0.0
    %9137 = vmatpush1.msra.mxu0 0.0
    %9138 = vmatprep.subr.mxu0 0.0
    %9139 = vmatpush1.msra.mxu0 0.0
    %9140 = vmatprep.subr.mxu0 0.0
    %9141 = vmatpush1.msra.mxu0 0.0
    %9142 = vmatprep.subr.mxu0 0.0
    %9143 = vmatpush1.msra.mxu0 0.0
    %9144 = vmatprep.subr.mxu0 0.0
    %9145 = vmatpush1.msra.mxu0 0.0
    %9146 = vmatprep.subr.mxu0 0.0
    %9147 = vmatpush1.msra.mxu0 0.0
    %9148 = vmatprep.subr.mxu0 0.0
    %9149 = vmatpush1.msra.mxu0 0.0
    %9150 = vmatprep.subr.mxu0 0.0
    %9151 = vmatpush1.msra.mxu0 0.0
    %9152 = vmatprep.subr.mxu0 0.0
    %9153 = vmatpush1.msra.mxu0 0.0
    %9154 = vmatprep.subr.mxu0 0.0
    %9155 = vmatpush1.msra.mxu0 0.0
    %9156 = vmatprep.subr.mxu0 0.0
    %9157 = vmatpush1.msra.mxu0 0.0
    %9158 = vmatprep.subr.mxu0 0.0
    %9159 = vmatpush1.msra.mxu0 0.0
    %9160 = vmatprep.subr.mxu0 0.0
    %9161 = vmatpush1.msra.mxu0 0.0
    %9162 = vmatprep.subr.mxu0 0.0
    %9163 = vmatpush1.msra.mxu0 0.0
    %9164 = vmatprep.subr.mxu0 0.0
    %9165 = vmatpush1.msra.mxu0 0.0
    %9166 = vmatprep.subr.mxu0 0.0
    %9167 = vmatpush1.msra.mxu0 0.0
    %9168 = vmatprep.subr.mxu0 0.0
    %9169 = vmatpush1.msra.mxu0 0.0
    %9170 = vmatprep.subr.mxu0 0.0
    %9171 = vmatpush1.msra.mxu0 0.0
    %9172 = vmatprep.subr.mxu0 0.0
    %9173 = vmatpush1.msra.mxu0 0.0
    %9174 = vmatprep.subr.mxu0 0.0
    %9175 = vmatpush1.msra.mxu0 0.0
    %9176 = vmatprep.subr.mxu0 0.0
    %9177 = vmatpush1.msra.mxu0 0.0
    %9178 = vmatprep.subr.mxu0 0.0
    %9179 = vmatpush1.msra.mxu0 0.0
    %9180 = vmatprep.subr.mxu0 0.0
    %9181 = vmatpush1.msra.mxu0 0.0
    %9182 = vmatprep.subr.mxu0 0.0
    %9183 = vmatpush1.msra.mxu0 0.0
    %9184 = vmatprep.mubr.f32.mxu0 0.0
    %9185 = vmatmul.mubr.f32.gmra.mrb[0].mxu0 %v9118
    %v9186 = vpop.f32.mrb[0].mxu0
    %v9187 = vadd.f32 0.0, %v9186
    %v9188 = vpop.f32.mrb[0].mxu0
    %v9189 = vadd.f32 0.0, %v9188
    %9190 = vdwg.mxu0
    %v9193 = vcombine.low %v9187, %v9189
    %v9195 = vunpack.c.l.s4 1983009808
    %v9196 = vunpack.c.0.s8 %v9195
    %v9197 = vlaneseq
    %v9198 = vshrl.u32 %v9197, 7
    %v9199 = vsub.s32 %v9196, %v9198
    %v9200 = vrot.slane %v9193, %v9199
    %v9202 = vadd.f32 %v8939, %v9200
    %v9204 = vlaneseq
    %v9205 = vshrl.u32 %v9204, 7
    %v9206 = vsub.s32 0, %v9205
    %v9207 = vrot.slane %v8852, %v9206
    %v9208 = vlaneseq
    %v9209 = vshrl.u32 %v9208, 7
    %v9210 = vsub.s32 1, %v9209
    %v9211 = vrot.slane %v8852, %v9210
    %v9212 = vcombine.low %v9207, %v9211
    %v9214 = vunpack.c.l.s4 1983009808
    %v9215 = vunpack.c.0.s8 %v9214
    %v9216 = vlaneseq
    %v9217 = vshrl.u32 %v9216, 7
    %v9218 = vsub.s32 %v9215, %v9217
    %v9219 = vrot.slane %v9212, %v9218
    %v9221 = vadd.f32 %v9202, %v9219
    %v9224 = vunpack.c.l.s4 1983009808
    %v9225 = vunpack.c.0.s8 %v9224
    %v9226 = vlaneseq
    %v9227 = vshrl.u32 %v9226, 7
    %v9228 = vsub.s32 %v9225, %v9227
    %v9229 = vrot.slane %v9221, %v9228
    %v9230 = vcombine.high %v9229, %v9229
    %v9232 = vsel %vm8950, %v9230, 0
    %9234 = vmatprep.subr.mxu0 0.0
    %9235 = vmatpush1.msra.mxu0 %v8806
    %9236 = vmatprep.subr.mxu0 0.0
    %9237 = vmatpush1.msra.mxu0 %v8807
    %9238 = vmatprep.subr.mxu0 0.0
    %9239 = vmatpush1.msra.mxu0 %v8808
    %9240 = vmatprep.subr.mxu0 0.0
    %9241 = vmatpush1.msra.mxu0 %v8809
    %9242 = vmatprep.subr.mxu0 0.0
    %9243 = vmatpush1.msra.mxu0 %v8810
    %9244 = vmatprep.subr.mxu0 0.0
    %9245 = vmatpush1.msra.mxu0 %v8811
    %9246 = vmatprep.subr.mxu0 0.0
    %9247 = vmatpush1.msra.mxu0 %v8812
    %9248 = vmatprep.subr.mxu0 0.0
    %9249 = vmatpush1.msra.mxu0 %v8813
    %9250 = vmatprep.subr.mxu0 0.0
    %9251 = vmatpush1.msra.mxu0 %v8814
    %9252 = vmatprep.subr.mxu0 0.0
    %9253 = vmatpush1.msra.mxu0 %v8815
    %9254 = vmatprep.subr.mxu0 0.0
    %9255 = vmatpush1.msra.mxu0 %v8816
    %9256 = vmatprep.subr.mxu0 0.0
    %9257 = vmatpush1.msra.mxu0 %v8817
    %9258 = vmatprep.subr.mxu0 0.0
    %9259 = vmatpush1.msra.mxu0 %v8818
    %9260 = vmatprep.subr.mxu0 0.0
    %9261 = vmatpush1.msra.mxu0 %v8819
    %9262 = vmatprep.subr.mxu0 0.0
    %9263 = vmatpush1.msra.mxu0 %v8820
    %9264 = vmatprep.subr.mxu0 0.0
    %9265 = vmatpush1.msra.mxu0 %v8821
    %9266 = vmatprep.subr.mxu0 0.0
    %9267 = vmatpush1.msra.mxu0 %v8822
    %9268 = vmatprep.subr.mxu0 0.0
    %9269 = vmatpush1.msra.mxu0 %v8823
    %9270 = vmatprep.subr.mxu0 0.0
    %9271 = vmatpush1.msra.mxu0 %v8824
    %9272 = vmatprep.subr.mxu0 0.0
    %9273 = vmatpush1.msra.mxu0 %v8955
    %9274 = vmatprep.subr.mxu0 0.0
    %9275 = vmatpush1.msra.mxu0 0.0
    %9276 = vmatprep.subr.mxu0 0.0
    %9277 = vmatpush1.msra.mxu0 0.0
    %9278 = vmatprep.subr.mxu0 0.0
    %9279 = vmatpush1.msra.mxu0 0.0
    %9280 = vmatprep.subr.mxu0 0.0
    %9281 = vmatpush1.msra.mxu0 0.0
    %9282 = vmatprep.subr.mxu0 0.0
    %9283 = vmatpush1.msra.mxu0 0.0
    %9284 = vmatprep.subr.mxu0 0.0
    %9285 = vmatpush1.msra.mxu0 0.0
    %9286 = vmatprep.subr.mxu0 0.0
    %9287 = vmatpush1.msra.mxu0 0.0
    %9288 = vmatprep.subr.mxu0 0.0
    %9289 = vmatpush1.msra.mxu0 0.0
    %9290 = vmatprep.subr.mxu0 0.0
    %9291 = vmatpush1.msra.mxu0 0.0
    %9292 = vmatprep.subr.mxu0 0.0
    %9293 = vmatpush1.msra.mxu0 0.0
    %9294 = vmatprep.subr.mxu0 0.0
    %9295 = vmatpush1.msra.mxu0 0.0
    %9296 = vmatprep.subr.mxu0 0.0
    %9297 = vmatpush1.msra.mxu0 0.0
    %9298 = vmatprep.mubr.f32.mxu0 %v9232
    %9299 = vmatmul.mubr.f32.gmra.mrb[0].mxu0 %v9229
    %v9300 = vpop.f32.mrb[0].mxu0
    %v9301 = vadd.f32 0.0, %v9300
    %v9302 = vpop.f32.mrb[0].mxu0
    %9303 = vdwg.mxu0
    %v9304 = vadd.f32 %v8936, %v9301
    %v9305 = vadd.f32 %v9304, %v9032
    %v9306 = vmax.f32 %v9305, 0.0
    %v9308 = vsel %vm9042, %v9306, 0
    %9310 = vmatprep.subr.mxu0 0.0
    %9311 = vmatpush1.msra.mxu0 %v8826
    %9312 = vmatprep.subr.mxu0 0.0
    %9313 = vmatpush1.msra.mxu0 %v8827
    %9314 = vmatprep.subr.mxu0 0.0
    %9315 = vmatpush1.msra.mxu0 %v8828
    %9316 = vmatprep.subr.mxu0 0.0
    %9317 = vmatpush1.msra.mxu0 %v8829
    %9318 = vmatprep.subr.mxu0 0.0
    %9319 = vmatpush1.msra.mxu0 %v8830
    %9320 = vmatprep.subr.mxu0 0.0
    %9321 = vmatpush1.msra.mxu0 %v8831
    %9322 = vmatprep.subr.mxu0 0.0
    %9323 = vmatpush1.msra.mxu0 %v8832
    %9324 = vmatprep.subr.mxu0 0.0
    %9325 = vmatpush1.msra.mxu0 %v8833
    %9326 = vmatprep.subr.mxu0 0.0
    %9327 = vmatpush1.msra.mxu0 0.0
    %9328 = vmatprep.subr.mxu0 0.0
    %9329 = vmatpush1.msra.mxu0 0.0
    %9330 = vmatprep.subr.mxu0 0.0
    %9331 = vmatpush1.msra.mxu0 0.0
    %9332 = vmatprep.subr.mxu0 0.0
    %9333 = vmatpush1.msra.mxu0 0.0
    %9334 = vmatprep.subr.mxu0 0.0
    %9335 = vmatpush1.msra.mxu0 0.0
    %9336 = vmatprep.subr.mxu0 0.0
    %9337 = vmatpush1.msra.mxu0 0.0
    %9338 = vmatprep.subr.mxu0 0.0
    %9339 = vmatpush1.msra.mxu0 0.0
    %9340 = vmatprep.subr.mxu0 0.0
    %9341 = vmatpush1.msra.mxu0 0.0
    %9342 = vmatprep.subr.mxu0 0.0
    %9343 = vmatpush1.msra.mxu0 0.0
    %9344 = vmatprep.subr.mxu0 0.0
    %9345 = vmatpush1.msra.mxu0 0.0
    %9346 = vmatprep.subr.mxu0 0.0
    %9347 = vmatpush1.msra.mxu0 0.0
    %9348 = vmatprep.subr.mxu0 0.0
    %9349 = vmatpush1.msra.mxu0 0.0
    %9350 = vmatprep.subr.mxu0 0.0
    %9351 = vmatpush1.msra.mxu0 0.0
    %9352 = vmatprep.subr.mxu0 0.0
    %9353 = vmatpush1.msra.mxu0 0.0
    %9354 = vmatprep.subr.mxu0 0.0
    %9355 = vmatpush1.msra.mxu0 0.0
    %9356 = vmatprep.subr.mxu0 0.0
    %9357 = vmatpush1.msra.mxu0 0.0
    %9358 = vmatprep.subr.mxu0 0.0
    %9359 = vmatpush1.msra.mxu0 0.0
    %9360 = vmatprep.subr.mxu0 0.0
    %9361 = vmatpush1.msra.mxu0 0.0
    %9362 = vmatprep.subr.mxu0 0.0
    %9363 = vmatpush1.msra.mxu0 0.0
    %9364 = vmatprep.subr.mxu0 0.0
    %9365 = vmatpush1.msra.mxu0 0.0
    %9366 = vmatprep.subr.mxu0 0.0
    %9367 = vmatpush1.msra.mxu0 0.0
    %9368 = vmatprep.subr.mxu0 0.0
    %9369 = vmatpush1.msra.mxu0 0.0
    %9370 = vmatprep.subr.mxu0 0.0
    %9371 = vmatpush1.msra.mxu0 0.0
    %9372 = vmatprep.subr.mxu0 0.0
    %9373 = vmatpush1.msra.mxu0 0.0
    %9374 = vmatprep.mubr.f32.mxu0 0.0
    %9375 = vmatmul.mubr.f32.gmra.mrb[0].mxu0 %v9308
    %v9376 = vpop.f32.mrb[0].mxu0
    %v9377 = vadd.f32 %v9040, %v9376
    %v9378 = vpop.f32.mrb[0].mxu0
    %9379 = vdwg.mxu0
    %v9380 = vmax.f32 %v9377, 0.0
    %v9382 = vsel %vm9042, %v9380, 0
    %9384 = vmatprep.subr.mxu0 %v8835
    %9385 = vmatpush1.msra.mxu0 %v8834
    %9386 = vmatprep.subr.mxu0 %v8837
    %9387 = vmatpush1.msra.mxu0 %v8836
    %9388 = vmatprep.subr.mxu0 %v8839
    %9389 = vmatpush1.msra.mxu0 %v8838
    %9390 = vmatprep.subr.mxu0 %v8841
    %9391 = vmatpush1.msra.mxu0 %v8840
    %9392 = vmatprep.subr.mxu0 %v8843
    %9393 = vmatpush1.msra.mxu0 %v8842
    %9394 = vmatprep.subr.mxu0 %v8845
    %9395 = vmatpush1.msra.mxu0 %v8844
    %9396 = vmatprep.subr.mxu0 %v8847
    %9397 = vmatpush1.msra.mxu0 %v8846
    %9398 = vmatprep.subr.mxu0 %v8849
    %9399 = vmatpush1.msra.mxu0 %v8848
    %9400 = vmatprep.subr.mxu0 0.0
    %9401 = vmatpush1.msra.mxu0 0.0
    %9402 = vmatprep.subr.mxu0 0.0
    %9403 = vmatpush1.msra.mxu0 0.0
    %9404 = vmatprep.subr.mxu0 0.0
    %9405 = vmatpush1.msra.mxu0 0.0
    %9406 = vmatprep.subr.mxu0 0.0
    %9407 = vmatpush1.msra.mxu0 0.0
    %9408 = vmatprep.subr.mxu0 0.0
    %9409 = vmatpush1.msra.mxu0 0.0
    %9410 = vmatprep.subr.mxu0 0.0
    %9411 = vmatpush1.msra.mxu0 0.0
    %9412 = vmatprep.subr.mxu0 0.0
    %9413 = vmatpush1.msra.mxu0 0.0
    %9414 = vmatprep.subr.mxu0 0.0
    %9415 = vmatpush1.msra.mxu0 0.0
    %9416 = vmatprep.subr.mxu0 0.0
    %9417 = vmatpush1.msra.mxu0 0.0
    %9418 = vmatprep.subr.mxu0 0.0
    %9419 = vmatpush1.msra.mxu0 0.0
    %9420 = vmatprep.subr.mxu0 0.0
    %9421 = vmatpush1.msra.mxu0 0.0
    %9422 = vmatprep.subr.mxu0 0.0
    %9423 = vmatpush1.msra.mxu0 0.0
    %9424 = vmatprep.subr.mxu0 0.0
    %9425 = vmatpush1.msra.mxu0 0.0
    %9426 = vmatprep.subr.mxu0 0.0
    %9427 = vmatpush1.msra.mxu0 0.0
    %9428 = vmatprep.subr.mxu0 0.0
    %9429 = vmatpush1.msra.mxu0 0.0
    %9430 = vmatprep.subr.mxu0 0.0
    %9431 = vmatpush1.msra.mxu0 0.0
    %9432 = vmatprep.subr.mxu0 0.0
    %9433 = vmatpush1.msra.mxu0 0.0
    %9434 = vmatprep.subr.mxu0 0.0
    %9435 = vmatpush1.msra.mxu0 0.0
    %9436 = vmatprep.subr.mxu0 0.0
    %9437 = vmatpush1.msra.mxu0 0.0
    %9438 = vmatprep.subr.mxu0 0.0
    %9439 = vmatpush1.msra.mxu0 0.0
    %9440 = vmatprep.subr.mxu0 0.0
    %9441 = vmatpush1.msra.mxu0 0.0
    %9442 = vmatprep.subr.mxu0 0.0
    %9443 = vmatpush1.msra.mxu0 0.0
    %9444 = vmatprep.subr.mxu0 0.0
    %9445 = vmatpush1.msra.mxu0 0.0
    %9446 = vmatprep.subr.mxu0 0.0
    %9447 = vmatpush1.msra.mxu0 0.0
    %9448 = vmatprep.mubr.f32.mxu0 0.0
    %9449 = vmatmul.mubr.f32.gmra.mrb[0].mxu0 %v9382
    %v9450 = vpop.f32.mrb[0].mxu0
    %v9451 = vadd.f32 0.0, %v9450
    %v9452 = vpop.f32.mrb[0].mxu0
    %v9453 = vadd.f32 0.0, %v9452
    %9454 = vdwg.mxu0
    %v9457 = vcombine.low %v9451, %v9453
    %v9459 = vunpack.c.l.s4 1983009808
    %v9460 = vunpack.c.0.s8 %v9459
    %v9461 = vlaneseq
    %v9462 = vshrl.u32 %v9461, 7
    %v9463 = vsub.s32 %v9460, %v9462
    %v9464 = vrot.slane %v9457, %v9463
    %v9466 = vadd.f32 %v9221, %v9464
    %v9467 = vadd.f32 %v9466, %v9219
    %v9470 = vunpack.c.l.s4 1983009808
    %v9471 = vunpack.c.0.s8 %v9470
    %v9472 = vlaneseq
    %v9473 = vshrl.u32 %v9472, 7
    %v9474 = vsub.s32 %v9471, %v9473
    %v9475 = vrot.slane %v9467, %v9474
    %v9476 = vcombine.high %v9475, %v9475
    %v9478 = vsel %vm8950, %v9476, 0
    %9480 = vmatprep.subr.mxu0 0.0
    %9481 = vmatpush1.msra.mxu0 %v8806
    %9482 = vmatprep.subr.mxu0 0.0
    %9483 = vmatpush1.msra.mxu0 %v8807
    %9484 = vmatprep.subr.mxu0 0.0
    %9485 = vmatpush1.msra.mxu0 %v8808
    %9486 = vmatprep.subr.mxu0 0.0
    %9487 = vmatpush1.msra.mxu0 %v8809
    %9488 = vmatprep.subr.mxu0 0.0
    %9489 = vmatpush1.msra.mxu0 %v8810
    %9490 = vmatprep.subr.mxu0 0.0
    %9491 = vmatpush1.msra.mxu0 %v8811
    %9492 = vmatprep.subr.mxu0 0.0
    %9493 = vmatpush1.msra.mxu0 %v8812
    %9494 = vmatprep.subr.mxu0 0.0
    %9495 = vmatpush1.msra.mxu0 %v8813
    %9496 = vmatprep.subr.mxu0 0.0
    %9497 = vmatpush1.msra.mxu0 %v8814
    %9498 = vmatprep.subr.mxu0 0.0
    %9499 = vmatpush1.msra.mxu0 %v8815
    %9500 = vmatprep.subr.mxu0 0.0
    %9501 = vmatpush1.msra.mxu0 %v8816
    %9502 = vmatprep.subr.mxu0 0.0
    %9503 = vmatpush1.msra.mxu0 %v8817
    %9504 = vmatprep.subr.mxu0 0.0
    %9505 = vmatpush1.msra.mxu0 %v8818
    %9506 = vmatprep.subr.mxu0 0.0
    %9507 = vmatpush1.msra.mxu0 %v8819
    %9508 = vmatprep.subr.mxu0 0.0
    %9509 = vmatpush1.msra.mxu0 %v8820
    %9510 = vmatprep.subr.mxu0 0.0
    %9511 = vmatpush1.msra.mxu0 %v8821
    %9512 = vmatprep.subr.mxu0 0.0
    %9513 = vmatpush1.msra.mxu0 %v8822
    %9514 = vmatprep.subr.mxu0 0.0
    %9515 = vmatpush1.msra.mxu0 %v8823
    %9516 = vmatprep.subr.mxu0 0.0
    %9517 = vmatpush1.msra.mxu0 %v8824
    %9518 = vmatprep.subr.mxu0 0.0
    %9519 = vmatpush1.msra.mxu0 %v8955
    %9520 = vmatprep.subr.mxu0 0.0
    %9521 = vmatpush1.msra.mxu0 0.0
    %9522 = vmatprep.subr.mxu0 0.0
    %9523 = vmatpush1.msra.mxu0 0.0
    %9524 = vmatprep.subr.mxu0 0.0
    %9525 = vmatpush1.msra.mxu0 0.0
    %9526 = vmatprep.subr.mxu0 0.0
    %9527 = vmatpush1.msra.mxu0 0.0
    %9528 = vmatprep.subr.mxu0 0.0
    %9529 = vmatpush1.msra.mxu0 0.0
    %9530 = vmatprep.subr.mxu0 0.0
    %9531 = vmatpush1.msra.mxu0 0.0
    %9532 = vmatprep.subr.mxu0 0.0
    %9533 = vmatpush1.msra.mxu0 0.0
    %9534 = vmatprep.subr.mxu0 0.0
    %9535 = vmatpush1.msra.mxu0 0.0
    %9536 = vmatprep.subr.mxu0 0.0
    %9537 = vmatpush1.msra.mxu0 0.0
    %9538 = vmatprep.subr.mxu0 0.0
    %9539 = vmatpush1.msra.mxu0 0.0
    %9540 = vmatprep.subr.mxu0 0.0
    %9541 = vmatpush1.msra.mxu0 0.0
    %9542 = vmatprep.subr.mxu0 0.0
    %9543 = vmatpush1.msra.mxu0 0.0
    %9544 = vmatprep.mubr.f32.mxu0 %v9478
    %9545 = vmatmul.mubr.f32.gmra.mrb[0].mxu0 %v9475
    %v9546 = vpop.f32.mrb[0].mxu0
    %v9547 = vadd.f32 0.0, %v9546
    %v9548 = vpop.f32.mrb[0].mxu0
    %9549 = vdwg.mxu0
    %v9550 = vadd.f32 %v8936, %v9547
    %v9551 = vadd.f32 %v9550, %v9032
    %v9552 = vmax.f32 %v9551, 0.0
    %v9554 = vsel %vm9042, %v9552, 0
    %9556 = vmatprep.subr.mxu0 0.0
    %9557 = vmatpush1.msra.mxu0 %v8826
    %9558 = vmatprep.subr.mxu0 0.0
    %9559 = vmatpush1.msra.mxu0 %v8827
    %9560 = vmatprep.subr.mxu0 0.0
    %9561 = vmatpush1.msra.mxu0 %v8828
    %9562 = vmatprep.subr.mxu0 0.0
    %9563 = vmatpush1.msra.mxu0 %v8829
    %9564 = vmatprep.subr.mxu0 0.0
    %9565 = vmatpush1.msra.mxu0 %v8830
    %9566 = vmatprep.subr.mxu0 0.0
    %9567 = vmatpush1.msra.mxu0 %v8831
    %9568 = vmatprep.subr.mxu0 0.0
    %9569 = vmatpush1.msra.mxu0 %v8832
    %9570 = vmatprep.subr.mxu0 0.0
    %9571 = vmatpush1.msra.mxu0 %v8833
    %9572 = vmatprep.subr.mxu0 0.0
    %9573 = vmatpush1.msra.mxu0 0.0
    %9574 = vmatprep.subr.mxu0 0.0
    %9575 = vmatpush1.msra.mxu0 0.0
    %9576 = vmatprep.subr.mxu0 0.0
    %9577 = vmatpush1.msra.mxu0 0.0
    %9578 = vmatprep.subr.mxu0 0.0
    %9579 = vmatpush1.msra.mxu0 0.0
    %9580 = vmatprep.subr.mxu0 0.0
    %9581 = vmatpush1.msra.mxu0 0.0
    %9582 = vmatprep.subr.mxu0 0.0
    %9583 = vmatpush1.msra.mxu0 0.0
    %9584 = vmatprep.subr.mxu0 0.0
    %9585 = vmatpush1.msra.mxu0 0.0
    %9586 = vmatprep.subr.mxu0 0.0
    %9587 = vmatpush1.msra.mxu0 0.0
    %9588 = vmatprep.subr.mxu0 0.0
    %9589 = vmatpush1.msra.mxu0 0.0
    %9590 = vmatprep.subr.mxu0 0.0
    %9591 = vmatpush1.msra.mxu0 0.0
    %9592 = vmatprep.subr.mxu0 0.0
    %9593 = vmatpush1.msra.mxu0 0.0
    %9594 = vmatprep.subr.mxu0 0.0
    %9595 = vmatpush1.msra.mxu0 0.0
    %9596 = vmatprep.subr.mxu0 0.0
    %9597 = vmatpush1.msra.mxu0 0.0
    %9598 = vmatprep.subr.mxu0 0.0
    %9599 = vmatpush1.msra.mxu0 0.0
    %9600 = vmatprep.subr.mxu0 0.0
    %9601 = vmatpush1.msra.mxu0 0.0
    %9602 = vmatprep.subr.mxu0 0.0
    %9603 = vmatpush1.msra.mxu0 0.0
    %9604 = vmatprep.subr.mxu0 0.0
    %9605 = vmatpush1.msra.mxu0 0.0
    %9606 = vmatprep.subr.mxu0 0.0
    %9607 = vmatpush1.msra.mxu0 0.0
    %9608 = vmatprep.subr.mxu0 0.0
    %9609 = vmatpush1.msra.mxu0 0.0
    %9610 = vmatprep.subr.mxu0 0.0
    %9611 = vmatpush1.msra.mxu0 0.0
    %9612 = vmatprep.subr.mxu0 0.0
    %9613 = vmatpush1.msra.mxu0 0.0
    %9614 = vmatprep.subr.mxu0 0.0
    %9615 = vmatpush1.msra.mxu0 0.0
    %9616 = vmatprep.subr.mxu0 0.0
    %9617 = vmatpush1.msra.mxu0 0.0
    %9618 = vmatprep.subr.mxu0 0.0
    %9619 = vmatpush1.msra.mxu0 0.0
    %9620 = vmatprep.mubr.f32.mxu0 0.0
    %9621 = vmatmul.mubr.f32.gmra.mrb[0].mxu0 %v9554
    %v9622 = vpop.f32.mrb[0].mxu0
    %v9623 = vadd.f32 %v9040, %v9622
    %v9624 = vpop.f32.mrb[0].mxu0
    %9625 = vdwg.mxu0
    %v9626 = vmax.f32 %v9623, 0.0
    %v9628 = vsel %vm9042, %v9626, 0
    %9630 = vmatprep.subr.mxu0 %v8835
    %9631 = vmatpush1.msra.mxu0 %v8834
    %9632 = vmatprep.subr.mxu0 %v8837
    %9633 = vmatpush1.msra.mxu0 %v8836
    %9634 = vmatprep.subr.mxu0 %v8839
    %9635 = vmatpush1.msra.mxu0 %v8838
    %9636 = vmatprep.subr.mxu0 %v8841
    %9637 = vmatpush1.msra.mxu0 %v8840
    %9638 = vmatprep.subr.mxu0 %v8843
    %9639 = vmatpush1.msra.mxu0 %v8842
    %9640 = vmatprep.subr.mxu0 %v8845
    %9641 = vmatpush1.msra.mxu0 %v8844
    %9642 = vmatprep.subr.mxu0 %v8847
    %9643 = vmatpush1.msra.mxu0 %v8846
    %9644 = vmatprep.subr.mxu0 %v8849
    %9645 = vmatpush1.msra.mxu0 %v8848
    %9646 = vmatprep.subr.mxu0 0.0
    %9647 = vmatpush1.msra.mxu0 0.0
    %9648 = vmatprep.subr.mxu0 0.0
    %9649 = vmatpush1.msra.mxu0 0.0
    %9650 = vmatprep.subr.mxu0 0.0
    %9651 = vmatpush1.msra.mxu0 0.0
    %9652 = vmatprep.subr.mxu0 0.0
    %9653 = vmatpush1.msra.mxu0 0.0
    %9654 = vmatprep.subr.mxu0 0.0
    %9655 = vmatpush1.msra.mxu0 0.0
    %9656 = vmatprep.subr.mxu0 0.0
    %9657 = vmatpush1.msra.mxu0 0.0
    %9658 = vmatprep.subr.mxu0 0.0
    %9659 = vmatpush1.msra.mxu0 0.0
    %9660 = vmatprep.subr.mxu0 0.0
    %9661 = vmatpush1.msra.mxu0 0.0
    %9662 = vmatprep.subr.mxu0 0.0
    %9663 = vmatpush1.msra.mxu0 0.0
    %9664 = vmatprep.subr.mxu0 0.0
    %9665 = vmatpush1.msra.mxu0 0.0
    %9666 = vmatprep.subr.mxu0 0.0
    %9667 = vmatpush1.msra.mxu0 0.0
    %9668 = vmatprep.subr.mxu0 0.0
    %9669 = vmatpush1.msra.mxu0 0.0
    %9670 = vmatprep.subr.mxu0 0.0
    %9671 = vmatpush1.msra.mxu0 0.0
    %9672 = vmatprep.subr.mxu0 0.0
    %9673 = vmatpush1.msra.mxu0 0.0
    %9674 = vmatprep.subr.mxu0 0.0
    %9675 = vmatpush1.msra.mxu0 0.0
    %9676 = vmatprep.subr.mxu0 0.0
    %9677 = vmatpush1.msra.mxu0 0.0
    %9678 = vmatprep.subr.mxu0 0.0
    %9679 = vmatpush1.msra.mxu0 0.0
    %9680 = vmatprep.subr.mxu0 0.0
    %9681 = vmatpush1.msra.mxu0 0.0
    %9682 = vmatprep.subr.mxu0 0.0
    %9683 = vmatpush1.msra.mxu0 0.0
    %9684 = vmatprep.subr.mxu0 0.0
    %9685 = vmatpush1.msra.mxu0 0.0
    %9686 = vmatprep.subr.mxu0 0.0
    %9687 = vmatpush1.msra.mxu0 0.0
    %9688 = vmatprep.subr.mxu0 0.0
    %9689 = vmatpush1.msra.mxu0 0.0
    %9690 = vmatprep.subr.mxu0 0.0
    %9691 = vmatpush1.msra.mxu0 0.0
    %9692 = vmatprep.subr.mxu0 0.0
    %9693 = vmatpush1.msra.mxu0 0.0
    %9694 = vmatprep.mubr.f32.mxu0 0.0
    %9695 = vmatmul.mubr.f32.gmra.mrb[0].mxu0 %v9628
    %v9696 = vpop.f32.mrb[0].mxu0
    %v9697 = vadd.f32 0.0, %v9696
    %v9698 = vpop.f32.mrb[0].mxu0
    %v9699 = vadd.f32 0.0, %v9698
    %9700 = vdwg.mxu0
    %v9703 = vcombine.low %v9697, %v9699
    %v9705 = vunpack.c.l.s4 1983009808
    %v9706 = vunpack.c.0.s8 %v9705
    %v9707 = vlaneseq
    %v9708 = vshrl.u32 %v9707, 7
    %v9709 = vsub.s32 %v9706, %v9708
    %v9710 = vrot.slane %v9703, %v9709
    %v9712 = vadd.f32 %v9467, %v9710
    %v9713 = vadd.f32 %v9712, %v9219
    %vm9714 = vcmask 1041408
    %vm9715 = vcmask 232450
    %vm9716 = vmor %vm9715, %vm9714
    %9717 = vst.msk [vmem:[%s17] sm:$0xf] %vm9716, %v9713
    // Predicated region
    $region98: #{smpl_head_forward.1} parent=1 // pred_check
      _
    $region99: #{smpl_head_forward.1} parent=1 // pred_check_branch
      %9719 = sbr.rel (0) target = $region101
    $region100: #{smpl_head_forward.1} parent=1 // pred_region
      _
    $region101: #{smpl_head_forward.1} parent=1 // pred_fallthru
      _
    // Predicated region
    $region102: #{smpl_head_forward.1} parent=1 // pred_check
      _
    $region103: #{smpl_head_forward.1} parent=1 // pred_check_branch
      %9721 = sbr.rel (0) target = $region105
    $region104: #{smpl_head_forward.1} parent=1 // pred_region
      _
    $region105: #{smpl_head_forward.1} parent=1 // pred_fallthru
      _
    %9722 = vsyncpa [#allocation6], 1
    %9723 = vsyncpa [#allocation8], 1
    %9724 = vsyncpa [#allocation11], 1
    %9725 = vsyncpa [#allocation14], 1

</llo_original>
